<compile_context>
chip_gen: v7x
topology: tpu7x:2x2x1
jax: 0.10.0
libtpu: 0.0.40
codegen_flags: <defaults>
</compile_context>

<pallas_src>
import functools

import jax
import jax.numpy as jnp
from jax.experimental import pallas as pl
from jax.experimental.pallas import tpu as pltpu

EPS = 1e-5          # BatchNorm eps (PyTorch default), eval-mode running stats
LANE = 128          # channels are zero-padded to a multiple of the lane width
TM = 512            # flattened output-position rows per tile (power of two)


def _round_up(x, m):
    return (x + m - 1) // m * m


# ------------------------------ Pallas kernel -------------------------------

def _conv_gemm_kernel(*refs, tap_offsets, tm, relu, shortcut_mode):
    """Implicit-GEMM 3x3 conv + folded BatchNorm (+ fused shortcut) (+ ReLU).

    The im2col matrix is never materialized: block i of the flattened padded
    activation plus a small halo block are assembled into a bf16 VMEM window
    with two aligned stores; each of the nine kernel taps is a static-offset
    (TM, K) slice of that window, accumulated on the MXU into one f32 value
    that is written to the output exactly once.

      a_ref    : (TM, K)      bf16  activation row block i
      h_ref    : (HALO, K)    bf16  halo rows following block i
      b_ref    : (9, K, TN)   bf16  BN-scale-folded weight taps
      sa_ref   : shortcut activation ((TM, Ks) matmul-mode / (TM, TN) add-mode)
      sb_ref   : (Ks, TN)     bf16  folded 1x1 shortcut weights (matmul-mode)
      shift_ref: (1, TN)      f32   folded conv-bias + BN shift
      o_ref    : (TM, TN)           output tile
      win_ref  : (TM+HALO, K) bf16  VMEM scratch (assembled halo window)
    """
    if shortcut_mode == "matmul":
        a_ref, h_ref, b_ref, sa_ref, sb_ref, shift_ref, o_ref, win_ref = refs
    elif shortcut_mode == "add":
        a_ref, h_ref, b_ref, sa_ref, shift_ref, o_ref, win_ref = refs
    else:
        a_ref, h_ref, b_ref, shift_ref, o_ref, win_ref = refs

    # Assemble the bf16 window (two aligned stores, no concatenate, no casts).
    win_ref[0:tm, :] = a_ref[...]
    win_ref[tm:, :] = h_ref[...]

    # Nine MXU dots accumulated in a single f32 value (one output write).
    acc = jnp.dot(win_ref[0:tm, :], b_ref[0],
                  preferred_element_type=jnp.float32)
    for t in range(1, 9):
        off = tap_offsets[t]
        acc = acc + jnp.dot(win_ref[off:off + tm, :], b_ref[t],
                            preferred_element_type=jnp.float32)

    if shortcut_mode == "matmul":
        # 1x1-conv+BN downsample fused as an extra K segment of the same GEMM.
        acc = acc + jnp.dot(sa_ref[...], sb_ref[...],
                            preferred_element_type=jnp.float32)

    out = acc + shift_ref[...]                 # folded conv bias + BN shift
    if shortcut_mode == "add":
        out = out + sa_ref[...].astype(jnp.float32)   # identity residual
    if relu:
        out = jnp.maximum(out, 0.0)
    o_ref[...] = out.astype(o_ref.dtype)


# ------------------------------ kernel wrappers ------------------------------

def _fold_bn(p, cout_pad):
    """Fold eval-mode BatchNorm (+ conv bias) into the conv weights.

    Returns (w_folded, shift) with  conv(x, w_folded) + shift == BN(conv(x,w)+b).
    w_folded: (kh, kw, cin, cout_pad), shift: (cout_pad,), both f32.
    """
    w = p["w"].astype(jnp.float32)                        # (cout, cin, kh, kw)
    cout = w.shape[0]
    s = p["gamma"] / jnp.sqrt(p["var"] + EPS)             # (cout,)
    shift = p["beta"] + s * (p["b"] - p["mean"])          # (cout,)
    w_f = jnp.transpose(w, (2, 3, 1, 0)) * s              # (kh, kw, cin, cout)
    w_f = jnp.pad(w_f, ((0, 0), (0, 0), (0, 0), (0, cout_pad - cout)))
    shift = jnp.pad(shift, (0, cout_pad - cout))
    return w_f, shift


def conv3x3_bn(x, p, stride, relu, shortcut=None, out_dtype=jnp.bfloat16):
    """3x3 conv (pad=1) + folded BN (+ fused shortcut) (+ ReLU) as implicit GEMM.

    x: (N, H, W, Cin_pad) bf16, channels already zero-padded to a LANE multiple.
    shortcut (stride == 1 only):
      {"a": act, "b": 1x1 weights, "shift": shift}  -> fused downsample GEMM
      {"a": act}                                    -> identity residual (epilogue add)
    Returns (N, Ho, Wo, Cout_pad) in out_dtype.
    """
    n, h, w_sp, cin_pad = x.shape
    cout, cin = p["w"].shape[0], p["w"].shape[1]
    cout_pad = _round_up(cout, LANE)

    hp, wp = h + 2, w_sp + 2
    ho = (h - 1) // stride + 1                    # == (h + 2*pad - 3)//stride + 1
    wo = (w_sp - 1) // stride + 1
    tap_offsets = tuple(dy * wp + dx for dy in range(3) for dx in range(3))

    # Smallest power-of-two halo block covering the 3x3 footprint (2*wp+2 rows);
    # a power of two (>=16 for bf16 sublane packing) always divides TM.
    halo = max(16, pl.next_power_of_2(tap_offsets[-1]))
    assert halo <= TM, "raise TM: the 3x3 halo must fit in one halo block"

    # TN=256 feeds the 256x256 MXU of v6e/v7x when channels allow; 128
    # otherwise (and already ideal for v5e's 128x128 MXU tiles).
    tn = 256 if cout_pad % 256 == 0 else 128

    # BN-scale-folded weights (9, Cin_pad, Cout_pad) bf16; K is not gridded
    # (nk == 1), so no accumulator scratch and no init/finalize predication.
    w_f, shift = _fold_bn(p, cout_pad)
    w_f = jnp.pad(w_f, ((0, 0), (0, 0), (0, cin_pad - cin), (0, 0)))
    b_taps = w_f.reshape(9, cin_pad, cout_pad).astype(jnp.bfloat16)
    shift = shift.reshape(1, cout_pad)

    # Flattened zero-padded activation; `halo` extra rows cover the last tile.
    m = n * hp * wp
    nm = pl.cdiv(m, TM)
    xf = jnp.pad(x, ((0, 0), (1, 1), (1, 1), (0, 0))).reshape(m, cin_pad)
    xf = jnp.pad(xf, ((0, nm * TM + halo - m), (0, 0)))

    nn_ = cout_pad // tn
    in_specs = [
        pl.BlockSpec((TM, cin_pad), lambda j, i: (i, 0)),              # block i
        pl.BlockSpec((halo, cin_pad),
                     lambda j, i: ((i + 1) * (TM // halo), 0)),        # halo
        pl.BlockSpec((9, cin_pad, tn), lambda j, i: (0, 0, j)),        # weights
    ]
    args = [xf, xf, b_taps]

    shortcut_mode = "none"
    if shortcut is not None:
        assert stride == 1
        cs_pad = shortcut["a"].shape[-1]
        sa = jnp.pad(shortcut["a"], ((0, 0), (0, 2), (0, 2), (0, 0)))
        sa = jnp.pad(sa.reshape(m, cs_pad), ((0, nm * TM - m), (0, 0)))
        if "b" in shortcut:                                # 1x1 conv + BN
            shortcut_mode = "matmul"
            in_specs += [pl.BlockSpec((TM, cs_pad), lambda j, i: (i, 0)),
                         pl.BlockSpec((cs_pad, tn), lambda j, i: (0, j))]
            args += [sa, shortcut["b"]]
            shift = shift + shortcut["shift"].reshape(1, cout_pad)
        else:                                              # identity residual
            shortcut_mode = "add"
            assert cs_pad == cout_pad
            in_specs.append(pl.BlockSpec((TM, tn), lambda j, i: (i, j)))
            args.append(sa)

    in_specs.append(pl.BlockSpec((1, tn), lambda j, i: (0, j)))
    args.append(shift.astype(jnp.float32))

    kernel = functools.partial(_conv_gemm_kernel, tap_offsets=tap_offsets,
                               tm=TM, relu=relu, shortcut_mode=shortcut_mode)
    out_flat = pl.pallas_call(
        kernel,
        out_shape=jax.ShapeDtypeStruct((nm * TM, cout_pad), out_dtype),
        grid_spec=pltpu.PrefetchScalarGridSpec(
            num_scalar_prefetch=0,
            grid=(nn_, nm),                     # weight-stationary over M axis
            in_specs=in_specs,
            out_specs=pl.BlockSpec((TM, tn), lambda j, i: (i, j)),
            scratch_shapes=[pltpu.VMEM((TM + halo, cin_pad), jnp.bfloat16)],
        ),
        compiler_params=pltpu.CompilerParams(
            dimension_semantics=("parallel", "parallel"),
            vmem_limit_bytes=32 * 1024 * 1024,
        ),
    )(*args)

    # Keep valid output positions (3x3 top-left corners), subsampled by stride.
    # TODO(synk): phase-decompose stride-2 convs to remove the s^2 overcompute.
    y = out_flat[:m].reshape(n, hp, wp, cout_pad)
    return jax.lax.slice(
        y, (0, 0, 0, 0),
        (n, (ho - 1) * stride + 1, (wo - 1) * stride + 1, cout_pad),
        (1, stride, stride, 1))


def residual_block_forward(params, x_nchw, stride):
    """Pallas forward of ResidualBlock (eval-mode BatchNorm). NCHW in / out."""
    x = jnp.transpose(x_nchw, (0, 2, 3, 1))                           # NHWC
    n, h, w_sp, cin = x.shape
    cout = params["conv1"]["w"].shape[0]
    cin_pad, cout_pad = _round_up(cin, LANE), _round_up(cout, LANE)

    # One pad+cast pass: lane-dense (128-multiple) channels, bf16 MXU inputs.
    x_p = jnp.pad(x, ((0, 0), (0, 0), (0, 0),
                      (0, cin_pad - cin))).astype(jnp.bfloat16)

    # conv1 -> bn1 -> relu   (bf16 output feeds the conv2 GEMM directly)
    h1 = conv3x3_bn(x_p, params["conv1"], stride=stride, relu=True,
                    out_dtype=jnp.bfloat16)
    ho, wo = h1.shape[1], h1.shape[2]

    # Shortcut branch: 1x1-conv+BN downsample fused into the conv2 GEMM as an
    # extra K segment; identity residual added in the conv2 epilogue.
    if stride != 1 or cin != cout:
        wd, td = _fold_bn(params["downsample"], cout_pad)   # (1,1,cin,cout_pad)
        wd = jnp.pad(wd[0, 0], ((0, cin_pad - cin), (0, 0)))
        sa = jax.lax.slice(                                  # x at output positions
            x_p, (0, 0, 0, 0),
            (n, (ho - 1) * stride + 1, (wo - 1) * stride + 1, cin_pad),
            (1, stride, stride, 1))
        shortcut = {"a": sa, "b": wd.astype(jnp.bfloat16), "shift": td}
    else:
        shortcut = {"a": x_p}                                # identity residual

    # conv2 -> bn2 -> (+= shortcut) -> relu, all in one fused Pallas GEMM.
    y = conv3x3_bn(h1, params["conv2"], stride=1, relu=True,
                   shortcut=shortcut, out_dtype=jnp.float32)

    return jnp.transpose(y[..., :cout], (0, 3, 1, 2))                 # NCHW


# ------------------------------ params / reference ---------------------------

def conv_bn_params(key, cin, cout, k):
    kw_, kb, kg, kbe, km, kv = jax.random.split(key, 6)
    return {
        "w": jax.random.normal(kw_, (cout, cin, k, k), jnp.float32)
             * (cin * k * k) ** -0.5,
        "b": 0.1 * jax.random.normal(kb, (cout,), jnp.float32),
        "gamma": 1.0 + 0.1 * jax.random.normal(kg, (cout,), jnp.float32),
        "beta": 0.1 * jax.random.normal(kbe, (cout,), jnp.float32),
        "mean": 0.1 * jax.random.normal(km, (cout,), jnp.float32),
        "var": 0.5 + jnp.abs(jax.random.normal(kv, (cout,), jnp.float32)),
    }


def _ref_conv_bn(x, p, stride, pad):
    y = jax.lax.conv_general_dilated(
        x, p["w"], (stride, stride), [(pad, pad), (pad, pad)],
        dimension_numbers=("NCHW", "OIHW", "NCHW"))
    y = y + p["b"][None, :, None, None]
    s = p["gamma"] / jnp.sqrt(p["var"] + EPS)
    return (s[None, :, None, None] * (y - p["mean"][None, :, None, None])
            + p["beta"][None, :, None, None])


def residual_block_reference(params, x, stride):
    h = jax.nn.relu(_ref_conv_bn(x, params["conv1"], stride, 1))
    h = _ref_conv_bn(h, params["conv2"], 1, 1)
    sc = (_ref_conv_bn(x, params["downsample"], stride, 0)
          if "downsample" in params else x)
    return jax.nn.relu(h + sc)


if __name__ == "__main__":
    configs = [  # (cin, cout, stride, H, W)
        (16, 32, 1, 16, 16),   # channel-change downsample (1x1 conv + BN)
        (16, 32, 2, 16, 16),   # strided downsample block
        (32, 32, 1, 16, 16),   # identity shortcut
    ]
    keys = jax.random.split(jax.random.PRNGKey(0), len(configs))
    for cfg_i, (cin, cout, stride, h, w) in enumerate(configs):
        k1, k2, kd, kx = jax.random.split(keys[cfg_i], 4)
        params = {"conv1": conv_bn_params(k1, cin, cout, 3),
                  "conv2": conv_bn_params(k2, cout, cout, 3)}
        if stride != 1 or cin != cout:
            params["downsample"] = conv_bn_params(kd, cin, cout, 1)
        x = jax.random.normal(kx, (2, cin, h, w), jnp.float32)        # NCHW

        fwd = jax.jit(functools.partial(residual_block_forward, stride=stride))
        out = jax.block_until_ready(fwd(params, x))
        ref = residual_block_reference(params, x, stride)

        assert out.shape == ref.shape, (out.shape, ref.shape)
        assert bool(jnp.all(jnp.isfinite(out)))
        assert bool(jnp.allclose(out, ref, rtol=3e-2, atol=3e-2)), (
            f"config {cfg_i}: max abs err "
            f"{float(jnp.max(jnp.abs(out - ref)))}")
    print("KERNEL_OK")
</pallas_src>

<mosaic_0001>
module attributes {stable_mosaic.version = 11 : i64} {
  func.func @_conv_gemm_kernel(%arg0: i32, %arg1: i32, %arg2: memref<512x128xbf16, #tpu.memory_space<vmem>>, %arg3: memref<64x128xbf16, #tpu.memory_space<vmem>>, %arg4: memref<9x128x128xbf16, #tpu.memory_space<vmem>>, %arg5: memref<1x128xf32, #tpu.memory_space<vmem>>, %arg6: memref<512x128xbf16, #tpu.memory_space<vmem>>, %arg7: memref<576x128xbf16, #tpu.memory_space<vmem>>) attributes {dimension_semantics = [#tpu.dimension_semantics<parallel>, #tpu.dimension_semantics<parallel>], iteration_bounds = array<i64: 1, 2>, scalar_prefetch = 0 : i64, scratch_operands = 1 : i64, tpu.core_type = #tpu.core_type<tc>, window_params = [{transform_indices = @transform_0, window_bounds = array<i64: 512, 128>}, {transform_indices = @transform_1, window_bounds = array<i64: 64, 128>}, {transform_indices = @transform_2, window_bounds = array<i64: 9, 128, 128>}, {transform_indices = @transform_3, window_bounds = array<i64: 1, 128>}, {transform_indices = @transform_4, window_bounds = array<i64: 512, 128>}]} {
    %c0 = arith.constant 0 : index
    %c0_0 = arith.constant 0 : index
    %0 = vector.load %arg2[%c0, %c0_0] : memref<512x128xbf16, #tpu.memory_space<vmem>>, vector<512x128xbf16>
    %c0_1 = arith.constant 0 : index
    %c0_2 = arith.constant 0 : index
    %1 = vector.load %arg7[%c0_1, %c0_2] : memref<576x128xbf16, #tpu.memory_space<vmem>>, vector<512x128xbf16>
    tpu.vector_store %arg7[%c0_1, %c0_2], %0 {strides = array<i32>} : memref<576x128xbf16, #tpu.memory_space<vmem>>, vector<512x128xbf16>,
    %c0_3 = arith.constant 0 : index
    %c0_4 = arith.constant 0 : index
    %2 = vector.load %arg3[%c0_3, %c0_4] : memref<64x128xbf16, #tpu.memory_space<vmem>>, vector<64x128xbf16>
    %c512 = arith.constant 512 : index
    %c0_5 = arith.constant 0 : index
    %3 = vector.load %arg7[%c512, %c0_5] : memref<576x128xbf16, #tpu.memory_space<vmem>>, vector<64x128xbf16>
    tpu.vector_store %arg7[%c512, %c0_5], %2 {strides = array<i32>} : memref<576x128xbf16, #tpu.memory_space<vmem>>, vector<64x128xbf16>,
    %c0_6 = arith.constant 0 : index
    %c0_7 = arith.constant 0 : index
    %4 = vector.load %arg7[%c0_6, %c0_7] : memref<576x128xbf16, #tpu.memory_space<vmem>>, vector<512x128xbf16>
    %c0_8 = arith.constant 0 : index
    %c0_9 = arith.constant 0 : index
    %c0_10 = arith.constant 0 : index
    %5 = vector.load %arg4[%c0_8, %c0_9, %c0_10] : memref<9x128x128xbf16, #tpu.memory_space<vmem>>, vector<1x128x128xbf16>
    %6 = vector.shape_cast %5 : vector<1x128x128xbf16> to vector<128x128xbf16>
    %cst = arith.constant dense<0.000000e+00> : vector<512x128xf32>
    %7 = tpu.matmul %4, %6, %cst {dimension_numbers = #tpu.dot_dimension_numbers<[1], [0], [0], [1], [0, 0, 1, 1], [], []>} : vector<512x128xbf16>, vector<128x128xbf16>, vector<512x128xf32> -> vector<512x128xf32>
    %c1 = arith.constant 1 : index
    %c0_11 = arith.constant 0 : index
    %8 = vector.load %arg7[%c1, %c0_11] : memref<576x128xbf16, #tpu.memory_space<vmem>>, vector<512x128xbf16>
    %c1_12 = arith.constant 1 : index
    %c0_13 = arith.constant 0 : index
    %c0_14 = arith.constant 0 : index
    %9 = vector.load %arg4[%c1_12, %c0_13, %c0_14] : memref<9x128x128xbf16, #tpu.memory_space<vmem>>, vector<1x128x128xbf16>
    %10 = vector.shape_cast %9 : vector<1x128x128xbf16> to vector<128x128xbf16>
    %cst_15 = arith.constant dense<0.000000e+00> : vector<512x128xf32>
    %11 = tpu.matmul %8, %10, %cst_15 {dimension_numbers = #tpu.dot_dimension_numbers<[1], [0], [0], [1], [0, 0, 1, 1], [], []>} : vector<512x128xbf16>, vector<128x128xbf16>, vector<512x128xf32> -> vector<512x128xf32>
    %12 = arith.addf %7, %11 : vector<512x128xf32>
    %c2 = arith.constant 2 : index
    %c0_16 = arith.constant 0 : index
    %13 = vector.load %arg7[%c2, %c0_16] : memref<576x128xbf16, #tpu.memory_space<vmem>>, vector<512x128xbf16>
    %c2_17 = arith.constant 2 : index
    %c0_18 = arith.constant 0 : index
    %c0_19 = arith.constant 0 : index
    %14 = vector.load %arg4[%c2_17, %c0_18, %c0_19] : memref<9x128x128xbf16, #tpu.memory_space<vmem>>, vector<1x128x128xbf16>
    %15 = vector.shape_cast %14 : vector<1x128x128xbf16> to vector<128x128xbf16>
    %cst_20 = arith.constant dense<0.000000e+00> : vector<512x128xf32>
    %16 = tpu.matmul %13, %15, %cst_20 {dimension_numbers = #tpu.dot_dimension_numbers<[1], [0], [0], [1], [0, 0, 1, 1], [], []>} : vector<512x128xbf16>, vector<128x128xbf16>, vector<512x128xf32> -> vector<512x128xf32>
    %17 = arith.addf %12, %16 : vector<512x128xf32>
    %c18 = arith.constant 18 : index
    %c0_21 = arith.constant 0 : index
    %18 = vector.load %arg7[%c18, %c0_21] : memref<576x128xbf16, #tpu.memory_space<vmem>>, vector<512x128xbf16>
    %c3 = arith.constant 3 : index
    %c0_22 = arith.constant 0 : index
    %c0_23 = arith.constant 0 : index
    %19 = vector.load %arg4[%c3, %c0_22, %c0_23] : memref<9x128x128xbf16, #tpu.memory_space<vmem>>, vector<1x128x128xbf16>
    %20 = vector.shape_cast %19 : vector<1x128x128xbf16> to vector<128x128xbf16>
    %cst_24 = arith.constant dense<0.000000e+00> : vector<512x128xf32>
    %21 = tpu.matmul %18, %20, %cst_24 {dimension_numbers = #tpu.dot_dimension_numbers<[1], [0], [0], [1], [0, 0, 1, 1], [], []>} : vector<512x128xbf16>, vector<128x128xbf16>, vector<512x128xf32> -> vector<512x128xf32>
    %22 = arith.addf %17, %21 : vector<512x128xf32>
    %c19 = arith.constant 19 : index
    %c0_25 = arith.constant 0 : index
    %23 = vector.load %arg7[%c19, %c0_25] : memref<576x128xbf16, #tpu.memory_space<vmem>>, vector<512x128xbf16>
    %c4 = arith.constant 4 : index
    %c0_26 = arith.constant 0 : index
    %c0_27 = arith.constant 0 : index
    %24 = vector.load %arg4[%c4, %c0_26, %c0_27] : memref<9x128x128xbf16, #tpu.memory_space<vmem>>, vector<1x128x128xbf16>
    %25 = vector.shape_cast %24 : vector<1x128x128xbf16> to vector<128x128xbf16>
    %cst_28 = arith.constant dense<0.000000e+00> : vector<512x128xf32>
    %26 = tpu.matmul %23, %25, %cst_28 {dimension_numbers = #tpu.dot_dimension_numbers<[1], [0], [0], [1], [0, 0, 1, 1], [], []>} : vector<512x128xbf16>, vector<128x128xbf16>, vector<512x128xf32> -> vector<512x128xf32>
    %27 = arith.addf %22, %26 : vector<512x128xf32>
    %c20 = arith.constant 20 : index
    %c0_29 = arith.constant 0 : index
    %28 = vector.load %arg7[%c20, %c0_29] : memref<576x128xbf16, #tpu.memory_space<vmem>>, vector<512x128xbf16>
    %c5 = arith.constant 5 : index
    %c0_30 = arith.constant 0 : index
    %c0_31 = arith.constant 0 : index
    %29 = vector.load %arg4[%c5, %c0_30, %c0_31] : memref<9x128x128xbf16, #tpu.memory_space<vmem>>, vector<1x128x128xbf16>
    %30 = vector.shape_cast %29 : vector<1x128x128xbf16> to vector<128x128xbf16>
    %cst_32 = arith.constant dense<0.000000e+00> : vector<512x128xf32>
    %31 = tpu.matmul %28, %30, %cst_32 {dimension_numbers = #tpu.dot_dimension_numbers<[1], [0], [0], [1], [0, 0, 1, 1], [], []>} : vector<512x128xbf16>, vector<128x128xbf16>, vector<512x128xf32> -> vector<512x128xf32>
    %32 = arith.addf %27, %31 : vector<512x128xf32>
    %c36 = arith.constant 36 : index
    %c0_33 = arith.constant 0 : index
    %33 = vector.load %arg7[%c36, %c0_33] : memref<576x128xbf16, #tpu.memory_space<vmem>>, vector<512x128xbf16>
    %c6 = arith.constant 6 : index
    %c0_34 = arith.constant 0 : index
    %c0_35 = arith.constant 0 : index
    %34 = vector.load %arg4[%c6, %c0_34, %c0_35] : memref<9x128x128xbf16, #tpu.memory_space<vmem>>, vector<1x128x128xbf16>
    %35 = vector.shape_cast %34 : vector<1x128x128xbf16> to vector<128x128xbf16>
    %cst_36 = arith.constant dense<0.000000e+00> : vector<512x128xf32>
    %36 = tpu.matmul %33, %35, %cst_36 {dimension_numbers = #tpu.dot_dimension_numbers<[1], [0], [0], [1], [0, 0, 1, 1], [], []>} : vector<512x128xbf16>, vector<128x128xbf16>, vector<512x128xf32> -> vector<512x128xf32>
    %37 = arith.addf %32, %36 : vector<512x128xf32>
    %c37 = arith.constant 37 : index
    %c0_37 = arith.constant 0 : index
    %38 = vector.load %arg7[%c37, %c0_37] : memref<576x128xbf16, #tpu.memory_space<vmem>>, vector<512x128xbf16>
    %c7 = arith.constant 7 : index
    %c0_38 = arith.constant 0 : index
    %c0_39 = arith.constant 0 : index
    %39 = vector.load %arg4[%c7, %c0_38, %c0_39] : memref<9x128x128xbf16, #tpu.memory_space<vmem>>, vector<1x128x128xbf16>
    %40 = vector.shape_cast %39 : vector<1x128x128xbf16> to vector<128x128xbf16>
    %cst_40 = arith.constant dense<0.000000e+00> : vector<512x128xf32>
    %41 = tpu.matmul %38, %40, %cst_40 {dimension_numbers = #tpu.dot_dimension_numbers<[1], [0], [0], [1], [0, 0, 1, 1], [], []>} : vector<512x128xbf16>, vector<128x128xbf16>, vector<512x128xf32> -> vector<512x128xf32>
    %42 = arith.addf %37, %41 : vector<512x128xf32>
    %c38 = arith.constant 38 : index
    %c0_41 = arith.constant 0 : index
    %43 = vector.load %arg7[%c38, %c0_41] : memref<576x128xbf16, #tpu.memory_space<vmem>>, vector<512x128xbf16>
    %c8 = arith.constant 8 : index
    %c0_42 = arith.constant 0 : index
    %c0_43 = arith.constant 0 : index
    %44 = vector.load %arg4[%c8, %c0_42, %c0_43] : memref<9x128x128xbf16, #tpu.memory_space<vmem>>, vector<1x128x128xbf16>
    %45 = vector.shape_cast %44 : vector<1x128x128xbf16> to vector<128x128xbf16>
    %cst_44 = arith.constant dense<0.000000e+00> : vector<512x128xf32>
    %46 = tpu.matmul %43, %45, %cst_44 {dimension_numbers = #tpu.dot_dimension_numbers<[1], [0], [0], [1], [0, 0, 1, 1], [], []>} : vector<512x128xbf16>, vector<128x128xbf16>, vector<512x128xf32> -> vector<512x128xf32>
    %47 = arith.addf %42, %46 : vector<512x128xf32>
    %c0_45 = arith.constant 0 : index
    %c0_46 = arith.constant 0 : index
    %48 = vector.load %arg5[%c0_45, %c0_46] : memref<1x128xf32, #tpu.memory_space<vmem>>, vector<1x128xf32>
    %49 = vector.broadcast %48 : vector<1x128xf32> to vector<512x128xf32>
    %50 = arith.addf %47, %49 : vector<512x128xf32>
    %cst_47 = arith.constant 0.000000e+00 : f32
    %51 = vector.broadcast %cst_47 : f32 to vector<512x128xf32>
    %52 = arith.maximumf %50, %51 : vector<512x128xf32>
    %53 = arith.truncf %52 : vector<512x128xf32> to vector<512x128xbf16>
    %c0_48 = arith.constant 0 : index
    %c0_49 = arith.constant 0 : index
    %54 = vector.load %arg6[%c0_48, %c0_49] : memref<512x128xbf16, #tpu.memory_space<vmem>>, vector<512x128xbf16>
    tpu.vector_store %arg6[%c0_48, %c0_49], %53 {strides = array<i32>} : memref<512x128xbf16, #tpu.memory_space<vmem>>, vector<512x128xbf16>,
    return
  }
  func.func @transform_0(%arg0: i32, %arg1: i32) -> (i32, i32) {
    %c0_i32 = arith.constant 0 : i32
    %c0_i32_0 = arith.constant 0 : i32
    return %arg1, %c0_i32 : i32, i32
  }
  func.func @transform_1(%arg0: i32, %arg1: i32) -> (i32, i32) {
    %c1_i32 = arith.constant 1 : i32
    %0 = arith.addi %arg1, %c1_i32 : i32
    %c8_i32 = arith.constant 8 : i32
    %1 = arith.muli %0, %c8_i32 : i32
    %c0_i32 = arith.constant 0 : i32
    %c0_i32_0 = arith.constant 0 : i32
    return %1, %c0_i32 : i32, i32
  }
  func.func @transform_2(%arg0: i32, %arg1: i32) -> (i32, i32, i32) {
    %c0_i32 = arith.constant 0 : i32
    %c0_i32_0 = arith.constant 0 : i32
    %c0_i32_1 = arith.constant 0 : i32
    return %c0_i32, %c0_i32_0, %arg0 : i32, i32, i32
  }
  func.func @transform_3(%arg0: i32, %arg1: i32) -> (i32, i32) {
    %c0_i32 = arith.constant 0 : i32
    %c0_i32_0 = arith.constant 0 : i32
    return %c0_i32, %arg0 : i32, i32
  }
  func.func @transform_4(%arg0: i32, %arg1: i32) -> (i32, i32) {
    %c0_i32 = arith.constant 0 : i32
    return %arg1, %arg0 : i32, i32
  }
}

module attributes {stable_mosaic.version = 11 : i64} {
  func.func @_conv_gemm_kernel(%arg0: i32, %arg1: i32, %arg2: memref<512x128xbf16, #tpu.memory_space<vmem>>, %arg3: memref<64x128xbf16, #tpu.memory_space<vmem>>, %arg4: memref<9x128x128xbf16, #tpu.memory_space<vmem>>, %arg5: memref<512x128xbf16, #tpu.memory_space<vmem>>, %arg6: memref<128x128xbf16, #tpu.memory_space<vmem>>, %arg7: memref<1x128xf32, #tpu.memory_space<vmem>>, %arg8: memref<512x128xf32, #tpu.memory_space<vmem>>, %arg9: memref<576x128xbf16, #tpu.memory_space<vmem>>) attributes {dimension_semantics = [#tpu.dimension_semantics<parallel>, #tpu.dimension_semantics<parallel>], iteration_bounds = array<i64: 1, 2>, scalar_prefetch = 0 : i64, scratch_operands = 1 : i64, tpu.core_type = #tpu.core_type<tc>, window_params = [{transform_indices = @transform_0, window_bounds = array<i64: 512, 128>}, {transform_indices = @transform_1, window_bounds = array<i64: 64, 128>}, {transform_indices = @transform_2, window_bounds = array<i64: 9, 128, 128>}, {transform_indices = @transform_3, window_bounds = array<i64: 512, 128>}, {transform_indices = @transform_4, window_bounds = array<i64: 128, 128>}, {transform_indices = @transform_5, window_bounds = array<i64: 1, 128>}, {transform_indices = @transform_6, window_bounds = array<i64: 512, 128>}]} {
    %c0 = arith.constant 0 : index
    %c0_0 = arith.constant 0 : index
    %0 = vector.load %arg2[%c0, %c0_0] : memref<512x128xbf16, #tpu.memory_space<vmem>>, vector<512x128xbf16>
    %c0_1 = arith.constant 0 : index
    %c0_2 = arith.constant 0 : index
    %1 = vector.load %arg9[%c0_1, %c0_2] : memref<576x128xbf16, #tpu.memory_space<vmem>>, vector<512x128xbf16>
    tpu.vector_store %arg9[%c0_1, %c0_2], %0 {strides = array<i32>} : memref<576x128xbf16, #tpu.memory_space<vmem>>, vector<512x128xbf16>,
    %c0_3 = arith.constant 0 : index
    %c0_4 = arith.constant 0 : index
    %2 = vector.load %arg3[%c0_3, %c0_4] : memref<64x128xbf16, #tpu.memory_space<vmem>>, vector<64x128xbf16>
    %c512 = arith.constant 512 : index
    %c0_5 = arith.constant 0 : index
    %3 = vector.load %arg9[%c512, %c0_5] : memref<576x128xbf16, #tpu.memory_space<vmem>>, vector<64x128xbf16>
    tpu.vector_store %arg9[%c512, %c0_5], %2 {strides = array<i32>} : memref<576x128xbf16, #tpu.memory_space<vmem>>, vector<64x128xbf16>,
    %c0_6 = arith.constant 0 : index
    %c0_7 = arith.constant 0 : index
    %4 = vector.load %arg9[%c0_6, %c0_7] : memref<576x128xbf16, #tpu.memory_space<vmem>>, vector<512x128xbf16>
    %c0_8 = arith.constant 0 : index
    %c0_9 = arith.constant 0 : index
    %c0_10 = arith.constant 0 : index
    %5 = vector.load %arg4[%c0_8, %c0_9, %c0_10] : memref<9x128x128xbf16, #tpu.memory_space<vmem>>, vector<1x128x128xbf16>
    %6 = vector.shape_cast %5 : vector<1x128x128xbf16> to vector<128x128xbf16>
    %cst = arith.constant dense<0.000000e+00> : vector<512x128xf32>
    %7 = tpu.matmul %4, %6, %cst {dimension_numbers = #tpu.dot_dimension_numbers<[1], [0], [0], [1], [0, 0, 1, 1], [], []>} : vector<512x128xbf16>, vector<128x128xbf16>, vector<512x128xf32> -> vector<512x128xf32>
    %c1 = arith.constant 1 : index
    %c0_11 = arith.constant 0 : index
    %8 = vector.load %arg9[%c1, %c0_11] : memref<576x128xbf16, #tpu.memory_space<vmem>>, vector<512x128xbf16>
    %c1_12 = arith.constant 1 : index
    %c0_13 = arith.constant 0 : index
    %c0_14 = arith.constant 0 : index
    %9 = vector.load %arg4[%c1_12, %c0_13, %c0_14] : memref<9x128x128xbf16, #tpu.memory_space<vmem>>, vector<1x128x128xbf16>
    %10 = vector.shape_cast %9 : vector<1x128x128xbf16> to vector<128x128xbf16>
    %cst_15 = arith.constant dense<0.000000e+00> : vector<512x128xf32>
    %11 = tpu.matmul %8, %10, %cst_15 {dimension_numbers = #tpu.dot_dimension_numbers<[1], [0], [0], [1], [0, 0, 1, 1], [], []>} : vector<512x128xbf16>, vector<128x128xbf16>, vector<512x128xf32> -> vector<512x128xf32>
    %12 = arith.addf %7, %11 : vector<512x128xf32>
    %c2 = arith.constant 2 : index
    %c0_16 = arith.constant 0 : index
    %13 = vector.load %arg9[%c2, %c0_16] : memref<576x128xbf16, #tpu.memory_space<vmem>>, vector<512x128xbf16>
    %c2_17 = arith.constant 2 : index
    %c0_18 = arith.constant 0 : index
    %c0_19 = arith.constant 0 : index
    %14 = vector.load %arg4[%c2_17, %c0_18, %c0_19] : memref<9x128x128xbf16, #tpu.memory_space<vmem>>, vector<1x128x128xbf16>
    %15 = vector.shape_cast %14 : vector<1x128x128xbf16> to vector<128x128xbf16>
    %cst_20 = arith.constant dense<0.000000e+00> : vector<512x128xf32>
    %16 = tpu.matmul %13, %15, %cst_20 {dimension_numbers = #tpu.dot_dimension_numbers<[1], [0], [0], [1], [0, 0, 1, 1], [], []>} : vector<512x128xbf16>, vector<128x128xbf16>, vector<512x128xf32> -> vector<512x128xf32>
    %17 = arith.addf %12, %16 : vector<512x128xf32>
    %c18 = arith.constant 18 : index
    %c0_21 = arith.constant 0 : index
    %18 = vector.load %arg9[%c18, %c0_21] : memref<576x128xbf16, #tpu.memory_space<vmem>>, vector<512x128xbf16>
    %c3 = arith.constant 3 : index
    %c0_22 = arith.constant 0 : index
    %c0_23 = arith.constant 0 : index
    %19 = vector.load %arg4[%c3, %c0_22, %c0_23] : memref<9x128x128xbf16, #tpu.memory_space<vmem>>, vector<1x128x128xbf16>
    %20 = vector.shape_cast %19 : vector<1x128x128xbf16> to vector<128x128xbf16>
    %cst_24 = arith.constant dense<0.000000e+00> : vector<512x128xf32>
    %21 = tpu.matmul %18, %20, %cst_24 {dimension_numbers = #tpu.dot_dimension_numbers<[1], [0], [0], [1], [0, 0, 1, 1], [], []>} : vector<512x128xbf16>, vector<128x128xbf16>, vector<512x128xf32> -> vector<512x128xf32>
    %22 = arith.addf %17, %21 : vector<512x128xf32>
    %c19 = arith.constant 19 : index
    %c0_25 = arith.constant 0 : index
    %23 = vector.load %arg9[%c19, %c0_25] : memref<576x128xbf16, #tpu.memory_space<vmem>>, vector<512x128xbf16>
    %c4 = arith.constant 4 : index
    %c0_26 = arith.constant 0 : index
    %c0_27 = arith.constant 0 : index
    %24 = vector.load %arg4[%c4, %c0_26, %c0_27] : memref<9x128x128xbf16, #tpu.memory_space<vmem>>, vector<1x128x128xbf16>
    %25 = vector.shape_cast %24 : vector<1x128x128xbf16> to vector<128x128xbf16>
    %cst_28 = arith.constant dense<0.000000e+00> : vector<512x128xf32>
    %26 = tpu.matmul %23, %25, %cst_28 {dimension_numbers = #tpu.dot_dimension_numbers<[1], [0], [0], [1], [0, 0, 1, 1], [], []>} : vector<512x128xbf16>, vector<128x128xbf16>, vector<512x128xf32> -> vector<512x128xf32>
    %27 = arith.addf %22, %26 : vector<512x128xf32>
    %c20 = arith.constant 20 : index
    %c0_29 = arith.constant 0 : index
    %28 = vector.load %arg9[%c20, %c0_29] : memref<576x128xbf16, #tpu.memory_space<vmem>>, vector<512x128xbf16>
    %c5 = arith.constant 5 : index
    %c0_30 = arith.constant 0 : index
    %c0_31 = arith.constant 0 : index
    %29 = vector.load %arg4[%c5, %c0_30, %c0_31] : memref<9x128x128xbf16, #tpu.memory_space<vmem>>, vector<1x128x128xbf16>
    %30 = vector.shape_cast %29 : vector<1x128x128xbf16> to vector<128x128xbf16>
    %cst_32 = arith.constant dense<0.000000e+00> : vector<512x128xf32>
    %31 = tpu.matmul %28, %30, %cst_32 {dimension_numbers = #tpu.dot_dimension_numbers<[1], [0], [0], [1], [0, 0, 1, 1], [], []>} : vector<512x128xbf16>, vector<128x128xbf16>, vector<512x128xf32> -> vector<512x128xf32>
    %32 = arith.addf %27, %31 : vector<512x128xf32>
    %c36 = arith.constant 36 : index
    %c0_33 = arith.constant 0 : index
    %33 = vector.load %arg9[%c36, %c0_33] : memref<576x128xbf16, #tpu.memory_space<vmem>>, vector<512x128xbf16>
    %c6 = arith.constant 6 : index
    %c0_34 = arith.constant 0 : index
    %c0_35 = arith.constant 0 : index
    %34 = vector.load %arg4[%c6, %c0_34, %c0_35] : memref<9x128x128xbf16, #tpu.memory_space<vmem>>, vector<1x128x128xbf16>
    %35 = vector.shape_cast %34 : vector<1x128x128xbf16> to vector<128x128xbf16>
    %cst_36 = arith.constant dense<0.000000e+00> : vector<512x128xf32>
    %36 = tpu.matmul %33, %35, %cst_36 {dimension_numbers = #tpu.dot_dimension_numbers<[1], [0], [0], [1], [0, 0, 1, 1], [], []>} : vector<512x128xbf16>, vector<128x128xbf16>, vector<512x128xf32> -> vector<512x128xf32>
    %37 = arith.addf %32, %36 : vector<512x128xf32>
    %c37 = arith.constant 37 : index
    %c0_37 = arith.constant 0 : index
    %38 = vector.load %arg9[%c37, %c0_37] : memref<576x128xbf16, #tpu.memory_space<vmem>>, vector<512x128xbf16>
    %c7 = arith.constant 7 : index
    %c0_38 = arith.constant 0 : index
    %c0_39 = arith.constant 0 : index
    %39 = vector.load %arg4[%c7, %c0_38, %c0_39] : memref<9x128x128xbf16, #tpu.memory_space<vmem>>, vector<1x128x128xbf16>
    %40 = vector.shape_cast %39 : vector<1x128x128xbf16> to vector<128x128xbf16>
    %cst_40 = arith.constant dense<0.000000e+00> : vector<512x128xf32>
    %41 = tpu.matmul %38, %40, %cst_40 {dimension_numbers = #tpu.dot_dimension_numbers<[1], [0], [0], [1], [0, 0, 1, 1], [], []>} : vector<512x128xbf16>, vector<128x128xbf16>, vector<512x128xf32> -> vector<512x128xf32>
    %42 = arith.addf %37, %41 : vector<512x128xf32>
    %c38 = arith.constant 38 : index
    %c0_41 = arith.constant 0 : index
    %43 = vector.load %arg9[%c38, %c0_41] : memref<576x128xbf16, #tpu.memory_space<vmem>>, vector<512x128xbf16>
    %c8 = arith.constant 8 : index
    %c0_42 = arith.constant 0 : index
    %c0_43 = arith.constant 0 : index
    %44 = vector.load %arg4[%c8, %c0_42, %c0_43] : memref<9x128x128xbf16, #tpu.memory_space<vmem>>, vector<1x128x128xbf16>
    %45 = vector.shape_cast %44 : vector<1x128x128xbf16> to vector<128x128xbf16>
    %cst_44 = arith.constant dense<0.000000e+00> : vector<512x128xf32>
    %46 = tpu.matmul %43, %45, %cst_44 {dimension_numbers = #tpu.dot_dimension_numbers<[1], [0], [0], [1], [0, 0, 1, 1], [], []>} : vector<512x128xbf16>, vector<128x128xbf16>, vector<512x128xf32> -> vector<512x128xf32>
    %47 = arith.addf %42, %46 : vector<512x128xf32>
    %c0_45 = arith.constant 0 : index
    %c0_46 = arith.constant 0 : index
    %48 = vector.load %arg5[%c0_45, %c0_46] : memref<512x128xbf16, #tpu.memory_space<vmem>>, vector<512x128xbf16>
    %c0_47 = arith.constant 0 : index
    %c0_48 = arith.constant 0 : index
    %49 = vector.load %arg6[%c0_47, %c0_48] : memref<128x128xbf16, #tpu.memory_space<vmem>>, vector<128x128xbf16>
    %cst_49 = arith.constant dense<0.000000e+00> : vector<512x128xf32>
    %50 = tpu.matmul %48, %49, %cst_49 {dimension_numbers = #tpu.dot_dimension_numbers<[1], [0], [0], [1], [0, 0, 1, 1], [], []>} : vector<512x128xbf16>, vector<128x128xbf16>, vector<512x128xf32> -> vector<512x128xf32>
    %51 = arith.addf %47, %50 : vector<512x128xf32>
    %c0_50 = arith.constant 0 : index
    %c0_51 = arith.constant 0 : index
    %52 = vector.load %arg7[%c0_50, %c0_51] : memref<1x128xf32, #tpu.memory_space<vmem>>, vector<1x128xf32>
    %53 = vector.broadcast %52 : vector<1x128xf32> to vector<512x128xf32>
    %54 = arith.addf %51, %53 : vector<512x128xf32>
    %cst_52 = arith.constant 0.000000e+00 : f32
    %55 = vector.broadcast %cst_52 : f32 to vector<512x128xf32>
    %56 = arith.maximumf %54, %55 : vector<512x128xf32>
    %c0_53 = arith.constant 0 : index
    %c0_54 = arith.constant 0 : index
    %57 = vector.load %arg8[%c0_53, %c0_54] : memref<512x128xf32, #tpu.memory_space<vmem>>, vector<512x128xf32>
    tpu.vector_store %arg8[%c0_53, %c0_54], %56 {strides = array<i32>} : memref<512x128xf32, #tpu.memory_space<vmem>>, vector<512x128xf32>,
    return
  }
  func.func @transform_0(%arg0: i32, %arg1: i32) -> (i32, i32) {
    %c0_i32 = arith.constant 0 : i32
    %c0_i32_0 = arith.constant 0 : i32
    return %arg1, %c0_i32 : i32, i32
  }
  func.func @transform_1(%arg0: i32, %arg1: i32) -> (i32, i32) {
    %c1_i32 = arith.constant 1 : i32
    %0 = arith.addi %arg1, %c1_i32 : i32
    %c8_i32 = arith.constant 8 : i32
    %1 = arith.muli %0, %c8_i32 : i32
    %c0_i32 = arith.constant 0 : i32
    %c0_i32_0 = arith.constant 0 : i32
    return %1, %c0_i32 : i32, i32
  }
  func.func @transform_2(%arg0: i32, %arg1: i32) -> (i32, i32, i32) {
    %c0_i32 = arith.constant 0 : i32
    %c0_i32_0 = arith.constant 0 : i32
    %c0_i32_1 = arith.constant 0 : i32
    return %c0_i32, %c0_i32_0, %arg0 : i32, i32, i32
  }
  func.func @transform_3(%arg0: i32, %arg1: i32) -> (i32, i32) {
    %c0_i32 = arith.constant 0 : i32
    %c0_i32_0 = arith.constant 0 : i32
    return %arg1, %c0_i32 : i32, i32
  }
  func.func @transform_4(%arg0: i32, %arg1: i32) -> (i32, i32) {
    %c0_i32 = arith.constant 0 : i32
    %c0_i32_0 = arith.constant 0 : i32
    return %c0_i32, %arg0 : i32, i32
  }
  func.func @transform_5(%arg0: i32, %arg1: i32) -> (i32, i32) {
    %c0_i32 = arith.constant 0 : i32
    %c0_i32_0 = arith.constant 0 : i32
    return %c0_i32, %arg0 : i32, i32
  }
  func.func @transform_6(%arg0: i32, %arg1: i32) -> (i32, i32) {
    %c0_i32 = arith.constant 0 : i32
    return %arg1, %arg0 : i32, i32
  }
}

</mosaic_0001>

<llo_original>
// kernel: residual_block_forward.2
$region0: #{residual_block_forward.2}
  #allocation0 [shape = 'u32[]', space=smem, size = 0x4, offset = 0x4, fixed_abs, tag = 'smem constant byte address 0x4 - core index']
  #allocation1 [shape = 'u32[144,128]{1,0:T(1,128)}', space=vmem, size = 0x12000, scoped, tag = 'internal scratch']
  #allocation2 [shape = 'bf16[576,128]{1,0:T(16,128)(2,1)}', space=vmem, size = 0x24000, scoped, tag = 'scratch operand']
  %s0 = inlined_call_operand.vmem [shape: bf16[1088,128], index: 0, kind: input, shape index: {}, may-alias: {0,1}]
  %s1 = inlined_call_operand.vmem [shape: bf16[1088,128], index: 1, kind: input, shape index: {}, may-alias: {0,1}]
  %s2 = inlined_call_operand.vmem [shape: bf16[9,128,128], index: 2, kind: input, shape index: {}]
  %s3 = inlined_call_operand.vmem [shape: f32[1,128], index: 3, kind: input, shape index: {}]
  %s4 = inlined_call_operand.vmem [shape: bf16[1024,128], index: 4, kind: output, shape index: {}]
  %s5 = sld [smem:[#allocation0]]
  $region49: #{residual_block_forward.2} parent=0
    _
  %s7 = ssub.s32 1, %s5
  %s8 = scalar_select 0, %s7, %s5
  loop: start=0, step=1, limit=4
  $region2: #{residual_block_forward.2} parent=0 // loop_pre_header
    _
  $region3: #{residual_block_forward.2} parent=0 // loop_header
    %s10 = sphi 0, %s14
    %p11 = scmp.ge.s32.totalorder %s10, 4
    %s17 = sphi 0, %s29
    %s18 = sphi 0, %s25
    %s19 = sphi 0, %s17
    %s20 = sphi 0, %s18
    %s21 = sphi 0, %s19
    %s22 = sphi 0, %s20
    %s32 = sphi 0, %s34
    %s35 = sphi 0, %s32
    %s36 = sphi 0, %s35
    %s52 = sphi 0, %s36
    %s62 = sphi 0, %s64
    %s65 = sphi 0, %s62
    %s66 = sphi 0, %s65
    %s82 = sphi 0, %s66
    %s88 = sphi 0, %s90
    %s91 = sphi 0, %s88
    %s92 = sphi 0, %s91
    %s108 = sphi 0, %s92
    %s114 = sphi 0, %s116
    %s117 = sphi 0, %s114
    %s118 = sphi 0, %s117
    %s134 = sphi 0, %s118
    %s142 = sphi 0, %s144
    %s145 = sphi 0, %s142
    %s146 = sphi 0, %s145
    %s162 = sphi 0, %s146
  $region4: #{residual_block_forward.2} parent=0 // loop_header_branch
    %13 = sbr.rel (%p11) target = $region8
  $region5: #{residual_block_forward.2} parent=0 // loop_body
    %s15 = ssub.s32 %s10, 1
    %s16 = ssub.s32 %s10, 2
    %s23 = sadd.s32 1, %s18
    %p24 = scmp.ge.s32.totalorder %s23, 2
    %s25 = scalar_select %p24, 0, %s23
    %s26 = sadd.s32 1, %s17
    %s27 = scalar_select %p24, %s26, %s17
    %p28 = scmp.ge.s32.totalorder %s27, 1
    %s29 = scalar_select %p28, 0, %s27
    %s30 = ssub.s32 %s18, %s25
    %p31 = scmp.eq.s32.totalorder %s30, 0
    %s33 = sadd.s32 %s32, 1
    %s34 = scalar_select %p31, %s32, %s33
    %p37 = pneg %p31
    %p38 = scmp.eq.s32.totalorder %s10, 1
    %p39 = por %p37, %p38
    %p40 = scmp.ne.s32.totalorder %s32, %s35
    %p41 = scmp.eq.s32.totalorder %s10, 0
    %p42 = por %p40, %p41
    %p43 = scmp.ne.s32.totalorder %s32, %s35
    %p44 = scmp.eq.s32.totalorder %s15, 1
    %p45 = por %p43, %p44
    %p46 = scmp.ne.s32.totalorder %s35, %s36
    %p47 = scmp.eq.s32.totalorder %s15, 0
    %p48 = por %p46, %p47
    %p49 = scmp.ne.s32.totalorder %s35, %s36
    %p50 = scmp.eq.s32.totalorder %s16, 1
    %p51 = por %p49, %p50
    %p53 = scmp.ne.s32.totalorder %s36, %s52
    %p54 = scmp.eq.s32.totalorder %s16, 0
    %p55 = por %p53, %p54
    %s56 = sadd.s32 %s18, 1
    %s57 = smul.u32 %s56, 8
    %s58 = sadd.s32 %s25, 1
    %s59 = smul.u32 %s58, 8
    %s60 = ssub.s32 %s57, %s59
    %p61 = scmp.eq.s32.totalorder %s60, 0
    %s63 = sadd.s32 %s62, 1
    %s64 = scalar_select %p61, %s62, %s63
    %p67 = pneg %p61
    %p68 = scmp.eq.s32.totalorder %s10, 1
    %p69 = por %p67, %p68
    %p70 = scmp.ne.s32.totalorder %s62, %s65
    %p71 = scmp.eq.s32.totalorder %s10, 0
    %p72 = por %p70, %p71
    %p73 = scmp.ne.s32.totalorder %s62, %s65
    %p74 = scmp.eq.s32.totalorder %s15, 1
    %p75 = por %p73, %p74
    %p76 = scmp.ne.s32.totalorder %s65, %s66
    %p77 = scmp.eq.s32.totalorder %s15, 0
    %p78 = por %p76, %p77
    %p79 = scmp.ne.s32.totalorder %s65, %s66
    %p80 = scmp.eq.s32.totalorder %s16, 1
    %p81 = por %p79, %p80
    %p83 = scmp.ne.s32.totalorder %s66, %s82
    %p84 = scmp.eq.s32.totalorder %s16, 0
    %p85 = por %p83, %p84
    %s86 = ssub.s32 %s17, %s29
    %p87 = scmp.eq.s32.totalorder %s86, 0
    %s89 = sadd.s32 %s88, 1
    %s90 = scalar_select %p87, %s88, %s89
    %p93 = pneg %p87
    %p94 = scmp.eq.s32.totalorder %s10, 1
    %p95 = por %p93, %p94
    %p96 = scmp.ne.s32.totalorder %s88, %s91
    %p97 = scmp.eq.s32.totalorder %s10, 0
    %p98 = por %p96, %p97
    %p99 = scmp.ne.s32.totalorder %s88, %s91
    %p100 = scmp.eq.s32.totalorder %s15, 1
    %p101 = por %p99, %p100
    %p102 = scmp.ne.s32.totalorder %s91, %s92
    %p103 = scmp.eq.s32.totalorder %s15, 0
    %p104 = por %p102, %p103
    %p105 = scmp.ne.s32.totalorder %s91, %s92
    %p106 = scmp.eq.s32.totalorder %s16, 1
    %p107 = por %p105, %p106
    %p109 = scmp.ne.s32.totalorder %s92, %s108
    %p110 = scmp.eq.s32.totalorder %s16, 0
    %p111 = por %p109, %p110
    %s112 = ssub.s32 %s17, %s29
    %p113 = scmp.eq.s32.totalorder %s112, 0
    %s115 = sadd.s32 %s114, 1
    %s116 = scalar_select %p113, %s114, %s115
    %p119 = pneg %p113
    %p120 = scmp.eq.s32.totalorder %s10, 1
    %p121 = por %p119, %p120
    %p122 = scmp.ne.s32.totalorder %s114, %s117
    %p123 = scmp.eq.s32.totalorder %s10, 0
    %p124 = por %p122, %p123
    %p125 = scmp.ne.s32.totalorder %s114, %s117
    %p126 = scmp.eq.s32.totalorder %s15, 1
    %p127 = por %p125, %p126
    %p128 = scmp.ne.s32.totalorder %s117, %s118
    %p129 = scmp.eq.s32.totalorder %s15, 0
    %p130 = por %p128, %p129
    %p131 = scmp.ne.s32.totalorder %s117, %s118
    %p132 = scmp.eq.s32.totalorder %s16, 1
    %p133 = por %p131, %p132
    %p135 = scmp.ne.s32.totalorder %s118, %s134
    %p136 = scmp.eq.s32.totalorder %s16, 0
    %p137 = por %p135, %p136
    %s138 = ssub.s32 %s18, %s25
    %s139 = ssub.s32 %s17, %s29
    %s140 = sor.u32 %s138, %s139
    %p141 = scmp.eq.s32.totalorder %s140, 0
    %s143 = sadd.s32 %s142, 1
    %s144 = scalar_select %p141, %s142, %s143
    %p147 = pneg %p141
    %p148 = scmp.eq.s32.totalorder %s10, 1
    %p149 = por %p147, %p148
    %p150 = scmp.ne.s32.totalorder %s142, %s145
    %p151 = scmp.eq.s32.totalorder %s10, 0
    %p152 = por %p150, %p151
    %p153 = scmp.ne.s32.totalorder %s142, %s145
    %p154 = scmp.eq.s32.totalorder %s15, 1
    %p155 = por %p153, %p154
    %p156 = scmp.ne.s32.totalorder %s145, %s146
    %p157 = scmp.eq.s32.totalorder %s15, 0
    %p158 = por %p156, %p157
    %p159 = scmp.ne.s32.totalorder %s145, %s146
    %p160 = scmp.eq.s32.totalorder %s16, 1
    %p161 = por %p159, %p160
    %p163 = scmp.ne.s32.totalorder %s146, %s162
    %p164 = scmp.eq.s32.totalorder %s16, 0
    %p165 = por %p163, %p164
    %p166 = scmp.le.s32.totalorder 1, %s10
    %p167 = scmp.lt.s32.totalorder %s10, 3
    %p168 = pnand %p166, %p167
    %p169 = pneg %p168
    // Predicated region
    $region9: #{residual_block_forward.2} parent=5 // pred_check
      _
    $region10: #{residual_block_forward.2} parent=5 // pred_check_branch
      %171 = sbr.rel (%p168) target = $region12
    $region11: #{residual_block_forward.2} parent=5 // pred_region
      %s172 = ssub.s32 %s10, 1
      // Predicated region
      $region13: #{residual_block_forward.2} parent=11 // pred_check
        %p173 = pneg %p104
      $region14: #{residual_block_forward.2} parent=11 // pred_check_branch
        %175 = sbr.rel (%p173) target = $region16
      $region15: #{residual_block_forward.2} parent=11 // pred_region
        %p176 = scmp.lt.s32.totalorder %s19, 0
        %s177 = scalar_select %p176, %s19, 0
        %s178 = smul.addr %s177, 4
        %s179 = scalar_lea.vmem %s2, %s178
      $region16: #{residual_block_forward.2} parent=11 // pred_fallthru
        _
      // Predicated region
      $region17: #{residual_block_forward.2} parent=11 // pred_check
        %p180 = pneg %p130
      $region18: #{residual_block_forward.2} parent=11 // pred_check_branch
        %182 = sbr.rel (%p180) target = $region20
      $region19: #{residual_block_forward.2} parent=11 // pred_region
        %p183 = scmp.lt.s32.totalorder %s19, 0
        %s184 = scalar_select %p183, %s19, 0
        %s185 = scalar_lea.vmem %s3, %s184
      $region20: #{residual_block_forward.2} parent=11 // pred_fallthru
        _
    $region12: #{residual_block_forward.2} parent=5 // pred_fallthru
      _
    %p186 = scmp.lt.s32.totalorder %s10, 2
    // Predicated region
    $region21: #{residual_block_forward.2} parent=5 // pred_check
      %p187 = pneg %p186
    $region22: #{residual_block_forward.2} parent=5 // pred_check_branch
      %189 = sbr.rel (%p187) target = $region24
    $region23: #{residual_block_forward.2} parent=5 // pred_region
      // Predicated region
      $region25: #{residual_block_forward.2} parent=23 // pred_check
        %p190 = pneg %p42
      $region26: #{residual_block_forward.2} parent=23 // pred_check_branch
        %192 = sbr.rel (%p190) target = $region28
      $region27: #{residual_block_forward.2} parent=23 // pred_region
        %s193 = smul.u32 64, %s18
        %s194 = ssub.s32 136, %s193
        %p195 = scmp.lt.s32.totalorder %s194, 64
        %s196 = scalar_select %p195, %s194, 64
        %s197 = smul.u32 64, %s196
        %p198 = scmp.lt.s32.totalorder %s193, 135
        %s199 = scalar_select %p198, %s193, 135
        %s200 = smul.addr %s199, 4
        %s201 = scalar_lea.vmem %s0, %s200
        %s202 = smul.u32 64, %s18
        %s203 = ssub.s32 136, %s202
        %p204 = scmp.lt.s32.totalorder %s203, 64
        %s205 = scalar_select %p204, %s203, 64
        %s206 = smul.u32 64, %s205
      $region28: #{residual_block_forward.2} parent=23 // pred_fallthru
        _
      // Predicated region
      $region29: #{residual_block_forward.2} parent=23 // pred_check
        %p207 = pneg %p72
      $region30: #{residual_block_forward.2} parent=23 // pred_check_branch
        %209 = sbr.rel (%p207) target = $region32
      $region31: #{residual_block_forward.2} parent=23 // pred_region
        %s210 = sadd.s32 %s18, 1
        %s211 = smul.u32 %s210, 8
        %s212 = smul.u32 8, %s211
        %p213 = scmp.lt.s32.totalorder %s212, 135
        %s214 = scalar_select %p213, %s212, 135
        %s215 = smul.addr %s214, 4
        %s216 = scalar_lea.vmem %s1, %s215
        %s217 = sadd.s32 %s18, 1
        %s218 = smul.u32 %s217, 8
        %s219 = smul.u32 8, %s218
      $region32: #{residual_block_forward.2} parent=23 // pred_fallthru
        _
    $region24: #{residual_block_forward.2} parent=5 // pred_fallthru
      _
    %p220 = scmp.le.s32.totalorder 1, %s10
    %p221 = scmp.lt.s32.totalorder %s10, 3
    %p222 = pnand %p220, %p221
    %p223 = pneg %p222
    // Predicated region
    $region33: #{residual_block_forward.2} parent=5 // pred_check
      _
    $region34: #{residual_block_forward.2} parent=5 // pred_check_branch
      %225 = sbr.rel (%p222) target = $region36
    $region35: #{residual_block_forward.2} parent=5 // pred_region
      %s226 = ssub.s32 %s10, 1
      %s227 = smul.u32 64, %s20
      %s228 = ssub.s32 136, %s227
      %p229 = scmp.lt.s32.totalorder %s228, 64
      %s230 = scalar_select %p229, %s228, 64
      %s231 = smul.u32 64, %s230
      %p232 = scmp.lt.s32.totalorder %s227, 135
      %s233 = scalar_select %p232, %s227, 135
      %s234 = smul.addr %s233, 4
      %s235 = scalar_lea.vmem %s0, %s234
      %p236 = pneg %p48
      %p237 = pneg %p45
      %s238 = sadd.s32 %s20, 1
      %s239 = smul.u32 %s238, 8
      %s240 = smul.u32 8, %s239
      %p241 = scmp.lt.s32.totalorder %s240, 135
      %s242 = scalar_select %p241, %s240, 135
      %s243 = smul.addr %s242, 4
      %s244 = scalar_lea.vmem %s1, %s243
      %p245 = pneg %p78
      %p246 = pneg %p75
      %p247 = scmp.lt.s32.totalorder %s19, 0
      %s248 = scalar_select %p247, %s19, 0
      %s249 = smul.addr %s248, 4
      %s250 = scalar_lea.vmem %s2, %s249
      %p251 = pneg %p104
      %p252 = pneg %p101
      %p253 = scmp.lt.s32.totalorder %s19, 0
      %s254 = scalar_select %p253, %s19, 0
      %s255 = scalar_lea.vmem %s3, %s254
      %p256 = pneg %p130
      %p257 = pneg %p127
      %p258 = pneg %p158
      %p259 = pneg %p155
      %s260 = smul.u32 64, %s20
      %p261 = scmp.lt.s32.totalorder %s260, 127
      %s262 = scalar_select %p261, %s260, 127
      %p263 = scmp.lt.s32.totalorder %s19, 0
      %s264 = scalar_select %p263, %s19, 0
      %s265 = sadd.s32 %s264, %s262
      %s266 = smul.addr %s265, 4
      %s267 = scalar_lea.vmem %s4, %s266
      %s268 = smul.u32 64, %s20
      %s269 = ssub.s32 136, %s268
      %p270 = scmp.lt.s32.totalorder %s269, 64
      %s271 = scalar_select %p270, %s269, 64
      %s272 = smul.u32 64, %s271
      %p273 = scmp.lt.s32.totalorder %s268, 135
      %s274 = scalar_select %p273, %s268, 135
      %s275 = smul.addr %s274, 4
      %s276 = scalar_lea.vmem %s0, %s275
      %s277 = smul.u32 64, %s20
      %s278 = ssub.s32 136, %s277
      %p279 = scmp.lt.s32.totalorder %s278, 64
      %s280 = scalar_select %p279, %s278, 64
      %s281 = smul.u32 64, %s280
      %s282 = sadd.s32 %s20, 1
      %s283 = smul.u32 %s282, 8
      %s284 = smul.u32 8, %s283
      %p285 = scmp.lt.s32.totalorder %s284, 135
      %s286 = scalar_select %p285, %s284, 135
      %s287 = smul.addr %s286, 4
      %s288 = scalar_lea.vmem %s1, %s287
      %s289 = sadd.s32 %s20, 1
      %s290 = smul.u32 %s289, 8
      %s291 = smul.u32 8, %s290
      %p292 = scmp.lt.s32.totalorder %s19, 0
      %s293 = scalar_select %p292, %s19, 0
      %s294 = smul.addr %s293, 4
      %s295 = scalar_lea.vmem %s2, %s294
      %p296 = scmp.lt.s32.totalorder %s19, 0
      %s297 = scalar_select %p296, %s19, 0
      %s298 = scalar_lea.vmem %s3, %s297
      %s299 = smul.u32 64, %s20
      %p300 = scmp.lt.s32.totalorder %s299, 127
      %s301 = scalar_select %p300, %s299, 127
      %p302 = scmp.lt.s32.totalorder %s19, 0
      %s303 = scalar_select %p302, %s19, 0
      %s304 = sadd.s32 %s303, %s301
      %s305 = smul.addr %s304, 4
      %s306 = scalar_lea.vmem %s4, %s305
      %s307 = smul.u32 64, %s20
      %v309 = vld [vmem:[%s276] sm:$0xf]
      %v310 = vld [vmem:[%s276 + $0x4] sm:$0xf]
      %v311 = vld [vmem:[%s276 + $0x8] sm:$0xf]
      %v312 = vld [vmem:[%s276 + $0xc] sm:$0xf]
      %v313 = vld [vmem:[%s276 + $0x10] sm:$0xf]
      %v314 = vld [vmem:[%s276 + $0x14] sm:$0xf]
      %v315 = vld [vmem:[%s276 + $0x18] sm:$0xf]
      %v316 = vld [vmem:[%s276 + $0x1c] sm:$0xf]
      %v317 = vld [vmem:[%s276 + $0x20] sm:$0xf]
      %v318 = vld [vmem:[%s276 + $0x24] sm:$0xf]
      %v319 = vld [vmem:[%s276 + $0x28] sm:$0xf]
      %v320 = vld [vmem:[%s276 + $0x2c] sm:$0xf]
      %v321 = vld [vmem:[%s276 + $0x30] sm:$0xf]
      %v322 = vld [vmem:[%s276 + $0x34] sm:$0xf]
      %v323 = vld [vmem:[%s276 + $0x38] sm:$0xf]
      %v324 = vld [vmem:[%s276 + $0x3c] sm:$0xf]
      %v325 = vld [vmem:[%s276 + $0x40] sm:$0xf]
      %v326 = vld [vmem:[%s276 + $0x44] sm:$0xf]
      %v327 = vld [vmem:[%s276 + $0x48] sm:$0xf]
      %v328 = vld [vmem:[%s276 + $0x4c] sm:$0xf]
      %v329 = vld [vmem:[%s276 + $0x50] sm:$0xf]
      %v330 = vld [vmem:[%s276 + $0x54] sm:$0xf]
      %v331 = vld [vmem:[%s276 + $0x58] sm:$0xf]
      %v332 = vld [vmem:[%s276 + $0x5c] sm:$0xf]
      %v333 = vld [vmem:[%s276 + $0x60] sm:$0xf]
      %v334 = vld [vmem:[%s276 + $0x64] sm:$0xf]
      %v335 = vld [vmem:[%s276 + $0x68] sm:$0xf]
      %v336 = vld [vmem:[%s276 + $0x6c] sm:$0xf]
      %v337 = vld [vmem:[%s276 + $0x70] sm:$0xf]
      %v338 = vld [vmem:[%s276 + $0x74] sm:$0xf]
      %v339 = vld [vmem:[%s276 + $0x78] sm:$0xf]
      %v340 = vld [vmem:[%s276 + $0x7c] sm:$0xf]
      %v341 = vld [vmem:[%s276 + $0x80] sm:$0xf]
      %v342 = vld [vmem:[%s276 + $0x84] sm:$0xf]
      %v343 = vld [vmem:[%s276 + $0x88] sm:$0xf]
      %v344 = vld [vmem:[%s276 + $0x8c] sm:$0xf]
      %v345 = vld [vmem:[%s276 + $0x90] sm:$0xf]
      %v346 = vld [vmem:[%s276 + $0x94] sm:$0xf]
      %v347 = vld [vmem:[%s276 + $0x98] sm:$0xf]
      %v348 = vld [vmem:[%s276 + $0x9c] sm:$0xf]
      %v349 = vld [vmem:[%s276 + $0xa0] sm:$0xf]
      %v350 = vld [vmem:[%s276 + $0xa4] sm:$0xf]
      %v351 = vld [vmem:[%s276 + $0xa8] sm:$0xf]
      %v352 = vld [vmem:[%s276 + $0xac] sm:$0xf]
      %v353 = vld [vmem:[%s276 + $0xb0] sm:$0xf]
      %v354 = vld [vmem:[%s276 + $0xb4] sm:$0xf]
      %v355 = vld [vmem:[%s276 + $0xb8] sm:$0xf]
      %v356 = vld [vmem:[%s276 + $0xbc] sm:$0xf]
      %v357 = vld [vmem:[%s276 + $0xc0] sm:$0xf]
      %v358 = vld [vmem:[%s276 + $0xc4] sm:$0xf]
      %v359 = vld [vmem:[%s276 + $0xc8] sm:$0xf]
      %v360 = vld [vmem:[%s276 + $0xcc] sm:$0xf]
      %v361 = vld [vmem:[%s276 + $0xd0] sm:$0xf]
      %v362 = vld [vmem:[%s276 + $0xd4] sm:$0xf]
      %v363 = vld [vmem:[%s276 + $0xd8] sm:$0xf]
      %v364 = vld [vmem:[%s276 + $0xdc] sm:$0xf]
      %v365 = vld [vmem:[%s276 + $0xe0] sm:$0xf]
      %v366 = vld [vmem:[%s276 + $0xe4] sm:$0xf]
      %v367 = vld [vmem:[%s276 + $0xe8] sm:$0xf]
      %v368 = vld [vmem:[%s276 + $0xec] sm:$0xf]
      %v369 = vld [vmem:[%s276 + $0xf0] sm:$0xf]
      %v370 = vld [vmem:[%s276 + $0xf4] sm:$0xf]
      %v371 = vld [vmem:[%s276 + $0xf8] sm:$0xf]
      %v372 = vld [vmem:[%s276 + $0xfc] sm:$0xf]
      %v437 = vunpack.c.l.b16 %v309
      %v438 = vunpack.c.l.b16 %v310
      %v439 = vunpack.c.l.b16 %v311
      %v440 = vunpack.c.l.b16 %v312
      %v441 = vunpack.c.l.b16 %v313
      %v442 = vunpack.c.l.b16 %v314
      %v443 = vunpack.c.l.b16 %v315
      %v444 = vunpack.c.l.b16 %v316
      %v445 = vunpack.c.l.b16 %v317
      %v446 = vunpack.c.l.b16 %v318
      %v447 = vunpack.c.l.b16 %v319
      %v448 = vunpack.c.l.b16 %v320
      %v449 = vunpack.c.l.b16 %v321
      %v450 = vunpack.c.l.b16 %v322
      %v451 = vunpack.c.l.b16 %v323
      %v452 = vunpack.c.l.b16 %v324
      %v453 = vunpack.c.l.b16 %v325
      %v454 = vunpack.c.l.b16 %v326
      %v455 = vunpack.c.l.b16 %v327
      %v456 = vunpack.c.l.b16 %v328
      %v457 = vunpack.c.l.b16 %v329
      %v458 = vunpack.c.l.b16 %v330
      %v459 = vunpack.c.l.b16 %v331
      %v460 = vunpack.c.l.b16 %v332
      %v461 = vunpack.c.l.b16 %v333
      %v462 = vunpack.c.l.b16 %v334
      %v463 = vunpack.c.l.b16 %v335
      %v464 = vunpack.c.l.b16 %v336
      %v465 = vunpack.c.l.b16 %v337
      %v466 = vunpack.c.l.b16 %v338
      %v467 = vunpack.c.l.b16 %v339
      %v468 = vunpack.c.l.b16 %v340
      %v469 = vunpack.c.l.b16 %v341
      %v470 = vunpack.c.l.b16 %v342
      %v471 = vunpack.c.l.b16 %v343
      %v472 = vunpack.c.l.b16 %v344
      %v473 = vunpack.c.l.b16 %v345
      %v474 = vunpack.c.l.b16 %v346
      %v475 = vunpack.c.l.b16 %v347
      %v476 = vunpack.c.l.b16 %v348
      %v477 = vunpack.c.l.b16 %v349
      %v478 = vunpack.c.l.b16 %v350
      %v479 = vunpack.c.l.b16 %v351
      %v480 = vunpack.c.l.b16 %v352
      %v481 = vunpack.c.l.b16 %v353
      %v482 = vunpack.c.l.b16 %v354
      %v483 = vunpack.c.l.b16 %v355
      %v484 = vunpack.c.l.b16 %v356
      %v485 = vunpack.c.l.b16 %v357
      %v486 = vunpack.c.l.b16 %v358
      %v487 = vunpack.c.l.b16 %v359
      %v488 = vunpack.c.l.b16 %v360
      %v489 = vunpack.c.l.b16 %v361
      %v490 = vunpack.c.l.b16 %v362
      %v491 = vunpack.c.l.b16 %v363
      %v492 = vunpack.c.l.b16 %v364
      %v493 = vunpack.c.l.b16 %v365
      %v494 = vunpack.c.l.b16 %v366
      %v495 = vunpack.c.l.b16 %v367
      %v496 = vunpack.c.l.b16 %v368
      %v497 = vunpack.c.l.b16 %v369
      %v498 = vunpack.c.l.b16 %v370
      %v499 = vunpack.c.l.b16 %v371
      %v500 = vunpack.c.l.b16 %v372
      %v501 = vpack.c.b16 %v438, %v437
      %v502 = vpack.c.b16 %v440, %v439
      %v503 = vpack.c.b16 %v442, %v441
      %v504 = vpack.c.b16 %v444, %v443
      %v505 = vpack.c.b16 %v446, %v445
      %v506 = vpack.c.b16 %v448, %v447
      %v507 = vpack.c.b16 %v450, %v449
      %v508 = vpack.c.b16 %v452, %v451
      %v509 = vpack.c.b16 %v454, %v453
      %v510 = vpack.c.b16 %v456, %v455
      %v511 = vpack.c.b16 %v458, %v457
      %v512 = vpack.c.b16 %v460, %v459
      %v513 = vpack.c.b16 %v462, %v461
      %v514 = vpack.c.b16 %v464, %v463
      %v515 = vpack.c.b16 %v466, %v465
      %v516 = vpack.c.b16 %v468, %v467
      %v517 = vpack.c.b16 %v470, %v469
      %v518 = vpack.c.b16 %v472, %v471
      %v519 = vpack.c.b16 %v474, %v473
      %v520 = vpack.c.b16 %v476, %v475
      %v521 = vpack.c.b16 %v478, %v477
      %v522 = vpack.c.b16 %v480, %v479
      %v523 = vpack.c.b16 %v482, %v481
      %v524 = vpack.c.b16 %v484, %v483
      %v525 = vpack.c.b16 %v486, %v485
      %v526 = vpack.c.b16 %v488, %v487
      %v527 = vpack.c.b16 %v490, %v489
      %v528 = vpack.c.b16 %v492, %v491
      %v529 = vpack.c.b16 %v494, %v493
      %v530 = vpack.c.b16 %v496, %v495
      %v531 = vpack.c.b16 %v498, %v497
      %v532 = vpack.c.b16 %v500, %v499
      %565 = vst [vmem:[#allocation2] sm:$0xff] %v501
      %566 = vst [vmem:[#allocation2 + $0x8] sm:$0xff] %v502
      %567 = vst [vmem:[#allocation2 + $0x10] sm:$0xff] %v503
      %568 = vst [vmem:[#allocation2 + $0x18] sm:$0xff] %v504
      %569 = vst [vmem:[#allocation2 + $0x20] sm:$0xff] %v505
      %570 = vst [vmem:[#allocation2 + $0x28] sm:$0xff] %v506
      %571 = vst [vmem:[#allocation2 + $0x30] sm:$0xff] %v507
      %572 = vst [vmem:[#allocation2 + $0x38] sm:$0xff] %v508
      %573 = vst [vmem:[#allocation2 + $0x40] sm:$0xff] %v509
      %574 = vst [vmem:[#allocation2 + $0x48] sm:$0xff] %v510
      %575 = vst [vmem:[#allocation2 + $0x50] sm:$0xff] %v511
      %576 = vst [vmem:[#allocation2 + $0x58] sm:$0xff] %v512
      %577 = vst [vmem:[#allocation2 + $0x60] sm:$0xff] %v513
      %578 = vst [vmem:[#allocation2 + $0x68] sm:$0xff] %v514
      %579 = vst [vmem:[#allocation2 + $0x70] sm:$0xff] %v515
      %580 = vst [vmem:[#allocation2 + $0x78] sm:$0xff] %v516
      %581 = vst [vmem:[#allocation2 + $0x80] sm:$0xff] %v517
      %582 = vst [vmem:[#allocation2 + $0x88] sm:$0xff] %v518
      %583 = vst [vmem:[#allocation2 + $0x90] sm:$0xff] %v519
      %584 = vst [vmem:[#allocation2 + $0x98] sm:$0xff] %v520
      %585 = vst [vmem:[#allocation2 + $0xa0] sm:$0xff] %v521
      %586 = vst [vmem:[#allocation2 + $0xa8] sm:$0xff] %v522
      %587 = vst [vmem:[#allocation2 + $0xb0] sm:$0xff] %v523
      %588 = vst [vmem:[#allocation2 + $0xb8] sm:$0xff] %v524
      %589 = vst [vmem:[#allocation2 + $0xc0] sm:$0xff] %v525
      %590 = vst [vmem:[#allocation2 + $0xc8] sm:$0xff] %v526
      %591 = vst [vmem:[#allocation2 + $0xd0] sm:$0xff] %v527
      %592 = vst [vmem:[#allocation2 + $0xd8] sm:$0xff] %v528
      %593 = vst [vmem:[#allocation2 + $0xe0] sm:$0xff] %v529
      %594 = vst [vmem:[#allocation2 + $0xe8] sm:$0xff] %v530
      %595 = vst [vmem:[#allocation2 + $0xf0] sm:$0xff] %v531
      %596 = vst [vmem:[#allocation2 + $0xf8] sm:$0xff] %v532
      %v597 = vld [vmem:[%s288] sm:$0xf]
      %v598 = vld [vmem:[%s288 + $0x4] sm:$0xf]
      %v599 = vld [vmem:[%s288 + $0x8] sm:$0xf]
      %v600 = vld [vmem:[%s288 + $0xc] sm:$0xf]
      %v601 = vld [vmem:[%s288 + $0x10] sm:$0xf]
      %v602 = vld [vmem:[%s288 + $0x14] sm:$0xf]
      %v603 = vld [vmem:[%s288 + $0x18] sm:$0xf]
      %v604 = vld [vmem:[%s288 + $0x1c] sm:$0xf]
      %v613 = vunpack.c.l.b16 %v597
      %v614 = vunpack.c.l.b16 %v598
      %v615 = vunpack.c.l.b16 %v599
      %v616 = vunpack.c.l.b16 %v600
      %v617 = vunpack.c.l.b16 %v601
      %v618 = vunpack.c.l.b16 %v602
      %v619 = vunpack.c.l.b16 %v603
      %v620 = vunpack.c.l.b16 %v604
      %v621 = vpack.c.b16 %v614, %v613
      %v622 = vpack.c.b16 %v616, %v615
      %v623 = vpack.c.b16 %v618, %v617
      %v624 = vpack.c.b16 %v620, %v619
      %629 = vst [vmem:[#allocation2 + $0x100] sm:$0xff] %v621
      %630 = vst [vmem:[#allocation2 + $0x108] sm:$0xff] %v622
      %631 = vst [vmem:[#allocation2 + $0x110] sm:$0xff] %v623
      %632 = vst [vmem:[#allocation2 + $0x118] sm:$0xff] %v624
      %v633 = vld [vmem:[#allocation2] sm:$0xff]
      %v634 = vld [vmem:[#allocation2 + $0x8] sm:$0xff]
      %v635 = vld [vmem:[#allocation2 + $0x10] sm:$0xff]
      %v636 = vld [vmem:[#allocation2 + $0x18] sm:$0xff]
      %v637 = vld [vmem:[#allocation2 + $0x20] sm:$0xff]
      %v638 = vld [vmem:[#allocation2 + $0x28] sm:$0xff]
      %v639 = vld [vmem:[#allocation2 + $0x30] sm:$0xff]
      %v640 = vld [vmem:[#allocation2 + $0x38] sm:$0xff]
      %v641 = vld [vmem:[#allocation2 + $0x40] sm:$0xff]
      %v642 = vld [vmem:[#allocation2 + $0x48] sm:$0xff]
      %v643 = vld [vmem:[#allocation2 + $0x50] sm:$0xff]
      %v644 = vld [vmem:[#allocation2 + $0x58] sm:$0xff]
      %v645 = vld [vmem:[#allocation2 + $0x60] sm:$0xff]
      %v646 = vld [vmem:[#allocation2 + $0x68] sm:$0xff]
      %v647 = vld [vmem:[#allocation2 + $0x70] sm:$0xff]
      %v648 = vld [vmem:[#allocation2 + $0x78] sm:$0xff]
      %v649 = vld [vmem:[#allocation2 + $0x80] sm:$0xff]
      %v650 = vld [vmem:[#allocation2 + $0x88] sm:$0xff]
      %v651 = vld [vmem:[#allocation2 + $0x90] sm:$0xff]
      %v652 = vld [vmem:[#allocation2 + $0x98] sm:$0xff]
      %v653 = vld [vmem:[#allocation2 + $0xa0] sm:$0xff]
      %v654 = vld [vmem:[#allocation2 + $0xa8] sm:$0xff]
      %v655 = vld [vmem:[#allocation2 + $0xb0] sm:$0xff]
      %v656 = vld [vmem:[#allocation2 + $0xb8] sm:$0xff]
      %v657 = vld [vmem:[#allocation2 + $0xc0] sm:$0xff]
      %v658 = vld [vmem:[#allocation2 + $0xc8] sm:$0xff]
      %v659 = vld [vmem:[#allocation2 + $0xd0] sm:$0xff]
      %v660 = vld [vmem:[#allocation2 + $0xd8] sm:$0xff]
      %v661 = vld [vmem:[#allocation2 + $0xe0] sm:$0xff]
      %v662 = vld [vmem:[#allocation2 + $0xe8] sm:$0xff]
      %v663 = vld [vmem:[#allocation2 + $0xf0] sm:$0xff]
      %v664 = vld [vmem:[#allocation2 + $0xf8] sm:$0xff]
      %v665 = vld [vmem:[%s295] sm:$0xf]
      %v666 = vld [vmem:[%s295 + $0x4] sm:$0xf]
      %v667 = vld [vmem:[%s295 + $0x8] sm:$0xf]
      %v668 = vld [vmem:[%s295 + $0xc] sm:$0xf]
      %v669 = vld [vmem:[%s295 + $0x10] sm:$0xf]
      %v670 = vld [vmem:[%s295 + $0x14] sm:$0xf]
      %v671 = vld [vmem:[%s295 + $0x18] sm:$0xf]
      %v672 = vld [vmem:[%s295 + $0x1c] sm:$0xf]
      %v673 = vld [vmem:[%s295 + $0x20] sm:$0xf]
      %v674 = vld [vmem:[%s295 + $0x24] sm:$0xf]
      %v675 = vld [vmem:[%s295 + $0x28] sm:$0xf]
      %v676 = vld [vmem:[%s295 + $0x2c] sm:$0xf]
      %v677 = vld [vmem:[%s295 + $0x30] sm:$0xf]
      %v678 = vld [vmem:[%s295 + $0x34] sm:$0xf]
      %v679 = vld [vmem:[%s295 + $0x38] sm:$0xf]
      %v680 = vld [vmem:[%s295 + $0x3c] sm:$0xf]
      %v681 = vld [vmem:[#allocation2 + $0x100] sm:$0x1]
      %s682 = scalar_lea.vmem %s295, 64
      %v683 = vld [vmem:[%s682] sm:$0xf]
      %v684 = vld [vmem:[%s682 + $0x4] sm:$0xf]
      %v685 = vld [vmem:[%s682 + $0x8] sm:$0xf]
      %v686 = vld [vmem:[%s682 + $0xc] sm:$0xf]
      %v687 = vld [vmem:[%s682 + $0x10] sm:$0xf]
      %v688 = vld [vmem:[%s682 + $0x14] sm:$0xf]
      %v689 = vld [vmem:[%s682 + $0x18] sm:$0xf]
      %v690 = vld [vmem:[%s682 + $0x1c] sm:$0xf]
      %v691 = vld [vmem:[%s682 + $0x20] sm:$0xf]
      %v692 = vld [vmem:[%s682 + $0x24] sm:$0xf]
      %v693 = vld [vmem:[%s682 + $0x28] sm:$0xf]
      %v694 = vld [vmem:[%s682 + $0x2c] sm:$0xf]
      %v695 = vld [vmem:[%s682 + $0x30] sm:$0xf]
      %v696 = vld [vmem:[%s682 + $0x34] sm:$0xf]
      %v697 = vld [vmem:[%s682 + $0x38] sm:$0xf]
      %v698 = vld [vmem:[%s682 + $0x3c] sm:$0xf]
      %vm699 = vsmask.f32 7424
      %v701 = vshrl.u32 %v633, 16
      %v703 = vshll.u32 %v633, 16
      %v705 = vrot.slane %v703, 1
      %v706 = vor.u32 %v701, %v705
      %v708 = vshll.u32 %v634, 16
      %v710 = vrot.slane %v708, 1
      %v711 = vsel %vm699, %v706, %v710
      %v712 = vshrl.u32 %v634, 16
      %v714 = vor.u32 %v712, %v710
      %v716 = vshll.u32 %v635, 16
      %v718 = vrot.slane %v716, 1
      %v719 = vsel %vm699, %v714, %v718
      %v720 = vshrl.u32 %v635, 16
      %v722 = vor.u32 %v720, %v718
      %v724 = vshll.u32 %v636, 16
      %v726 = vrot.slane %v724, 1
      %v727 = vsel %vm699, %v722, %v726
      %v728 = vshrl.u32 %v636, 16
      %v730 = vor.u32 %v728, %v726
      %v732 = vshll.u32 %v637, 16
      %v734 = vrot.slane %v732, 1
      %v735 = vsel %vm699, %v730, %v734
      %v736 = vshrl.u32 %v637, 16
      %v738 = vor.u32 %v736, %v734
      %v740 = vshll.u32 %v638, 16
      %v742 = vrot.slane %v740, 1
      %v743 = vsel %vm699, %v738, %v742
      %v744 = vshrl.u32 %v638, 16
      %v746 = vor.u32 %v744, %v742
      %v748 = vshll.u32 %v639, 16
      %v750 = vrot.slane %v748, 1
      %v751 = vsel %vm699, %v746, %v750
      %v752 = vshrl.u32 %v639, 16
      %v754 = vor.u32 %v752, %v750
      %v756 = vshll.u32 %v640, 16
      %v758 = vrot.slane %v756, 1
      %v759 = vsel %vm699, %v754, %v758
      %v760 = vshrl.u32 %v640, 16
      %v762 = vor.u32 %v760, %v758
      %v764 = vshll.u32 %v641, 16
      %v766 = vrot.slane %v764, 1
      %v767 = vsel %vm699, %v762, %v766
      %v768 = vshrl.u32 %v641, 16
      %v770 = vor.u32 %v768, %v766
      %v772 = vshll.u32 %v642, 16
      %v774 = vrot.slane %v772, 1
      %v775 = vsel %vm699, %v770, %v774
      %v776 = vshrl.u32 %v642, 16
      %v778 = vor.u32 %v776, %v774
      %v780 = vshll.u32 %v643, 16
      %v782 = vrot.slane %v780, 1
      %v783 = vsel %vm699, %v778, %v782
      %v784 = vshrl.u32 %v643, 16
      %v786 = vor.u32 %v784, %v782
      %v788 = vshll.u32 %v644, 16
      %v790 = vrot.slane %v788, 1
      %v791 = vsel %vm699, %v786, %v790
      %v792 = vshrl.u32 %v644, 16
      %v794 = vor.u32 %v792, %v790
      %v796 = vshll.u32 %v645, 16
      %v798 = vrot.slane %v796, 1
      %v799 = vsel %vm699, %v794, %v798
      %v800 = vshrl.u32 %v645, 16
      %v802 = vor.u32 %v800, %v798
      %v804 = vshll.u32 %v646, 16
      %v806 = vrot.slane %v804, 1
      %v807 = vsel %vm699, %v802, %v806
      %v808 = vshrl.u32 %v646, 16
      %v810 = vor.u32 %v808, %v806
      %v812 = vshll.u32 %v647, 16
      %v814 = vrot.slane %v812, 1
      %v815 = vsel %vm699, %v810, %v814
      %v816 = vshrl.u32 %v647, 16
      %v818 = vor.u32 %v816, %v814
      %v820 = vshll.u32 %v648, 16
      %v822 = vrot.slane %v820, 1
      %v823 = vsel %vm699, %v818, %v822
      %v824 = vshrl.u32 %v648, 16
      %v826 = vor.u32 %v824, %v822
      %v828 = vshll.u32 %v649, 16
      %v830 = vrot.slane %v828, 1
      %v831 = vsel %vm699, %v826, %v830
      %v832 = vshrl.u32 %v649, 16
      %v834 = vor.u32 %v832, %v830
      %v836 = vshll.u32 %v650, 16
      %v838 = vrot.slane %v836, 1
      %v839 = vsel %vm699, %v834, %v838
      %v840 = vshrl.u32 %v650, 16
      %v842 = vor.u32 %v840, %v838
      %v844 = vshll.u32 %v651, 16
      %v846 = vrot.slane %v844, 1
      %v847 = vsel %vm699, %v842, %v846
      %v848 = vshrl.u32 %v651, 16
      %v850 = vor.u32 %v848, %v846
      %v852 = vshll.u32 %v652, 16
      %v854 = vrot.slane %v852, 1
      %v855 = vsel %vm699, %v850, %v854
      %v856 = vshrl.u32 %v652, 16
      %v858 = vor.u32 %v856, %v854
      %v860 = vshll.u32 %v653, 16
      %v862 = vrot.slane %v860, 1
      %v863 = vsel %vm699, %v858, %v862
      %v864 = vshrl.u32 %v653, 16
      %v866 = vor.u32 %v864, %v862
      %v868 = vshll.u32 %v654, 16
      %v870 = vrot.slane %v868, 1
      %v871 = vsel %vm699, %v866, %v870
      %v872 = vshrl.u32 %v654, 16
      %v874 = vor.u32 %v872, %v870
      %v876 = vshll.u32 %v655, 16
      %v878 = vrot.slane %v876, 1
      %v879 = vsel %vm699, %v874, %v878
      %v880 = vshrl.u32 %v655, 16
      %v882 = vor.u32 %v880, %v878
      %v884 = vshll.u32 %v656, 16
      %v886 = vrot.slane %v884, 1
      %v887 = vsel %vm699, %v882, %v886
      %v888 = vshrl.u32 %v656, 16
      %v890 = vor.u32 %v888, %v886
      %v892 = vshll.u32 %v657, 16
      %v894 = vrot.slane %v892, 1
      %v895 = vsel %vm699, %v890, %v894
      %v896 = vshrl.u32 %v657, 16
      %v898 = vor.u32 %v896, %v894
      %v900 = vshll.u32 %v658, 16
      %v902 = vrot.slane %v900, 1
      %v903 = vsel %vm699, %v898, %v902
      %v904 = vshrl.u32 %v658, 16
      %v906 = vor.u32 %v904, %v902
      %v908 = vshll.u32 %v659, 16
      %v910 = vrot.slane %v908, 1
      %v911 = vsel %vm699, %v906, %v910
      %v912 = vshrl.u32 %v659, 16
      %v914 = vor.u32 %v912, %v910
      %v916 = vshll.u32 %v660, 16
      %v918 = vrot.slane %v916, 1
      %v919 = vsel %vm699, %v914, %v918
      %v920 = vshrl.u32 %v660, 16
      %v922 = vor.u32 %v920, %v918
      %v924 = vshll.u32 %v661, 16
      %v926 = vrot.slane %v924, 1
      %v927 = vsel %vm699, %v922, %v926
      %v928 = vshrl.u32 %v661, 16
      %v930 = vor.u32 %v928, %v926
      %v932 = vshll.u32 %v662, 16
      %v934 = vrot.slane %v932, 1
      %v935 = vsel %vm699, %v930, %v934
      %v936 = vshrl.u32 %v662, 16
      %v938 = vor.u32 %v936, %v934
      %v940 = vshll.u32 %v663, 16
      %v942 = vrot.slane %v940, 1
      %v943 = vsel %vm699, %v938, %v942
      %v944 = vshrl.u32 %v663, 16
      %v946 = vor.u32 %v944, %v942
      %v948 = vshll.u32 %v664, 16
      %v950 = vrot.slane %v948, 1
      %v951 = vsel %vm699, %v946, %v950
      %v952 = vshrl.u32 %v664, 16
      %v954 = vor.u32 %v952, %v950
      %v956 = vshll.u32 %v681, 16
      %v958 = vrot.slane %v956, 1
      %v959 = vsel %vm699, %v954, %v958
      %v1008 = vunpack.c.l.b16 %v683
      %v1009 = vunpack.c.l.b16 %v684
      %v1010 = vunpack.c.l.b16 %v685
      %v1011 = vunpack.c.l.b16 %v686
      %v1012 = vunpack.c.l.b16 %v687
      %v1013 = vunpack.c.l.b16 %v688
      %v1014 = vunpack.c.l.b16 %v689
      %v1015 = vunpack.c.l.b16 %v690
      %v1016 = vunpack.c.l.b16 %v691
      %v1017 = vunpack.c.l.b16 %v692
      %v1018 = vunpack.c.l.b16 %v693
      %v1019 = vunpack.c.l.b16 %v694
      %v1020 = vunpack.c.l.b16 %v695
      %v1021 = vunpack.c.l.b16 %v696
      %v1022 = vunpack.c.l.b16 %v697
      %v1023 = vunpack.c.l.b16 %v698
      %v1024 = vpack.c.b16 %v1009, %v1008
      %v1025 = vpack.c.b16 %v1011, %v1010
      %v1026 = vpack.c.b16 %v1013, %v1012
      %v1027 = vpack.c.b16 %v1015, %v1014
      %v1028 = vpack.c.b16 %v1017, %v1016
      %v1029 = vpack.c.b16 %v1019, %v1018
      %v1030 = vpack.c.b16 %v1021, %v1020
      %v1031 = vpack.c.b16 %v1023, %v1022
      %1040 = vmatprep.subr.bf16.mxu0 0
      %1041 = vmatpush1.bf16.msra.mxu0 %v1024
      %1042 = vmatprep.subr.bf16.mxu0 0
      %1043 = vmatpush1.bf16.msra.mxu0 %v1025
      %1044 = vmatprep.subr.bf16.mxu0 0
      %1045 = vmatpush1.bf16.msra.mxu0 %v1026
      %1046 = vmatprep.subr.bf16.mxu0 0
      %1047 = vmatpush1.bf16.msra.mxu0 %v1027
      %1048 = vmatprep.subr.bf16.mxu0 0
      %1049 = vmatpush1.bf16.msra.mxu0 %v1028
      %1050 = vmatprep.subr.bf16.mxu0 0
      %1051 = vmatpush1.bf16.msra.mxu0 %v1029
      %1052 = vmatprep.subr.bf16.mxu0 0
      %1053 = vmatpush1.bf16.msra.mxu0 %v1030
      %1054 = vmatprep.subr.bf16.mxu0 0
      %1055 = vmatpush1.bf16.msra.mxu0 %v1031
      %1056 = vmatprep.subr.bf16.mxu0 0
      %1057 = vmatpush1.bf16.msra.mxu0 0
      %1058 = vmatprep.subr.bf16.mxu0 0
      %1059 = vmatpush1.bf16.msra.mxu0 0
      %1060 = vmatprep.subr.bf16.mxu0 0
      %1061 = vmatpush1.bf16.msra.mxu0 0
      %1062 = vmatprep.subr.bf16.mxu0 0
      %1063 = vmatpush1.bf16.msra.mxu0 0
      %1064 = vmatprep.subr.bf16.mxu0 0
      %1065 = vmatpush1.bf16.msra.mxu0 0
      %1066 = vmatprep.subr.bf16.mxu0 0
      %1067 = vmatpush1.bf16.msra.mxu0 0
      %1068 = vmatprep.subr.bf16.mxu0 0
      %1069 = vmatpush1.bf16.msra.mxu0 0
      %1070 = vmatprep.subr.bf16.mxu0 0
      %1071 = vmatpush1.bf16.msra.mxu0 0
      %1072 = vmatprep.mubr.bf16.mxu0 0
      %1073 = vmatmul.mubr.bf16.gmra.mrb[0].mxu0 %v711
      %v1074 = vpop.f32.mrb[0].mxu0
      %v1075 = vadd.f32 0.0, %v1074
      %v1076 = vpop.f32.mrb[0].mxu0
      %v1077 = vpop.f32.mrb[0].mxu0
      %v1078 = vadd.f32 0.0, %v1077
      %v1079 = vpop.f32.mrb[0].mxu0
      %1080 = vmatprep.mubr.bf16.mxu0 0
      %1081 = vmatmul.mubr.bf16.gmra.mrb[0].mxu0 %v719
      %v1082 = vpop.f32.mrb[0].mxu0
      %v1083 = vadd.f32 0.0, %v1082
      %v1084 = vpop.f32.mrb[0].mxu0
      %v1085 = vpop.f32.mrb[0].mxu0
      %v1086 = vadd.f32 0.0, %v1085
      %v1087 = vpop.f32.mrb[0].mxu0
      %1088 = vmatprep.mubr.bf16.mxu0 0
      %1089 = vmatmul.mubr.bf16.gmra.mrb[0].mxu0 %v727
      %v1090 = vpop.f32.mrb[0].mxu0
      %v1091 = vadd.f32 0.0, %v1090
      %v1092 = vpop.f32.mrb[0].mxu0
      %v1093 = vpop.f32.mrb[0].mxu0
      %v1094 = vadd.f32 0.0, %v1093
      %v1095 = vpop.f32.mrb[0].mxu0
      %1096 = vmatprep.mubr.bf16.mxu0 0
      %1097 = vmatmul.mubr.bf16.gmra.mrb[0].mxu0 %v735
      %v1098 = vpop.f32.mrb[0].mxu0
      %v1099 = vadd.f32 0.0, %v1098
      %v1100 = vpop.f32.mrb[0].mxu0
      %v1101 = vpop.f32.mrb[0].mxu0
      %v1102 = vadd.f32 0.0, %v1101
      %v1103 = vpop.f32.mrb[0].mxu0
      %1104 = vmatprep.mubr.bf16.mxu0 0
      %1105 = vmatmul.mubr.bf16.gmra.mrb[0].mxu0 %v743
      %v1106 = vpop.f32.mrb[0].mxu0
      %v1107 = vadd.f32 0.0, %v1106
      %v1108 = vpop.f32.mrb[0].mxu0
      %v1109 = vpop.f32.mrb[0].mxu0
      %v1110 = vadd.f32 0.0, %v1109
      %v1111 = vpop.f32.mrb[0].mxu0
      %1112 = vmatprep.mubr.bf16.mxu0 0
      %1113 = vmatmul.mubr.bf16.gmra.mrb[0].mxu0 %v751
      %v1114 = vpop.f32.mrb[0].mxu0
      %v1115 = vadd.f32 0.0, %v1114
      %v1116 = vpop.f32.mrb[0].mxu0
      %v1117 = vpop.f32.mrb[0].mxu0
      %v1118 = vadd.f32 0.0, %v1117
      %v1119 = vpop.f32.mrb[0].mxu0
      %1120 = vmatprep.mubr.bf16.mxu0 0
      %1121 = vmatmul.mubr.bf16.gmra.mrb[0].mxu0 %v759
      %v1122 = vpop.f32.mrb[0].mxu0
      %v1123 = vadd.f32 0.0, %v1122
      %v1124 = vpop.f32.mrb[0].mxu0
      %v1125 = vpop.f32.mrb[0].mxu0
      %v1126 = vadd.f32 0.0, %v1125
      %v1127 = vpop.f32.mrb[0].mxu0
      %1128 = vmatprep.mubr.bf16.mxu0 0
      %1129 = vmatmul.mubr.bf16.gmra.mrb[0].mxu0 %v767
      %v1130 = vpop.f32.mrb[0].mxu0
      %v1131 = vadd.f32 0.0, %v1130
      %v1132 = vpop.f32.mrb[0].mxu0
      %v1133 = vpop.f32.mrb[0].mxu0
      %v1134 = vadd.f32 0.0, %v1133
      %v1135 = vpop.f32.mrb[0].mxu0
      %1136 = vmatprep.mubr.bf16.mxu0 0
      %1137 = vmatmul.mubr.bf16.gmra.mrb[0].mxu0 %v775
      %v1138 = vpop.f32.mrb[0].mxu0
      %v1139 = vadd.f32 0.0, %v1138
      %v1140 = vpop.f32.mrb[0].mxu0
      %v1141 = vpop.f32.mrb[0].mxu0
      %v1142 = vadd.f32 0.0, %v1141
      %v1143 = vpop.f32.mrb[0].mxu0
      %1144 = vmatprep.mubr.bf16.mxu0 0
      %1145 = vmatmul.mubr.bf16.gmra.mrb[0].mxu0 %v783
      %v1146 = vpop.f32.mrb[0].mxu0
      %v1147 = vadd.f32 0.0, %v1146
      %v1148 = vpop.f32.mrb[0].mxu0
      %v1149 = vpop.f32.mrb[0].mxu0
      %v1150 = vadd.f32 0.0, %v1149
      %v1151 = vpop.f32.mrb[0].mxu0
      %1152 = vmatprep.mubr.bf16.mxu0 0
      %1153 = vmatmul.mubr.bf16.gmra.mrb[0].mxu0 %v791
      %v1154 = vpop.f32.mrb[0].mxu0
      %v1155 = vadd.f32 0.0, %v1154
      %v1156 = vpop.f32.mrb[0].mxu0
      %v1157 = vpop.f32.mrb[0].mxu0
      %v1158 = vadd.f32 0.0, %v1157
      %v1159 = vpop.f32.mrb[0].mxu0
      %1160 = vmatprep.mubr.bf16.mxu0 0
      %1161 = vmatmul.mubr.bf16.gmra.mrb[0].mxu0 %v799
      %v1162 = vpop.f32.mrb[0].mxu0
      %v1163 = vadd.f32 0.0, %v1162
      %v1164 = vpop.f32.mrb[0].mxu0
      %v1165 = vpop.f32.mrb[0].mxu0
      %v1166 = vadd.f32 0.0, %v1165
      %v1167 = vpop.f32.mrb[0].mxu0
      %1168 = vmatprep.mubr.bf16.mxu0 0
      %1169 = vmatmul.mubr.bf16.gmra.mrb[0].mxu0 %v807
      %v1170 = vpop.f32.mrb[0].mxu0
      %v1171 = vadd.f32 0.0, %v1170
      %v1172 = vpop.f32.mrb[0].mxu0
      %v1173 = vpop.f32.mrb[0].mxu0
      %v1174 = vadd.f32 0.0, %v1173
      %v1175 = vpop.f32.mrb[0].mxu0
      %1176 = vmatprep.mubr.bf16.mxu0 0
      %1177 = vmatmul.mubr.bf16.gmra.mrb[0].mxu0 %v815
      %v1178 = vpop.f32.mrb[0].mxu0
      %v1179 = vadd.f32 0.0, %v1178
      %v1180 = vpop.f32.mrb[0].mxu0
      %v1181 = vpop.f32.mrb[0].mxu0
      %v1182 = vadd.f32 0.0, %v1181
      %v1183 = vpop.f32.mrb[0].mxu0
      %1184 = vmatprep.mubr.bf16.mxu0 0
      %1185 = vmatmul.mubr.bf16.gmra.mrb[0].mxu0 %v823
      %v1186 = vpop.f32.mrb[0].mxu0
      %v1187 = vadd.f32 0.0, %v1186
      %v1188 = vpop.f32.mrb[0].mxu0
      %v1189 = vpop.f32.mrb[0].mxu0
      %v1190 = vadd.f32 0.0, %v1189
      %v1191 = vpop.f32.mrb[0].mxu0
      %1192 = vmatprep.mubr.bf16.mxu0 0
      %1193 = vmatmul.mubr.bf16.gmra.mrb[0].mxu0 %v831
      %v1194 = vpop.f32.mrb[0].mxu0
      %v1195 = vadd.f32 0.0, %v1194
      %v1196 = vpop.f32.mrb[0].mxu0
      %v1197 = vpop.f32.mrb[0].mxu0
      %v1198 = vadd.f32 0.0, %v1197
      %v1199 = vpop.f32.mrb[0].mxu0
      %1200 = vmatprep.mubr.bf16.mxu0 0
      %1201 = vmatmul.mubr.bf16.gmra.mrb[0].mxu0 %v839
      %v1202 = vpop.f32.mrb[0].mxu0
      %v1203 = vadd.f32 0.0, %v1202
      %v1204 = vpop.f32.mrb[0].mxu0
      %v1205 = vpop.f32.mrb[0].mxu0
      %v1206 = vadd.f32 0.0, %v1205
      %v1207 = vpop.f32.mrb[0].mxu0
      %1208 = vmatprep.mubr.bf16.mxu0 0
      %1209 = vmatmul.mubr.bf16.gmra.mrb[0].mxu0 %v847
      %v1210 = vpop.f32.mrb[0].mxu0
      %v1211 = vadd.f32 0.0, %v1210
      %v1212 = vpop.f32.mrb[0].mxu0
      %v1213 = vpop.f32.mrb[0].mxu0
      %v1214 = vadd.f32 0.0, %v1213
      %v1215 = vpop.f32.mrb[0].mxu0
      %1216 = vmatprep.mubr.bf16.mxu0 0
      %1217 = vmatmul.mubr.bf16.gmra.mrb[0].mxu0 %v855
      %v1218 = vpop.f32.mrb[0].mxu0
      %v1219 = vadd.f32 0.0, %v1218
      %v1220 = vpop.f32.mrb[0].mxu0
      %v1221 = vpop.f32.mrb[0].mxu0
      %v1222 = vadd.f32 0.0, %v1221
      %v1223 = vpop.f32.mrb[0].mxu0
      %1224 = vmatprep.mubr.bf16.mxu0 0
      %1225 = vmatmul.mubr.bf16.gmra.mrb[0].mxu0 %v863
      %v1226 = vpop.f32.mrb[0].mxu0
      %v1227 = vadd.f32 0.0, %v1226
      %v1228 = vpop.f32.mrb[0].mxu0
      %v1229 = vpop.f32.mrb[0].mxu0
      %v1230 = vadd.f32 0.0, %v1229
      %v1231 = vpop.f32.mrb[0].mxu0
      %1232 = vmatprep.mubr.bf16.mxu0 0
      %1233 = vmatmul.mubr.bf16.gmra.mrb[0].mxu0 %v871
      %v1234 = vpop.f32.mrb[0].mxu0
      %v1235 = vadd.f32 0.0, %v1234
      %v1236 = vpop.f32.mrb[0].mxu0
      %v1237 = vpop.f32.mrb[0].mxu0
      %v1238 = vadd.f32 0.0, %v1237
      %v1239 = vpop.f32.mrb[0].mxu0
      %1240 = vmatprep.mubr.bf16.mxu0 0
      %1241 = vmatmul.mubr.bf16.gmra.mrb[0].mxu0 %v879
      %v1242 = vpop.f32.mrb[0].mxu0
      %v1243 = vadd.f32 0.0, %v1242
      %v1244 = vpop.f32.mrb[0].mxu0
      %v1245 = vpop.f32.mrb[0].mxu0
      %v1246 = vadd.f32 0.0, %v1245
      %v1247 = vpop.f32.mrb[0].mxu0
      %1248 = vmatprep.mubr.bf16.mxu0 0
      %1249 = vmatmul.mubr.bf16.gmra.mrb[0].mxu0 %v887
      %v1250 = vpop.f32.mrb[0].mxu0
      %v1251 = vadd.f32 0.0, %v1250
      %v1252 = vpop.f32.mrb[0].mxu0
      %v1253 = vpop.f32.mrb[0].mxu0
      %v1254 = vadd.f32 0.0, %v1253
      %v1255 = vpop.f32.mrb[0].mxu0
      %1256 = vmatprep.mubr.bf16.mxu0 0
      %1257 = vmatmul.mubr.bf16.gmra.mrb[0].mxu0 %v895
      %v1258 = vpop.f32.mrb[0].mxu0
      %v1259 = vadd.f32 0.0, %v1258
      %v1260 = vpop.f32.mrb[0].mxu0
      %v1261 = vpop.f32.mrb[0].mxu0
      %v1262 = vadd.f32 0.0, %v1261
      %v1263 = vpop.f32.mrb[0].mxu0
      %1264 = vmatprep.mubr.bf16.mxu0 0
      %1265 = vmatmul.mubr.bf16.gmra.mrb[0].mxu0 %v903
      %v1266 = vpop.f32.mrb[0].mxu0
      %v1267 = vadd.f32 0.0, %v1266
      %v1268 = vpop.f32.mrb[0].mxu0
      %v1269 = vpop.f32.mrb[0].mxu0
      %v1270 = vadd.f32 0.0, %v1269
      %v1271 = vpop.f32.mrb[0].mxu0
      %1272 = vmatprep.mubr.bf16.mxu0 0
      %1273 = vmatmul.mubr.bf16.gmra.mrb[0].mxu0 %v911
      %v1274 = vpop.f32.mrb[0].mxu0
      %v1275 = vadd.f32 0.0, %v1274
      %v1276 = vpop.f32.mrb[0].mxu0
      %v1277 = vpop.f32.mrb[0].mxu0
      %v1278 = vadd.f32 0.0, %v1277
      %v1279 = vpop.f32.mrb[0].mxu0
      %1280 = vmatprep.mubr.bf16.mxu0 0
      %1281 = vmatmul.mubr.bf16.gmra.mrb[0].mxu0 %v919
      %v1282 = vpop.f32.mrb[0].mxu0
      %v1283 = vadd.f32 0.0, %v1282
      %v1284 = vpop.f32.mrb[0].mxu0
      %v1285 = vpop.f32.mrb[0].mxu0
      %v1286 = vadd.f32 0.0, %v1285
      %v1287 = vpop.f32.mrb[0].mxu0
      %1288 = vmatprep.mubr.bf16.mxu0 0
      %1289 = vmatmul.mubr.bf16.gmra.mrb[0].mxu0 %v927
      %v1290 = vpop.f32.mrb[0].mxu0
      %v1291 = vadd.f32 0.0, %v1290
      %v1292 = vpop.f32.mrb[0].mxu0
      %v1293 = vpop.f32.mrb[0].mxu0
      %v1294 = vadd.f32 0.0, %v1293
      %v1295 = vpop.f32.mrb[0].mxu0
      %1296 = vmatprep.mubr.bf16.mxu0 0
      %1297 = vmatmul.mubr.bf16.gmra.mrb[0].mxu0 %v935
      %v1298 = vpop.f32.mrb[0].mxu0
      %v1299 = vadd.f32 0.0, %v1298
      %v1300 = vpop.f32.mrb[0].mxu0
      %v1301 = vpop.f32.mrb[0].mxu0
      %v1302 = vadd.f32 0.0, %v1301
      %v1303 = vpop.f32.mrb[0].mxu0
      %1304 = vmatprep.mubr.bf16.mxu0 0
      %1305 = vmatmul.mubr.bf16.gmra.mrb[0].mxu0 %v943
      %v1306 = vpop.f32.mrb[0].mxu0
      %v1307 = vadd.f32 0.0, %v1306
      %v1308 = vpop.f32.mrb[0].mxu0
      %v1309 = vpop.f32.mrb[0].mxu0
      %v1310 = vadd.f32 0.0, %v1309
      %v1311 = vpop.f32.mrb[0].mxu0
      %1312 = vmatprep.mubr.bf16.mxu0 0
      %1313 = vmatmul.mubr.bf16.gmra.mrb[0].mxu0 %v951
      %v1314 = vpop.f32.mrb[0].mxu0
      %v1315 = vadd.f32 0.0, %v1314
      %v1316 = vpop.f32.mrb[0].mxu0
      %v1317 = vpop.f32.mrb[0].mxu0
      %v1318 = vadd.f32 0.0, %v1317
      %v1319 = vpop.f32.mrb[0].mxu0
      %1320 = vmatprep.mubr.bf16.mxu0 0
      %1321 = vmatmul.mubr.bf16.gmra.mrb[0].mxu0 %v959
      %v1322 = vpop.f32.mrb[0].mxu0
      %v1323 = vadd.f32 0.0, %v1322
      %v1324 = vpop.f32.mrb[0].mxu0
      %v1325 = vpop.f32.mrb[0].mxu0
      %v1326 = vadd.f32 0.0, %v1325
      %v1327 = vpop.f32.mrb[0].mxu0
      %1328 = vdwg.mxu0
      %v1345 = vunpack.c.l.b16 %v665
      %v1346 = vunpack.c.l.b16 %v666
      %v1347 = vunpack.c.l.b16 %v667
      %v1348 = vunpack.c.l.b16 %v668
      %v1349 = vunpack.c.l.b16 %v669
      %v1350 = vunpack.c.l.b16 %v670
      %v1351 = vunpack.c.l.b16 %v671
      %v1352 = vunpack.c.l.b16 %v672
      %v1353 = vunpack.c.l.b16 %v673
      %v1354 = vunpack.c.l.b16 %v674
      %v1355 = vunpack.c.l.b16 %v675
      %v1356 = vunpack.c.l.b16 %v676
      %v1357 = vunpack.c.l.b16 %v677
      %v1358 = vunpack.c.l.b16 %v678
      %v1359 = vunpack.c.l.b16 %v679
      %v1360 = vunpack.c.l.b16 %v680
      %v1361 = vpack.c.b16 %v1346, %v1345
      %v1362 = vpack.c.b16 %v1348, %v1347
      %v1363 = vpack.c.b16 %v1350, %v1349
      %v1364 = vpack.c.b16 %v1352, %v1351
      %v1365 = vpack.c.b16 %v1354, %v1353
      %v1366 = vpack.c.b16 %v1356, %v1355
      %v1367 = vpack.c.b16 %v1358, %v1357
      %v1368 = vpack.c.b16 %v1360, %v1359
      %1377 = vmatprep.subr.bf16.mxu0 0
      %1378 = vmatpush1.bf16.msra.mxu0 %v1361
      %1379 = vmatprep.subr.bf16.mxu0 0
      %1380 = vmatpush1.bf16.msra.mxu0 %v1362
      %1381 = vmatprep.subr.bf16.mxu0 0
      %1382 = vmatpush1.bf16.msra.mxu0 %v1363
      %1383 = vmatprep.subr.bf16.mxu0 0
      %1384 = vmatpush1.bf16.msra.mxu0 %v1364
      %1385 = vmatprep.subr.bf16.mxu0 0
      %1386 = vmatpush1.bf16.msra.mxu0 %v1365
      %1387 = vmatprep.subr.bf16.mxu0 0
      %1388 = vmatpush1.bf16.msra.mxu0 %v1366
      %1389 = vmatprep.subr.bf16.mxu0 0
      %1390 = vmatpush1.bf16.msra.mxu0 %v1367
      %1391 = vmatprep.subr.bf16.mxu0 0
      %1392 = vmatpush1.bf16.msra.mxu0 %v1368
      %1393 = vmatprep.subr.bf16.mxu0 0
      %1394 = vmatpush1.bf16.msra.mxu0 0
      %1395 = vmatprep.subr.bf16.mxu0 0
      %1396 = vmatpush1.bf16.msra.mxu0 0
      %1397 = vmatprep.subr.bf16.mxu0 0
      %1398 = vmatpush1.bf16.msra.mxu0 0
      %1399 = vmatprep.subr.bf16.mxu0 0
      %1400 = vmatpush1.bf16.msra.mxu0 0
      %1401 = vmatprep.subr.bf16.mxu0 0
      %1402 = vmatpush1.bf16.msra.mxu0 0
      %1403 = vmatprep.subr.bf16.mxu0 0
      %1404 = vmatpush1.bf16.msra.mxu0 0
      %1405 = vmatprep.subr.bf16.mxu0 0
      %1406 = vmatpush1.bf16.msra.mxu0 0
      %1407 = vmatprep.subr.bf16.mxu0 0
      %1408 = vmatpush1.bf16.msra.mxu0 0
      %1409 = vmatprep.mubr.bf16.mxu0 0
      %1410 = vmatmul.mubr.bf16.gmra.mrb[0].mxu0 %v633
      %v1411 = vpop.f32.mrb[0].mxu0
      %v1412 = vadd.f32 %v1075, %v1411
      %v1413 = vpop.f32.mrb[0].mxu0
      %v1414 = vpop.f32.mrb[0].mxu0
      %v1415 = vadd.f32 %v1078, %v1414
      %v1416 = vpop.f32.mrb[0].mxu0
      %1417 = vmatprep.mubr.bf16.mxu0 0
      %1418 = vmatmul.mubr.bf16.gmra.mrb[0].mxu0 %v634
      %v1419 = vpop.f32.mrb[0].mxu0
      %v1420 = vadd.f32 %v1083, %v1419
      %v1421 = vpop.f32.mrb[0].mxu0
      %v1422 = vpop.f32.mrb[0].mxu0
      %v1423 = vadd.f32 %v1086, %v1422
      %v1424 = vpop.f32.mrb[0].mxu0
      %1425 = vmatprep.mubr.bf16.mxu0 0
      %1426 = vmatmul.mubr.bf16.gmra.mrb[0].mxu0 %v635
      %v1427 = vpop.f32.mrb[0].mxu0
      %v1428 = vadd.f32 %v1091, %v1427
      %v1429 = vpop.f32.mrb[0].mxu0
      %v1430 = vpop.f32.mrb[0].mxu0
      %v1431 = vadd.f32 %v1094, %v1430
      %v1432 = vpop.f32.mrb[0].mxu0
      %1433 = vmatprep.mubr.bf16.mxu0 0
      %1434 = vmatmul.mubr.bf16.gmra.mrb[0].mxu0 %v636
      %v1435 = vpop.f32.mrb[0].mxu0
      %v1436 = vadd.f32 %v1099, %v1435
      %v1437 = vpop.f32.mrb[0].mxu0
      %v1438 = vpop.f32.mrb[0].mxu0
      %v1439 = vadd.f32 %v1102, %v1438
      %v1440 = vpop.f32.mrb[0].mxu0
      %1441 = vmatprep.mubr.bf16.mxu0 0
      %1442 = vmatmul.mubr.bf16.gmra.mrb[0].mxu0 %v637
      %v1443 = vpop.f32.mrb[0].mxu0
      %v1444 = vadd.f32 %v1107, %v1443
      %v1445 = vpop.f32.mrb[0].mxu0
      %v1446 = vpop.f32.mrb[0].mxu0
      %v1447 = vadd.f32 %v1110, %v1446
      %v1448 = vpop.f32.mrb[0].mxu0
      %1449 = vmatprep.mubr.bf16.mxu0 0
      %1450 = vmatmul.mubr.bf16.gmra.mrb[0].mxu0 %v638
      %v1451 = vpop.f32.mrb[0].mxu0
      %v1452 = vadd.f32 %v1115, %v1451
      %v1453 = vpop.f32.mrb[0].mxu0
      %v1454 = vpop.f32.mrb[0].mxu0
      %v1455 = vadd.f32 %v1118, %v1454
      %v1456 = vpop.f32.mrb[0].mxu0
      %1457 = vmatprep.mubr.bf16.mxu0 0
      %1458 = vmatmul.mubr.bf16.gmra.mrb[0].mxu0 %v639
      %v1459 = vpop.f32.mrb[0].mxu0
      %v1460 = vadd.f32 %v1123, %v1459
      %v1461 = vpop.f32.mrb[0].mxu0
      %v1462 = vpop.f32.mrb[0].mxu0
      %v1463 = vadd.f32 %v1126, %v1462
      %v1464 = vpop.f32.mrb[0].mxu0
      %1465 = vmatprep.mubr.bf16.mxu0 0
      %1466 = vmatmul.mubr.bf16.gmra.mrb[0].mxu0 %v640
      %v1467 = vpop.f32.mrb[0].mxu0
      %v1468 = vadd.f32 %v1131, %v1467
      %v1469 = vpop.f32.mrb[0].mxu0
      %v1470 = vpop.f32.mrb[0].mxu0
      %v1471 = vadd.f32 %v1134, %v1470
      %v1472 = vpop.f32.mrb[0].mxu0
      %1473 = vmatprep.mubr.bf16.mxu0 0
      %1474 = vmatmul.mubr.bf16.gmra.mrb[0].mxu0 %v641
      %v1475 = vpop.f32.mrb[0].mxu0
      %v1476 = vadd.f32 %v1139, %v1475
      %v1477 = vpop.f32.mrb[0].mxu0
      %v1478 = vpop.f32.mrb[0].mxu0
      %v1479 = vadd.f32 %v1142, %v1478
      %v1480 = vpop.f32.mrb[0].mxu0
      %1481 = vmatprep.mubr.bf16.mxu0 0
      %1482 = vmatmul.mubr.bf16.gmra.mrb[0].mxu0 %v642
      %v1483 = vpop.f32.mrb[0].mxu0
      %v1484 = vadd.f32 %v1147, %v1483
      %v1485 = vpop.f32.mrb[0].mxu0
      %v1486 = vpop.f32.mrb[0].mxu0
      %v1487 = vadd.f32 %v1150, %v1486
      %v1488 = vpop.f32.mrb[0].mxu0
      %1489 = vmatprep.mubr.bf16.mxu0 0
      %1490 = vmatmul.mubr.bf16.gmra.mrb[0].mxu0 %v643
      %v1491 = vpop.f32.mrb[0].mxu0
      %v1492 = vadd.f32 %v1155, %v1491
      %v1493 = vpop.f32.mrb[0].mxu0
      %v1494 = vpop.f32.mrb[0].mxu0
      %v1495 = vadd.f32 %v1158, %v1494
      %v1496 = vpop.f32.mrb[0].mxu0
      %1497 = vmatprep.mubr.bf16.mxu0 0
      %1498 = vmatmul.mubr.bf16.gmra.mrb[0].mxu0 %v644
      %v1499 = vpop.f32.mrb[0].mxu0
      %v1500 = vadd.f32 %v1163, %v1499
      %v1501 = vpop.f32.mrb[0].mxu0
      %v1502 = vpop.f32.mrb[0].mxu0
      %v1503 = vadd.f32 %v1166, %v1502
      %v1504 = vpop.f32.mrb[0].mxu0
      %1505 = vmatprep.mubr.bf16.mxu0 0
      %1506 = vmatmul.mubr.bf16.gmra.mrb[0].mxu0 %v645
      %v1507 = vpop.f32.mrb[0].mxu0
      %v1508 = vadd.f32 %v1171, %v1507
      %v1509 = vpop.f32.mrb[0].mxu0
      %v1510 = vpop.f32.mrb[0].mxu0
      %v1511 = vadd.f32 %v1174, %v1510
      %v1512 = vpop.f32.mrb[0].mxu0
      %1513 = vmatprep.mubr.bf16.mxu0 0
      %1514 = vmatmul.mubr.bf16.gmra.mrb[0].mxu0 %v646
      %v1515 = vpop.f32.mrb[0].mxu0
      %v1516 = vadd.f32 %v1179, %v1515
      %v1517 = vpop.f32.mrb[0].mxu0
      %v1518 = vpop.f32.mrb[0].mxu0
      %v1519 = vadd.f32 %v1182, %v1518
      %v1520 = vpop.f32.mrb[0].mxu0
      %1521 = vmatprep.mubr.bf16.mxu0 0
      %1522 = vmatmul.mubr.bf16.gmra.mrb[0].mxu0 %v647
      %v1523 = vpop.f32.mrb[0].mxu0
      %v1524 = vadd.f32 %v1187, %v1523
      %v1525 = vpop.f32.mrb[0].mxu0
      %v1526 = vpop.f32.mrb[0].mxu0
      %v1527 = vadd.f32 %v1190, %v1526
      %v1528 = vpop.f32.mrb[0].mxu0
      %1529 = vmatprep.mubr.bf16.mxu0 0
      %1530 = vmatmul.mubr.bf16.gmra.mrb[0].mxu0 %v648
      %v1531 = vpop.f32.mrb[0].mxu0
      %v1532 = vadd.f32 %v1195, %v1531
      %v1533 = vpop.f32.mrb[0].mxu0
      %v1534 = vpop.f32.mrb[0].mxu0
      %v1535 = vadd.f32 %v1198, %v1534
      %v1536 = vpop.f32.mrb[0].mxu0
      %1537 = vmatprep.mubr.bf16.mxu0 0
      %1538 = vmatmul.mubr.bf16.gmra.mrb[0].mxu0 %v649
      %v1539 = vpop.f32.mrb[0].mxu0
      %v1540 = vadd.f32 %v1203, %v1539
      %v1541 = vpop.f32.mrb[0].mxu0
      %v1542 = vpop.f32.mrb[0].mxu0
      %v1543 = vadd.f32 %v1206, %v1542
      %v1544 = vpop.f32.mrb[0].mxu0
      %1545 = vmatprep.mubr.bf16.mxu0 0
      %1546 = vmatmul.mubr.bf16.gmra.mrb[0].mxu0 %v650
      %v1547 = vpop.f32.mrb[0].mxu0
      %v1548 = vadd.f32 %v1211, %v1547
      %v1549 = vpop.f32.mrb[0].mxu0
      %v1550 = vpop.f32.mrb[0].mxu0
      %v1551 = vadd.f32 %v1214, %v1550
      %v1552 = vpop.f32.mrb[0].mxu0
      %1553 = vmatprep.mubr.bf16.mxu0 0
      %1554 = vmatmul.mubr.bf16.gmra.mrb[0].mxu0 %v651
      %v1555 = vpop.f32.mrb[0].mxu0
      %v1556 = vadd.f32 %v1219, %v1555
      %v1557 = vpop.f32.mrb[0].mxu0
      %v1558 = vpop.f32.mrb[0].mxu0
      %v1559 = vadd.f32 %v1222, %v1558
      %v1560 = vpop.f32.mrb[0].mxu0
      %1561 = vmatprep.mubr.bf16.mxu0 0
      %1562 = vmatmul.mubr.bf16.gmra.mrb[0].mxu0 %v652
      %v1563 = vpop.f32.mrb[0].mxu0
      %v1564 = vadd.f32 %v1227, %v1563
      %v1565 = vpop.f32.mrb[0].mxu0
      %v1566 = vpop.f32.mrb[0].mxu0
      %v1567 = vadd.f32 %v1230, %v1566
      %v1568 = vpop.f32.mrb[0].mxu0
      %1569 = vmatprep.mubr.bf16.mxu0 0
      %1570 = vmatmul.mubr.bf16.gmra.mrb[0].mxu0 %v653
      %v1571 = vpop.f32.mrb[0].mxu0
      %v1572 = vadd.f32 %v1235, %v1571
      %v1573 = vpop.f32.mrb[0].mxu0
      %v1574 = vpop.f32.mrb[0].mxu0
      %v1575 = vadd.f32 %v1238, %v1574
      %v1576 = vpop.f32.mrb[0].mxu0
      %1577 = vmatprep.mubr.bf16.mxu0 0
      %1578 = vmatmul.mubr.bf16.gmra.mrb[0].mxu0 %v654
      %v1579 = vpop.f32.mrb[0].mxu0
      %v1580 = vadd.f32 %v1243, %v1579
      %v1581 = vpop.f32.mrb[0].mxu0
      %v1582 = vpop.f32.mrb[0].mxu0
      %v1583 = vadd.f32 %v1246, %v1582
      %v1584 = vpop.f32.mrb[0].mxu0
      %1585 = vmatprep.mubr.bf16.mxu0 0
      %1586 = vmatmul.mubr.bf16.gmra.mrb[0].mxu0 %v655
      %v1587 = vpop.f32.mrb[0].mxu0
      %v1588 = vadd.f32 %v1251, %v1587
      %v1589 = vpop.f32.mrb[0].mxu0
      %v1590 = vpop.f32.mrb[0].mxu0
      %v1591 = vadd.f32 %v1254, %v1590
      %v1592 = vpop.f32.mrb[0].mxu0
      %1593 = vmatprep.mubr.bf16.mxu0 0
      %1594 = vmatmul.mubr.bf16.gmra.mrb[0].mxu0 %v656
      %v1595 = vpop.f32.mrb[0].mxu0
      %v1596 = vadd.f32 %v1259, %v1595
      %v1597 = vpop.f32.mrb[0].mxu0
      %v1598 = vpop.f32.mrb[0].mxu0
      %v1599 = vadd.f32 %v1262, %v1598
      %v1600 = vpop.f32.mrb[0].mxu0
      %1601 = vmatprep.mubr.bf16.mxu0 0
      %1602 = vmatmul.mubr.bf16.gmra.mrb[0].mxu0 %v657
      %v1603 = vpop.f32.mrb[0].mxu0
      %v1604 = vadd.f32 %v1267, %v1603
      %v1605 = vpop.f32.mrb[0].mxu0
      %v1606 = vpop.f32.mrb[0].mxu0
      %v1607 = vadd.f32 %v1270, %v1606
      %v1608 = vpop.f32.mrb[0].mxu0
      %1609 = vmatprep.mubr.bf16.mxu0 0
      %1610 = vmatmul.mubr.bf16.gmra.mrb[0].mxu0 %v658
      %v1611 = vpop.f32.mrb[0].mxu0
      %v1612 = vadd.f32 %v1275, %v1611
      %v1613 = vpop.f32.mrb[0].mxu0
      %v1614 = vpop.f32.mrb[0].mxu0
      %v1615 = vadd.f32 %v1278, %v1614
      %v1616 = vpop.f32.mrb[0].mxu0
      %1617 = vmatprep.mubr.bf16.mxu0 0
      %1618 = vmatmul.mubr.bf16.gmra.mrb[0].mxu0 %v659
      %v1619 = vpop.f32.mrb[0].mxu0
      %v1620 = vadd.f32 %v1283, %v1619
      %v1621 = vpop.f32.mrb[0].mxu0
      %v1622 = vpop.f32.mrb[0].mxu0
      %v1623 = vadd.f32 %v1286, %v1622
      %v1624 = vpop.f32.mrb[0].mxu0
      %1625 = vmatprep.mubr.bf16.mxu0 0
      %1626 = vmatmul.mubr.bf16.gmra.mrb[0].mxu0 %v660
      %v1627 = vpop.f32.mrb[0].mxu0
      %v1628 = vadd.f32 %v1291, %v1627
      %v1629 = vpop.f32.mrb[0].mxu0
      %v1630 = vpop.f32.mrb[0].mxu0
      %v1631 = vadd.f32 %v1294, %v1630
      %v1632 = vpop.f32.mrb[0].mxu0
      %1633 = vmatprep.mubr.bf16.mxu0 0
      %1634 = vmatmul.mubr.bf16.gmra.mrb[0].mxu0 %v661
      %v1635 = vpop.f32.mrb[0].mxu0
      %v1636 = vadd.f32 %v1299, %v1635
      %v1637 = vpop.f32.mrb[0].mxu0
      %v1638 = vpop.f32.mrb[0].mxu0
      %v1639 = vadd.f32 %v1302, %v1638
      %v1640 = vpop.f32.mrb[0].mxu0
      %1641 = vmatprep.mubr.bf16.mxu0 0
      %1642 = vmatmul.mubr.bf16.gmra.mrb[0].mxu0 %v662
      %v1643 = vpop.f32.mrb[0].mxu0
      %v1644 = vadd.f32 %v1307, %v1643
      %v1645 = vpop.f32.mrb[0].mxu0
      %v1646 = vpop.f32.mrb[0].mxu0
      %v1647 = vadd.f32 %v1310, %v1646
      %v1648 = vpop.f32.mrb[0].mxu0
      %1649 = vmatprep.mubr.bf16.mxu0 0
      %1650 = vmatmul.mubr.bf16.gmra.mrb[0].mxu0 %v663
      %v1651 = vpop.f32.mrb[0].mxu0
      %v1652 = vadd.f32 %v1315, %v1651
      %v1653 = vpop.f32.mrb[0].mxu0
      %v1654 = vpop.f32.mrb[0].mxu0
      %v1655 = vadd.f32 %v1318, %v1654
      %v1656 = vpop.f32.mrb[0].mxu0
      %1657 = vmatprep.mubr.bf16.mxu0 0
      %1658 = vmatmul.mubr.bf16.gmra.mrb[0].mxu0 %v664
      %v1659 = vpop.f32.mrb[0].mxu0
      %v1660 = vadd.f32 %v1323, %v1659
      %v1661 = vpop.f32.mrb[0].mxu0
      %v1662 = vpop.f32.mrb[0].mxu0
      %v1663 = vadd.f32 %v1326, %v1662
      %v1664 = vpop.f32.mrb[0].mxu0
      %1665 = vdwg.mxu0
      %v1666 = vld [vmem:[#allocation2] sm:$0xfe]
      %s1667 = scalar_lea.vmem %s295, 128
      %v1668 = vld [vmem:[%s1667] sm:$0xf]
      %v1669 = vld [vmem:[%s1667 + $0x4] sm:$0xf]
      %v1670 = vld [vmem:[%s1667 + $0x8] sm:$0xf]
      %v1671 = vld [vmem:[%s1667 + $0xc] sm:$0xf]
      %v1672 = vld [vmem:[%s1667 + $0x10] sm:$0xf]
      %v1673 = vld [vmem:[%s1667 + $0x14] sm:$0xf]
      %v1674 = vld [vmem:[%s1667 + $0x18] sm:$0xf]
      %v1675 = vld [vmem:[%s1667 + $0x1c] sm:$0xf]
      %v1676 = vld [vmem:[%s1667 + $0x20] sm:$0xf]
      %v1677 = vld [vmem:[%s1667 + $0x24] sm:$0xf]
      %v1678 = vld [vmem:[%s1667 + $0x28] sm:$0xf]
      %v1679 = vld [vmem:[%s1667 + $0x2c] sm:$0xf]
      %v1680 = vld [vmem:[%s1667 + $0x30] sm:$0xf]
      %v1681 = vld [vmem:[%s1667 + $0x34] sm:$0xf]
      %v1682 = vld [vmem:[%s1667 + $0x38] sm:$0xf]
      %v1683 = vld [vmem:[%s1667 + $0x3c] sm:$0xf]
      %vm1717 = vcmask 1046528
      %v1718 = vrot.slane %v1666, 1
      %v1719 = vrot.slane %v634, 1
      %v1720 = vsel %vm1717, %v1718, %v1719
      %v1721 = vrot.slane %v635, 1
      %v1722 = vsel %vm1717, %v1719, %v1721
      %v1723 = vrot.slane %v636, 1
      %v1724 = vsel %vm1717, %v1721, %v1723
      %v1725 = vrot.slane %v637, 1
      %v1726 = vsel %vm1717, %v1723, %v1725
      %v1727 = vrot.slane %v638, 1
      %v1728 = vsel %vm1717, %v1725, %v1727
      %v1729 = vrot.slane %v639, 1
      %v1730 = vsel %vm1717, %v1727, %v1729
      %v1731 = vrot.slane %v640, 1
      %v1732 = vsel %vm1717, %v1729, %v1731
      %v1733 = vrot.slane %v641, 1
      %v1734 = vsel %vm1717, %v1731, %v1733
      %v1735 = vrot.slane %v642, 1
      %v1736 = vsel %vm1717, %v1733, %v1735
      %v1737 = vrot.slane %v643, 1
      %v1738 = vsel %vm1717, %v1735, %v1737
      %v1739 = vrot.slane %v644, 1
      %v1740 = vsel %vm1717, %v1737, %v1739
      %v1741 = vrot.slane %v645, 1
      %v1742 = vsel %vm1717, %v1739, %v1741
      %v1743 = vrot.slane %v646, 1
      %v1744 = vsel %vm1717, %v1741, %v1743
      %v1745 = vrot.slane %v647, 1
      %v1746 = vsel %vm1717, %v1743, %v1745
      %v1747 = vrot.slane %v648, 1
      %v1748 = vsel %vm1717, %v1745, %v1747
      %v1749 = vrot.slane %v649, 1
      %v1750 = vsel %vm1717, %v1747, %v1749
      %v1751 = vrot.slane %v650, 1
      %v1752 = vsel %vm1717, %v1749, %v1751
      %v1753 = vrot.slane %v651, 1
      %v1754 = vsel %vm1717, %v1751, %v1753
      %v1755 = vrot.slane %v652, 1
      %v1756 = vsel %vm1717, %v1753, %v1755
      %v1757 = vrot.slane %v653, 1
      %v1758 = vsel %vm1717, %v1755, %v1757
      %v1759 = vrot.slane %v654, 1
      %v1760 = vsel %vm1717, %v1757, %v1759
      %v1761 = vrot.slane %v655, 1
      %v1762 = vsel %vm1717, %v1759, %v1761
      %v1763 = vrot.slane %v656, 1
      %v1764 = vsel %vm1717, %v1761, %v1763
      %v1765 = vrot.slane %v657, 1
      %v1766 = vsel %vm1717, %v1763, %v1765
      %v1767 = vrot.slane %v658, 1
      %v1768 = vsel %vm1717, %v1765, %v1767
      %v1769 = vrot.slane %v659, 1
      %v1770 = vsel %vm1717, %v1767, %v1769
      %v1771 = vrot.slane %v660, 1
      %v1772 = vsel %vm1717, %v1769, %v1771
      %v1773 = vrot.slane %v661, 1
      %v1774 = vsel %vm1717, %v1771, %v1773
      %v1775 = vrot.slane %v662, 1
      %v1776 = vsel %vm1717, %v1773, %v1775
      %v1777 = vrot.slane %v663, 1
      %v1778 = vsel %vm1717, %v1775, %v1777
      %v1779 = vrot.slane %v664, 1
      %v1780 = vsel %vm1717, %v1777, %v1779
      %v1781 = vrot.slane %v681, 1
      %v1782 = vsel %vm1717, %v1779, %v1781
      %v1831 = vunpack.c.l.b16 %v1668
      %v1832 = vunpack.c.l.b16 %v1669
      %v1833 = vunpack.c.l.b16 %v1670
      %v1834 = vunpack.c.l.b16 %v1671
      %v1835 = vunpack.c.l.b16 %v1672
      %v1836 = vunpack.c.l.b16 %v1673
      %v1837 = vunpack.c.l.b16 %v1674
      %v1838 = vunpack.c.l.b16 %v1675
      %v1839 = vunpack.c.l.b16 %v1676
      %v1840 = vunpack.c.l.b16 %v1677
      %v1841 = vunpack.c.l.b16 %v1678
      %v1842 = vunpack.c.l.b16 %v1679
      %v1843 = vunpack.c.l.b16 %v1680
      %v1844 = vunpack.c.l.b16 %v1681
      %v1845 = vunpack.c.l.b16 %v1682
      %v1846 = vunpack.c.l.b16 %v1683
      %v1847 = vpack.c.b16 %v1832, %v1831
      %v1848 = vpack.c.b16 %v1834, %v1833
      %v1849 = vpack.c.b16 %v1836, %v1835
      %v1850 = vpack.c.b16 %v1838, %v1837
      %v1851 = vpack.c.b16 %v1840, %v1839
      %v1852 = vpack.c.b16 %v1842, %v1841
      %v1853 = vpack.c.b16 %v1844, %v1843
      %v1854 = vpack.c.b16 %v1846, %v1845
      %1863 = vmatprep.subr.bf16.mxu0 0
      %1864 = vmatpush1.bf16.msra.mxu0 %v1847
      %1865 = vmatprep.subr.bf16.mxu0 0
      %1866 = vmatpush1.bf16.msra.mxu0 %v1848
      %1867 = vmatprep.subr.bf16.mxu0 0
      %1868 = vmatpush1.bf16.msra.mxu0 %v1849
      %1869 = vmatprep.subr.bf16.mxu0 0
      %1870 = vmatpush1.bf16.msra.mxu0 %v1850
      %1871 = vmatprep.subr.bf16.mxu0 0
      %1872 = vmatpush1.bf16.msra.mxu0 %v1851
      %1873 = vmatprep.subr.bf16.mxu0 0
      %1874 = vmatpush1.bf16.msra.mxu0 %v1852
      %1875 = vmatprep.subr.bf16.mxu0 0
      %1876 = vmatpush1.bf16.msra.mxu0 %v1853
      %1877 = vmatprep.subr.bf16.mxu0 0
      %1878 = vmatpush1.bf16.msra.mxu0 %v1854
      %1879 = vmatprep.subr.bf16.mxu0 0
      %1880 = vmatpush1.bf16.msra.mxu0 0
      %1881 = vmatprep.subr.bf16.mxu0 0
      %1882 = vmatpush1.bf16.msra.mxu0 0
      %1883 = vmatprep.subr.bf16.mxu0 0
      %1884 = vmatpush1.bf16.msra.mxu0 0
      %1885 = vmatprep.subr.bf16.mxu0 0
      %1886 = vmatpush1.bf16.msra.mxu0 0
      %1887 = vmatprep.subr.bf16.mxu0 0
      %1888 = vmatpush1.bf16.msra.mxu0 0
      %1889 = vmatprep.subr.bf16.mxu0 0
      %1890 = vmatpush1.bf16.msra.mxu0 0
      %1891 = vmatprep.subr.bf16.mxu0 0
      %1892 = vmatpush1.bf16.msra.mxu0 0
      %1893 = vmatprep.subr.bf16.mxu0 0
      %1894 = vmatpush1.bf16.msra.mxu0 0
      %1895 = vmatprep.mubr.bf16.mxu0 0
      %1896 = vmatmul.mubr.bf16.gmra.mrb[0].mxu0 %v1720
      %v1897 = vpop.f32.mrb[0].mxu0
      %v1898 = vadd.f32 0.0, %v1897
      %v1899 = vpop.f32.mrb[0].mxu0
      %v1900 = vpop.f32.mrb[0].mxu0
      %v1901 = vadd.f32 0.0, %v1900
      %v1902 = vpop.f32.mrb[0].mxu0
      %1903 = vmatprep.mubr.bf16.mxu0 0
      %1904 = vmatmul.mubr.bf16.gmra.mrb[0].mxu0 %v1722
      %v1905 = vpop.f32.mrb[0].mxu0
      %v1906 = vadd.f32 0.0, %v1905
      %v1907 = vpop.f32.mrb[0].mxu0
      %v1908 = vpop.f32.mrb[0].mxu0
      %v1909 = vadd.f32 0.0, %v1908
      %v1910 = vpop.f32.mrb[0].mxu0
      %1911 = vmatprep.mubr.bf16.mxu0 0
      %1912 = vmatmul.mubr.bf16.gmra.mrb[0].mxu0 %v1724
      %v1913 = vpop.f32.mrb[0].mxu0
      %v1914 = vadd.f32 0.0, %v1913
      %v1915 = vpop.f32.mrb[0].mxu0
      %v1916 = vpop.f32.mrb[0].mxu0
      %v1917 = vadd.f32 0.0, %v1916
      %v1918 = vpop.f32.mrb[0].mxu0
      %1919 = vmatprep.mubr.bf16.mxu0 0
      %1920 = vmatmul.mubr.bf16.gmra.mrb[0].mxu0 %v1726
      %v1921 = vpop.f32.mrb[0].mxu0
      %v1922 = vadd.f32 0.0, %v1921
      %v1923 = vpop.f32.mrb[0].mxu0
      %v1924 = vpop.f32.mrb[0].mxu0
      %v1925 = vadd.f32 0.0, %v1924
      %v1926 = vpop.f32.mrb[0].mxu0
      %1927 = vmatprep.mubr.bf16.mxu0 0
      %1928 = vmatmul.mubr.bf16.gmra.mrb[0].mxu0 %v1728
      %v1929 = vpop.f32.mrb[0].mxu0
      %v1930 = vadd.f32 0.0, %v1929
      %v1931 = vpop.f32.mrb[0].mxu0
      %v1932 = vpop.f32.mrb[0].mxu0
      %v1933 = vadd.f32 0.0, %v1932
      %v1934 = vpop.f32.mrb[0].mxu0
      %1935 = vmatprep.mubr.bf16.mxu0 0
      %1936 = vmatmul.mubr.bf16.gmra.mrb[0].mxu0 %v1730
      %v1937 = vpop.f32.mrb[0].mxu0
      %v1938 = vadd.f32 0.0, %v1937
      %v1939 = vpop.f32.mrb[0].mxu0
      %v1940 = vpop.f32.mrb[0].mxu0
      %v1941 = vadd.f32 0.0, %v1940
      %v1942 = vpop.f32.mrb[0].mxu0
      %1943 = vmatprep.mubr.bf16.mxu0 0
      %1944 = vmatmul.mubr.bf16.gmra.mrb[0].mxu0 %v1732
      %v1945 = vpop.f32.mrb[0].mxu0
      %v1946 = vadd.f32 0.0, %v1945
      %v1947 = vpop.f32.mrb[0].mxu0
      %v1948 = vpop.f32.mrb[0].mxu0
      %v1949 = vadd.f32 0.0, %v1948
      %v1950 = vpop.f32.mrb[0].mxu0
      %1951 = vmatprep.mubr.bf16.mxu0 0
      %1952 = vmatmul.mubr.bf16.gmra.mrb[0].mxu0 %v1734
      %v1953 = vpop.f32.mrb[0].mxu0
      %v1954 = vadd.f32 0.0, %v1953
      %v1955 = vpop.f32.mrb[0].mxu0
      %v1956 = vpop.f32.mrb[0].mxu0
      %v1957 = vadd.f32 0.0, %v1956
      %v1958 = vpop.f32.mrb[0].mxu0
      %1959 = vmatprep.mubr.bf16.mxu0 0
      %1960 = vmatmul.mubr.bf16.gmra.mrb[0].mxu0 %v1736
      %v1961 = vpop.f32.mrb[0].mxu0
      %v1962 = vadd.f32 0.0, %v1961
      %v1963 = vpop.f32.mrb[0].mxu0
      %v1964 = vpop.f32.mrb[0].mxu0
      %v1965 = vadd.f32 0.0, %v1964
      %v1966 = vpop.f32.mrb[0].mxu0
      %1967 = vmatprep.mubr.bf16.mxu0 0
      %1968 = vmatmul.mubr.bf16.gmra.mrb[0].mxu0 %v1738
      %v1969 = vpop.f32.mrb[0].mxu0
      %v1970 = vadd.f32 0.0, %v1969
      %v1971 = vpop.f32.mrb[0].mxu0
      %v1972 = vpop.f32.mrb[0].mxu0
      %v1973 = vadd.f32 0.0, %v1972
      %v1974 = vpop.f32.mrb[0].mxu0
      %1975 = vmatprep.mubr.bf16.mxu0 0
      %1976 = vmatmul.mubr.bf16.gmra.mrb[0].mxu0 %v1740
      %v1977 = vpop.f32.mrb[0].mxu0
      %v1978 = vadd.f32 0.0, %v1977
      %v1979 = vpop.f32.mrb[0].mxu0
      %v1980 = vpop.f32.mrb[0].mxu0
      %v1981 = vadd.f32 0.0, %v1980
      %v1982 = vpop.f32.mrb[0].mxu0
      %1983 = vmatprep.mubr.bf16.mxu0 0
      %1984 = vmatmul.mubr.bf16.gmra.mrb[0].mxu0 %v1742
      %v1985 = vpop.f32.mrb[0].mxu0
      %v1986 = vadd.f32 0.0, %v1985
      %v1987 = vpop.f32.mrb[0].mxu0
      %v1988 = vpop.f32.mrb[0].mxu0
      %v1989 = vadd.f32 0.0, %v1988
      %v1990 = vpop.f32.mrb[0].mxu0
      %1991 = vmatprep.mubr.bf16.mxu0 0
      %1992 = vmatmul.mubr.bf16.gmra.mrb[0].mxu0 %v1744
      %v1993 = vpop.f32.mrb[0].mxu0
      %v1994 = vadd.f32 0.0, %v1993
      %v1995 = vpop.f32.mrb[0].mxu0
      %v1996 = vpop.f32.mrb[0].mxu0
      %v1997 = vadd.f32 0.0, %v1996
      %v1998 = vpop.f32.mrb[0].mxu0
      %1999 = vmatprep.mubr.bf16.mxu0 0
      %2000 = vmatmul.mubr.bf16.gmra.mrb[0].mxu0 %v1746
      %v2001 = vpop.f32.mrb[0].mxu0
      %v2002 = vadd.f32 0.0, %v2001
      %v2003 = vpop.f32.mrb[0].mxu0
      %v2004 = vpop.f32.mrb[0].mxu0
      %v2005 = vadd.f32 0.0, %v2004
      %v2006 = vpop.f32.mrb[0].mxu0
      %2007 = vmatprep.mubr.bf16.mxu0 0
      %2008 = vmatmul.mubr.bf16.gmra.mrb[0].mxu0 %v1748
      %v2009 = vpop.f32.mrb[0].mxu0
      %v2010 = vadd.f32 0.0, %v2009
      %v2011 = vpop.f32.mrb[0].mxu0
      %v2012 = vpop.f32.mrb[0].mxu0
      %v2013 = vadd.f32 0.0, %v2012
      %v2014 = vpop.f32.mrb[0].mxu0
      %2015 = vmatprep.mubr.bf16.mxu0 0
      %2016 = vmatmul.mubr.bf16.gmra.mrb[0].mxu0 %v1750
      %v2017 = vpop.f32.mrb[0].mxu0
      %v2018 = vadd.f32 0.0, %v2017
      %v2019 = vpop.f32.mrb[0].mxu0
      %v2020 = vpop.f32.mrb[0].mxu0
      %v2021 = vadd.f32 0.0, %v2020
      %v2022 = vpop.f32.mrb[0].mxu0
      %2023 = vmatprep.mubr.bf16.mxu0 0
      %2024 = vmatmul.mubr.bf16.gmra.mrb[0].mxu0 %v1752
      %v2025 = vpop.f32.mrb[0].mxu0
      %v2026 = vadd.f32 0.0, %v2025
      %v2027 = vpop.f32.mrb[0].mxu0
      %v2028 = vpop.f32.mrb[0].mxu0
      %v2029 = vadd.f32 0.0, %v2028
      %v2030 = vpop.f32.mrb[0].mxu0
      %2031 = vmatprep.mubr.bf16.mxu0 0
      %2032 = vmatmul.mubr.bf16.gmra.mrb[0].mxu0 %v1754
      %v2033 = vpop.f32.mrb[0].mxu0
      %v2034 = vadd.f32 0.0, %v2033
      %v2035 = vpop.f32.mrb[0].mxu0
      %v2036 = vpop.f32.mrb[0].mxu0
      %v2037 = vadd.f32 0.0, %v2036
      %v2038 = vpop.f32.mrb[0].mxu0
      %2039 = vmatprep.mubr.bf16.mxu0 0
      %2040 = vmatmul.mubr.bf16.gmra.mrb[0].mxu0 %v1756
      %v2041 = vpop.f32.mrb[0].mxu0
      %v2042 = vadd.f32 0.0, %v2041
      %v2043 = vpop.f32.mrb[0].mxu0
      %v2044 = vpop.f32.mrb[0].mxu0
      %v2045 = vadd.f32 0.0, %v2044
      %v2046 = vpop.f32.mrb[0].mxu0
      %2047 = vmatprep.mubr.bf16.mxu0 0
      %2048 = vmatmul.mubr.bf16.gmra.mrb[0].mxu0 %v1758
      %v2049 = vpop.f32.mrb[0].mxu0
      %v2050 = vadd.f32 0.0, %v2049
      %v2051 = vpop.f32.mrb[0].mxu0
      %v2052 = vpop.f32.mrb[0].mxu0
      %v2053 = vadd.f32 0.0, %v2052
      %v2054 = vpop.f32.mrb[0].mxu0
      %2055 = vmatprep.mubr.bf16.mxu0 0
      %2056 = vmatmul.mubr.bf16.gmra.mrb[0].mxu0 %v1760
      %v2057 = vpop.f32.mrb[0].mxu0
      %v2058 = vadd.f32 0.0, %v2057
      %v2059 = vpop.f32.mrb[0].mxu0
      %v2060 = vpop.f32.mrb[0].mxu0
      %v2061 = vadd.f32 0.0, %v2060
      %v2062 = vpop.f32.mrb[0].mxu0
      %2063 = vmatprep.mubr.bf16.mxu0 0
      %2064 = vmatmul.mubr.bf16.gmra.mrb[0].mxu0 %v1762
      %v2065 = vpop.f32.mrb[0].mxu0
      %v2066 = vadd.f32 0.0, %v2065
      %v2067 = vpop.f32.mrb[0].mxu0
      %v2068 = vpop.f32.mrb[0].mxu0
      %v2069 = vadd.f32 0.0, %v2068
      %v2070 = vpop.f32.mrb[0].mxu0
      %2071 = vmatprep.mubr.bf16.mxu0 0
      %2072 = vmatmul.mubr.bf16.gmra.mrb[0].mxu0 %v1764
      %v2073 = vpop.f32.mrb[0].mxu0
      %v2074 = vadd.f32 0.0, %v2073
      %v2075 = vpop.f32.mrb[0].mxu0
      %v2076 = vpop.f32.mrb[0].mxu0
      %v2077 = vadd.f32 0.0, %v2076
      %v2078 = vpop.f32.mrb[0].mxu0
      %2079 = vmatprep.mubr.bf16.mxu0 0
      %2080 = vmatmul.mubr.bf16.gmra.mrb[0].mxu0 %v1766
      %v2081 = vpop.f32.mrb[0].mxu0
      %v2082 = vadd.f32 0.0, %v2081
      %v2083 = vpop.f32.mrb[0].mxu0
      %v2084 = vpop.f32.mrb[0].mxu0
      %v2085 = vadd.f32 0.0, %v2084
      %v2086 = vpop.f32.mrb[0].mxu0
      %2087 = vmatprep.mubr.bf16.mxu0 0
      %2088 = vmatmul.mubr.bf16.gmra.mrb[0].mxu0 %v1768
      %v2089 = vpop.f32.mrb[0].mxu0
      %v2090 = vadd.f32 0.0, %v2089
      %v2091 = vpop.f32.mrb[0].mxu0
      %v2092 = vpop.f32.mrb[0].mxu0
      %v2093 = vadd.f32 0.0, %v2092
      %v2094 = vpop.f32.mrb[0].mxu0
      %2095 = vmatprep.mubr.bf16.mxu0 0
      %2096 = vmatmul.mubr.bf16.gmra.mrb[0].mxu0 %v1770
      %v2097 = vpop.f32.mrb[0].mxu0
      %v2098 = vadd.f32 0.0, %v2097
      %v2099 = vpop.f32.mrb[0].mxu0
      %v2100 = vpop.f32.mrb[0].mxu0
      %v2101 = vadd.f32 0.0, %v2100
      %v2102 = vpop.f32.mrb[0].mxu0
      %2103 = vmatprep.mubr.bf16.mxu0 0
      %2104 = vmatmul.mubr.bf16.gmra.mrb[0].mxu0 %v1772
      %v2105 = vpop.f32.mrb[0].mxu0
      %v2106 = vadd.f32 0.0, %v2105
      %v2107 = vpop.f32.mrb[0].mxu0
      %v2108 = vpop.f32.mrb[0].mxu0
      %v2109 = vadd.f32 0.0, %v2108
      %v2110 = vpop.f32.mrb[0].mxu0
      %2111 = vmatprep.mubr.bf16.mxu0 0
      %2112 = vmatmul.mubr.bf16.gmra.mrb[0].mxu0 %v1774
      %v2113 = vpop.f32.mrb[0].mxu0
      %v2114 = vadd.f32 0.0, %v2113
      %v2115 = vpop.f32.mrb[0].mxu0
      %v2116 = vpop.f32.mrb[0].mxu0
      %v2117 = vadd.f32 0.0, %v2116
      %v2118 = vpop.f32.mrb[0].mxu0
      %2119 = vmatprep.mubr.bf16.mxu0 0
      %2120 = vmatmul.mubr.bf16.gmra.mrb[0].mxu0 %v1776
      %v2121 = vpop.f32.mrb[0].mxu0
      %v2122 = vadd.f32 0.0, %v2121
      %v2123 = vpop.f32.mrb[0].mxu0
      %v2124 = vpop.f32.mrb[0].mxu0
      %v2125 = vadd.f32 0.0, %v2124
      %v2126 = vpop.f32.mrb[0].mxu0
      %2127 = vmatprep.mubr.bf16.mxu0 0
      %2128 = vmatmul.mubr.bf16.gmra.mrb[0].mxu0 %v1778
      %v2129 = vpop.f32.mrb[0].mxu0
      %v2130 = vadd.f32 0.0, %v2129
      %v2131 = vpop.f32.mrb[0].mxu0
      %v2132 = vpop.f32.mrb[0].mxu0
      %v2133 = vadd.f32 0.0, %v2132
      %v2134 = vpop.f32.mrb[0].mxu0
      %2135 = vmatprep.mubr.bf16.mxu0 0
      %2136 = vmatmul.mubr.bf16.gmra.mrb[0].mxu0 %v1780
      %v2137 = vpop.f32.mrb[0].mxu0
      %v2138 = vadd.f32 0.0, %v2137
      %v2139 = vpop.f32.mrb[0].mxu0
      %v2140 = vpop.f32.mrb[0].mxu0
      %v2141 = vadd.f32 0.0, %v2140
      %v2142 = vpop.f32.mrb[0].mxu0
      %2143 = vmatprep.mubr.bf16.mxu0 0
      %2144 = vmatmul.mubr.bf16.gmra.mrb[0].mxu0 %v1782
      %v2145 = vpop.f32.mrb[0].mxu0
      %v2146 = vadd.f32 0.0, %v2145
      %v2147 = vpop.f32.mrb[0].mxu0
      %v2148 = vpop.f32.mrb[0].mxu0
      %v2149 = vadd.f32 0.0, %v2148
      %v2150 = vpop.f32.mrb[0].mxu0
      %2151 = vdwg.mxu0
      %v2152 = vadd.f32 %v1412, %v1898
      %v2153 = vadd.f32 %v1415, %v1901
      %v2154 = vadd.f32 %v1420, %v1906
      %v2155 = vadd.f32 %v1423, %v1909
      %v2156 = vadd.f32 %v1428, %v1914
      %v2157 = vadd.f32 %v1431, %v1917
      %v2158 = vadd.f32 %v1436, %v1922
      %v2159 = vadd.f32 %v1439, %v1925
      %v2160 = vadd.f32 %v1444, %v1930
      %v2161 = vadd.f32 %v1447, %v1933
      %v2162 = vadd.f32 %v1452, %v1938
      %v2163 = vadd.f32 %v1455, %v1941
      %v2164 = vadd.f32 %v1460, %v1946
      %v2165 = vadd.f32 %v1463, %v1949
      %v2166 = vadd.f32 %v1468, %v1954
      %v2167 = vadd.f32 %v1471, %v1957
      %v2168 = vadd.f32 %v1476, %v1962
      %v2169 = vadd.f32 %v1479, %v1965
      %v2170 = vadd.f32 %v1484, %v1970
      %v2171 = vadd.f32 %v1487, %v1973
      %v2172 = vadd.f32 %v1492, %v1978
      %v2173 = vadd.f32 %v1495, %v1981
      %v2174 = vadd.f32 %v1500, %v1986
      %v2175 = vadd.f32 %v1503, %v1989
      %v2176 = vadd.f32 %v1508, %v1994
      %v2177 = vadd.f32 %v1511, %v1997
      %v2178 = vadd.f32 %v1516, %v2002
      %v2179 = vadd.f32 %v1519, %v2005
      %v2180 = vadd.f32 %v1524, %v2010
      %v2181 = vadd.f32 %v1527, %v2013
      %v2182 = vadd.f32 %v1532, %v2018
      %v2183 = vadd.f32 %v1535, %v2021
      %v2184 = vadd.f32 %v1540, %v2026
      %v2185 = vadd.f32 %v1543, %v2029
      %v2186 = vadd.f32 %v1548, %v2034
      %v2187 = vadd.f32 %v1551, %v2037
      %v2188 = vadd.f32 %v1556, %v2042
      %v2189 = vadd.f32 %v1559, %v2045
      %v2190 = vadd.f32 %v1564, %v2050
      %v2191 = vadd.f32 %v1567, %v2053
      %v2192 = vadd.f32 %v1572, %v2058
      %v2193 = vadd.f32 %v1575, %v2061
      %v2194 = vadd.f32 %v1580, %v2066
      %v2195 = vadd.f32 %v1583, %v2069
      %v2196 = vadd.f32 %v1588, %v2074
      %v2197 = vadd.f32 %v1591, %v2077
      %v2198 = vadd.f32 %v1596, %v2082
      %v2199 = vadd.f32 %v1599, %v2085
      %v2200 = vadd.f32 %v1604, %v2090
      %v2201 = vadd.f32 %v1607, %v2093
      %v2202 = vadd.f32 %v1612, %v2098
      %v2203 = vadd.f32 %v1615, %v2101
      %v2204 = vadd.f32 %v1620, %v2106
      %v2205 = vadd.f32 %v1623, %v2109
      %v2206 = vadd.f32 %v1628, %v2114
      %v2207 = vadd.f32 %v1631, %v2117
      %v2208 = vadd.f32 %v1636, %v2122
      %v2209 = vadd.f32 %v1639, %v2125
      %v2210 = vadd.f32 %v1644, %v2130
      %v2211 = vadd.f32 %v1647, %v2133
      %v2212 = vadd.f32 %v1652, %v2138
      %v2213 = vadd.f32 %v1655, %v2141
      %v2214 = vadd.f32 %v1660, %v2146
      %v2215 = vadd.f32 %v1663, %v2149
      %v2216 = vld [vmem:[#allocation2 + $0x8] sm:$0xfe]
      %v2217 = vld [vmem:[#allocation2 + $0x10] sm:$0xff]
      %v2218 = vld [vmem:[#allocation2 + $0x18] sm:$0xff]
      %v2219 = vld [vmem:[#allocation2 + $0x20] sm:$0xff]
      %v2220 = vld [vmem:[#allocation2 + $0x28] sm:$0xff]
      %v2221 = vld [vmem:[#allocation2 + $0x30] sm:$0xff]
      %v2222 = vld [vmem:[#allocation2 + $0x38] sm:$0xff]
      %v2223 = vld [vmem:[#allocation2 + $0x40] sm:$0xff]
      %v2224 = vld [vmem:[#allocation2 + $0x48] sm:$0xff]
      %v2225 = vld [vmem:[#allocation2 + $0x50] sm:$0xff]
      %v2226 = vld [vmem:[#allocation2 + $0x58] sm:$0xff]
      %v2227 = vld [vmem:[#allocation2 + $0x60] sm:$0xff]
      %v2228 = vld [vmem:[#allocation2 + $0x68] sm:$0xff]
      %v2229 = vld [vmem:[#allocation2 + $0x70] sm:$0xff]
      %v2230 = vld [vmem:[#allocation2 + $0x78] sm:$0xff]
      %v2231 = vld [vmem:[#allocation2 + $0x80] sm:$0xff]
      %v2232 = vld [vmem:[#allocation2 + $0x88] sm:$0xff]
      %v2233 = vld [vmem:[#allocation2 + $0x90] sm:$0xff]
      %v2234 = vld [vmem:[#allocation2 + $0x98] sm:$0xff]
      %v2235 = vld [vmem:[#allocation2 + $0xa0] sm:$0xff]
      %v2236 = vld [vmem:[#allocation2 + $0xa8] sm:$0xff]
      %v2237 = vld [vmem:[#allocation2 + $0xb0] sm:$0xff]
      %v2238 = vld [vmem:[#allocation2 + $0xb8] sm:$0xff]
      %v2239 = vld [vmem:[#allocation2 + $0xc0] sm:$0xff]
      %v2240 = vld [vmem:[#allocation2 + $0xc8] sm:$0xff]
      %v2241 = vld [vmem:[#allocation2 + $0xd0] sm:$0xff]
      %v2242 = vld [vmem:[#allocation2 + $0xd8] sm:$0xff]
      %v2243 = vld [vmem:[#allocation2 + $0xe0] sm:$0xff]
      %v2244 = vld [vmem:[#allocation2 + $0xe8] sm:$0xff]
      %v2245 = vld [vmem:[#allocation2 + $0xf0] sm:$0xff]
      %v2246 = vld [vmem:[#allocation2 + $0xf8] sm:$0xff]
      %v2247 = vld [vmem:[#allocation2 + $0x100] sm:$0xff]
      %v2248 = vld [vmem:[#allocation2 + $0x108] sm:$0x1]
      %s2249 = scalar_lea.vmem %s295, 192
      %v2250 = vld [vmem:[%s2249] sm:$0xf]
      %v2251 = vld [vmem:[%s2249 + $0x4] sm:$0xf]
      %v2252 = vld [vmem:[%s2249 + $0x8] sm:$0xf]
      %v2253 = vld [vmem:[%s2249 + $0xc] sm:$0xf]
      %v2254 = vld [vmem:[%s2249 + $0x10] sm:$0xf]
      %v2255 = vld [vmem:[%s2249 + $0x14] sm:$0xf]
      %v2256 = vld [vmem:[%s2249 + $0x18] sm:$0xf]
      %v2257 = vld [vmem:[%s2249 + $0x1c] sm:$0xf]
      %v2258 = vld [vmem:[%s2249 + $0x20] sm:$0xf]
      %v2259 = vld [vmem:[%s2249 + $0x24] sm:$0xf]
      %v2260 = vld [vmem:[%s2249 + $0x28] sm:$0xf]
      %v2261 = vld [vmem:[%s2249 + $0x2c] sm:$0xf]
      %v2262 = vld [vmem:[%s2249 + $0x30] sm:$0xf]
      %v2263 = vld [vmem:[%s2249 + $0x34] sm:$0xf]
      %v2264 = vld [vmem:[%s2249 + $0x38] sm:$0xf]
      %v2265 = vld [vmem:[%s2249 + $0x3c] sm:$0xf]
      %v2299 = vrot.slane %v2216, 1
      %v2300 = vrot.slane %v2217, 1
      %v2301 = vsel %vm1717, %v2299, %v2300
      %v2302 = vrot.slane %v2218, 1
      %v2303 = vsel %vm1717, %v2300, %v2302
      %v2304 = vrot.slane %v2219, 1
      %v2305 = vsel %vm1717, %v2302, %v2304
      %v2306 = vrot.slane %v2220, 1
      %v2307 = vsel %vm1717, %v2304, %v2306
      %v2308 = vrot.slane %v2221, 1
      %v2309 = vsel %vm1717, %v2306, %v2308
      %v2310 = vrot.slane %v2222, 1
      %v2311 = vsel %vm1717, %v2308, %v2310
      %v2312 = vrot.slane %v2223, 1
      %v2313 = vsel %vm1717, %v2310, %v2312
      %v2314 = vrot.slane %v2224, 1
      %v2315 = vsel %vm1717, %v2312, %v2314
      %v2316 = vrot.slane %v2225, 1
      %v2317 = vsel %vm1717, %v2314, %v2316
      %v2318 = vrot.slane %v2226, 1
      %v2319 = vsel %vm1717, %v2316, %v2318
      %v2320 = vrot.slane %v2227, 1
      %v2321 = vsel %vm1717, %v2318, %v2320
      %v2322 = vrot.slane %v2228, 1
      %v2323 = vsel %vm1717, %v2320, %v2322
      %v2324 = vrot.slane %v2229, 1
      %v2325 = vsel %vm1717, %v2322, %v2324
      %v2326 = vrot.slane %v2230, 1
      %v2327 = vsel %vm1717, %v2324, %v2326
      %v2328 = vrot.slane %v2231, 1
      %v2329 = vsel %vm1717, %v2326, %v2328
      %v2330 = vrot.slane %v2232, 1
      %v2331 = vsel %vm1717, %v2328, %v2330
      %v2332 = vrot.slane %v2233, 1
      %v2333 = vsel %vm1717, %v2330, %v2332
      %v2334 = vrot.slane %v2234, 1
      %v2335 = vsel %vm1717, %v2332, %v2334
      %v2336 = vrot.slane %v2235, 1
      %v2337 = vsel %vm1717, %v2334, %v2336
      %v2338 = vrot.slane %v2236, 1
      %v2339 = vsel %vm1717, %v2336, %v2338
      %v2340 = vrot.slane %v2237, 1
      %v2341 = vsel %vm1717, %v2338, %v2340
      %v2342 = vrot.slane %v2238, 1
      %v2343 = vsel %vm1717, %v2340, %v2342
      %v2344 = vrot.slane %v2239, 1
      %v2345 = vsel %vm1717, %v2342, %v2344
      %v2346 = vrot.slane %v2240, 1
      %v2347 = vsel %vm1717, %v2344, %v2346
      %v2348 = vrot.slane %v2241, 1
      %v2349 = vsel %vm1717, %v2346, %v2348
      %v2350 = vrot.slane %v2242, 1
      %v2351 = vsel %vm1717, %v2348, %v2350
      %v2352 = vrot.slane %v2243, 1
      %v2353 = vsel %vm1717, %v2350, %v2352
      %v2354 = vrot.slane %v2244, 1
      %v2355 = vsel %vm1717, %v2352, %v2354
      %v2356 = vrot.slane %v2245, 1
      %v2357 = vsel %vm1717, %v2354, %v2356
      %v2358 = vrot.slane %v2246, 1
      %v2359 = vsel %vm1717, %v2356, %v2358
      %v2360 = vrot.slane %v2247, 1
      %v2361 = vsel %vm1717, %v2358, %v2360
      %v2362 = vrot.slane %v2248, 1
      %v2363 = vsel %vm1717, %v2360, %v2362
      %v2412 = vunpack.c.l.b16 %v2250
      %v2413 = vunpack.c.l.b16 %v2251
      %v2414 = vunpack.c.l.b16 %v2252
      %v2415 = vunpack.c.l.b16 %v2253
      %v2416 = vunpack.c.l.b16 %v2254
      %v2417 = vunpack.c.l.b16 %v2255
      %v2418 = vunpack.c.l.b16 %v2256
      %v2419 = vunpack.c.l.b16 %v2257
      %v2420 = vunpack.c.l.b16 %v2258
      %v2421 = vunpack.c.l.b16 %v2259
      %v2422 = vunpack.c.l.b16 %v2260
      %v2423 = vunpack.c.l.b16 %v2261
      %v2424 = vunpack.c.l.b16 %v2262
      %v2425 = vunpack.c.l.b16 %v2263
      %v2426 = vunpack.c.l.b16 %v2264
      %v2427 = vunpack.c.l.b16 %v2265
      %v2428 = vpack.c.b16 %v2413, %v2412
      %v2429 = vpack.c.b16 %v2415, %v2414
      %v2430 = vpack.c.b16 %v2417, %v2416
      %v2431 = vpack.c.b16 %v2419, %v2418
      %v2432 = vpack.c.b16 %v2421, %v2420
      %v2433 = vpack.c.b16 %v2423, %v2422
      %v2434 = vpack.c.b16 %v2425, %v2424
      %v2435 = vpack.c.b16 %v2427, %v2426
      %2444 = vmatprep.subr.bf16.mxu0 0
      %2445 = vmatpush1.bf16.msra.mxu0 %v2428
      %2446 = vmatprep.subr.bf16.mxu0 0
      %2447 = vmatpush1.bf16.msra.mxu0 %v2429
      %2448 = vmatprep.subr.bf16.mxu0 0
      %2449 = vmatpush1.bf16.msra.mxu0 %v2430
      %2450 = vmatprep.subr.bf16.mxu0 0
      %2451 = vmatpush1.bf16.msra.mxu0 %v2431
      %2452 = vmatprep.subr.bf16.mxu0 0
      %2453 = vmatpush1.bf16.msra.mxu0 %v2432
      %2454 = vmatprep.subr.bf16.mxu0 0
      %2455 = vmatpush1.bf16.msra.mxu0 %v2433
      %2456 = vmatprep.subr.bf16.mxu0 0
      %2457 = vmatpush1.bf16.msra.mxu0 %v2434
      %2458 = vmatprep.subr.bf16.mxu0 0
      %2459 = vmatpush1.bf16.msra.mxu0 %v2435
      %2460 = vmatprep.subr.bf16.mxu0 0
      %2461 = vmatpush1.bf16.msra.mxu0 0
      %2462 = vmatprep.subr.bf16.mxu0 0
      %2463 = vmatpush1.bf16.msra.mxu0 0
      %2464 = vmatprep.subr.bf16.mxu0 0
      %2465 = vmatpush1.bf16.msra.mxu0 0
      %2466 = vmatprep.subr.bf16.mxu0 0
      %2467 = vmatpush1.bf16.msra.mxu0 0
      %2468 = vmatprep.subr.bf16.mxu0 0
      %2469 = vmatpush1.bf16.msra.mxu0 0
      %2470 = vmatprep.subr.bf16.mxu0 0
      %2471 = vmatpush1.bf16.msra.mxu0 0
      %2472 = vmatprep.subr.bf16.mxu0 0
      %2473 = vmatpush1.bf16.msra.mxu0 0
      %2474 = vmatprep.subr.bf16.mxu0 0
      %2475 = vmatpush1.bf16.msra.mxu0 0
      %2476 = vmatprep.mubr.bf16.mxu0 0
      %2477 = vmatmul.mubr.bf16.gmra.mrb[0].mxu0 %v2301
      %v2478 = vpop.f32.mrb[0].mxu0
      %v2479 = vadd.f32 0.0, %v2478
      %v2480 = vpop.f32.mrb[0].mxu0
      %v2481 = vpop.f32.mrb[0].mxu0
      %v2482 = vadd.f32 0.0, %v2481
      %v2483 = vpop.f32.mrb[0].mxu0
      %2484 = vmatprep.mubr.bf16.mxu0 0
      %2485 = vmatmul.mubr.bf16.gmra.mrb[0].mxu0 %v2303
      %v2486 = vpop.f32.mrb[0].mxu0
      %v2487 = vadd.f32 0.0, %v2486
      %v2488 = vpop.f32.mrb[0].mxu0
      %v2489 = vpop.f32.mrb[0].mxu0
      %v2490 = vadd.f32 0.0, %v2489
      %v2491 = vpop.f32.mrb[0].mxu0
      %2492 = vmatprep.mubr.bf16.mxu0 0
      %2493 = vmatmul.mubr.bf16.gmra.mrb[0].mxu0 %v2305
      %v2494 = vpop.f32.mrb[0].mxu0
      %v2495 = vadd.f32 0.0, %v2494
      %v2496 = vpop.f32.mrb[0].mxu0
      %v2497 = vpop.f32.mrb[0].mxu0
      %v2498 = vadd.f32 0.0, %v2497
      %v2499 = vpop.f32.mrb[0].mxu0
      %2500 = vmatprep.mubr.bf16.mxu0 0
      %2501 = vmatmul.mubr.bf16.gmra.mrb[0].mxu0 %v2307
      %v2502 = vpop.f32.mrb[0].mxu0
      %v2503 = vadd.f32 0.0, %v2502
      %v2504 = vpop.f32.mrb[0].mxu0
      %v2505 = vpop.f32.mrb[0].mxu0
      %v2506 = vadd.f32 0.0, %v2505
      %v2507 = vpop.f32.mrb[0].mxu0
      %2508 = vmatprep.mubr.bf16.mxu0 0
      %2509 = vmatmul.mubr.bf16.gmra.mrb[0].mxu0 %v2309
      %v2510 = vpop.f32.mrb[0].mxu0
      %v2511 = vadd.f32 0.0, %v2510
      %v2512 = vpop.f32.mrb[0].mxu0
      %v2513 = vpop.f32.mrb[0].mxu0
      %v2514 = vadd.f32 0.0, %v2513
      %v2515 = vpop.f32.mrb[0].mxu0
      %2516 = vmatprep.mubr.bf16.mxu0 0
      %2517 = vmatmul.mubr.bf16.gmra.mrb[0].mxu0 %v2311
      %v2518 = vpop.f32.mrb[0].mxu0
      %v2519 = vadd.f32 0.0, %v2518
      %v2520 = vpop.f32.mrb[0].mxu0
      %v2521 = vpop.f32.mrb[0].mxu0
      %v2522 = vadd.f32 0.0, %v2521
      %v2523 = vpop.f32.mrb[0].mxu0
      %2524 = vmatprep.mubr.bf16.mxu0 0
      %2525 = vmatmul.mubr.bf16.gmra.mrb[0].mxu0 %v2313
      %v2526 = vpop.f32.mrb[0].mxu0
      %v2527 = vadd.f32 0.0, %v2526
      %v2528 = vpop.f32.mrb[0].mxu0
      %v2529 = vpop.f32.mrb[0].mxu0
      %v2530 = vadd.f32 0.0, %v2529
      %v2531 = vpop.f32.mrb[0].mxu0
      %2532 = vmatprep.mubr.bf16.mxu0 0
      %2533 = vmatmul.mubr.bf16.gmra.mrb[0].mxu0 %v2315
      %v2534 = vpop.f32.mrb[0].mxu0
      %v2535 = vadd.f32 0.0, %v2534
      %v2536 = vpop.f32.mrb[0].mxu0
      %v2537 = vpop.f32.mrb[0].mxu0
      %v2538 = vadd.f32 0.0, %v2537
      %v2539 = vpop.f32.mrb[0].mxu0
      %2540 = vmatprep.mubr.bf16.mxu0 0
      %2541 = vmatmul.mubr.bf16.gmra.mrb[0].mxu0 %v2317
      %v2542 = vpop.f32.mrb[0].mxu0
      %v2543 = vadd.f32 0.0, %v2542
      %v2544 = vpop.f32.mrb[0].mxu0
      %v2545 = vpop.f32.mrb[0].mxu0
      %v2546 = vadd.f32 0.0, %v2545
      %v2547 = vpop.f32.mrb[0].mxu0
      %2548 = vmatprep.mubr.bf16.mxu0 0
      %2549 = vmatmul.mubr.bf16.gmra.mrb[0].mxu0 %v2319
      %v2550 = vpop.f32.mrb[0].mxu0
      %v2551 = vadd.f32 0.0, %v2550
      %v2552 = vpop.f32.mrb[0].mxu0
      %v2553 = vpop.f32.mrb[0].mxu0
      %v2554 = vadd.f32 0.0, %v2553
      %v2555 = vpop.f32.mrb[0].mxu0
      %2556 = vmatprep.mubr.bf16.mxu0 0
      %2557 = vmatmul.mubr.bf16.gmra.mrb[0].mxu0 %v2321
      %v2558 = vpop.f32.mrb[0].mxu0
      %v2559 = vadd.f32 0.0, %v2558
      %v2560 = vpop.f32.mrb[0].mxu0
      %v2561 = vpop.f32.mrb[0].mxu0
      %v2562 = vadd.f32 0.0, %v2561
      %v2563 = vpop.f32.mrb[0].mxu0
      %2564 = vmatprep.mubr.bf16.mxu0 0
      %2565 = vmatmul.mubr.bf16.gmra.mrb[0].mxu0 %v2323
      %v2566 = vpop.f32.mrb[0].mxu0
      %v2567 = vadd.f32 0.0, %v2566
      %v2568 = vpop.f32.mrb[0].mxu0
      %v2569 = vpop.f32.mrb[0].mxu0
      %v2570 = vadd.f32 0.0, %v2569
      %v2571 = vpop.f32.mrb[0].mxu0
      %2572 = vmatprep.mubr.bf16.mxu0 0
      %2573 = vmatmul.mubr.bf16.gmra.mrb[0].mxu0 %v2325
      %v2574 = vpop.f32.mrb[0].mxu0
      %v2575 = vadd.f32 0.0, %v2574
      %v2576 = vpop.f32.mrb[0].mxu0
      %v2577 = vpop.f32.mrb[0].mxu0
      %v2578 = vadd.f32 0.0, %v2577
      %v2579 = vpop.f32.mrb[0].mxu0
      %2580 = vmatprep.mubr.bf16.mxu0 0
      %2581 = vmatmul.mubr.bf16.gmra.mrb[0].mxu0 %v2327
      %v2582 = vpop.f32.mrb[0].mxu0
      %v2583 = vadd.f32 0.0, %v2582
      %v2584 = vpop.f32.mrb[0].mxu0
      %v2585 = vpop.f32.mrb[0].mxu0
      %v2586 = vadd.f32 0.0, %v2585
      %v2587 = vpop.f32.mrb[0].mxu0
      %2588 = vmatprep.mubr.bf16.mxu0 0
      %2589 = vmatmul.mubr.bf16.gmra.mrb[0].mxu0 %v2329
      %v2590 = vpop.f32.mrb[0].mxu0
      %v2591 = vadd.f32 0.0, %v2590
      %v2592 = vpop.f32.mrb[0].mxu0
      %v2593 = vpop.f32.mrb[0].mxu0
      %v2594 = vadd.f32 0.0, %v2593
      %v2595 = vpop.f32.mrb[0].mxu0
      %2596 = vmatprep.mubr.bf16.mxu0 0
      %2597 = vmatmul.mubr.bf16.gmra.mrb[0].mxu0 %v2331
      %v2598 = vpop.f32.mrb[0].mxu0
      %v2599 = vadd.f32 0.0, %v2598
      %v2600 = vpop.f32.mrb[0].mxu0
      %v2601 = vpop.f32.mrb[0].mxu0
      %v2602 = vadd.f32 0.0, %v2601
      %v2603 = vpop.f32.mrb[0].mxu0
      %2604 = vmatprep.mubr.bf16.mxu0 0
      %2605 = vmatmul.mubr.bf16.gmra.mrb[0].mxu0 %v2333
      %v2606 = vpop.f32.mrb[0].mxu0
      %v2607 = vadd.f32 0.0, %v2606
      %v2608 = vpop.f32.mrb[0].mxu0
      %v2609 = vpop.f32.mrb[0].mxu0
      %v2610 = vadd.f32 0.0, %v2609
      %v2611 = vpop.f32.mrb[0].mxu0
      %2612 = vmatprep.mubr.bf16.mxu0 0
      %2613 = vmatmul.mubr.bf16.gmra.mrb[0].mxu0 %v2335
      %v2614 = vpop.f32.mrb[0].mxu0
      %v2615 = vadd.f32 0.0, %v2614
      %v2616 = vpop.f32.mrb[0].mxu0
      %v2617 = vpop.f32.mrb[0].mxu0
      %v2618 = vadd.f32 0.0, %v2617
      %v2619 = vpop.f32.mrb[0].mxu0
      %2620 = vmatprep.mubr.bf16.mxu0 0
      %2621 = vmatmul.mubr.bf16.gmra.mrb[0].mxu0 %v2337
      %v2622 = vpop.f32.mrb[0].mxu0
      %v2623 = vadd.f32 0.0, %v2622
      %v2624 = vpop.f32.mrb[0].mxu0
      %v2625 = vpop.f32.mrb[0].mxu0
      %v2626 = vadd.f32 0.0, %v2625
      %v2627 = vpop.f32.mrb[0].mxu0
      %2628 = vmatprep.mubr.bf16.mxu0 0
      %2629 = vmatmul.mubr.bf16.gmra.mrb[0].mxu0 %v2339
      %v2630 = vpop.f32.mrb[0].mxu0
      %v2631 = vadd.f32 0.0, %v2630
      %v2632 = vpop.f32.mrb[0].mxu0
      %v2633 = vpop.f32.mrb[0].mxu0
      %v2634 = vadd.f32 0.0, %v2633
      %v2635 = vpop.f32.mrb[0].mxu0
      %2636 = vmatprep.mubr.bf16.mxu0 0
      %2637 = vmatmul.mubr.bf16.gmra.mrb[0].mxu0 %v2341
      %v2638 = vpop.f32.mrb[0].mxu0
      %v2639 = vadd.f32 0.0, %v2638
      %v2640 = vpop.f32.mrb[0].mxu0
      %v2641 = vpop.f32.mrb[0].mxu0
      %v2642 = vadd.f32 0.0, %v2641
      %v2643 = vpop.f32.mrb[0].mxu0
      %2644 = vmatprep.mubr.bf16.mxu0 0
      %2645 = vmatmul.mubr.bf16.gmra.mrb[0].mxu0 %v2343
      %v2646 = vpop.f32.mrb[0].mxu0
      %v2647 = vadd.f32 0.0, %v2646
      %v2648 = vpop.f32.mrb[0].mxu0
      %v2649 = vpop.f32.mrb[0].mxu0
      %v2650 = vadd.f32 0.0, %v2649
      %v2651 = vpop.f32.mrb[0].mxu0
      %2652 = vmatprep.mubr.bf16.mxu0 0
      %2653 = vmatmul.mubr.bf16.gmra.mrb[0].mxu0 %v2345
      %v2654 = vpop.f32.mrb[0].mxu0
      %v2655 = vadd.f32 0.0, %v2654
      %v2656 = vpop.f32.mrb[0].mxu0
      %v2657 = vpop.f32.mrb[0].mxu0
      %v2658 = vadd.f32 0.0, %v2657
      %v2659 = vpop.f32.mrb[0].mxu0
      %2660 = vmatprep.mubr.bf16.mxu0 0
      %2661 = vmatmul.mubr.bf16.gmra.mrb[0].mxu0 %v2347
      %v2662 = vpop.f32.mrb[0].mxu0
      %v2663 = vadd.f32 0.0, %v2662
      %v2664 = vpop.f32.mrb[0].mxu0
      %v2665 = vpop.f32.mrb[0].mxu0
      %v2666 = vadd.f32 0.0, %v2665
      %v2667 = vpop.f32.mrb[0].mxu0
      %2668 = vmatprep.mubr.bf16.mxu0 0
      %2669 = vmatmul.mubr.bf16.gmra.mrb[0].mxu0 %v2349
      %v2670 = vpop.f32.mrb[0].mxu0
      %v2671 = vadd.f32 0.0, %v2670
      %v2672 = vpop.f32.mrb[0].mxu0
      %v2673 = vpop.f32.mrb[0].mxu0
      %v2674 = vadd.f32 0.0, %v2673
      %v2675 = vpop.f32.mrb[0].mxu0
      %2676 = vmatprep.mubr.bf16.mxu0 0
      %2677 = vmatmul.mubr.bf16.gmra.mrb[0].mxu0 %v2351
      %v2678 = vpop.f32.mrb[0].mxu0
      %v2679 = vadd.f32 0.0, %v2678
      %v2680 = vpop.f32.mrb[0].mxu0
      %v2681 = vpop.f32.mrb[0].mxu0
      %v2682 = vadd.f32 0.0, %v2681
      %v2683 = vpop.f32.mrb[0].mxu0
      %2684 = vmatprep.mubr.bf16.mxu0 0
      %2685 = vmatmul.mubr.bf16.gmra.mrb[0].mxu0 %v2353
      %v2686 = vpop.f32.mrb[0].mxu0
      %v2687 = vadd.f32 0.0, %v2686
      %v2688 = vpop.f32.mrb[0].mxu0
      %v2689 = vpop.f32.mrb[0].mxu0
      %v2690 = vadd.f32 0.0, %v2689
      %v2691 = vpop.f32.mrb[0].mxu0
      %2692 = vmatprep.mubr.bf16.mxu0 0
      %2693 = vmatmul.mubr.bf16.gmra.mrb[0].mxu0 %v2355
      %v2694 = vpop.f32.mrb[0].mxu0
      %v2695 = vadd.f32 0.0, %v2694
      %v2696 = vpop.f32.mrb[0].mxu0
      %v2697 = vpop.f32.mrb[0].mxu0
      %v2698 = vadd.f32 0.0, %v2697
      %v2699 = vpop.f32.mrb[0].mxu0
      %2700 = vmatprep.mubr.bf16.mxu0 0
      %2701 = vmatmul.mubr.bf16.gmra.mrb[0].mxu0 %v2357
      %v2702 = vpop.f32.mrb[0].mxu0
      %v2703 = vadd.f32 0.0, %v2702
      %v2704 = vpop.f32.mrb[0].mxu0
      %v2705 = vpop.f32.mrb[0].mxu0
      %v2706 = vadd.f32 0.0, %v2705
      %v2707 = vpop.f32.mrb[0].mxu0
      %2708 = vmatprep.mubr.bf16.mxu0 0
      %2709 = vmatmul.mubr.bf16.gmra.mrb[0].mxu0 %v2359
      %v2710 = vpop.f32.mrb[0].mxu0
      %v2711 = vadd.f32 0.0, %v2710
      %v2712 = vpop.f32.mrb[0].mxu0
      %v2713 = vpop.f32.mrb[0].mxu0
      %v2714 = vadd.f32 0.0, %v2713
      %v2715 = vpop.f32.mrb[0].mxu0
      %2716 = vmatprep.mubr.bf16.mxu0 0
      %2717 = vmatmul.mubr.bf16.gmra.mrb[0].mxu0 %v2361
      %v2718 = vpop.f32.mrb[0].mxu0
      %v2719 = vadd.f32 0.0, %v2718
      %v2720 = vpop.f32.mrb[0].mxu0
      %v2721 = vpop.f32.mrb[0].mxu0
      %v2722 = vadd.f32 0.0, %v2721
      %v2723 = vpop.f32.mrb[0].mxu0
      %2724 = vmatprep.mubr.bf16.mxu0 0
      %2725 = vmatmul.mubr.bf16.gmra.mrb[0].mxu0 %v2363
      %v2726 = vpop.f32.mrb[0].mxu0
      %v2727 = vadd.f32 0.0, %v2726
      %v2728 = vpop.f32.mrb[0].mxu0
      %v2729 = vpop.f32.mrb[0].mxu0
      %v2730 = vadd.f32 0.0, %v2729
      %v2731 = vpop.f32.mrb[0].mxu0
      %2732 = vdwg.mxu0
      %v2733 = vadd.f32 %v2152, %v2479
      %v2734 = vadd.f32 %v2153, %v2482
      %v2735 = vadd.f32 %v2154, %v2487
      %v2736 = vadd.f32 %v2155, %v2490
      %v2737 = vadd.f32 %v2156, %v2495
      %v2738 = vadd.f32 %v2157, %v2498
      %v2739 = vadd.f32 %v2158, %v2503
      %v2740 = vadd.f32 %v2159, %v2506
      %v2741 = vadd.f32 %v2160, %v2511
      %v2742 = vadd.f32 %v2161, %v2514
      %v2743 = vadd.f32 %v2162, %v2519
      %v2744 = vadd.f32 %v2163, %v2522
      %v2745 = vadd.f32 %v2164, %v2527
      %v2746 = vadd.f32 %v2165, %v2530
      %v2747 = vadd.f32 %v2166, %v2535
      %v2748 = vadd.f32 %v2167, %v2538
      %v2749 = vadd.f32 %v2168, %v2543
      %v2750 = vadd.f32 %v2169, %v2546
      %v2751 = vadd.f32 %v2170, %v2551
      %v2752 = vadd.f32 %v2171, %v2554
      %v2753 = vadd.f32 %v2172, %v2559
      %v2754 = vadd.f32 %v2173, %v2562
      %v2755 = vadd.f32 %v2174, %v2567
      %v2756 = vadd.f32 %v2175, %v2570
      %v2757 = vadd.f32 %v2176, %v2575
      %v2758 = vadd.f32 %v2177, %v2578
      %v2759 = vadd.f32 %v2178, %v2583
      %v2760 = vadd.f32 %v2179, %v2586
      %v2761 = vadd.f32 %v2180, %v2591
      %v2762 = vadd.f32 %v2181, %v2594
      %v2763 = vadd.f32 %v2182, %v2599
      %v2764 = vadd.f32 %v2183, %v2602
      %v2765 = vadd.f32 %v2184, %v2607
      %v2766 = vadd.f32 %v2185, %v2610
      %v2767 = vadd.f32 %v2186, %v2615
      %v2768 = vadd.f32 %v2187, %v2618
      %v2769 = vadd.f32 %v2188, %v2623
      %v2770 = vadd.f32 %v2189, %v2626
      %v2771 = vadd.f32 %v2190, %v2631
      %v2772 = vadd.f32 %v2191, %v2634
      %v2773 = vadd.f32 %v2192, %v2639
      %v2774 = vadd.f32 %v2193, %v2642
      %v2775 = vadd.f32 %v2194, %v2647
      %v2776 = vadd.f32 %v2195, %v2650
      %v2777 = vadd.f32 %v2196, %v2655
      %v2778 = vadd.f32 %v2197, %v2658
      %v2779 = vadd.f32 %v2198, %v2663
      %v2780 = vadd.f32 %v2199, %v2666
      %v2781 = vadd.f32 %v2200, %v2671
      %v2782 = vadd.f32 %v2201, %v2674
      %v2783 = vadd.f32 %v2202, %v2679
      %v2784 = vadd.f32 %v2203, %v2682
      %v2785 = vadd.f32 %v2204, %v2687
      %v2786 = vadd.f32 %v2205, %v2690
      %v2787 = vadd.f32 %v2206, %v2695
      %v2788 = vadd.f32 %v2207, %v2698
      %v2789 = vadd.f32 %v2208, %v2703
      %v2790 = vadd.f32 %v2209, %v2706
      %v2791 = vadd.f32 %v2210, %v2711
      %v2792 = vadd.f32 %v2211, %v2714
      %v2793 = vadd.f32 %v2212, %v2719
      %v2794 = vadd.f32 %v2213, %v2722
      %v2795 = vadd.f32 %v2214, %v2727
      %v2796 = vadd.f32 %v2215, %v2730
      %v2797 = vld [vmem:[#allocation2 + $0x108] sm:$0x3]
      %s2798 = scalar_lea.vmem %s295, 256
      %v2799 = vld [vmem:[%s2798] sm:$0xf]
      %v2800 = vld [vmem:[%s2798 + $0x4] sm:$0xf]
      %v2801 = vld [vmem:[%s2798 + $0x8] sm:$0xf]
      %v2802 = vld [vmem:[%s2798 + $0xc] sm:$0xf]
      %v2803 = vld [vmem:[%s2798 + $0x10] sm:$0xf]
      %v2804 = vld [vmem:[%s2798 + $0x14] sm:$0xf]
      %v2805 = vld [vmem:[%s2798 + $0x18] sm:$0xf]
      %v2806 = vld [vmem:[%s2798 + $0x1c] sm:$0xf]
      %v2807 = vld [vmem:[%s2798 + $0x20] sm:$0xf]
      %v2808 = vld [vmem:[%s2798 + $0x24] sm:$0xf]
      %v2809 = vld [vmem:[%s2798 + $0x28] sm:$0xf]
      %v2810 = vld [vmem:[%s2798 + $0x2c] sm:$0xf]
      %v2811 = vld [vmem:[%s2798 + $0x30] sm:$0xf]
      %v2812 = vld [vmem:[%s2798 + $0x34] sm:$0xf]
      %v2813 = vld [vmem:[%s2798 + $0x38] sm:$0xf]
      %v2814 = vld [vmem:[%s2798 + $0x3c] sm:$0xf]
      %vm2815 = vsmask.f32 6400
      %v2817 = vshrl.u32 %v2216, 16
      %v2819 = vrot.slane %v2817, 1
      %v2820 = vshll.u32 %v2216, 16
      %v2822 = vrot.slane %v2820, 2
      %v2823 = vor.u32 %v2819, %v2822
      %v2825 = vshrl.u32 %v2217, 16
      %v2827 = vrot.slane %v2825, 1
      %v2828 = vshll.u32 %v2217, 16
      %v2830 = vrot.slane %v2828, 2
      %v2831 = vor.u32 %v2827, %v2830
      %v2832 = vsel %vm2815, %v2823, %v2831
      %v2834 = vshrl.u32 %v2218, 16
      %v2836 = vrot.slane %v2834, 1
      %v2837 = vshll.u32 %v2218, 16
      %v2839 = vrot.slane %v2837, 2
      %v2840 = vor.u32 %v2836, %v2839
      %v2841 = vsel %vm2815, %v2831, %v2840
      %v2843 = vshrl.u32 %v2219, 16
      %v2845 = vrot.slane %v2843, 1
      %v2846 = vshll.u32 %v2219, 16
      %v2848 = vrot.slane %v2846, 2
      %v2849 = vor.u32 %v2845, %v2848
      %v2850 = vsel %vm2815, %v2840, %v2849
      %v2852 = vshrl.u32 %v2220, 16
      %v2854 = vrot.slane %v2852, 1
      %v2855 = vshll.u32 %v2220, 16
      %v2857 = vrot.slane %v2855, 2
      %v2858 = vor.u32 %v2854, %v2857
      %v2859 = vsel %vm2815, %v2849, %v2858
      %v2861 = vshrl.u32 %v2221, 16
      %v2863 = vrot.slane %v2861, 1
      %v2864 = vshll.u32 %v2221, 16
      %v2866 = vrot.slane %v2864, 2
      %v2867 = vor.u32 %v2863, %v2866
      %v2868 = vsel %vm2815, %v2858, %v2867
      %v2870 = vshrl.u32 %v2222, 16
      %v2872 = vrot.slane %v2870, 1
      %v2873 = vshll.u32 %v2222, 16
      %v2875 = vrot.slane %v2873, 2
      %v2876 = vor.u32 %v2872, %v2875
      %v2877 = vsel %vm2815, %v2867, %v2876
      %v2879 = vshrl.u32 %v2223, 16
      %v2881 = vrot.slane %v2879, 1
      %v2882 = vshll.u32 %v2223, 16
      %v2884 = vrot.slane %v2882, 2
      %v2885 = vor.u32 %v2881, %v2884
      %v2886 = vsel %vm2815, %v2876, %v2885
      %v2888 = vshrl.u32 %v2224, 16
      %v2890 = vrot.slane %v2888, 1
      %v2891 = vshll.u32 %v2224, 16
      %v2893 = vrot.slane %v2891, 2
      %v2894 = vor.u32 %v2890, %v2893
      %v2895 = vsel %vm2815, %v2885, %v2894
      %v2897 = vshrl.u32 %v2225, 16
      %v2899 = vrot.slane %v2897, 1
      %v2900 = vshll.u32 %v2225, 16
      %v2902 = vrot.slane %v2900, 2
      %v2903 = vor.u32 %v2899, %v2902
      %v2904 = vsel %vm2815, %v2894, %v2903
      %v2906 = vshrl.u32 %v2226, 16
      %v2908 = vrot.slane %v2906, 1
      %v2909 = vshll.u32 %v2226, 16
      %v2911 = vrot.slane %v2909, 2
      %v2912 = vor.u32 %v2908, %v2911
      %v2913 = vsel %vm2815, %v2903, %v2912
      %v2915 = vshrl.u32 %v2227, 16
      %v2917 = vrot.slane %v2915, 1
      %v2918 = vshll.u32 %v2227, 16
      %v2920 = vrot.slane %v2918, 2
      %v2921 = vor.u32 %v2917, %v2920
      %v2922 = vsel %vm2815, %v2912, %v2921
      %v2924 = vshrl.u32 %v2228, 16
      %v2926 = vrot.slane %v2924, 1
      %v2927 = vshll.u32 %v2228, 16
      %v2929 = vrot.slane %v2927, 2
      %v2930 = vor.u32 %v2926, %v2929
      %v2931 = vsel %vm2815, %v2921, %v2930
      %v2933 = vshrl.u32 %v2229, 16
      %v2935 = vrot.slane %v2933, 1
      %v2936 = vshll.u32 %v2229, 16
      %v2938 = vrot.slane %v2936, 2
      %v2939 = vor.u32 %v2935, %v2938
      %v2940 = vsel %vm2815, %v2930, %v2939
      %v2942 = vshrl.u32 %v2230, 16
      %v2944 = vrot.slane %v2942, 1
      %v2945 = vshll.u32 %v2230, 16
      %v2947 = vrot.slane %v2945, 2
      %v2948 = vor.u32 %v2944, %v2947
      %v2949 = vsel %vm2815, %v2939, %v2948
      %v2951 = vshrl.u32 %v2231, 16
      %v2953 = vrot.slane %v2951, 1
      %v2954 = vshll.u32 %v2231, 16
      %v2956 = vrot.slane %v2954, 2
      %v2957 = vor.u32 %v2953, %v2956
      %v2958 = vsel %vm2815, %v2948, %v2957
      %v2960 = vshrl.u32 %v2232, 16
      %v2962 = vrot.slane %v2960, 1
      %v2963 = vshll.u32 %v2232, 16
      %v2965 = vrot.slane %v2963, 2
      %v2966 = vor.u32 %v2962, %v2965
      %v2967 = vsel %vm2815, %v2957, %v2966
      %v2969 = vshrl.u32 %v2233, 16
      %v2971 = vrot.slane %v2969, 1
      %v2972 = vshll.u32 %v2233, 16
      %v2974 = vrot.slane %v2972, 2
      %v2975 = vor.u32 %v2971, %v2974
      %v2976 = vsel %vm2815, %v2966, %v2975
      %v2978 = vshrl.u32 %v2234, 16
      %v2980 = vrot.slane %v2978, 1
      %v2981 = vshll.u32 %v2234, 16
      %v2983 = vrot.slane %v2981, 2
      %v2984 = vor.u32 %v2980, %v2983
      %v2985 = vsel %vm2815, %v2975, %v2984
      %v2987 = vshrl.u32 %v2235, 16
      %v2989 = vrot.slane %v2987, 1
      %v2990 = vshll.u32 %v2235, 16
      %v2992 = vrot.slane %v2990, 2
      %v2993 = vor.u32 %v2989, %v2992
      %v2994 = vsel %vm2815, %v2984, %v2993
      %v2996 = vshrl.u32 %v2236, 16
      %v2998 = vrot.slane %v2996, 1
      %v2999 = vshll.u32 %v2236, 16
      %v3001 = vrot.slane %v2999, 2
      %v3002 = vor.u32 %v2998, %v3001
      %v3003 = vsel %vm2815, %v2993, %v3002
      %v3005 = vshrl.u32 %v2237, 16
      %v3007 = vrot.slane %v3005, 1
      %v3008 = vshll.u32 %v2237, 16
      %v3010 = vrot.slane %v3008, 2
      %v3011 = vor.u32 %v3007, %v3010
      %v3012 = vsel %vm2815, %v3002, %v3011
      %v3014 = vshrl.u32 %v2238, 16
      %v3016 = vrot.slane %v3014, 1
      %v3017 = vshll.u32 %v2238, 16
      %v3019 = vrot.slane %v3017, 2
      %v3020 = vor.u32 %v3016, %v3019
      %v3021 = vsel %vm2815, %v3011, %v3020
      %v3023 = vshrl.u32 %v2239, 16
      %v3025 = vrot.slane %v3023, 1
      %v3026 = vshll.u32 %v2239, 16
      %v3028 = vrot.slane %v3026, 2
      %v3029 = vor.u32 %v3025, %v3028
      %v3030 = vsel %vm2815, %v3020, %v3029
      %v3032 = vshrl.u32 %v2240, 16
      %v3034 = vrot.slane %v3032, 1
      %v3035 = vshll.u32 %v2240, 16
      %v3037 = vrot.slane %v3035, 2
      %v3038 = vor.u32 %v3034, %v3037
      %v3039 = vsel %vm2815, %v3029, %v3038
      %v3041 = vshrl.u32 %v2241, 16
      %v3043 = vrot.slane %v3041, 1
      %v3044 = vshll.u32 %v2241, 16
      %v3046 = vrot.slane %v3044, 2
      %v3047 = vor.u32 %v3043, %v3046
      %v3048 = vsel %vm2815, %v3038, %v3047
      %v3050 = vshrl.u32 %v2242, 16
      %v3052 = vrot.slane %v3050, 1
      %v3053 = vshll.u32 %v2242, 16
      %v3055 = vrot.slane %v3053, 2
      %v3056 = vor.u32 %v3052, %v3055
      %v3057 = vsel %vm2815, %v3047, %v3056
      %v3059 = vshrl.u32 %v2243, 16
      %v3061 = vrot.slane %v3059, 1
      %v3062 = vshll.u32 %v2243, 16
      %v3064 = vrot.slane %v3062, 2
      %v3065 = vor.u32 %v3061, %v3064
      %v3066 = vsel %vm2815, %v3056, %v3065
      %v3068 = vshrl.u32 %v2244, 16
      %v3070 = vrot.slane %v3068, 1
      %v3071 = vshll.u32 %v2244, 16
      %v3073 = vrot.slane %v3071, 2
      %v3074 = vor.u32 %v3070, %v3073
      %v3075 = vsel %vm2815, %v3065, %v3074
      %v3077 = vshrl.u32 %v2245, 16
      %v3079 = vrot.slane %v3077, 1
      %v3080 = vshll.u32 %v2245, 16
      %v3082 = vrot.slane %v3080, 2
      %v3083 = vor.u32 %v3079, %v3082
      %v3084 = vsel %vm2815, %v3074, %v3083
      %v3086 = vshrl.u32 %v2246, 16
      %v3088 = vrot.slane %v3086, 1
      %v3089 = vshll.u32 %v2246, 16
      %v3091 = vrot.slane %v3089, 2
      %v3092 = vor.u32 %v3088, %v3091
      %v3093 = vsel %vm2815, %v3083, %v3092
      %v3095 = vshrl.u32 %v2247, 16
      %v3097 = vrot.slane %v3095, 1
      %v3098 = vshll.u32 %v2247, 16
      %v3100 = vrot.slane %v3098, 2
      %v3101 = vor.u32 %v3097, %v3100
      %v3102 = vsel %vm2815, %v3092, %v3101
      %v3104 = vshrl.u32 %v2797, 16
      %v3106 = vrot.slane %v3104, 1
      %v3107 = vshll.u32 %v2797, 16
      %v3109 = vrot.slane %v3107, 2
      %v3110 = vor.u32 %v3106, %v3109
      %v3111 = vsel %vm2815, %v3101, %v3110
      %v3160 = vunpack.c.l.b16 %v2799
      %v3161 = vunpack.c.l.b16 %v2800
      %v3162 = vunpack.c.l.b16 %v2801
      %v3163 = vunpack.c.l.b16 %v2802
      %v3164 = vunpack.c.l.b16 %v2803
      %v3165 = vunpack.c.l.b16 %v2804
      %v3166 = vunpack.c.l.b16 %v2805
      %v3167 = vunpack.c.l.b16 %v2806
      %v3168 = vunpack.c.l.b16 %v2807
      %v3169 = vunpack.c.l.b16 %v2808
      %v3170 = vunpack.c.l.b16 %v2809
      %v3171 = vunpack.c.l.b16 %v2810
      %v3172 = vunpack.c.l.b16 %v2811
      %v3173 = vunpack.c.l.b16 %v2812
      %v3174 = vunpack.c.l.b16 %v2813
      %v3175 = vunpack.c.l.b16 %v2814
      %v3176 = vpack.c.b16 %v3161, %v3160
      %v3177 = vpack.c.b16 %v3163, %v3162
      %v3178 = vpack.c.b16 %v3165, %v3164
      %v3179 = vpack.c.b16 %v3167, %v3166
      %v3180 = vpack.c.b16 %v3169, %v3168
      %v3181 = vpack.c.b16 %v3171, %v3170
      %v3182 = vpack.c.b16 %v3173, %v3172
      %v3183 = vpack.c.b16 %v3175, %v3174
      %3192 = vmatprep.subr.bf16.mxu0 0
      %3193 = vmatpush1.bf16.msra.mxu0 %v3176
      %3194 = vmatprep.subr.bf16.mxu0 0
      %3195 = vmatpush1.bf16.msra.mxu0 %v3177
      %3196 = vmatprep.subr.bf16.mxu0 0
      %3197 = vmatpush1.bf16.msra.mxu0 %v3178
      %3198 = vmatprep.subr.bf16.mxu0 0
      %3199 = vmatpush1.bf16.msra.mxu0 %v3179
      %3200 = vmatprep.subr.bf16.mxu0 0
      %3201 = vmatpush1.bf16.msra.mxu0 %v3180
      %3202 = vmatprep.subr.bf16.mxu0 0
      %3203 = vmatpush1.bf16.msra.mxu0 %v3181
      %3204 = vmatprep.subr.bf16.mxu0 0
      %3205 = vmatpush1.bf16.msra.mxu0 %v3182
      %3206 = vmatprep.subr.bf16.mxu0 0
      %3207 = vmatpush1.bf16.msra.mxu0 %v3183
      %3208 = vmatprep.subr.bf16.mxu0 0
      %3209 = vmatpush1.bf16.msra.mxu0 0
      %3210 = vmatprep.subr.bf16.mxu0 0
      %3211 = vmatpush1.bf16.msra.mxu0 0
      %3212 = vmatprep.subr.bf16.mxu0 0
      %3213 = vmatpush1.bf16.msra.mxu0 0
      %3214 = vmatprep.subr.bf16.mxu0 0
      %3215 = vmatpush1.bf16.msra.mxu0 0
      %3216 = vmatprep.subr.bf16.mxu0 0
      %3217 = vmatpush1.bf16.msra.mxu0 0
      %3218 = vmatprep.subr.bf16.mxu0 0
      %3219 = vmatpush1.bf16.msra.mxu0 0
      %3220 = vmatprep.subr.bf16.mxu0 0
      %3221 = vmatpush1.bf16.msra.mxu0 0
      %3222 = vmatprep.subr.bf16.mxu0 0
      %3223 = vmatpush1.bf16.msra.mxu0 0
      %3224 = vmatprep.mubr.bf16.mxu0 0
      %3225 = vmatmul.mubr.bf16.gmra.mrb[0].mxu0 %v2832
      %v3226 = vpop.f32.mrb[0].mxu0
      %v3227 = vadd.f32 0.0, %v3226
      %v3228 = vpop.f32.mrb[0].mxu0
      %v3229 = vpop.f32.mrb[0].mxu0
      %v3230 = vadd.f32 0.0, %v3229
      %v3231 = vpop.f32.mrb[0].mxu0
      %3232 = vmatprep.mubr.bf16.mxu0 0
      %3233 = vmatmul.mubr.bf16.gmra.mrb[0].mxu0 %v2841
      %v3234 = vpop.f32.mrb[0].mxu0
      %v3235 = vadd.f32 0.0, %v3234
      %v3236 = vpop.f32.mrb[0].mxu0
      %v3237 = vpop.f32.mrb[0].mxu0
      %v3238 = vadd.f32 0.0, %v3237
      %v3239 = vpop.f32.mrb[0].mxu0
      %3240 = vmatprep.mubr.bf16.mxu0 0
      %3241 = vmatmul.mubr.bf16.gmra.mrb[0].mxu0 %v2850
      %v3242 = vpop.f32.mrb[0].mxu0
      %v3243 = vadd.f32 0.0, %v3242
      %v3244 = vpop.f32.mrb[0].mxu0
      %v3245 = vpop.f32.mrb[0].mxu0
      %v3246 = vadd.f32 0.0, %v3245
      %v3247 = vpop.f32.mrb[0].mxu0
      %3248 = vmatprep.mubr.bf16.mxu0 0
      %3249 = vmatmul.mubr.bf16.gmra.mrb[0].mxu0 %v2859
      %v3250 = vpop.f32.mrb[0].mxu0
      %v3251 = vadd.f32 0.0, %v3250
      %v3252 = vpop.f32.mrb[0].mxu0
      %v3253 = vpop.f32.mrb[0].mxu0
      %v3254 = vadd.f32 0.0, %v3253
      %v3255 = vpop.f32.mrb[0].mxu0
      %3256 = vmatprep.mubr.bf16.mxu0 0
      %3257 = vmatmul.mubr.bf16.gmra.mrb[0].mxu0 %v2868
      %v3258 = vpop.f32.mrb[0].mxu0
      %v3259 = vadd.f32 0.0, %v3258
      %v3260 = vpop.f32.mrb[0].mxu0
      %v3261 = vpop.f32.mrb[0].mxu0
      %v3262 = vadd.f32 0.0, %v3261
      %v3263 = vpop.f32.mrb[0].mxu0
      %3264 = vmatprep.mubr.bf16.mxu0 0
      %3265 = vmatmul.mubr.bf16.gmra.mrb[0].mxu0 %v2877
      %v3266 = vpop.f32.mrb[0].mxu0
      %v3267 = vadd.f32 0.0, %v3266
      %v3268 = vpop.f32.mrb[0].mxu0
      %v3269 = vpop.f32.mrb[0].mxu0
      %v3270 = vadd.f32 0.0, %v3269
      %v3271 = vpop.f32.mrb[0].mxu0
      %3272 = vmatprep.mubr.bf16.mxu0 0
      %3273 = vmatmul.mubr.bf16.gmra.mrb[0].mxu0 %v2886
      %v3274 = vpop.f32.mrb[0].mxu0
      %v3275 = vadd.f32 0.0, %v3274
      %v3276 = vpop.f32.mrb[0].mxu0
      %v3277 = vpop.f32.mrb[0].mxu0
      %v3278 = vadd.f32 0.0, %v3277
      %v3279 = vpop.f32.mrb[0].mxu0
      %3280 = vmatprep.mubr.bf16.mxu0 0
      %3281 = vmatmul.mubr.bf16.gmra.mrb[0].mxu0 %v2895
      %v3282 = vpop.f32.mrb[0].mxu0
      %v3283 = vadd.f32 0.0, %v3282
      %v3284 = vpop.f32.mrb[0].mxu0
      %v3285 = vpop.f32.mrb[0].mxu0
      %v3286 = vadd.f32 0.0, %v3285
      %v3287 = vpop.f32.mrb[0].mxu0
      %3288 = vmatprep.mubr.bf16.mxu0 0
      %3289 = vmatmul.mubr.bf16.gmra.mrb[0].mxu0 %v2904
      %v3290 = vpop.f32.mrb[0].mxu0
      %v3291 = vadd.f32 0.0, %v3290
      %v3292 = vpop.f32.mrb[0].mxu0
      %v3293 = vpop.f32.mrb[0].mxu0
      %v3294 = vadd.f32 0.0, %v3293
      %v3295 = vpop.f32.mrb[0].mxu0
      %3296 = vmatprep.mubr.bf16.mxu0 0
      %3297 = vmatmul.mubr.bf16.gmra.mrb[0].mxu0 %v2913
      %v3298 = vpop.f32.mrb[0].mxu0
      %v3299 = vadd.f32 0.0, %v3298
      %v3300 = vpop.f32.mrb[0].mxu0
      %v3301 = vpop.f32.mrb[0].mxu0
      %v3302 = vadd.f32 0.0, %v3301
      %v3303 = vpop.f32.mrb[0].mxu0
      %3304 = vmatprep.mubr.bf16.mxu0 0
      %3305 = vmatmul.mubr.bf16.gmra.mrb[0].mxu0 %v2922
      %v3306 = vpop.f32.mrb[0].mxu0
      %v3307 = vadd.f32 0.0, %v3306
      %v3308 = vpop.f32.mrb[0].mxu0
      %v3309 = vpop.f32.mrb[0].mxu0
      %v3310 = vadd.f32 0.0, %v3309
      %v3311 = vpop.f32.mrb[0].mxu0
      %3312 = vmatprep.mubr.bf16.mxu0 0
      %3313 = vmatmul.mubr.bf16.gmra.mrb[0].mxu0 %v2931
      %v3314 = vpop.f32.mrb[0].mxu0
      %v3315 = vadd.f32 0.0, %v3314
      %v3316 = vpop.f32.mrb[0].mxu0
      %v3317 = vpop.f32.mrb[0].mxu0
      %v3318 = vadd.f32 0.0, %v3317
      %v3319 = vpop.f32.mrb[0].mxu0
      %3320 = vmatprep.mubr.bf16.mxu0 0
      %3321 = vmatmul.mubr.bf16.gmra.mrb[0].mxu0 %v2940
      %v3322 = vpop.f32.mrb[0].mxu0
      %v3323 = vadd.f32 0.0, %v3322
      %v3324 = vpop.f32.mrb[0].mxu0
      %v3325 = vpop.f32.mrb[0].mxu0
      %v3326 = vadd.f32 0.0, %v3325
      %v3327 = vpop.f32.mrb[0].mxu0
      %3328 = vmatprep.mubr.bf16.mxu0 0
      %3329 = vmatmul.mubr.bf16.gmra.mrb[0].mxu0 %v2949
      %v3330 = vpop.f32.mrb[0].mxu0
      %v3331 = vadd.f32 0.0, %v3330
      %v3332 = vpop.f32.mrb[0].mxu0
      %v3333 = vpop.f32.mrb[0].mxu0
      %v3334 = vadd.f32 0.0, %v3333
      %v3335 = vpop.f32.mrb[0].mxu0
      %3336 = vmatprep.mubr.bf16.mxu0 0
      %3337 = vmatmul.mubr.bf16.gmra.mrb[0].mxu0 %v2958
      %v3338 = vpop.f32.mrb[0].mxu0
      %v3339 = vadd.f32 0.0, %v3338
      %v3340 = vpop.f32.mrb[0].mxu0
      %v3341 = vpop.f32.mrb[0].mxu0
      %v3342 = vadd.f32 0.0, %v3341
      %v3343 = vpop.f32.mrb[0].mxu0
      %3344 = vmatprep.mubr.bf16.mxu0 0
      %3345 = vmatmul.mubr.bf16.gmra.mrb[0].mxu0 %v2967
      %v3346 = vpop.f32.mrb[0].mxu0
      %v3347 = vadd.f32 0.0, %v3346
      %v3348 = vpop.f32.mrb[0].mxu0
      %v3349 = vpop.f32.mrb[0].mxu0
      %v3350 = vadd.f32 0.0, %v3349
      %v3351 = vpop.f32.mrb[0].mxu0
      %3352 = vmatprep.mubr.bf16.mxu0 0
      %3353 = vmatmul.mubr.bf16.gmra.mrb[0].mxu0 %v2976
      %v3354 = vpop.f32.mrb[0].mxu0
      %v3355 = vadd.f32 0.0, %v3354
      %v3356 = vpop.f32.mrb[0].mxu0
      %v3357 = vpop.f32.mrb[0].mxu0
      %v3358 = vadd.f32 0.0, %v3357
      %v3359 = vpop.f32.mrb[0].mxu0
      %3360 = vmatprep.mubr.bf16.mxu0 0
      %3361 = vmatmul.mubr.bf16.gmra.mrb[0].mxu0 %v2985
      %v3362 = vpop.f32.mrb[0].mxu0
      %v3363 = vadd.f32 0.0, %v3362
      %v3364 = vpop.f32.mrb[0].mxu0
      %v3365 = vpop.f32.mrb[0].mxu0
      %v3366 = vadd.f32 0.0, %v3365
      %v3367 = vpop.f32.mrb[0].mxu0
      %3368 = vmatprep.mubr.bf16.mxu0 0
      %3369 = vmatmul.mubr.bf16.gmra.mrb[0].mxu0 %v2994
      %v3370 = vpop.f32.mrb[0].mxu0
      %v3371 = vadd.f32 0.0, %v3370
      %v3372 = vpop.f32.mrb[0].mxu0
      %v3373 = vpop.f32.mrb[0].mxu0
      %v3374 = vadd.f32 0.0, %v3373
      %v3375 = vpop.f32.mrb[0].mxu0
      %3376 = vmatprep.mubr.bf16.mxu0 0
      %3377 = vmatmul.mubr.bf16.gmra.mrb[0].mxu0 %v3003
      %v3378 = vpop.f32.mrb[0].mxu0
      %v3379 = vadd.f32 0.0, %v3378
      %v3380 = vpop.f32.mrb[0].mxu0
      %v3381 = vpop.f32.mrb[0].mxu0
      %v3382 = vadd.f32 0.0, %v3381
      %v3383 = vpop.f32.mrb[0].mxu0
      %3384 = vmatprep.mubr.bf16.mxu0 0
      %3385 = vmatmul.mubr.bf16.gmra.mrb[0].mxu0 %v3012
      %v3386 = vpop.f32.mrb[0].mxu0
      %v3387 = vadd.f32 0.0, %v3386
      %v3388 = vpop.f32.mrb[0].mxu0
      %v3389 = vpop.f32.mrb[0].mxu0
      %v3390 = vadd.f32 0.0, %v3389
      %v3391 = vpop.f32.mrb[0].mxu0
      %3392 = vmatprep.mubr.bf16.mxu0 0
      %3393 = vmatmul.mubr.bf16.gmra.mrb[0].mxu0 %v3021
      %v3394 = vpop.f32.mrb[0].mxu0
      %v3395 = vadd.f32 0.0, %v3394
      %v3396 = vpop.f32.mrb[0].mxu0
      %v3397 = vpop.f32.mrb[0].mxu0
      %v3398 = vadd.f32 0.0, %v3397
      %v3399 = vpop.f32.mrb[0].mxu0
      %3400 = vmatprep.mubr.bf16.mxu0 0
      %3401 = vmatmul.mubr.bf16.gmra.mrb[0].mxu0 %v3030
      %v3402 = vpop.f32.mrb[0].mxu0
      %v3403 = vadd.f32 0.0, %v3402
      %v3404 = vpop.f32.mrb[0].mxu0
      %v3405 = vpop.f32.mrb[0].mxu0
      %v3406 = vadd.f32 0.0, %v3405
      %v3407 = vpop.f32.mrb[0].mxu0
      %3408 = vmatprep.mubr.bf16.mxu0 0
      %3409 = vmatmul.mubr.bf16.gmra.mrb[0].mxu0 %v3039
      %v3410 = vpop.f32.mrb[0].mxu0
      %v3411 = vadd.f32 0.0, %v3410
      %v3412 = vpop.f32.mrb[0].mxu0
      %v3413 = vpop.f32.mrb[0].mxu0
      %v3414 = vadd.f32 0.0, %v3413
      %v3415 = vpop.f32.mrb[0].mxu0
      %3416 = vmatprep.mubr.bf16.mxu0 0
      %3417 = vmatmul.mubr.bf16.gmra.mrb[0].mxu0 %v3048
      %v3418 = vpop.f32.mrb[0].mxu0
      %v3419 = vadd.f32 0.0, %v3418
      %v3420 = vpop.f32.mrb[0].mxu0
      %v3421 = vpop.f32.mrb[0].mxu0
      %v3422 = vadd.f32 0.0, %v3421
      %v3423 = vpop.f32.mrb[0].mxu0
      %3424 = vmatprep.mubr.bf16.mxu0 0
      %3425 = vmatmul.mubr.bf16.gmra.mrb[0].mxu0 %v3057
      %v3426 = vpop.f32.mrb[0].mxu0
      %v3427 = vadd.f32 0.0, %v3426
      %v3428 = vpop.f32.mrb[0].mxu0
      %v3429 = vpop.f32.mrb[0].mxu0
      %v3430 = vadd.f32 0.0, %v3429
      %v3431 = vpop.f32.mrb[0].mxu0
      %3432 = vmatprep.mubr.bf16.mxu0 0
      %3433 = vmatmul.mubr.bf16.gmra.mrb[0].mxu0 %v3066
      %v3434 = vpop.f32.mrb[0].mxu0
      %v3435 = vadd.f32 0.0, %v3434
      %v3436 = vpop.f32.mrb[0].mxu0
      %v3437 = vpop.f32.mrb[0].mxu0
      %v3438 = vadd.f32 0.0, %v3437
      %v3439 = vpop.f32.mrb[0].mxu0
      %3440 = vmatprep.mubr.bf16.mxu0 0
      %3441 = vmatmul.mubr.bf16.gmra.mrb[0].mxu0 %v3075
      %v3442 = vpop.f32.mrb[0].mxu0
      %v3443 = vadd.f32 0.0, %v3442
      %v3444 = vpop.f32.mrb[0].mxu0
      %v3445 = vpop.f32.mrb[0].mxu0
      %v3446 = vadd.f32 0.0, %v3445
      %v3447 = vpop.f32.mrb[0].mxu0
      %3448 = vmatprep.mubr.bf16.mxu0 0
      %3449 = vmatmul.mubr.bf16.gmra.mrb[0].mxu0 %v3084
      %v3450 = vpop.f32.mrb[0].mxu0
      %v3451 = vadd.f32 0.0, %v3450
      %v3452 = vpop.f32.mrb[0].mxu0
      %v3453 = vpop.f32.mrb[0].mxu0
      %v3454 = vadd.f32 0.0, %v3453
      %v3455 = vpop.f32.mrb[0].mxu0
      %3456 = vmatprep.mubr.bf16.mxu0 0
      %3457 = vmatmul.mubr.bf16.gmra.mrb[0].mxu0 %v3093
      %v3458 = vpop.f32.mrb[0].mxu0
      %v3459 = vadd.f32 0.0, %v3458
      %v3460 = vpop.f32.mrb[0].mxu0
      %v3461 = vpop.f32.mrb[0].mxu0
      %v3462 = vadd.f32 0.0, %v3461
      %v3463 = vpop.f32.mrb[0].mxu0
      %3464 = vmatprep.mubr.bf16.mxu0 0
      %3465 = vmatmul.mubr.bf16.gmra.mrb[0].mxu0 %v3102
      %v3466 = vpop.f32.mrb[0].mxu0
      %v3467 = vadd.f32 0.0, %v3466
      %v3468 = vpop.f32.mrb[0].mxu0
      %v3469 = vpop.f32.mrb[0].mxu0
      %v3470 = vadd.f32 0.0, %v3469
      %v3471 = vpop.f32.mrb[0].mxu0
      %3472 = vmatprep.mubr.bf16.mxu0 0
      %3473 = vmatmul.mubr.bf16.gmra.mrb[0].mxu0 %v3111
      %v3474 = vpop.f32.mrb[0].mxu0
      %v3475 = vadd.f32 0.0, %v3474
      %v3476 = vpop.f32.mrb[0].mxu0
      %v3477 = vpop.f32.mrb[0].mxu0
      %v3478 = vadd.f32 0.0, %v3477
      %v3479 = vpop.f32.mrb[0].mxu0
      %3480 = vdwg.mxu0
      %v3481 = vadd.f32 %v2733, %v3227
      %v3482 = vadd.f32 %v2734, %v3230
      %v3483 = vadd.f32 %v2735, %v3235
      %v3484 = vadd.f32 %v2736, %v3238
      %v3485 = vadd.f32 %v2737, %v3243
      %v3486 = vadd.f32 %v2738, %v3246
      %v3487 = vadd.f32 %v2739, %v3251
      %v3488 = vadd.f32 %v2740, %v3254
      %v3489 = vadd.f32 %v2741, %v3259
      %v3490 = vadd.f32 %v2742, %v3262
      %v3491 = vadd.f32 %v2743, %v3267
      %v3492 = vadd.f32 %v2744, %v3270
      %v3493 = vadd.f32 %v2745, %v3275
      %v3494 = vadd.f32 %v2746, %v3278
      %v3495 = vadd.f32 %v2747, %v3283
      %v3496 = vadd.f32 %v2748, %v3286
      %v3497 = vadd.f32 %v2749, %v3291
      %v3498 = vadd.f32 %v2750, %v3294
      %v3499 = vadd.f32 %v2751, %v3299
      %v3500 = vadd.f32 %v2752, %v3302
      %v3501 = vadd.f32 %v2753, %v3307
      %v3502 = vadd.f32 %v2754, %v3310
      %v3503 = vadd.f32 %v2755, %v3315
      %v3504 = vadd.f32 %v2756, %v3318
      %v3505 = vadd.f32 %v2757, %v3323
      %v3506 = vadd.f32 %v2758, %v3326
      %v3507 = vadd.f32 %v2759, %v3331
      %v3508 = vadd.f32 %v2760, %v3334
      %v3509 = vadd.f32 %v2761, %v3339
      %v3510 = vadd.f32 %v2762, %v3342
      %v3511 = vadd.f32 %v2763, %v3347
      %v3512 = vadd.f32 %v2764, %v3350
      %v3513 = vadd.f32 %v2765, %v3355
      %v3514 = vadd.f32 %v2766, %v3358
      %v3515 = vadd.f32 %v2767, %v3363
      %v3516 = vadd.f32 %v2768, %v3366
      %v3517 = vadd.f32 %v2769, %v3371
      %v3518 = vadd.f32 %v2770, %v3374
      %v3519 = vadd.f32 %v2771, %v3379
      %v3520 = vadd.f32 %v2772, %v3382
      %v3521 = vadd.f32 %v2773, %v3387
      %v3522 = vadd.f32 %v2774, %v3390
      %v3523 = vadd.f32 %v2775, %v3395
      %v3524 = vadd.f32 %v2776, %v3398
      %v3525 = vadd.f32 %v2777, %v3403
      %v3526 = vadd.f32 %v2778, %v3406
      %v3527 = vadd.f32 %v2779, %v3411
      %v3528 = vadd.f32 %v2780, %v3414
      %v3529 = vadd.f32 %v2781, %v3419
      %v3530 = vadd.f32 %v2782, %v3422
      %v3531 = vadd.f32 %v2783, %v3427
      %v3532 = vadd.f32 %v2784, %v3430
      %v3533 = vadd.f32 %v2785, %v3435
      %v3534 = vadd.f32 %v2786, %v3438
      %v3535 = vadd.f32 %v2787, %v3443
      %v3536 = vadd.f32 %v2788, %v3446
      %v3537 = vadd.f32 %v2789, %v3451
      %v3538 = vadd.f32 %v2790, %v3454
      %v3539 = vadd.f32 %v2791, %v3459
      %v3540 = vadd.f32 %v2792, %v3462
      %v3541 = vadd.f32 %v2793, %v3467
      %v3542 = vadd.f32 %v2794, %v3470
      %v3543 = vadd.f32 %v2795, %v3475
      %v3544 = vadd.f32 %v2796, %v3478
      %v3545 = vld [vmem:[#allocation2 + $0x8] sm:$0xfc]
      %s3546 = scalar_lea.vmem %s295, 320
      %v3547 = vld [vmem:[%s3546] sm:$0xf]
      %v3548 = vld [vmem:[%s3546 + $0x4] sm:$0xf]
      %v3549 = vld [vmem:[%s3546 + $0x8] sm:$0xf]
      %v3550 = vld [vmem:[%s3546 + $0xc] sm:$0xf]
      %v3551 = vld [vmem:[%s3546 + $0x10] sm:$0xf]
      %v3552 = vld [vmem:[%s3546 + $0x14] sm:$0xf]
      %v3553 = vld [vmem:[%s3546 + $0x18] sm:$0xf]
      %v3554 = vld [vmem:[%s3546 + $0x1c] sm:$0xf]
      %v3555 = vld [vmem:[%s3546 + $0x20] sm:$0xf]
      %v3556 = vld [vmem:[%s3546 + $0x24] sm:$0xf]
      %v3557 = vld [vmem:[%s3546 + $0x28] sm:$0xf]
      %v3558 = vld [vmem:[%s3546 + $0x2c] sm:$0xf]
      %v3559 = vld [vmem:[%s3546 + $0x30] sm:$0xf]
      %v3560 = vld [vmem:[%s3546 + $0x34] sm:$0xf]
      %v3561 = vld [vmem:[%s3546 + $0x38] sm:$0xf]
      %v3562 = vld [vmem:[%s3546 + $0x3c] sm:$0xf]
      %vm3565 = vcmask 1045504
      %v3566 = vrot.slane %v3545, 2
      %v3567 = vrot.slane %v2217, 2
      %v3568 = vsel %vm3565, %v3566, %v3567
      %v3569 = vrot.slane %v2218, 2
      %v3570 = vsel %vm3565, %v3567, %v3569
      %v3571 = vrot.slane %v2219, 2
      %v3572 = vsel %vm3565, %v3569, %v3571
      %v3573 = vrot.slane %v2220, 2
      %v3574 = vsel %vm3565, %v3571, %v3573
      %v3575 = vrot.slane %v2221, 2
      %v3576 = vsel %vm3565, %v3573, %v3575
      %v3577 = vrot.slane %v2222, 2
      %v3578 = vsel %vm3565, %v3575, %v3577
      %v3579 = vrot.slane %v2223, 2
      %v3580 = vsel %vm3565, %v3577, %v3579
      %v3581 = vrot.slane %v2224, 2
      %v3582 = vsel %vm3565, %v3579, %v3581
      %v3583 = vrot.slane %v2225, 2
      %v3584 = vsel %vm3565, %v3581, %v3583
      %v3585 = vrot.slane %v2226, 2
      %v3586 = vsel %vm3565, %v3583, %v3585
      %v3587 = vrot.slane %v2227, 2
      %v3588 = vsel %vm3565, %v3585, %v3587
      %v3589 = vrot.slane %v2228, 2
      %v3590 = vsel %vm3565, %v3587, %v3589
      %v3591 = vrot.slane %v2229, 2
      %v3592 = vsel %vm3565, %v3589, %v3591
      %v3593 = vrot.slane %v2230, 2
      %v3594 = vsel %vm3565, %v3591, %v3593
      %v3595 = vrot.slane %v2231, 2
      %v3596 = vsel %vm3565, %v3593, %v3595
      %v3597 = vrot.slane %v2232, 2
      %v3598 = vsel %vm3565, %v3595, %v3597
      %v3599 = vrot.slane %v2233, 2
      %v3600 = vsel %vm3565, %v3597, %v3599
      %v3601 = vrot.slane %v2234, 2
      %v3602 = vsel %vm3565, %v3599, %v3601
      %v3603 = vrot.slane %v2235, 2
      %v3604 = vsel %vm3565, %v3601, %v3603
      %v3605 = vrot.slane %v2236, 2
      %v3606 = vsel %vm3565, %v3603, %v3605
      %v3607 = vrot.slane %v2237, 2
      %v3608 = vsel %vm3565, %v3605, %v3607
      %v3609 = vrot.slane %v2238, 2
      %v3610 = vsel %vm3565, %v3607, %v3609
      %v3611 = vrot.slane %v2239, 2
      %v3612 = vsel %vm3565, %v3609, %v3611
      %v3613 = vrot.slane %v2240, 2
      %v3614 = vsel %vm3565, %v3611, %v3613
      %v3615 = vrot.slane %v2241, 2
      %v3616 = vsel %vm3565, %v3613, %v3615
      %v3617 = vrot.slane %v2242, 2
      %v3618 = vsel %vm3565, %v3615, %v3617
      %v3619 = vrot.slane %v2243, 2
      %v3620 = vsel %vm3565, %v3617, %v3619
      %v3621 = vrot.slane %v2244, 2
      %v3622 = vsel %vm3565, %v3619, %v3621
      %v3623 = vrot.slane %v2245, 2
      %v3624 = vsel %vm3565, %v3621, %v3623
      %v3625 = vrot.slane %v2246, 2
      %v3626 = vsel %vm3565, %v3623, %v3625
      %v3627 = vrot.slane %v2247, 2
      %v3628 = vsel %vm3565, %v3625, %v3627
      %v3629 = vrot.slane %v2797, 2
      %v3630 = vsel %vm3565, %v3627, %v3629
      %v3679 = vunpack.c.l.b16 %v3547
      %v3680 = vunpack.c.l.b16 %v3548
      %v3681 = vunpack.c.l.b16 %v3549
      %v3682 = vunpack.c.l.b16 %v3550
      %v3683 = vunpack.c.l.b16 %v3551
      %v3684 = vunpack.c.l.b16 %v3552
      %v3685 = vunpack.c.l.b16 %v3553
      %v3686 = vunpack.c.l.b16 %v3554
      %v3687 = vunpack.c.l.b16 %v3555
      %v3688 = vunpack.c.l.b16 %v3556
      %v3689 = vunpack.c.l.b16 %v3557
      %v3690 = vunpack.c.l.b16 %v3558
      %v3691 = vunpack.c.l.b16 %v3559
      %v3692 = vunpack.c.l.b16 %v3560
      %v3693 = vunpack.c.l.b16 %v3561
      %v3694 = vunpack.c.l.b16 %v3562
      %v3695 = vpack.c.b16 %v3680, %v3679
      %v3696 = vpack.c.b16 %v3682, %v3681
      %v3697 = vpack.c.b16 %v3684, %v3683
      %v3698 = vpack.c.b16 %v3686, %v3685
      %v3699 = vpack.c.b16 %v3688, %v3687
      %v3700 = vpack.c.b16 %v3690, %v3689
      %v3701 = vpack.c.b16 %v3692, %v3691
      %v3702 = vpack.c.b16 %v3694, %v3693
      %3711 = vmatprep.subr.bf16.mxu0 0
      %3712 = vmatpush1.bf16.msra.mxu0 %v3695
      %3713 = vmatprep.subr.bf16.mxu0 0
      %3714 = vmatpush1.bf16.msra.mxu0 %v3696
      %3715 = vmatprep.subr.bf16.mxu0 0
      %3716 = vmatpush1.bf16.msra.mxu0 %v3697
      %3717 = vmatprep.subr.bf16.mxu0 0
      %3718 = vmatpush1.bf16.msra.mxu0 %v3698
      %3719 = vmatprep.subr.bf16.mxu0 0
      %3720 = vmatpush1.bf16.msra.mxu0 %v3699
      %3721 = vmatprep.subr.bf16.mxu0 0
      %3722 = vmatpush1.bf16.msra.mxu0 %v3700
      %3723 = vmatprep.subr.bf16.mxu0 0
      %3724 = vmatpush1.bf16.msra.mxu0 %v3701
      %3725 = vmatprep.subr.bf16.mxu0 0
      %3726 = vmatpush1.bf16.msra.mxu0 %v3702
      %3727 = vmatprep.subr.bf16.mxu0 0
      %3728 = vmatpush1.bf16.msra.mxu0 0
      %3729 = vmatprep.subr.bf16.mxu0 0
      %3730 = vmatpush1.bf16.msra.mxu0 0
      %3731 = vmatprep.subr.bf16.mxu0 0
      %3732 = vmatpush1.bf16.msra.mxu0 0
      %3733 = vmatprep.subr.bf16.mxu0 0
      %3734 = vmatpush1.bf16.msra.mxu0 0
      %3735 = vmatprep.subr.bf16.mxu0 0
      %3736 = vmatpush1.bf16.msra.mxu0 0
      %3737 = vmatprep.subr.bf16.mxu0 0
      %3738 = vmatpush1.bf16.msra.mxu0 0
      %3739 = vmatprep.subr.bf16.mxu0 0
      %3740 = vmatpush1.bf16.msra.mxu0 0
      %3741 = vmatprep.subr.bf16.mxu0 0
      %3742 = vmatpush1.bf16.msra.mxu0 0
      %3743 = vmatprep.mubr.bf16.mxu0 0
      %3744 = vmatmul.mubr.bf16.gmra.mrb[0].mxu0 %v3568
      %v3745 = vpop.f32.mrb[0].mxu0
      %v3746 = vadd.f32 0.0, %v3745
      %v3747 = vpop.f32.mrb[0].mxu0
      %v3748 = vpop.f32.mrb[0].mxu0
      %v3749 = vadd.f32 0.0, %v3748
      %v3750 = vpop.f32.mrb[0].mxu0
      %3751 = vmatprep.mubr.bf16.mxu0 0
      %3752 = vmatmul.mubr.bf16.gmra.mrb[0].mxu0 %v3570
      %v3753 = vpop.f32.mrb[0].mxu0
      %v3754 = vadd.f32 0.0, %v3753
      %v3755 = vpop.f32.mrb[0].mxu0
      %v3756 = vpop.f32.mrb[0].mxu0
      %v3757 = vadd.f32 0.0, %v3756
      %v3758 = vpop.f32.mrb[0].mxu0
      %3759 = vmatprep.mubr.bf16.mxu0 0
      %3760 = vmatmul.mubr.bf16.gmra.mrb[0].mxu0 %v3572
      %v3761 = vpop.f32.mrb[0].mxu0
      %v3762 = vadd.f32 0.0, %v3761
      %v3763 = vpop.f32.mrb[0].mxu0
      %v3764 = vpop.f32.mrb[0].mxu0
      %v3765 = vadd.f32 0.0, %v3764
      %v3766 = vpop.f32.mrb[0].mxu0
      %3767 = vmatprep.mubr.bf16.mxu0 0
      %3768 = vmatmul.mubr.bf16.gmra.mrb[0].mxu0 %v3574
      %v3769 = vpop.f32.mrb[0].mxu0
      %v3770 = vadd.f32 0.0, %v3769
      %v3771 = vpop.f32.mrb[0].mxu0
      %v3772 = vpop.f32.mrb[0].mxu0
      %v3773 = vadd.f32 0.0, %v3772
      %v3774 = vpop.f32.mrb[0].mxu0
      %3775 = vmatprep.mubr.bf16.mxu0 0
      %3776 = vmatmul.mubr.bf16.gmra.mrb[0].mxu0 %v3576
      %v3777 = vpop.f32.mrb[0].mxu0
      %v3778 = vadd.f32 0.0, %v3777
      %v3779 = vpop.f32.mrb[0].mxu0
      %v3780 = vpop.f32.mrb[0].mxu0
      %v3781 = vadd.f32 0.0, %v3780
      %v3782 = vpop.f32.mrb[0].mxu0
      %3783 = vmatprep.mubr.bf16.mxu0 0
      %3784 = vmatmul.mubr.bf16.gmra.mrb[0].mxu0 %v3578
      %v3785 = vpop.f32.mrb[0].mxu0
      %v3786 = vadd.f32 0.0, %v3785
      %v3787 = vpop.f32.mrb[0].mxu0
      %v3788 = vpop.f32.mrb[0].mxu0
      %v3789 = vadd.f32 0.0, %v3788
      %v3790 = vpop.f32.mrb[0].mxu0
      %3791 = vmatprep.mubr.bf16.mxu0 0
      %3792 = vmatmul.mubr.bf16.gmra.mrb[0].mxu0 %v3580
      %v3793 = vpop.f32.mrb[0].mxu0
      %v3794 = vadd.f32 0.0, %v3793
      %v3795 = vpop.f32.mrb[0].mxu0
      %v3796 = vpop.f32.mrb[0].mxu0
      %v3797 = vadd.f32 0.0, %v3796
      %v3798 = vpop.f32.mrb[0].mxu0
      %3799 = vmatprep.mubr.bf16.mxu0 0
      %3800 = vmatmul.mubr.bf16.gmra.mrb[0].mxu0 %v3582
      %v3801 = vpop.f32.mrb[0].mxu0
      %v3802 = vadd.f32 0.0, %v3801
      %v3803 = vpop.f32.mrb[0].mxu0
      %v3804 = vpop.f32.mrb[0].mxu0
      %v3805 = vadd.f32 0.0, %v3804
      %v3806 = vpop.f32.mrb[0].mxu0
      %3807 = vmatprep.mubr.bf16.mxu0 0
      %3808 = vmatmul.mubr.bf16.gmra.mrb[0].mxu0 %v3584
      %v3809 = vpop.f32.mrb[0].mxu0
      %v3810 = vadd.f32 0.0, %v3809
      %v3811 = vpop.f32.mrb[0].mxu0
      %v3812 = vpop.f32.mrb[0].mxu0
      %v3813 = vadd.f32 0.0, %v3812
      %v3814 = vpop.f32.mrb[0].mxu0
      %3815 = vmatprep.mubr.bf16.mxu0 0
      %3816 = vmatmul.mubr.bf16.gmra.mrb[0].mxu0 %v3586
      %v3817 = vpop.f32.mrb[0].mxu0
      %v3818 = vadd.f32 0.0, %v3817
      %v3819 = vpop.f32.mrb[0].mxu0
      %v3820 = vpop.f32.mrb[0].mxu0
      %v3821 = vadd.f32 0.0, %v3820
      %v3822 = vpop.f32.mrb[0].mxu0
      %3823 = vmatprep.mubr.bf16.mxu0 0
      %3824 = vmatmul.mubr.bf16.gmra.mrb[0].mxu0 %v3588
      %v3825 = vpop.f32.mrb[0].mxu0
      %v3826 = vadd.f32 0.0, %v3825
      %v3827 = vpop.f32.mrb[0].mxu0
      %v3828 = vpop.f32.mrb[0].mxu0
      %v3829 = vadd.f32 0.0, %v3828
      %v3830 = vpop.f32.mrb[0].mxu0
      %3831 = vmatprep.mubr.bf16.mxu0 0
      %3832 = vmatmul.mubr.bf16.gmra.mrb[0].mxu0 %v3590
      %v3833 = vpop.f32.mrb[0].mxu0
      %v3834 = vadd.f32 0.0, %v3833
      %v3835 = vpop.f32.mrb[0].mxu0
      %v3836 = vpop.f32.mrb[0].mxu0
      %v3837 = vadd.f32 0.0, %v3836
      %v3838 = vpop.f32.mrb[0].mxu0
      %3839 = vmatprep.mubr.bf16.mxu0 0
      %3840 = vmatmul.mubr.bf16.gmra.mrb[0].mxu0 %v3592
      %v3841 = vpop.f32.mrb[0].mxu0
      %v3842 = vadd.f32 0.0, %v3841
      %v3843 = vpop.f32.mrb[0].mxu0
      %v3844 = vpop.f32.mrb[0].mxu0
      %v3845 = vadd.f32 0.0, %v3844
      %v3846 = vpop.f32.mrb[0].mxu0
      %3847 = vmatprep.mubr.bf16.mxu0 0
      %3848 = vmatmul.mubr.bf16.gmra.mrb[0].mxu0 %v3594
      %v3849 = vpop.f32.mrb[0].mxu0
      %v3850 = vadd.f32 0.0, %v3849
      %v3851 = vpop.f32.mrb[0].mxu0
      %v3852 = vpop.f32.mrb[0].mxu0
      %v3853 = vadd.f32 0.0, %v3852
      %v3854 = vpop.f32.mrb[0].mxu0
      %3855 = vmatprep.mubr.bf16.mxu0 0
      %3856 = vmatmul.mubr.bf16.gmra.mrb[0].mxu0 %v3596
      %v3857 = vpop.f32.mrb[0].mxu0
      %v3858 = vadd.f32 0.0, %v3857
      %v3859 = vpop.f32.mrb[0].mxu0
      %v3860 = vpop.f32.mrb[0].mxu0
      %v3861 = vadd.f32 0.0, %v3860
      %v3862 = vpop.f32.mrb[0].mxu0
      %3863 = vmatprep.mubr.bf16.mxu0 0
      %3864 = vmatmul.mubr.bf16.gmra.mrb[0].mxu0 %v3598
      %v3865 = vpop.f32.mrb[0].mxu0
      %v3866 = vadd.f32 0.0, %v3865
      %v3867 = vpop.f32.mrb[0].mxu0
      %v3868 = vpop.f32.mrb[0].mxu0
      %v3869 = vadd.f32 0.0, %v3868
      %v3870 = vpop.f32.mrb[0].mxu0
      %3871 = vmatprep.mubr.bf16.mxu0 0
      %3872 = vmatmul.mubr.bf16.gmra.mrb[0].mxu0 %v3600
      %v3873 = vpop.f32.mrb[0].mxu0
      %v3874 = vadd.f32 0.0, %v3873
      %v3875 = vpop.f32.mrb[0].mxu0
      %v3876 = vpop.f32.mrb[0].mxu0
      %v3877 = vadd.f32 0.0, %v3876
      %v3878 = vpop.f32.mrb[0].mxu0
      %3879 = vmatprep.mubr.bf16.mxu0 0
      %3880 = vmatmul.mubr.bf16.gmra.mrb[0].mxu0 %v3602
      %v3881 = vpop.f32.mrb[0].mxu0
      %v3882 = vadd.f32 0.0, %v3881
      %v3883 = vpop.f32.mrb[0].mxu0
      %v3884 = vpop.f32.mrb[0].mxu0
      %v3885 = vadd.f32 0.0, %v3884
      %v3886 = vpop.f32.mrb[0].mxu0
      %3887 = vmatprep.mubr.bf16.mxu0 0
      %3888 = vmatmul.mubr.bf16.gmra.mrb[0].mxu0 %v3604
      %v3889 = vpop.f32.mrb[0].mxu0
      %v3890 = vadd.f32 0.0, %v3889
      %v3891 = vpop.f32.mrb[0].mxu0
      %v3892 = vpop.f32.mrb[0].mxu0
      %v3893 = vadd.f32 0.0, %v3892
      %v3894 = vpop.f32.mrb[0].mxu0
      %3895 = vmatprep.mubr.bf16.mxu0 0
      %3896 = vmatmul.mubr.bf16.gmra.mrb[0].mxu0 %v3606
      %v3897 = vpop.f32.mrb[0].mxu0
      %v3898 = vadd.f32 0.0, %v3897
      %v3899 = vpop.f32.mrb[0].mxu0
      %v3900 = vpop.f32.mrb[0].mxu0
      %v3901 = vadd.f32 0.0, %v3900
      %v3902 = vpop.f32.mrb[0].mxu0
      %3903 = vmatprep.mubr.bf16.mxu0 0
      %3904 = vmatmul.mubr.bf16.gmra.mrb[0].mxu0 %v3608
      %v3905 = vpop.f32.mrb[0].mxu0
      %v3906 = vadd.f32 0.0, %v3905
      %v3907 = vpop.f32.mrb[0].mxu0
      %v3908 = vpop.f32.mrb[0].mxu0
      %v3909 = vadd.f32 0.0, %v3908
      %v3910 = vpop.f32.mrb[0].mxu0
      %3911 = vmatprep.mubr.bf16.mxu0 0
      %3912 = vmatmul.mubr.bf16.gmra.mrb[0].mxu0 %v3610
      %v3913 = vpop.f32.mrb[0].mxu0
      %v3914 = vadd.f32 0.0, %v3913
      %v3915 = vpop.f32.mrb[0].mxu0
      %v3916 = vpop.f32.mrb[0].mxu0
      %v3917 = vadd.f32 0.0, %v3916
      %v3918 = vpop.f32.mrb[0].mxu0
      %3919 = vmatprep.mubr.bf16.mxu0 0
      %3920 = vmatmul.mubr.bf16.gmra.mrb[0].mxu0 %v3612
      %v3921 = vpop.f32.mrb[0].mxu0
      %v3922 = vadd.f32 0.0, %v3921
      %v3923 = vpop.f32.mrb[0].mxu0
      %v3924 = vpop.f32.mrb[0].mxu0
      %v3925 = vadd.f32 0.0, %v3924
      %v3926 = vpop.f32.mrb[0].mxu0
      %3927 = vmatprep.mubr.bf16.mxu0 0
      %3928 = vmatmul.mubr.bf16.gmra.mrb[0].mxu0 %v3614
      %v3929 = vpop.f32.mrb[0].mxu0
      %v3930 = vadd.f32 0.0, %v3929
      %v3931 = vpop.f32.mrb[0].mxu0
      %v3932 = vpop.f32.mrb[0].mxu0
      %v3933 = vadd.f32 0.0, %v3932
      %v3934 = vpop.f32.mrb[0].mxu0
      %3935 = vmatprep.mubr.bf16.mxu0 0
      %3936 = vmatmul.mubr.bf16.gmra.mrb[0].mxu0 %v3616
      %v3937 = vpop.f32.mrb[0].mxu0
      %v3938 = vadd.f32 0.0, %v3937
      %v3939 = vpop.f32.mrb[0].mxu0
      %v3940 = vpop.f32.mrb[0].mxu0
      %v3941 = vadd.f32 0.0, %v3940
      %v3942 = vpop.f32.mrb[0].mxu0
      %3943 = vmatprep.mubr.bf16.mxu0 0
      %3944 = vmatmul.mubr.bf16.gmra.mrb[0].mxu0 %v3618
      %v3945 = vpop.f32.mrb[0].mxu0
      %v3946 = vadd.f32 0.0, %v3945
      %v3947 = vpop.f32.mrb[0].mxu0
      %v3948 = vpop.f32.mrb[0].mxu0
      %v3949 = vadd.f32 0.0, %v3948
      %v3950 = vpop.f32.mrb[0].mxu0
      %3951 = vmatprep.mubr.bf16.mxu0 0
      %3952 = vmatmul.mubr.bf16.gmra.mrb[0].mxu0 %v3620
      %v3953 = vpop.f32.mrb[0].mxu0
      %v3954 = vadd.f32 0.0, %v3953
      %v3955 = vpop.f32.mrb[0].mxu0
      %v3956 = vpop.f32.mrb[0].mxu0
      %v3957 = vadd.f32 0.0, %v3956
      %v3958 = vpop.f32.mrb[0].mxu0
      %3959 = vmatprep.mubr.bf16.mxu0 0
      %3960 = vmatmul.mubr.bf16.gmra.mrb[0].mxu0 %v3622
      %v3961 = vpop.f32.mrb[0].mxu0
      %v3962 = vadd.f32 0.0, %v3961
      %v3963 = vpop.f32.mrb[0].mxu0
      %v3964 = vpop.f32.mrb[0].mxu0
      %v3965 = vadd.f32 0.0, %v3964
      %v3966 = vpop.f32.mrb[0].mxu0
      %3967 = vmatprep.mubr.bf16.mxu0 0
      %3968 = vmatmul.mubr.bf16.gmra.mrb[0].mxu0 %v3624
      %v3969 = vpop.f32.mrb[0].mxu0
      %v3970 = vadd.f32 0.0, %v3969
      %v3971 = vpop.f32.mrb[0].mxu0
      %v3972 = vpop.f32.mrb[0].mxu0
      %v3973 = vadd.f32 0.0, %v3972
      %v3974 = vpop.f32.mrb[0].mxu0
      %3975 = vmatprep.mubr.bf16.mxu0 0
      %3976 = vmatmul.mubr.bf16.gmra.mrb[0].mxu0 %v3626
      %v3977 = vpop.f32.mrb[0].mxu0
      %v3978 = vadd.f32 0.0, %v3977
      %v3979 = vpop.f32.mrb[0].mxu0
      %v3980 = vpop.f32.mrb[0].mxu0
      %v3981 = vadd.f32 0.0, %v3980
      %v3982 = vpop.f32.mrb[0].mxu0
      %3983 = vmatprep.mubr.bf16.mxu0 0
      %3984 = vmatmul.mubr.bf16.gmra.mrb[0].mxu0 %v3628
      %v3985 = vpop.f32.mrb[0].mxu0
      %v3986 = vadd.f32 0.0, %v3985
      %v3987 = vpop.f32.mrb[0].mxu0
      %v3988 = vpop.f32.mrb[0].mxu0
      %v3989 = vadd.f32 0.0, %v3988
      %v3990 = vpop.f32.mrb[0].mxu0
      %3991 = vmatprep.mubr.bf16.mxu0 0
      %3992 = vmatmul.mubr.bf16.gmra.mrb[0].mxu0 %v3630
      %v3993 = vpop.f32.mrb[0].mxu0
      %v3994 = vadd.f32 0.0, %v3993
      %v3995 = vpop.f32.mrb[0].mxu0
      %v3996 = vpop.f32.mrb[0].mxu0
      %v3997 = vadd.f32 0.0, %v3996
      %v3998 = vpop.f32.mrb[0].mxu0
      %3999 = vdwg.mxu0
      %v4000 = vadd.f32 %v3481, %v3746
      %v4001 = vadd.f32 %v3482, %v3749
      %v4002 = vadd.f32 %v3483, %v3754
      %v4003 = vadd.f32 %v3484, %v3757
      %v4004 = vadd.f32 %v3485, %v3762
      %v4005 = vadd.f32 %v3486, %v3765
      %v4006 = vadd.f32 %v3487, %v3770
      %v4007 = vadd.f32 %v3488, %v3773
      %v4008 = vadd.f32 %v3489, %v3778
      %v4009 = vadd.f32 %v3490, %v3781
      %v4010 = vadd.f32 %v3491, %v3786
      %v4011 = vadd.f32 %v3492, %v3789
      %v4012 = vadd.f32 %v3493, %v3794
      %v4013 = vadd.f32 %v3494, %v3797
      %v4014 = vadd.f32 %v3495, %v3802
      %v4015 = vadd.f32 %v3496, %v3805
      %v4016 = vadd.f32 %v3497, %v3810
      %v4017 = vadd.f32 %v3498, %v3813
      %v4018 = vadd.f32 %v3499, %v3818
      %v4019 = vadd.f32 %v3500, %v3821
      %v4020 = vadd.f32 %v3501, %v3826
      %v4021 = vadd.f32 %v3502, %v3829
      %v4022 = vadd.f32 %v3503, %v3834
      %v4023 = vadd.f32 %v3504, %v3837
      %v4024 = vadd.f32 %v3505, %v3842
      %v4025 = vadd.f32 %v3506, %v3845
      %v4026 = vadd.f32 %v3507, %v3850
      %v4027 = vadd.f32 %v3508, %v3853
      %v4028 = vadd.f32 %v3509, %v3858
      %v4029 = vadd.f32 %v3510, %v3861
      %v4030 = vadd.f32 %v3511, %v3866
      %v4031 = vadd.f32 %v3512, %v3869
      %v4032 = vadd.f32 %v3513, %v3874
      %v4033 = vadd.f32 %v3514, %v3877
      %v4034 = vadd.f32 %v3515, %v3882
      %v4035 = vadd.f32 %v3516, %v3885
      %v4036 = vadd.f32 %v3517, %v3890
      %v4037 = vadd.f32 %v3518, %v3893
      %v4038 = vadd.f32 %v3519, %v3898
      %v4039 = vadd.f32 %v3520, %v3901
      %v4040 = vadd.f32 %v3521, %v3906
      %v4041 = vadd.f32 %v3522, %v3909
      %v4042 = vadd.f32 %v3523, %v3914
      %v4043 = vadd.f32 %v3524, %v3917
      %v4044 = vadd.f32 %v3525, %v3922
      %v4045 = vadd.f32 %v3526, %v3925
      %v4046 = vadd.f32 %v3527, %v3930
      %v4047 = vadd.f32 %v3528, %v3933
      %v4048 = vadd.f32 %v3529, %v3938
      %v4049 = vadd.f32 %v3530, %v3941
      %v4050 = vadd.f32 %v3531, %v3946
      %v4051 = vadd.f32 %v3532, %v3949
      %v4052 = vadd.f32 %v3533, %v3954
      %v4053 = vadd.f32 %v3534, %v3957
      %v4054 = vadd.f32 %v3535, %v3962
      %v4055 = vadd.f32 %v3536, %v3965
      %v4056 = vadd.f32 %v3537, %v3970
      %v4057 = vadd.f32 %v3538, %v3973
      %v4058 = vadd.f32 %v3539, %v3978
      %v4059 = vadd.f32 %v3540, %v3981
      %v4060 = vadd.f32 %v3541, %v3986
      %v4061 = vadd.f32 %v3542, %v3989
      %v4062 = vadd.f32 %v3543, %v3994
      %v4063 = vadd.f32 %v3544, %v3997
      %v4064 = vld [vmem:[#allocation2 + $0x10] sm:$0xfc]
      %v4065 = vld [vmem:[#allocation2 + $0x18] sm:$0xff]
      %v4066 = vld [vmem:[#allocation2 + $0x20] sm:$0xff]
      %v4067 = vld [vmem:[#allocation2 + $0x28] sm:$0xff]
      %v4068 = vld [vmem:[#allocation2 + $0x30] sm:$0xff]
      %v4069 = vld [vmem:[#allocation2 + $0x38] sm:$0xff]
      %v4070 = vld [vmem:[#allocation2 + $0x40] sm:$0xff]
      %v4071 = vld [vmem:[#allocation2 + $0x48] sm:$0xff]
      %v4072 = vld [vmem:[#allocation2 + $0x50] sm:$0xff]
      %v4073 = vld [vmem:[#allocation2 + $0x58] sm:$0xff]
      %v4074 = vld [vmem:[#allocation2 + $0x60] sm:$0xff]
      %v4075 = vld [vmem:[#allocation2 + $0x68] sm:$0xff]
      %v4076 = vld [vmem:[#allocation2 + $0x70] sm:$0xff]
      %v4077 = vld [vmem:[#allocation2 + $0x78] sm:$0xff]
      %v4078 = vld [vmem:[#allocation2 + $0x80] sm:$0xff]
      %v4079 = vld [vmem:[#allocation2 + $0x88] sm:$0xff]
      %v4080 = vld [vmem:[#allocation2 + $0x90] sm:$0xff]
      %v4081 = vld [vmem:[#allocation2 + $0x98] sm:$0xff]
      %v4082 = vld [vmem:[#allocation2 + $0xa0] sm:$0xff]
      %v4083 = vld [vmem:[#allocation2 + $0xa8] sm:$0xff]
      %v4084 = vld [vmem:[#allocation2 + $0xb0] sm:$0xff]
      %v4085 = vld [vmem:[#allocation2 + $0xb8] sm:$0xff]
      %v4086 = vld [vmem:[#allocation2 + $0xc0] sm:$0xff]
      %v4087 = vld [vmem:[#allocation2 + $0xc8] sm:$0xff]
      %v4088 = vld [vmem:[#allocation2 + $0xd0] sm:$0xff]
      %v4089 = vld [vmem:[#allocation2 + $0xd8] sm:$0xff]
      %v4090 = vld [vmem:[#allocation2 + $0xe0] sm:$0xff]
      %v4091 = vld [vmem:[#allocation2 + $0xe8] sm:$0xff]
      %v4092 = vld [vmem:[#allocation2 + $0xf0] sm:$0xff]
      %v4093 = vld [vmem:[#allocation2 + $0xf8] sm:$0xff]
      %v4094 = vld [vmem:[#allocation2 + $0x100] sm:$0xff]
      %v4095 = vld [vmem:[#allocation2 + $0x108] sm:$0xff]
      %v4096 = vld [vmem:[#allocation2 + $0x110] sm:$0x3]
      %s4097 = scalar_lea.vmem %s295, 384
      %v4098 = vld [vmem:[%s4097] sm:$0xf]
      %v4099 = vld [vmem:[%s4097 + $0x4] sm:$0xf]
      %v4100 = vld [vmem:[%s4097 + $0x8] sm:$0xf]
      %v4101 = vld [vmem:[%s4097 + $0xc] sm:$0xf]
      %v4102 = vld [vmem:[%s4097 + $0x10] sm:$0xf]
      %v4103 = vld [vmem:[%s4097 + $0x14] sm:$0xf]
      %v4104 = vld [vmem:[%s4097 + $0x18] sm:$0xf]
      %v4105 = vld [vmem:[%s4097 + $0x1c] sm:$0xf]
      %v4106 = vld [vmem:[%s4097 + $0x20] sm:$0xf]
      %v4107 = vld [vmem:[%s4097 + $0x24] sm:$0xf]
      %v4108 = vld [vmem:[%s4097 + $0x28] sm:$0xf]
      %v4109 = vld [vmem:[%s4097 + $0x2c] sm:$0xf]
      %v4110 = vld [vmem:[%s4097 + $0x30] sm:$0xf]
      %v4111 = vld [vmem:[%s4097 + $0x34] sm:$0xf]
      %v4112 = vld [vmem:[%s4097 + $0x38] sm:$0xf]
      %v4113 = vld [vmem:[%s4097 + $0x3c] sm:$0xf]
      %v4147 = vrot.slane %v4064, 2
      %v4148 = vrot.slane %v4065, 2
      %v4149 = vsel %vm3565, %v4147, %v4148
      %v4150 = vrot.slane %v4066, 2
      %v4151 = vsel %vm3565, %v4148, %v4150
      %v4152 = vrot.slane %v4067, 2
      %v4153 = vsel %vm3565, %v4150, %v4152
      %v4154 = vrot.slane %v4068, 2
      %v4155 = vsel %vm3565, %v4152, %v4154
      %v4156 = vrot.slane %v4069, 2
      %v4157 = vsel %vm3565, %v4154, %v4156
      %v4158 = vrot.slane %v4070, 2
      %v4159 = vsel %vm3565, %v4156, %v4158
      %v4160 = vrot.slane %v4071, 2
      %v4161 = vsel %vm3565, %v4158, %v4160
      %v4162 = vrot.slane %v4072, 2
      %v4163 = vsel %vm3565, %v4160, %v4162
      %v4164 = vrot.slane %v4073, 2
      %v4165 = vsel %vm3565, %v4162, %v4164
      %v4166 = vrot.slane %v4074, 2
      %v4167 = vsel %vm3565, %v4164, %v4166
      %v4168 = vrot.slane %v4075, 2
      %v4169 = vsel %vm3565, %v4166, %v4168
      %v4170 = vrot.slane %v4076, 2
      %v4171 = vsel %vm3565, %v4168, %v4170
      %v4172 = vrot.slane %v4077, 2
      %v4173 = vsel %vm3565, %v4170, %v4172
      %v4174 = vrot.slane %v4078, 2
      %v4175 = vsel %vm3565, %v4172, %v4174
      %v4176 = vrot.slane %v4079, 2
      %v4177 = vsel %vm3565, %v4174, %v4176
      %v4178 = vrot.slane %v4080, 2
      %v4179 = vsel %vm3565, %v4176, %v4178
      %v4180 = vrot.slane %v4081, 2
      %v4181 = vsel %vm3565, %v4178, %v4180
      %v4182 = vrot.slane %v4082, 2
      %v4183 = vsel %vm3565, %v4180, %v4182
      %v4184 = vrot.slane %v4083, 2
      %v4185 = vsel %vm3565, %v4182, %v4184
      %v4186 = vrot.slane %v4084, 2
      %v4187 = vsel %vm3565, %v4184, %v4186
      %v4188 = vrot.slane %v4085, 2
      %v4189 = vsel %vm3565, %v4186, %v4188
      %v4190 = vrot.slane %v4086, 2
      %v4191 = vsel %vm3565, %v4188, %v4190
      %v4192 = vrot.slane %v4087, 2
      %v4193 = vsel %vm3565, %v4190, %v4192
      %v4194 = vrot.slane %v4088, 2
      %v4195 = vsel %vm3565, %v4192, %v4194
      %v4196 = vrot.slane %v4089, 2
      %v4197 = vsel %vm3565, %v4194, %v4196
      %v4198 = vrot.slane %v4090, 2
      %v4199 = vsel %vm3565, %v4196, %v4198
      %v4200 = vrot.slane %v4091, 2
      %v4201 = vsel %vm3565, %v4198, %v4200
      %v4202 = vrot.slane %v4092, 2
      %v4203 = vsel %vm3565, %v4200, %v4202
      %v4204 = vrot.slane %v4093, 2
      %v4205 = vsel %vm3565, %v4202, %v4204
      %v4206 = vrot.slane %v4094, 2
      %v4207 = vsel %vm3565, %v4204, %v4206
      %v4208 = vrot.slane %v4095, 2
      %v4209 = vsel %vm3565, %v4206, %v4208
      %v4210 = vrot.slane %v4096, 2
      %v4211 = vsel %vm3565, %v4208, %v4210
      %v4260 = vunpack.c.l.b16 %v4098
      %v4261 = vunpack.c.l.b16 %v4099
      %v4262 = vunpack.c.l.b16 %v4100
      %v4263 = vunpack.c.l.b16 %v4101
      %v4264 = vunpack.c.l.b16 %v4102
      %v4265 = vunpack.c.l.b16 %v4103
      %v4266 = vunpack.c.l.b16 %v4104
      %v4267 = vunpack.c.l.b16 %v4105
      %v4268 = vunpack.c.l.b16 %v4106
      %v4269 = vunpack.c.l.b16 %v4107
      %v4270 = vunpack.c.l.b16 %v4108
      %v4271 = vunpack.c.l.b16 %v4109
      %v4272 = vunpack.c.l.b16 %v4110
      %v4273 = vunpack.c.l.b16 %v4111
      %v4274 = vunpack.c.l.b16 %v4112
      %v4275 = vunpack.c.l.b16 %v4113
      %v4276 = vpack.c.b16 %v4261, %v4260
      %v4277 = vpack.c.b16 %v4263, %v4262
      %v4278 = vpack.c.b16 %v4265, %v4264
      %v4279 = vpack.c.b16 %v4267, %v4266
      %v4280 = vpack.c.b16 %v4269, %v4268
      %v4281 = vpack.c.b16 %v4271, %v4270
      %v4282 = vpack.c.b16 %v4273, %v4272
      %v4283 = vpack.c.b16 %v4275, %v4274
      %4292 = vmatprep.subr.bf16.mxu0 0
      %4293 = vmatpush1.bf16.msra.mxu0 %v4276
      %4294 = vmatprep.subr.bf16.mxu0 0
      %4295 = vmatpush1.bf16.msra.mxu0 %v4277
      %4296 = vmatprep.subr.bf16.mxu0 0
      %4297 = vmatpush1.bf16.msra.mxu0 %v4278
      %4298 = vmatprep.subr.bf16.mxu0 0
      %4299 = vmatpush1.bf16.msra.mxu0 %v4279
      %4300 = vmatprep.subr.bf16.mxu0 0
      %4301 = vmatpush1.bf16.msra.mxu0 %v4280
      %4302 = vmatprep.subr.bf16.mxu0 0
      %4303 = vmatpush1.bf16.msra.mxu0 %v4281
      %4304 = vmatprep.subr.bf16.mxu0 0
      %4305 = vmatpush1.bf16.msra.mxu0 %v4282
      %4306 = vmatprep.subr.bf16.mxu0 0
      %4307 = vmatpush1.bf16.msra.mxu0 %v4283
      %4308 = vmatprep.subr.bf16.mxu0 0
      %4309 = vmatpush1.bf16.msra.mxu0 0
      %4310 = vmatprep.subr.bf16.mxu0 0
      %4311 = vmatpush1.bf16.msra.mxu0 0
      %4312 = vmatprep.subr.bf16.mxu0 0
      %4313 = vmatpush1.bf16.msra.mxu0 0
      %4314 = vmatprep.subr.bf16.mxu0 0
      %4315 = vmatpush1.bf16.msra.mxu0 0
      %4316 = vmatprep.subr.bf16.mxu0 0
      %4317 = vmatpush1.bf16.msra.mxu0 0
      %4318 = vmatprep.subr.bf16.mxu0 0
      %4319 = vmatpush1.bf16.msra.mxu0 0
      %4320 = vmatprep.subr.bf16.mxu0 0
      %4321 = vmatpush1.bf16.msra.mxu0 0
      %4322 = vmatprep.subr.bf16.mxu0 0
      %4323 = vmatpush1.bf16.msra.mxu0 0
      %4324 = vmatprep.mubr.bf16.mxu0 0
      %4325 = vmatmul.mubr.bf16.gmra.mrb[0].mxu0 %v4149
      %v4326 = vpop.f32.mrb[0].mxu0
      %v4327 = vadd.f32 0.0, %v4326
      %v4328 = vpop.f32.mrb[0].mxu0
      %v4329 = vpop.f32.mrb[0].mxu0
      %v4330 = vadd.f32 0.0, %v4329
      %v4331 = vpop.f32.mrb[0].mxu0
      %4332 = vmatprep.mubr.bf16.mxu0 0
      %4333 = vmatmul.mubr.bf16.gmra.mrb[0].mxu0 %v4151
      %v4334 = vpop.f32.mrb[0].mxu0
      %v4335 = vadd.f32 0.0, %v4334
      %v4336 = vpop.f32.mrb[0].mxu0
      %v4337 = vpop.f32.mrb[0].mxu0
      %v4338 = vadd.f32 0.0, %v4337
      %v4339 = vpop.f32.mrb[0].mxu0
      %4340 = vmatprep.mubr.bf16.mxu0 0
      %4341 = vmatmul.mubr.bf16.gmra.mrb[0].mxu0 %v4153
      %v4342 = vpop.f32.mrb[0].mxu0
      %v4343 = vadd.f32 0.0, %v4342
      %v4344 = vpop.f32.mrb[0].mxu0
      %v4345 = vpop.f32.mrb[0].mxu0
      %v4346 = vadd.f32 0.0, %v4345
      %v4347 = vpop.f32.mrb[0].mxu0
      %4348 = vmatprep.mubr.bf16.mxu0 0
      %4349 = vmatmul.mubr.bf16.gmra.mrb[0].mxu0 %v4155
      %v4350 = vpop.f32.mrb[0].mxu0
      %v4351 = vadd.f32 0.0, %v4350
      %v4352 = vpop.f32.mrb[0].mxu0
      %v4353 = vpop.f32.mrb[0].mxu0
      %v4354 = vadd.f32 0.0, %v4353
      %v4355 = vpop.f32.mrb[0].mxu0
      %4356 = vmatprep.mubr.bf16.mxu0 0
      %4357 = vmatmul.mubr.bf16.gmra.mrb[0].mxu0 %v4157
      %v4358 = vpop.f32.mrb[0].mxu0
      %v4359 = vadd.f32 0.0, %v4358
      %v4360 = vpop.f32.mrb[0].mxu0
      %v4361 = vpop.f32.mrb[0].mxu0
      %v4362 = vadd.f32 0.0, %v4361
      %v4363 = vpop.f32.mrb[0].mxu0
      %4364 = vmatprep.mubr.bf16.mxu0 0
      %4365 = vmatmul.mubr.bf16.gmra.mrb[0].mxu0 %v4159
      %v4366 = vpop.f32.mrb[0].mxu0
      %v4367 = vadd.f32 0.0, %v4366
      %v4368 = vpop.f32.mrb[0].mxu0
      %v4369 = vpop.f32.mrb[0].mxu0
      %v4370 = vadd.f32 0.0, %v4369
      %v4371 = vpop.f32.mrb[0].mxu0
      %4372 = vmatprep.mubr.bf16.mxu0 0
      %4373 = vmatmul.mubr.bf16.gmra.mrb[0].mxu0 %v4161
      %v4374 = vpop.f32.mrb[0].mxu0
      %v4375 = vadd.f32 0.0, %v4374
      %v4376 = vpop.f32.mrb[0].mxu0
      %v4377 = vpop.f32.mrb[0].mxu0
      %v4378 = vadd.f32 0.0, %v4377
      %v4379 = vpop.f32.mrb[0].mxu0
      %4380 = vmatprep.mubr.bf16.mxu0 0
      %4381 = vmatmul.mubr.bf16.gmra.mrb[0].mxu0 %v4163
      %v4382 = vpop.f32.mrb[0].mxu0
      %v4383 = vadd.f32 0.0, %v4382
      %v4384 = vpop.f32.mrb[0].mxu0
      %v4385 = vpop.f32.mrb[0].mxu0
      %v4386 = vadd.f32 0.0, %v4385
      %v4387 = vpop.f32.mrb[0].mxu0
      %4388 = vmatprep.mubr.bf16.mxu0 0
      %4389 = vmatmul.mubr.bf16.gmra.mrb[0].mxu0 %v4165
      %v4390 = vpop.f32.mrb[0].mxu0
      %v4391 = vadd.f32 0.0, %v4390
      %v4392 = vpop.f32.mrb[0].mxu0
      %v4393 = vpop.f32.mrb[0].mxu0
      %v4394 = vadd.f32 0.0, %v4393
      %v4395 = vpop.f32.mrb[0].mxu0
      %4396 = vmatprep.mubr.bf16.mxu0 0
      %4397 = vmatmul.mubr.bf16.gmra.mrb[0].mxu0 %v4167
      %v4398 = vpop.f32.mrb[0].mxu0
      %v4399 = vadd.f32 0.0, %v4398
      %v4400 = vpop.f32.mrb[0].mxu0
      %v4401 = vpop.f32.mrb[0].mxu0
      %v4402 = vadd.f32 0.0, %v4401
      %v4403 = vpop.f32.mrb[0].mxu0
      %4404 = vmatprep.mubr.bf16.mxu0 0
      %4405 = vmatmul.mubr.bf16.gmra.mrb[0].mxu0 %v4169
      %v4406 = vpop.f32.mrb[0].mxu0
      %v4407 = vadd.f32 0.0, %v4406
      %v4408 = vpop.f32.mrb[0].mxu0
      %v4409 = vpop.f32.mrb[0].mxu0
      %v4410 = vadd.f32 0.0, %v4409
      %v4411 = vpop.f32.mrb[0].mxu0
      %4412 = vmatprep.mubr.bf16.mxu0 0
      %4413 = vmatmul.mubr.bf16.gmra.mrb[0].mxu0 %v4171
      %v4414 = vpop.f32.mrb[0].mxu0
      %v4415 = vadd.f32 0.0, %v4414
      %v4416 = vpop.f32.mrb[0].mxu0
      %v4417 = vpop.f32.mrb[0].mxu0
      %v4418 = vadd.f32 0.0, %v4417
      %v4419 = vpop.f32.mrb[0].mxu0
      %4420 = vmatprep.mubr.bf16.mxu0 0
      %4421 = vmatmul.mubr.bf16.gmra.mrb[0].mxu0 %v4173
      %v4422 = vpop.f32.mrb[0].mxu0
      %v4423 = vadd.f32 0.0, %v4422
      %v4424 = vpop.f32.mrb[0].mxu0
      %v4425 = vpop.f32.mrb[0].mxu0
      %v4426 = vadd.f32 0.0, %v4425
      %v4427 = vpop.f32.mrb[0].mxu0
      %4428 = vmatprep.mubr.bf16.mxu0 0
      %4429 = vmatmul.mubr.bf16.gmra.mrb[0].mxu0 %v4175
      %v4430 = vpop.f32.mrb[0].mxu0
      %v4431 = vadd.f32 0.0, %v4430
      %v4432 = vpop.f32.mrb[0].mxu0
      %v4433 = vpop.f32.mrb[0].mxu0
      %v4434 = vadd.f32 0.0, %v4433
      %v4435 = vpop.f32.mrb[0].mxu0
      %4436 = vmatprep.mubr.bf16.mxu0 0
      %4437 = vmatmul.mubr.bf16.gmra.mrb[0].mxu0 %v4177
      %v4438 = vpop.f32.mrb[0].mxu0
      %v4439 = vadd.f32 0.0, %v4438
      %v4440 = vpop.f32.mrb[0].mxu0
      %v4441 = vpop.f32.mrb[0].mxu0
      %v4442 = vadd.f32 0.0, %v4441
      %v4443 = vpop.f32.mrb[0].mxu0
      %4444 = vmatprep.mubr.bf16.mxu0 0
      %4445 = vmatmul.mubr.bf16.gmra.mrb[0].mxu0 %v4179
      %v4446 = vpop.f32.mrb[0].mxu0
      %v4447 = vadd.f32 0.0, %v4446
      %v4448 = vpop.f32.mrb[0].mxu0
      %v4449 = vpop.f32.mrb[0].mxu0
      %v4450 = vadd.f32 0.0, %v4449
      %v4451 = vpop.f32.mrb[0].mxu0
      %4452 = vmatprep.mubr.bf16.mxu0 0
      %4453 = vmatmul.mubr.bf16.gmra.mrb[0].mxu0 %v4181
      %v4454 = vpop.f32.mrb[0].mxu0
      %v4455 = vadd.f32 0.0, %v4454
      %v4456 = vpop.f32.mrb[0].mxu0
      %v4457 = vpop.f32.mrb[0].mxu0
      %v4458 = vadd.f32 0.0, %v4457
      %v4459 = vpop.f32.mrb[0].mxu0
      %4460 = vmatprep.mubr.bf16.mxu0 0
      %4461 = vmatmul.mubr.bf16.gmra.mrb[0].mxu0 %v4183
      %v4462 = vpop.f32.mrb[0].mxu0
      %v4463 = vadd.f32 0.0, %v4462
      %v4464 = vpop.f32.mrb[0].mxu0
      %v4465 = vpop.f32.mrb[0].mxu0
      %v4466 = vadd.f32 0.0, %v4465
      %v4467 = vpop.f32.mrb[0].mxu0
      %4468 = vmatprep.mubr.bf16.mxu0 0
      %4469 = vmatmul.mubr.bf16.gmra.mrb[0].mxu0 %v4185
      %v4470 = vpop.f32.mrb[0].mxu0
      %v4471 = vadd.f32 0.0, %v4470
      %v4472 = vpop.f32.mrb[0].mxu0
      %v4473 = vpop.f32.mrb[0].mxu0
      %v4474 = vadd.f32 0.0, %v4473
      %v4475 = vpop.f32.mrb[0].mxu0
      %4476 = vmatprep.mubr.bf16.mxu0 0
      %4477 = vmatmul.mubr.bf16.gmra.mrb[0].mxu0 %v4187
      %v4478 = vpop.f32.mrb[0].mxu0
      %v4479 = vadd.f32 0.0, %v4478
      %v4480 = vpop.f32.mrb[0].mxu0
      %v4481 = vpop.f32.mrb[0].mxu0
      %v4482 = vadd.f32 0.0, %v4481
      %v4483 = vpop.f32.mrb[0].mxu0
      %4484 = vmatprep.mubr.bf16.mxu0 0
      %4485 = vmatmul.mubr.bf16.gmra.mrb[0].mxu0 %v4189
      %v4486 = vpop.f32.mrb[0].mxu0
      %v4487 = vadd.f32 0.0, %v4486
      %v4488 = vpop.f32.mrb[0].mxu0
      %v4489 = vpop.f32.mrb[0].mxu0
      %v4490 = vadd.f32 0.0, %v4489
      %v4491 = vpop.f32.mrb[0].mxu0
      %4492 = vmatprep.mubr.bf16.mxu0 0
      %4493 = vmatmul.mubr.bf16.gmra.mrb[0].mxu0 %v4191
      %v4494 = vpop.f32.mrb[0].mxu0
      %v4495 = vadd.f32 0.0, %v4494
      %v4496 = vpop.f32.mrb[0].mxu0
      %v4497 = vpop.f32.mrb[0].mxu0
      %v4498 = vadd.f32 0.0, %v4497
      %v4499 = vpop.f32.mrb[0].mxu0
      %4500 = vmatprep.mubr.bf16.mxu0 0
      %4501 = vmatmul.mubr.bf16.gmra.mrb[0].mxu0 %v4193
      %v4502 = vpop.f32.mrb[0].mxu0
      %v4503 = vadd.f32 0.0, %v4502
      %v4504 = vpop.f32.mrb[0].mxu0
      %v4505 = vpop.f32.mrb[0].mxu0
      %v4506 = vadd.f32 0.0, %v4505
      %v4507 = vpop.f32.mrb[0].mxu0
      %4508 = vmatprep.mubr.bf16.mxu0 0
      %4509 = vmatmul.mubr.bf16.gmra.mrb[0].mxu0 %v4195
      %v4510 = vpop.f32.mrb[0].mxu0
      %v4511 = vadd.f32 0.0, %v4510
      %v4512 = vpop.f32.mrb[0].mxu0
      %v4513 = vpop.f32.mrb[0].mxu0
      %v4514 = vadd.f32 0.0, %v4513
      %v4515 = vpop.f32.mrb[0].mxu0
      %4516 = vmatprep.mubr.bf16.mxu0 0
      %4517 = vmatmul.mubr.bf16.gmra.mrb[0].mxu0 %v4197
      %v4518 = vpop.f32.mrb[0].mxu0
      %v4519 = vadd.f32 0.0, %v4518
      %v4520 = vpop.f32.mrb[0].mxu0
      %v4521 = vpop.f32.mrb[0].mxu0
      %v4522 = vadd.f32 0.0, %v4521
      %v4523 = vpop.f32.mrb[0].mxu0
      %4524 = vmatprep.mubr.bf16.mxu0 0
      %4525 = vmatmul.mubr.bf16.gmra.mrb[0].mxu0 %v4199
      %v4526 = vpop.f32.mrb[0].mxu0
      %v4527 = vadd.f32 0.0, %v4526
      %v4528 = vpop.f32.mrb[0].mxu0
      %v4529 = vpop.f32.mrb[0].mxu0
      %v4530 = vadd.f32 0.0, %v4529
      %v4531 = vpop.f32.mrb[0].mxu0
      %4532 = vmatprep.mubr.bf16.mxu0 0
      %4533 = vmatmul.mubr.bf16.gmra.mrb[0].mxu0 %v4201
      %v4534 = vpop.f32.mrb[0].mxu0
      %v4535 = vadd.f32 0.0, %v4534
      %v4536 = vpop.f32.mrb[0].mxu0
      %v4537 = vpop.f32.mrb[0].mxu0
      %v4538 = vadd.f32 0.0, %v4537
      %v4539 = vpop.f32.mrb[0].mxu0
      %4540 = vmatprep.mubr.bf16.mxu0 0
      %4541 = vmatmul.mubr.bf16.gmra.mrb[0].mxu0 %v4203
      %v4542 = vpop.f32.mrb[0].mxu0
      %v4543 = vadd.f32 0.0, %v4542
      %v4544 = vpop.f32.mrb[0].mxu0
      %v4545 = vpop.f32.mrb[0].mxu0
      %v4546 = vadd.f32 0.0, %v4545
      %v4547 = vpop.f32.mrb[0].mxu0
      %4548 = vmatprep.mubr.bf16.mxu0 0
      %4549 = vmatmul.mubr.bf16.gmra.mrb[0].mxu0 %v4205
      %v4550 = vpop.f32.mrb[0].mxu0
      %v4551 = vadd.f32 0.0, %v4550
      %v4552 = vpop.f32.mrb[0].mxu0
      %v4553 = vpop.f32.mrb[0].mxu0
      %v4554 = vadd.f32 0.0, %v4553
      %v4555 = vpop.f32.mrb[0].mxu0
      %4556 = vmatprep.mubr.bf16.mxu0 0
      %4557 = vmatmul.mubr.bf16.gmra.mrb[0].mxu0 %v4207
      %v4558 = vpop.f32.mrb[0].mxu0
      %v4559 = vadd.f32 0.0, %v4558
      %v4560 = vpop.f32.mrb[0].mxu0
      %v4561 = vpop.f32.mrb[0].mxu0
      %v4562 = vadd.f32 0.0, %v4561
      %v4563 = vpop.f32.mrb[0].mxu0
      %4564 = vmatprep.mubr.bf16.mxu0 0
      %4565 = vmatmul.mubr.bf16.gmra.mrb[0].mxu0 %v4209
      %v4566 = vpop.f32.mrb[0].mxu0
      %v4567 = vadd.f32 0.0, %v4566
      %v4568 = vpop.f32.mrb[0].mxu0
      %v4569 = vpop.f32.mrb[0].mxu0
      %v4570 = vadd.f32 0.0, %v4569
      %v4571 = vpop.f32.mrb[0].mxu0
      %4572 = vmatprep.mubr.bf16.mxu0 0
      %4573 = vmatmul.mubr.bf16.gmra.mrb[0].mxu0 %v4211
      %v4574 = vpop.f32.mrb[0].mxu0
      %v4575 = vadd.f32 0.0, %v4574
      %v4576 = vpop.f32.mrb[0].mxu0
      %v4577 = vpop.f32.mrb[0].mxu0
      %v4578 = vadd.f32 0.0, %v4577
      %v4579 = vpop.f32.mrb[0].mxu0
      %4580 = vdwg.mxu0
      %v4581 = vadd.f32 %v4000, %v4327
      %v4582 = vadd.f32 %v4001, %v4330
      %v4583 = vadd.f32 %v4002, %v4335
      %v4584 = vadd.f32 %v4003, %v4338
      %v4585 = vadd.f32 %v4004, %v4343
      %v4586 = vadd.f32 %v4005, %v4346
      %v4587 = vadd.f32 %v4006, %v4351
      %v4588 = vadd.f32 %v4007, %v4354
      %v4589 = vadd.f32 %v4008, %v4359
      %v4590 = vadd.f32 %v4009, %v4362
      %v4591 = vadd.f32 %v4010, %v4367
      %v4592 = vadd.f32 %v4011, %v4370
      %v4593 = vadd.f32 %v4012, %v4375
      %v4594 = vadd.f32 %v4013, %v4378
      %v4595 = vadd.f32 %v4014, %v4383
      %v4596 = vadd.f32 %v4015, %v4386
      %v4597 = vadd.f32 %v4016, %v4391
      %v4598 = vadd.f32 %v4017, %v4394
      %v4599 = vadd.f32 %v4018, %v4399
      %v4600 = vadd.f32 %v4019, %v4402
      %v4601 = vadd.f32 %v4020, %v4407
      %v4602 = vadd.f32 %v4021, %v4410
      %v4603 = vadd.f32 %v4022, %v4415
      %v4604 = vadd.f32 %v4023, %v4418
      %v4605 = vadd.f32 %v4024, %v4423
      %v4606 = vadd.f32 %v4025, %v4426
      %v4607 = vadd.f32 %v4026, %v4431
      %v4608 = vadd.f32 %v4027, %v4434
      %v4609 = vadd.f32 %v4028, %v4439
      %v4610 = vadd.f32 %v4029, %v4442
      %v4611 = vadd.f32 %v4030, %v4447
      %v4612 = vadd.f32 %v4031, %v4450
      %v4613 = vadd.f32 %v4032, %v4455
      %v4614 = vadd.f32 %v4033, %v4458
      %v4615 = vadd.f32 %v4034, %v4463
      %v4616 = vadd.f32 %v4035, %v4466
      %v4617 = vadd.f32 %v4036, %v4471
      %v4618 = vadd.f32 %v4037, %v4474
      %v4619 = vadd.f32 %v4038, %v4479
      %v4620 = vadd.f32 %v4039, %v4482
      %v4621 = vadd.f32 %v4040, %v4487
      %v4622 = vadd.f32 %v4041, %v4490
      %v4623 = vadd.f32 %v4042, %v4495
      %v4624 = vadd.f32 %v4043, %v4498
      %v4625 = vadd.f32 %v4044, %v4503
      %v4626 = vadd.f32 %v4045, %v4506
      %v4627 = vadd.f32 %v4046, %v4511
      %v4628 = vadd.f32 %v4047, %v4514
      %v4629 = vadd.f32 %v4048, %v4519
      %v4630 = vadd.f32 %v4049, %v4522
      %v4631 = vadd.f32 %v4050, %v4527
      %v4632 = vadd.f32 %v4051, %v4530
      %v4633 = vadd.f32 %v4052, %v4535
      %v4634 = vadd.f32 %v4053, %v4538
      %v4635 = vadd.f32 %v4054, %v4543
      %v4636 = vadd.f32 %v4055, %v4546
      %v4637 = vadd.f32 %v4056, %v4551
      %v4638 = vadd.f32 %v4057, %v4554
      %v4639 = vadd.f32 %v4058, %v4559
      %v4640 = vadd.f32 %v4059, %v4562
      %v4641 = vadd.f32 %v4060, %v4567
      %v4642 = vadd.f32 %v4061, %v4570
      %v4643 = vadd.f32 %v4062, %v4575
      %v4644 = vadd.f32 %v4063, %v4578
      %v4645 = vld [vmem:[#allocation2 + $0x110] sm:$0x7]
      %s4646 = scalar_lea.vmem %s295, 448
      %v4647 = vld [vmem:[%s4646] sm:$0xf]
      %v4648 = vld [vmem:[%s4646 + $0x4] sm:$0xf]
      %v4649 = vld [vmem:[%s4646 + $0x8] sm:$0xf]
      %v4650 = vld [vmem:[%s4646 + $0xc] sm:$0xf]
      %v4651 = vld [vmem:[%s4646 + $0x10] sm:$0xf]
      %v4652 = vld [vmem:[%s4646 + $0x14] sm:$0xf]
      %v4653 = vld [vmem:[%s4646 + $0x18] sm:$0xf]
      %v4654 = vld [vmem:[%s4646 + $0x1c] sm:$0xf]
      %v4655 = vld [vmem:[%s4646 + $0x20] sm:$0xf]
      %v4656 = vld [vmem:[%s4646 + $0x24] sm:$0xf]
      %v4657 = vld [vmem:[%s4646 + $0x28] sm:$0xf]
      %v4658 = vld [vmem:[%s4646 + $0x2c] sm:$0xf]
      %v4659 = vld [vmem:[%s4646 + $0x30] sm:$0xf]
      %v4660 = vld [vmem:[%s4646 + $0x34] sm:$0xf]
      %v4661 = vld [vmem:[%s4646 + $0x38] sm:$0xf]
      %v4662 = vld [vmem:[%s4646 + $0x3c] sm:$0xf]
      %vm4663 = vsmask.f32 5376
      %v4665 = vshrl.u32 %v4064, 16
      %v4667 = vrot.slane %v4665, 2
      %v4668 = vshll.u32 %v4064, 16
      %v4670 = vrot.slane %v4668, 3
      %v4671 = vor.u32 %v4667, %v4670
      %v4673 = vshrl.u32 %v4065, 16
      %v4675 = vrot.slane %v4673, 2
      %v4676 = vshll.u32 %v4065, 16
      %v4678 = vrot.slane %v4676, 3
      %v4679 = vor.u32 %v4675, %v4678
      %v4680 = vsel %vm4663, %v4671, %v4679
      %v4682 = vshrl.u32 %v4066, 16
      %v4684 = vrot.slane %v4682, 2
      %v4685 = vshll.u32 %v4066, 16
      %v4687 = vrot.slane %v4685, 3
      %v4688 = vor.u32 %v4684, %v4687
      %v4689 = vsel %vm4663, %v4679, %v4688
      %v4691 = vshrl.u32 %v4067, 16
      %v4693 = vrot.slane %v4691, 2
      %v4694 = vshll.u32 %v4067, 16
      %v4696 = vrot.slane %v4694, 3
      %v4697 = vor.u32 %v4693, %v4696
      %v4698 = vsel %vm4663, %v4688, %v4697
      %v4700 = vshrl.u32 %v4068, 16
      %v4702 = vrot.slane %v4700, 2
      %v4703 = vshll.u32 %v4068, 16
      %v4705 = vrot.slane %v4703, 3
      %v4706 = vor.u32 %v4702, %v4705
      %v4707 = vsel %vm4663, %v4697, %v4706
      %v4709 = vshrl.u32 %v4069, 16
      %v4711 = vrot.slane %v4709, 2
      %v4712 = vshll.u32 %v4069, 16
      %v4714 = vrot.slane %v4712, 3
      %v4715 = vor.u32 %v4711, %v4714
      %v4716 = vsel %vm4663, %v4706, %v4715
      %v4718 = vshrl.u32 %v4070, 16
      %v4720 = vrot.slane %v4718, 2
      %v4721 = vshll.u32 %v4070, 16
      %v4723 = vrot.slane %v4721, 3
      %v4724 = vor.u32 %v4720, %v4723
      %v4725 = vsel %vm4663, %v4715, %v4724
      %v4727 = vshrl.u32 %v4071, 16
      %v4729 = vrot.slane %v4727, 2
      %v4730 = vshll.u32 %v4071, 16
      %v4732 = vrot.slane %v4730, 3
      %v4733 = vor.u32 %v4729, %v4732
      %v4734 = vsel %vm4663, %v4724, %v4733
      %v4736 = vshrl.u32 %v4072, 16
      %v4738 = vrot.slane %v4736, 2
      %v4739 = vshll.u32 %v4072, 16
      %v4741 = vrot.slane %v4739, 3
      %v4742 = vor.u32 %v4738, %v4741
      %v4743 = vsel %vm4663, %v4733, %v4742
      %v4745 = vshrl.u32 %v4073, 16
      %v4747 = vrot.slane %v4745, 2
      %v4748 = vshll.u32 %v4073, 16
      %v4750 = vrot.slane %v4748, 3
      %v4751 = vor.u32 %v4747, %v4750
      %v4752 = vsel %vm4663, %v4742, %v4751
      %v4754 = vshrl.u32 %v4074, 16
      %v4756 = vrot.slane %v4754, 2
      %v4757 = vshll.u32 %v4074, 16
      %v4759 = vrot.slane %v4757, 3
      %v4760 = vor.u32 %v4756, %v4759
      %v4761 = vsel %vm4663, %v4751, %v4760
      %v4763 = vshrl.u32 %v4075, 16
      %v4765 = vrot.slane %v4763, 2
      %v4766 = vshll.u32 %v4075, 16
      %v4768 = vrot.slane %v4766, 3
      %v4769 = vor.u32 %v4765, %v4768
      %v4770 = vsel %vm4663, %v4760, %v4769
      %v4772 = vshrl.u32 %v4076, 16
      %v4774 = vrot.slane %v4772, 2
      %v4775 = vshll.u32 %v4076, 16
      %v4777 = vrot.slane %v4775, 3
      %v4778 = vor.u32 %v4774, %v4777
      %v4779 = vsel %vm4663, %v4769, %v4778
      %v4781 = vshrl.u32 %v4077, 16
      %v4783 = vrot.slane %v4781, 2
      %v4784 = vshll.u32 %v4077, 16
      %v4786 = vrot.slane %v4784, 3
      %v4787 = vor.u32 %v4783, %v4786
      %v4788 = vsel %vm4663, %v4778, %v4787
      %v4790 = vshrl.u32 %v4078, 16
      %v4792 = vrot.slane %v4790, 2
      %v4793 = vshll.u32 %v4078, 16
      %v4795 = vrot.slane %v4793, 3
      %v4796 = vor.u32 %v4792, %v4795
      %v4797 = vsel %vm4663, %v4787, %v4796
      %v4799 = vshrl.u32 %v4079, 16
      %v4801 = vrot.slane %v4799, 2
      %v4802 = vshll.u32 %v4079, 16
      %v4804 = vrot.slane %v4802, 3
      %v4805 = vor.u32 %v4801, %v4804
      %v4806 = vsel %vm4663, %v4796, %v4805
      %v4808 = vshrl.u32 %v4080, 16
      %v4810 = vrot.slane %v4808, 2
      %v4811 = vshll.u32 %v4080, 16
      %v4813 = vrot.slane %v4811, 3
      %v4814 = vor.u32 %v4810, %v4813
      %v4815 = vsel %vm4663, %v4805, %v4814
      %v4817 = vshrl.u32 %v4081, 16
      %v4819 = vrot.slane %v4817, 2
      %v4820 = vshll.u32 %v4081, 16
      %v4822 = vrot.slane %v4820, 3
      %v4823 = vor.u32 %v4819, %v4822
      %v4824 = vsel %vm4663, %v4814, %v4823
      %v4826 = vshrl.u32 %v4082, 16
      %v4828 = vrot.slane %v4826, 2
      %v4829 = vshll.u32 %v4082, 16
      %v4831 = vrot.slane %v4829, 3
      %v4832 = vor.u32 %v4828, %v4831
      %v4833 = vsel %vm4663, %v4823, %v4832
      %v4835 = vshrl.u32 %v4083, 16
      %v4837 = vrot.slane %v4835, 2
      %v4838 = vshll.u32 %v4083, 16
      %v4840 = vrot.slane %v4838, 3
      %v4841 = vor.u32 %v4837, %v4840
      %v4842 = vsel %vm4663, %v4832, %v4841
      %v4844 = vshrl.u32 %v4084, 16
      %v4846 = vrot.slane %v4844, 2
      %v4847 = vshll.u32 %v4084, 16
      %v4849 = vrot.slane %v4847, 3
      %v4850 = vor.u32 %v4846, %v4849
      %v4851 = vsel %vm4663, %v4841, %v4850
      %v4853 = vshrl.u32 %v4085, 16
      %v4855 = vrot.slane %v4853, 2
      %v4856 = vshll.u32 %v4085, 16
      %v4858 = vrot.slane %v4856, 3
      %v4859 = vor.u32 %v4855, %v4858
      %v4860 = vsel %vm4663, %v4850, %v4859
      %v4862 = vshrl.u32 %v4086, 16
      %v4864 = vrot.slane %v4862, 2
      %v4865 = vshll.u32 %v4086, 16
      %v4867 = vrot.slane %v4865, 3
      %v4868 = vor.u32 %v4864, %v4867
      %v4869 = vsel %vm4663, %v4859, %v4868
      %v4871 = vshrl.u32 %v4087, 16
      %v4873 = vrot.slane %v4871, 2
      %v4874 = vshll.u32 %v4087, 16
      %v4876 = vrot.slane %v4874, 3
      %v4877 = vor.u32 %v4873, %v4876
      %v4878 = vsel %vm4663, %v4868, %v4877
      %v4880 = vshrl.u32 %v4088, 16
      %v4882 = vrot.slane %v4880, 2
      %v4883 = vshll.u32 %v4088, 16
      %v4885 = vrot.slane %v4883, 3
      %v4886 = vor.u32 %v4882, %v4885
      %v4887 = vsel %vm4663, %v4877, %v4886
      %v4889 = vshrl.u32 %v4089, 16
      %v4891 = vrot.slane %v4889, 2
      %v4892 = vshll.u32 %v4089, 16
      %v4894 = vrot.slane %v4892, 3
      %v4895 = vor.u32 %v4891, %v4894
      %v4896 = vsel %vm4663, %v4886, %v4895
      %v4898 = vshrl.u32 %v4090, 16
      %v4900 = vrot.slane %v4898, 2
      %v4901 = vshll.u32 %v4090, 16
      %v4903 = vrot.slane %v4901, 3
      %v4904 = vor.u32 %v4900, %v4903
      %v4905 = vsel %vm4663, %v4895, %v4904
      %v4907 = vshrl.u32 %v4091, 16
      %v4909 = vrot.slane %v4907, 2
      %v4910 = vshll.u32 %v4091, 16
      %v4912 = vrot.slane %v4910, 3
      %v4913 = vor.u32 %v4909, %v4912
      %v4914 = vsel %vm4663, %v4904, %v4913
      %v4916 = vshrl.u32 %v4092, 16
      %v4918 = vrot.slane %v4916, 2
      %v4919 = vshll.u32 %v4092, 16
      %v4921 = vrot.slane %v4919, 3
      %v4922 = vor.u32 %v4918, %v4921
      %v4923 = vsel %vm4663, %v4913, %v4922
      %v4925 = vshrl.u32 %v4093, 16
      %v4927 = vrot.slane %v4925, 2
      %v4928 = vshll.u32 %v4093, 16
      %v4930 = vrot.slane %v4928, 3
      %v4931 = vor.u32 %v4927, %v4930
      %v4932 = vsel %vm4663, %v4922, %v4931
      %v4934 = vshrl.u32 %v4094, 16
      %v4936 = vrot.slane %v4934, 2
      %v4937 = vshll.u32 %v4094, 16
      %v4939 = vrot.slane %v4937, 3
      %v4940 = vor.u32 %v4936, %v4939
      %v4941 = vsel %vm4663, %v4931, %v4940
      %v4943 = vshrl.u32 %v4095, 16
      %v4945 = vrot.slane %v4943, 2
      %v4946 = vshll.u32 %v4095, 16
      %v4948 = vrot.slane %v4946, 3
      %v4949 = vor.u32 %v4945, %v4948
      %v4950 = vsel %vm4663, %v4940, %v4949
      %v4952 = vshrl.u32 %v4645, 16
      %v4954 = vrot.slane %v4952, 2
      %v4955 = vshll.u32 %v4645, 16
      %v4957 = vrot.slane %v4955, 3
      %v4958 = vor.u32 %v4954, %v4957
      %v4959 = vsel %vm4663, %v4949, %v4958
      %v5008 = vunpack.c.l.b16 %v4647
      %v5009 = vunpack.c.l.b16 %v4648
      %v5010 = vunpack.c.l.b16 %v4649
      %v5011 = vunpack.c.l.b16 %v4650
      %v5012 = vunpack.c.l.b16 %v4651
      %v5013 = vunpack.c.l.b16 %v4652
      %v5014 = vunpack.c.l.b16 %v4653
      %v5015 = vunpack.c.l.b16 %v4654
      %v5016 = vunpack.c.l.b16 %v4655
      %v5017 = vunpack.c.l.b16 %v4656
      %v5018 = vunpack.c.l.b16 %v4657
      %v5019 = vunpack.c.l.b16 %v4658
      %v5020 = vunpack.c.l.b16 %v4659
      %v5021 = vunpack.c.l.b16 %v4660
      %v5022 = vunpack.c.l.b16 %v4661
      %v5023 = vunpack.c.l.b16 %v4662
      %v5024 = vpack.c.b16 %v5009, %v5008
      %v5025 = vpack.c.b16 %v5011, %v5010
      %v5026 = vpack.c.b16 %v5013, %v5012
      %v5027 = vpack.c.b16 %v5015, %v5014
      %v5028 = vpack.c.b16 %v5017, %v5016
      %v5029 = vpack.c.b16 %v5019, %v5018
      %v5030 = vpack.c.b16 %v5021, %v5020
      %v5031 = vpack.c.b16 %v5023, %v5022
      %5040 = vmatprep.subr.bf16.mxu0 0
      %5041 = vmatpush1.bf16.msra.mxu0 %v5024
      %5042 = vmatprep.subr.bf16.mxu0 0
      %5043 = vmatpush1.bf16.msra.mxu0 %v5025
      %5044 = vmatprep.subr.bf16.mxu0 0
      %5045 = vmatpush1.bf16.msra.mxu0 %v5026
      %5046 = vmatprep.subr.bf16.mxu0 0
      %5047 = vmatpush1.bf16.msra.mxu0 %v5027
      %5048 = vmatprep.subr.bf16.mxu0 0
      %5049 = vmatpush1.bf16.msra.mxu0 %v5028
      %5050 = vmatprep.subr.bf16.mxu0 0
      %5051 = vmatpush1.bf16.msra.mxu0 %v5029
      %5052 = vmatprep.subr.bf16.mxu0 0
      %5053 = vmatpush1.bf16.msra.mxu0 %v5030
      %5054 = vmatprep.subr.bf16.mxu0 0
      %5055 = vmatpush1.bf16.msra.mxu0 %v5031
      %5056 = vmatprep.subr.bf16.mxu0 0
      %5057 = vmatpush1.bf16.msra.mxu0 0
      %5058 = vmatprep.subr.bf16.mxu0 0
      %5059 = vmatpush1.bf16.msra.mxu0 0
      %5060 = vmatprep.subr.bf16.mxu0 0
      %5061 = vmatpush1.bf16.msra.mxu0 0
      %5062 = vmatprep.subr.bf16.mxu0 0
      %5063 = vmatpush1.bf16.msra.mxu0 0
      %5064 = vmatprep.subr.bf16.mxu0 0
      %5065 = vmatpush1.bf16.msra.mxu0 0
      %5066 = vmatprep.subr.bf16.mxu0 0
      %5067 = vmatpush1.bf16.msra.mxu0 0
      %5068 = vmatprep.subr.bf16.mxu0 0
      %5069 = vmatpush1.bf16.msra.mxu0 0
      %5070 = vmatprep.subr.bf16.mxu0 0
      %5071 = vmatpush1.bf16.msra.mxu0 0
      %5072 = vmatprep.mubr.bf16.mxu0 0
      %5073 = vmatmul.mubr.bf16.gmra.mrb[0].mxu0 %v4680
      %v5074 = vpop.f32.mrb[0].mxu0
      %v5075 = vadd.f32 0.0, %v5074
      %v5076 = vpop.f32.mrb[0].mxu0
      %v5077 = vpop.f32.mrb[0].mxu0
      %v5078 = vadd.f32 0.0, %v5077
      %v5079 = vpop.f32.mrb[0].mxu0
      %5080 = vmatprep.mubr.bf16.mxu0 0
      %5081 = vmatmul.mubr.bf16.gmra.mrb[0].mxu0 %v4689
      %v5082 = vpop.f32.mrb[0].mxu0
      %v5083 = vadd.f32 0.0, %v5082
      %v5084 = vpop.f32.mrb[0].mxu0
      %v5085 = vpop.f32.mrb[0].mxu0
      %v5086 = vadd.f32 0.0, %v5085
      %v5087 = vpop.f32.mrb[0].mxu0
      %5088 = vmatprep.mubr.bf16.mxu0 0
      %5089 = vmatmul.mubr.bf16.gmra.mrb[0].mxu0 %v4698
      %v5090 = vpop.f32.mrb[0].mxu0
      %v5091 = vadd.f32 0.0, %v5090
      %v5092 = vpop.f32.mrb[0].mxu0
      %v5093 = vpop.f32.mrb[0].mxu0
      %v5094 = vadd.f32 0.0, %v5093
      %v5095 = vpop.f32.mrb[0].mxu0
      %5096 = vmatprep.mubr.bf16.mxu0 0
      %5097 = vmatmul.mubr.bf16.gmra.mrb[0].mxu0 %v4707
      %v5098 = vpop.f32.mrb[0].mxu0
      %v5099 = vadd.f32 0.0, %v5098
      %v5100 = vpop.f32.mrb[0].mxu0
      %v5101 = vpop.f32.mrb[0].mxu0
      %v5102 = vadd.f32 0.0, %v5101
      %v5103 = vpop.f32.mrb[0].mxu0
      %5104 = vmatprep.mubr.bf16.mxu0 0
      %5105 = vmatmul.mubr.bf16.gmra.mrb[0].mxu0 %v4716
      %v5106 = vpop.f32.mrb[0].mxu0
      %v5107 = vadd.f32 0.0, %v5106
      %v5108 = vpop.f32.mrb[0].mxu0
      %v5109 = vpop.f32.mrb[0].mxu0
      %v5110 = vadd.f32 0.0, %v5109
      %v5111 = vpop.f32.mrb[0].mxu0
      %5112 = vmatprep.mubr.bf16.mxu0 0
      %5113 = vmatmul.mubr.bf16.gmra.mrb[0].mxu0 %v4725
      %v5114 = vpop.f32.mrb[0].mxu0
      %v5115 = vadd.f32 0.0, %v5114
      %v5116 = vpop.f32.mrb[0].mxu0
      %v5117 = vpop.f32.mrb[0].mxu0
      %v5118 = vadd.f32 0.0, %v5117
      %v5119 = vpop.f32.mrb[0].mxu0
      %5120 = vmatprep.mubr.bf16.mxu0 0
      %5121 = vmatmul.mubr.bf16.gmra.mrb[0].mxu0 %v4734
      %v5122 = vpop.f32.mrb[0].mxu0
      %v5123 = vadd.f32 0.0, %v5122
      %v5124 = vpop.f32.mrb[0].mxu0
      %v5125 = vpop.f32.mrb[0].mxu0
      %v5126 = vadd.f32 0.0, %v5125
      %v5127 = vpop.f32.mrb[0].mxu0
      %5128 = vmatprep.mubr.bf16.mxu0 0
      %5129 = vmatmul.mubr.bf16.gmra.mrb[0].mxu0 %v4743
      %v5130 = vpop.f32.mrb[0].mxu0
      %v5131 = vadd.f32 0.0, %v5130
      %v5132 = vpop.f32.mrb[0].mxu0
      %v5133 = vpop.f32.mrb[0].mxu0
      %v5134 = vadd.f32 0.0, %v5133
      %v5135 = vpop.f32.mrb[0].mxu0
      %5136 = vmatprep.mubr.bf16.mxu0 0
      %5137 = vmatmul.mubr.bf16.gmra.mrb[0].mxu0 %v4752
      %v5138 = vpop.f32.mrb[0].mxu0
      %v5139 = vadd.f32 0.0, %v5138
      %v5140 = vpop.f32.mrb[0].mxu0
      %v5141 = vpop.f32.mrb[0].mxu0
      %v5142 = vadd.f32 0.0, %v5141
      %v5143 = vpop.f32.mrb[0].mxu0
      %5144 = vmatprep.mubr.bf16.mxu0 0
      %5145 = vmatmul.mubr.bf16.gmra.mrb[0].mxu0 %v4761
      %v5146 = vpop.f32.mrb[0].mxu0
      %v5147 = vadd.f32 0.0, %v5146
      %v5148 = vpop.f32.mrb[0].mxu0
      %v5149 = vpop.f32.mrb[0].mxu0
      %v5150 = vadd.f32 0.0, %v5149
      %v5151 = vpop.f32.mrb[0].mxu0
      %5152 = vmatprep.mubr.bf16.mxu0 0
      %5153 = vmatmul.mubr.bf16.gmra.mrb[0].mxu0 %v4770
      %v5154 = vpop.f32.mrb[0].mxu0
      %v5155 = vadd.f32 0.0, %v5154
      %v5156 = vpop.f32.mrb[0].mxu0
      %v5157 = vpop.f32.mrb[0].mxu0
      %v5158 = vadd.f32 0.0, %v5157
      %v5159 = vpop.f32.mrb[0].mxu0
      %5160 = vmatprep.mubr.bf16.mxu0 0
      %5161 = vmatmul.mubr.bf16.gmra.mrb[0].mxu0 %v4779
      %v5162 = vpop.f32.mrb[0].mxu0
      %v5163 = vadd.f32 0.0, %v5162
      %v5164 = vpop.f32.mrb[0].mxu0
      %v5165 = vpop.f32.mrb[0].mxu0
      %v5166 = vadd.f32 0.0, %v5165
      %v5167 = vpop.f32.mrb[0].mxu0
      %5168 = vmatprep.mubr.bf16.mxu0 0
      %5169 = vmatmul.mubr.bf16.gmra.mrb[0].mxu0 %v4788
      %v5170 = vpop.f32.mrb[0].mxu0
      %v5171 = vadd.f32 0.0, %v5170
      %v5172 = vpop.f32.mrb[0].mxu0
      %v5173 = vpop.f32.mrb[0].mxu0
      %v5174 = vadd.f32 0.0, %v5173
      %v5175 = vpop.f32.mrb[0].mxu0
      %5176 = vmatprep.mubr.bf16.mxu0 0
      %5177 = vmatmul.mubr.bf16.gmra.mrb[0].mxu0 %v4797
      %v5178 = vpop.f32.mrb[0].mxu0
      %v5179 = vadd.f32 0.0, %v5178
      %v5180 = vpop.f32.mrb[0].mxu0
      %v5181 = vpop.f32.mrb[0].mxu0
      %v5182 = vadd.f32 0.0, %v5181
      %v5183 = vpop.f32.mrb[0].mxu0
      %5184 = vmatprep.mubr.bf16.mxu0 0
      %5185 = vmatmul.mubr.bf16.gmra.mrb[0].mxu0 %v4806
      %v5186 = vpop.f32.mrb[0].mxu0
      %v5187 = vadd.f32 0.0, %v5186
      %v5188 = vpop.f32.mrb[0].mxu0
      %v5189 = vpop.f32.mrb[0].mxu0
      %v5190 = vadd.f32 0.0, %v5189
      %v5191 = vpop.f32.mrb[0].mxu0
      %5192 = vmatprep.mubr.bf16.mxu0 0
      %5193 = vmatmul.mubr.bf16.gmra.mrb[0].mxu0 %v4815
      %v5194 = vpop.f32.mrb[0].mxu0
      %v5195 = vadd.f32 0.0, %v5194
      %v5196 = vpop.f32.mrb[0].mxu0
      %v5197 = vpop.f32.mrb[0].mxu0
      %v5198 = vadd.f32 0.0, %v5197
      %v5199 = vpop.f32.mrb[0].mxu0
      %5200 = vmatprep.mubr.bf16.mxu0 0
      %5201 = vmatmul.mubr.bf16.gmra.mrb[0].mxu0 %v4824
      %v5202 = vpop.f32.mrb[0].mxu0
      %v5203 = vadd.f32 0.0, %v5202
      %v5204 = vpop.f32.mrb[0].mxu0
      %v5205 = vpop.f32.mrb[0].mxu0
      %v5206 = vadd.f32 0.0, %v5205
      %v5207 = vpop.f32.mrb[0].mxu0
      %5208 = vmatprep.mubr.bf16.mxu0 0
      %5209 = vmatmul.mubr.bf16.gmra.mrb[0].mxu0 %v4833
      %v5210 = vpop.f32.mrb[0].mxu0
      %v5211 = vadd.f32 0.0, %v5210
      %v5212 = vpop.f32.mrb[0].mxu0
      %v5213 = vpop.f32.mrb[0].mxu0
      %v5214 = vadd.f32 0.0, %v5213
      %v5215 = vpop.f32.mrb[0].mxu0
      %5216 = vmatprep.mubr.bf16.mxu0 0
      %5217 = vmatmul.mubr.bf16.gmra.mrb[0].mxu0 %v4842
      %v5218 = vpop.f32.mrb[0].mxu0
      %v5219 = vadd.f32 0.0, %v5218
      %v5220 = vpop.f32.mrb[0].mxu0
      %v5221 = vpop.f32.mrb[0].mxu0
      %v5222 = vadd.f32 0.0, %v5221
      %v5223 = vpop.f32.mrb[0].mxu0
      %5224 = vmatprep.mubr.bf16.mxu0 0
      %5225 = vmatmul.mubr.bf16.gmra.mrb[0].mxu0 %v4851
      %v5226 = vpop.f32.mrb[0].mxu0
      %v5227 = vadd.f32 0.0, %v5226
      %v5228 = vpop.f32.mrb[0].mxu0
      %v5229 = vpop.f32.mrb[0].mxu0
      %v5230 = vadd.f32 0.0, %v5229
      %v5231 = vpop.f32.mrb[0].mxu0
      %5232 = vmatprep.mubr.bf16.mxu0 0
      %5233 = vmatmul.mubr.bf16.gmra.mrb[0].mxu0 %v4860
      %v5234 = vpop.f32.mrb[0].mxu0
      %v5235 = vadd.f32 0.0, %v5234
      %v5236 = vpop.f32.mrb[0].mxu0
      %v5237 = vpop.f32.mrb[0].mxu0
      %v5238 = vadd.f32 0.0, %v5237
      %v5239 = vpop.f32.mrb[0].mxu0
      %5240 = vmatprep.mubr.bf16.mxu0 0
      %5241 = vmatmul.mubr.bf16.gmra.mrb[0].mxu0 %v4869
      %v5242 = vpop.f32.mrb[0].mxu0
      %v5243 = vadd.f32 0.0, %v5242
      %v5244 = vpop.f32.mrb[0].mxu0
      %v5245 = vpop.f32.mrb[0].mxu0
      %v5246 = vadd.f32 0.0, %v5245
      %v5247 = vpop.f32.mrb[0].mxu0
      %5248 = vmatprep.mubr.bf16.mxu0 0
      %5249 = vmatmul.mubr.bf16.gmra.mrb[0].mxu0 %v4878
      %v5250 = vpop.f32.mrb[0].mxu0
      %v5251 = vadd.f32 0.0, %v5250
      %v5252 = vpop.f32.mrb[0].mxu0
      %v5253 = vpop.f32.mrb[0].mxu0
      %v5254 = vadd.f32 0.0, %v5253
      %v5255 = vpop.f32.mrb[0].mxu0
      %5256 = vmatprep.mubr.bf16.mxu0 0
      %5257 = vmatmul.mubr.bf16.gmra.mrb[0].mxu0 %v4887
      %v5258 = vpop.f32.mrb[0].mxu0
      %v5259 = vadd.f32 0.0, %v5258
      %v5260 = vpop.f32.mrb[0].mxu0
      %v5261 = vpop.f32.mrb[0].mxu0
      %v5262 = vadd.f32 0.0, %v5261
      %v5263 = vpop.f32.mrb[0].mxu0
      %5264 = vmatprep.mubr.bf16.mxu0 0
      %5265 = vmatmul.mubr.bf16.gmra.mrb[0].mxu0 %v4896
      %v5266 = vpop.f32.mrb[0].mxu0
      %v5267 = vadd.f32 0.0, %v5266
      %v5268 = vpop.f32.mrb[0].mxu0
      %v5269 = vpop.f32.mrb[0].mxu0
      %v5270 = vadd.f32 0.0, %v5269
      %v5271 = vpop.f32.mrb[0].mxu0
      %5272 = vmatprep.mubr.bf16.mxu0 0
      %5273 = vmatmul.mubr.bf16.gmra.mrb[0].mxu0 %v4905
      %v5274 = vpop.f32.mrb[0].mxu0
      %v5275 = vadd.f32 0.0, %v5274
      %v5276 = vpop.f32.mrb[0].mxu0
      %v5277 = vpop.f32.mrb[0].mxu0
      %v5278 = vadd.f32 0.0, %v5277
      %v5279 = vpop.f32.mrb[0].mxu0
      %5280 = vmatprep.mubr.bf16.mxu0 0
      %5281 = vmatmul.mubr.bf16.gmra.mrb[0].mxu0 %v4914
      %v5282 = vpop.f32.mrb[0].mxu0
      %v5283 = vadd.f32 0.0, %v5282
      %v5284 = vpop.f32.mrb[0].mxu0
      %v5285 = vpop.f32.mrb[0].mxu0
      %v5286 = vadd.f32 0.0, %v5285
      %v5287 = vpop.f32.mrb[0].mxu0
      %5288 = vmatprep.mubr.bf16.mxu0 0
      %5289 = vmatmul.mubr.bf16.gmra.mrb[0].mxu0 %v4923
      %v5290 = vpop.f32.mrb[0].mxu0
      %v5291 = vadd.f32 0.0, %v5290
      %v5292 = vpop.f32.mrb[0].mxu0
      %v5293 = vpop.f32.mrb[0].mxu0
      %v5294 = vadd.f32 0.0, %v5293
      %v5295 = vpop.f32.mrb[0].mxu0
      %5296 = vmatprep.mubr.bf16.mxu0 0
      %5297 = vmatmul.mubr.bf16.gmra.mrb[0].mxu0 %v4932
      %v5298 = vpop.f32.mrb[0].mxu0
      %v5299 = vadd.f32 0.0, %v5298
      %v5300 = vpop.f32.mrb[0].mxu0
      %v5301 = vpop.f32.mrb[0].mxu0
      %v5302 = vadd.f32 0.0, %v5301
      %v5303 = vpop.f32.mrb[0].mxu0
      %5304 = vmatprep.mubr.bf16.mxu0 0
      %5305 = vmatmul.mubr.bf16.gmra.mrb[0].mxu0 %v4941
      %v5306 = vpop.f32.mrb[0].mxu0
      %v5307 = vadd.f32 0.0, %v5306
      %v5308 = vpop.f32.mrb[0].mxu0
      %v5309 = vpop.f32.mrb[0].mxu0
      %v5310 = vadd.f32 0.0, %v5309
      %v5311 = vpop.f32.mrb[0].mxu0
      %5312 = vmatprep.mubr.bf16.mxu0 0
      %5313 = vmatmul.mubr.bf16.gmra.mrb[0].mxu0 %v4950
      %v5314 = vpop.f32.mrb[0].mxu0
      %v5315 = vadd.f32 0.0, %v5314
      %v5316 = vpop.f32.mrb[0].mxu0
      %v5317 = vpop.f32.mrb[0].mxu0
      %v5318 = vadd.f32 0.0, %v5317
      %v5319 = vpop.f32.mrb[0].mxu0
      %5320 = vmatprep.mubr.bf16.mxu0 0
      %5321 = vmatmul.mubr.bf16.gmra.mrb[0].mxu0 %v4959
      %v5322 = vpop.f32.mrb[0].mxu0
      %v5323 = vadd.f32 0.0, %v5322
      %v5324 = vpop.f32.mrb[0].mxu0
      %v5325 = vpop.f32.mrb[0].mxu0
      %v5326 = vadd.f32 0.0, %v5325
      %v5327 = vpop.f32.mrb[0].mxu0
      %5328 = vdwg.mxu0
      %v5329 = vadd.f32 %v4581, %v5075
      %v5330 = vadd.f32 %v4582, %v5078
      %v5331 = vadd.f32 %v4583, %v5083
      %v5332 = vadd.f32 %v4584, %v5086
      %v5333 = vadd.f32 %v4585, %v5091
      %v5334 = vadd.f32 %v4586, %v5094
      %v5335 = vadd.f32 %v4587, %v5099
      %v5336 = vadd.f32 %v4588, %v5102
      %v5337 = vadd.f32 %v4589, %v5107
      %v5338 = vadd.f32 %v4590, %v5110
      %v5339 = vadd.f32 %v4591, %v5115
      %v5340 = vadd.f32 %v4592, %v5118
      %v5341 = vadd.f32 %v4593, %v5123
      %v5342 = vadd.f32 %v4594, %v5126
      %v5343 = vadd.f32 %v4595, %v5131
      %v5344 = vadd.f32 %v4596, %v5134
      %v5345 = vadd.f32 %v4597, %v5139
      %v5346 = vadd.f32 %v4598, %v5142
      %v5347 = vadd.f32 %v4599, %v5147
      %v5348 = vadd.f32 %v4600, %v5150
      %v5349 = vadd.f32 %v4601, %v5155
      %v5350 = vadd.f32 %v4602, %v5158
      %v5351 = vadd.f32 %v4603, %v5163
      %v5352 = vadd.f32 %v4604, %v5166
      %v5353 = vadd.f32 %v4605, %v5171
      %v5354 = vadd.f32 %v4606, %v5174
      %v5355 = vadd.f32 %v4607, %v5179
      %v5356 = vadd.f32 %v4608, %v5182
      %v5357 = vadd.f32 %v4609, %v5187
      %v5358 = vadd.f32 %v4610, %v5190
      %v5359 = vadd.f32 %v4611, %v5195
      %v5360 = vadd.f32 %v4612, %v5198
      %v5361 = vadd.f32 %v4613, %v5203
      %v5362 = vadd.f32 %v4614, %v5206
      %v5363 = vadd.f32 %v4615, %v5211
      %v5364 = vadd.f32 %v4616, %v5214
      %v5365 = vadd.f32 %v4617, %v5219
      %v5366 = vadd.f32 %v4618, %v5222
      %v5367 = vadd.f32 %v4619, %v5227
      %v5368 = vadd.f32 %v4620, %v5230
      %v5369 = vadd.f32 %v4621, %v5235
      %v5370 = vadd.f32 %v4622, %v5238
      %v5371 = vadd.f32 %v4623, %v5243
      %v5372 = vadd.f32 %v4624, %v5246
      %v5373 = vadd.f32 %v4625, %v5251
      %v5374 = vadd.f32 %v4626, %v5254
      %v5375 = vadd.f32 %v4627, %v5259
      %v5376 = vadd.f32 %v4628, %v5262
      %v5377 = vadd.f32 %v4629, %v5267
      %v5378 = vadd.f32 %v4630, %v5270
      %v5379 = vadd.f32 %v4631, %v5275
      %v5380 = vadd.f32 %v4632, %v5278
      %v5381 = vadd.f32 %v4633, %v5283
      %v5382 = vadd.f32 %v4634, %v5286
      %v5383 = vadd.f32 %v4635, %v5291
      %v5384 = vadd.f32 %v4636, %v5294
      %v5385 = vadd.f32 %v4637, %v5299
      %v5386 = vadd.f32 %v4638, %v5302
      %v5387 = vadd.f32 %v4639, %v5307
      %v5388 = vadd.f32 %v4640, %v5310
      %v5389 = vadd.f32 %v4641, %v5315
      %v5390 = vadd.f32 %v4642, %v5318
      %v5391 = vadd.f32 %v4643, %v5323
      %v5392 = vadd.f32 %v4644, %v5326
      %v5393 = vld [vmem:[#allocation2 + $0x10] sm:$0xf8]
      %s5394 = scalar_lea.vmem %s295, 512
      %v5395 = vld [vmem:[%s5394] sm:$0xf]
      %v5396 = vld [vmem:[%s5394 + $0x4] sm:$0xf]
      %v5397 = vld [vmem:[%s5394 + $0x8] sm:$0xf]
      %v5398 = vld [vmem:[%s5394 + $0xc] sm:$0xf]
      %v5399 = vld [vmem:[%s5394 + $0x10] sm:$0xf]
      %v5400 = vld [vmem:[%s5394 + $0x14] sm:$0xf]
      %v5401 = vld [vmem:[%s5394 + $0x18] sm:$0xf]
      %v5402 = vld [vmem:[%s5394 + $0x1c] sm:$0xf]
      %v5403 = vld [vmem:[%s5394 + $0x20] sm:$0xf]
      %v5404 = vld [vmem:[%s5394 + $0x24] sm:$0xf]
      %v5405 = vld [vmem:[%s5394 + $0x28] sm:$0xf]
      %v5406 = vld [vmem:[%s5394 + $0x2c] sm:$0xf]
      %v5407 = vld [vmem:[%s5394 + $0x30] sm:$0xf]
      %v5408 = vld [vmem:[%s5394 + $0x34] sm:$0xf]
      %v5409 = vld [vmem:[%s5394 + $0x38] sm:$0xf]
      %v5410 = vld [vmem:[%s5394 + $0x3c] sm:$0xf]
      %vm5413 = vcmask 1044480
      %v5414 = vrot.slane %v5393, 3
      %v5415 = vrot.slane %v4065, 3
      %v5416 = vsel %vm5413, %v5414, %v5415
      %v5417 = vrot.slane %v4066, 3
      %v5418 = vsel %vm5413, %v5415, %v5417
      %v5419 = vrot.slane %v4067, 3
      %v5420 = vsel %vm5413, %v5417, %v5419
      %v5421 = vrot.slane %v4068, 3
      %v5422 = vsel %vm5413, %v5419, %v5421
      %v5423 = vrot.slane %v4069, 3
      %v5424 = vsel %vm5413, %v5421, %v5423
      %v5425 = vrot.slane %v4070, 3
      %v5426 = vsel %vm5413, %v5423, %v5425
      %v5427 = vrot.slane %v4071, 3
      %v5428 = vsel %vm5413, %v5425, %v5427
      %v5429 = vrot.slane %v4072, 3
      %v5430 = vsel %vm5413, %v5427, %v5429
      %v5431 = vrot.slane %v4073, 3
      %v5432 = vsel %vm5413, %v5429, %v5431
      %v5433 = vrot.slane %v4074, 3
      %v5434 = vsel %vm5413, %v5431, %v5433
      %v5435 = vrot.slane %v4075, 3
      %v5436 = vsel %vm5413, %v5433, %v5435
      %v5437 = vrot.slane %v4076, 3
      %v5438 = vsel %vm5413, %v5435, %v5437
      %v5439 = vrot.slane %v4077, 3
      %v5440 = vsel %vm5413, %v5437, %v5439
      %v5441 = vrot.slane %v4078, 3
      %v5442 = vsel %vm5413, %v5439, %v5441
      %v5443 = vrot.slane %v4079, 3
      %v5444 = vsel %vm5413, %v5441, %v5443
      %v5445 = vrot.slane %v4080, 3
      %v5446 = vsel %vm5413, %v5443, %v5445
      %v5447 = vrot.slane %v4081, 3
      %v5448 = vsel %vm5413, %v5445, %v5447
      %v5449 = vrot.slane %v4082, 3
      %v5450 = vsel %vm5413, %v5447, %v5449
      %v5451 = vrot.slane %v4083, 3
      %v5452 = vsel %vm5413, %v5449, %v5451
      %v5453 = vrot.slane %v4084, 3
      %v5454 = vsel %vm5413, %v5451, %v5453
      %v5455 = vrot.slane %v4085, 3
      %v5456 = vsel %vm5413, %v5453, %v5455
      %v5457 = vrot.slane %v4086, 3
      %v5458 = vsel %vm5413, %v5455, %v5457
      %v5459 = vrot.slane %v4087, 3
      %v5460 = vsel %vm5413, %v5457, %v5459
      %v5461 = vrot.slane %v4088, 3
      %v5462 = vsel %vm5413, %v5459, %v5461
      %v5463 = vrot.slane %v4089, 3
      %v5464 = vsel %vm5413, %v5461, %v5463
      %v5465 = vrot.slane %v4090, 3
      %v5466 = vsel %vm5413, %v5463, %v5465
      %v5467 = vrot.slane %v4091, 3
      %v5468 = vsel %vm5413, %v5465, %v5467
      %v5469 = vrot.slane %v4092, 3
      %v5470 = vsel %vm5413, %v5467, %v5469
      %v5471 = vrot.slane %v4093, 3
      %v5472 = vsel %vm5413, %v5469, %v5471
      %v5473 = vrot.slane %v4094, 3
      %v5474 = vsel %vm5413, %v5471, %v5473
      %v5475 = vrot.slane %v4095, 3
      %v5476 = vsel %vm5413, %v5473, %v5475
      %v5477 = vrot.slane %v4645, 3
      %v5478 = vsel %vm5413, %v5475, %v5477
      %v5527 = vunpack.c.l.b16 %v5395
      %v5528 = vunpack.c.l.b16 %v5396
      %v5529 = vunpack.c.l.b16 %v5397
      %v5530 = vunpack.c.l.b16 %v5398
      %v5531 = vunpack.c.l.b16 %v5399
      %v5532 = vunpack.c.l.b16 %v5400
      %v5533 = vunpack.c.l.b16 %v5401
      %v5534 = vunpack.c.l.b16 %v5402
      %v5535 = vunpack.c.l.b16 %v5403
      %v5536 = vunpack.c.l.b16 %v5404
      %v5537 = vunpack.c.l.b16 %v5405
      %v5538 = vunpack.c.l.b16 %v5406
      %v5539 = vunpack.c.l.b16 %v5407
      %v5540 = vunpack.c.l.b16 %v5408
      %v5541 = vunpack.c.l.b16 %v5409
      %v5542 = vunpack.c.l.b16 %v5410
      %v5543 = vpack.c.b16 %v5528, %v5527
      %v5544 = vpack.c.b16 %v5530, %v5529
      %v5545 = vpack.c.b16 %v5532, %v5531
      %v5546 = vpack.c.b16 %v5534, %v5533
      %v5547 = vpack.c.b16 %v5536, %v5535
      %v5548 = vpack.c.b16 %v5538, %v5537
      %v5549 = vpack.c.b16 %v5540, %v5539
      %v5550 = vpack.c.b16 %v5542, %v5541
      %5559 = vmatprep.subr.bf16.mxu0 0
      %5560 = vmatpush1.bf16.msra.mxu0 %v5543
      %5561 = vmatprep.subr.bf16.mxu0 0
      %5562 = vmatpush1.bf16.msra.mxu0 %v5544
      %5563 = vmatprep.subr.bf16.mxu0 0
      %5564 = vmatpush1.bf16.msra.mxu0 %v5545
      %5565 = vmatprep.subr.bf16.mxu0 0
      %5566 = vmatpush1.bf16.msra.mxu0 %v5546
      %5567 = vmatprep.subr.bf16.mxu0 0
      %5568 = vmatpush1.bf16.msra.mxu0 %v5547
      %5569 = vmatprep.subr.bf16.mxu0 0
      %5570 = vmatpush1.bf16.msra.mxu0 %v5548
      %5571 = vmatprep.subr.bf16.mxu0 0
      %5572 = vmatpush1.bf16.msra.mxu0 %v5549
      %5573 = vmatprep.subr.bf16.mxu0 0
      %5574 = vmatpush1.bf16.msra.mxu0 %v5550
      %5575 = vmatprep.subr.bf16.mxu0 0
      %5576 = vmatpush1.bf16.msra.mxu0 0
      %5577 = vmatprep.subr.bf16.mxu0 0
      %5578 = vmatpush1.bf16.msra.mxu0 0
      %5579 = vmatprep.subr.bf16.mxu0 0
      %5580 = vmatpush1.bf16.msra.mxu0 0
      %5581 = vmatprep.subr.bf16.mxu0 0
      %5582 = vmatpush1.bf16.msra.mxu0 0
      %5583 = vmatprep.subr.bf16.mxu0 0
      %5584 = vmatpush1.bf16.msra.mxu0 0
      %5585 = vmatprep.subr.bf16.mxu0 0
      %5586 = vmatpush1.bf16.msra.mxu0 0
      %5587 = vmatprep.subr.bf16.mxu0 0
      %5588 = vmatpush1.bf16.msra.mxu0 0
      %5589 = vmatprep.subr.bf16.mxu0 0
      %5590 = vmatpush1.bf16.msra.mxu0 0
      %5591 = vmatprep.mubr.bf16.mxu0 0
      %5592 = vmatmul.mubr.bf16.gmra.mrb[0].mxu0 %v5416
      %v5593 = vpop.f32.mrb[0].mxu0
      %v5594 = vadd.f32 0.0, %v5593
      %v5595 = vpop.f32.mrb[0].mxu0
      %v5596 = vpop.f32.mrb[0].mxu0
      %v5597 = vadd.f32 0.0, %v5596
      %v5598 = vpop.f32.mrb[0].mxu0
      %5599 = vmatprep.mubr.bf16.mxu0 0
      %5600 = vmatmul.mubr.bf16.gmra.mrb[0].mxu0 %v5418
      %v5601 = vpop.f32.mrb[0].mxu0
      %v5602 = vadd.f32 0.0, %v5601
      %v5603 = vpop.f32.mrb[0].mxu0
      %v5604 = vpop.f32.mrb[0].mxu0
      %v5605 = vadd.f32 0.0, %v5604
      %v5606 = vpop.f32.mrb[0].mxu0
      %5607 = vmatprep.mubr.bf16.mxu0 0
      %5608 = vmatmul.mubr.bf16.gmra.mrb[0].mxu0 %v5420
      %v5609 = vpop.f32.mrb[0].mxu0
      %v5610 = vadd.f32 0.0, %v5609
      %v5611 = vpop.f32.mrb[0].mxu0
      %v5612 = vpop.f32.mrb[0].mxu0
      %v5613 = vadd.f32 0.0, %v5612
      %v5614 = vpop.f32.mrb[0].mxu0
      %5615 = vmatprep.mubr.bf16.mxu0 0
      %5616 = vmatmul.mubr.bf16.gmra.mrb[0].mxu0 %v5422
      %v5617 = vpop.f32.mrb[0].mxu0
      %v5618 = vadd.f32 0.0, %v5617
      %v5619 = vpop.f32.mrb[0].mxu0
      %v5620 = vpop.f32.mrb[0].mxu0
      %v5621 = vadd.f32 0.0, %v5620
      %v5622 = vpop.f32.mrb[0].mxu0
      %5623 = vmatprep.mubr.bf16.mxu0 0
      %5624 = vmatmul.mubr.bf16.gmra.mrb[0].mxu0 %v5424
      %v5625 = vpop.f32.mrb[0].mxu0
      %v5626 = vadd.f32 0.0, %v5625
      %v5627 = vpop.f32.mrb[0].mxu0
      %v5628 = vpop.f32.mrb[0].mxu0
      %v5629 = vadd.f32 0.0, %v5628
      %v5630 = vpop.f32.mrb[0].mxu0
      %5631 = vmatprep.mubr.bf16.mxu0 0
      %5632 = vmatmul.mubr.bf16.gmra.mrb[0].mxu0 %v5426
      %v5633 = vpop.f32.mrb[0].mxu0
      %v5634 = vadd.f32 0.0, %v5633
      %v5635 = vpop.f32.mrb[0].mxu0
      %v5636 = vpop.f32.mrb[0].mxu0
      %v5637 = vadd.f32 0.0, %v5636
      %v5638 = vpop.f32.mrb[0].mxu0
      %5639 = vmatprep.mubr.bf16.mxu0 0
      %5640 = vmatmul.mubr.bf16.gmra.mrb[0].mxu0 %v5428
      %v5641 = vpop.f32.mrb[0].mxu0
      %v5642 = vadd.f32 0.0, %v5641
      %v5643 = vpop.f32.mrb[0].mxu0
      %v5644 = vpop.f32.mrb[0].mxu0
      %v5645 = vadd.f32 0.0, %v5644
      %v5646 = vpop.f32.mrb[0].mxu0
      %5647 = vmatprep.mubr.bf16.mxu0 0
      %5648 = vmatmul.mubr.bf16.gmra.mrb[0].mxu0 %v5430
      %v5649 = vpop.f32.mrb[0].mxu0
      %v5650 = vadd.f32 0.0, %v5649
      %v5651 = vpop.f32.mrb[0].mxu0
      %v5652 = vpop.f32.mrb[0].mxu0
      %v5653 = vadd.f32 0.0, %v5652
      %v5654 = vpop.f32.mrb[0].mxu0
      %5655 = vmatprep.mubr.bf16.mxu0 0
      %5656 = vmatmul.mubr.bf16.gmra.mrb[0].mxu0 %v5432
      %v5657 = vpop.f32.mrb[0].mxu0
      %v5658 = vadd.f32 0.0, %v5657
      %v5659 = vpop.f32.mrb[0].mxu0
      %v5660 = vpop.f32.mrb[0].mxu0
      %v5661 = vadd.f32 0.0, %v5660
      %v5662 = vpop.f32.mrb[0].mxu0
      %5663 = vmatprep.mubr.bf16.mxu0 0
      %5664 = vmatmul.mubr.bf16.gmra.mrb[0].mxu0 %v5434
      %v5665 = vpop.f32.mrb[0].mxu0
      %v5666 = vadd.f32 0.0, %v5665
      %v5667 = vpop.f32.mrb[0].mxu0
      %v5668 = vpop.f32.mrb[0].mxu0
      %v5669 = vadd.f32 0.0, %v5668
      %v5670 = vpop.f32.mrb[0].mxu0
      %5671 = vmatprep.mubr.bf16.mxu0 0
      %5672 = vmatmul.mubr.bf16.gmra.mrb[0].mxu0 %v5436
      %v5673 = vpop.f32.mrb[0].mxu0
      %v5674 = vadd.f32 0.0, %v5673
      %v5675 = vpop.f32.mrb[0].mxu0
      %v5676 = vpop.f32.mrb[0].mxu0
      %v5677 = vadd.f32 0.0, %v5676
      %v5678 = vpop.f32.mrb[0].mxu0
      %5679 = vmatprep.mubr.bf16.mxu0 0
      %5680 = vmatmul.mubr.bf16.gmra.mrb[0].mxu0 %v5438
      %v5681 = vpop.f32.mrb[0].mxu0
      %v5682 = vadd.f32 0.0, %v5681
      %v5683 = vpop.f32.mrb[0].mxu0
      %v5684 = vpop.f32.mrb[0].mxu0
      %v5685 = vadd.f32 0.0, %v5684
      %v5686 = vpop.f32.mrb[0].mxu0
      %5687 = vmatprep.mubr.bf16.mxu0 0
      %5688 = vmatmul.mubr.bf16.gmra.mrb[0].mxu0 %v5440
      %v5689 = vpop.f32.mrb[0].mxu0
      %v5690 = vadd.f32 0.0, %v5689
      %v5691 = vpop.f32.mrb[0].mxu0
      %v5692 = vpop.f32.mrb[0].mxu0
      %v5693 = vadd.f32 0.0, %v5692
      %v5694 = vpop.f32.mrb[0].mxu0
      %5695 = vmatprep.mubr.bf16.mxu0 0
      %5696 = vmatmul.mubr.bf16.gmra.mrb[0].mxu0 %v5442
      %v5697 = vpop.f32.mrb[0].mxu0
      %v5698 = vadd.f32 0.0, %v5697
      %v5699 = vpop.f32.mrb[0].mxu0
      %v5700 = vpop.f32.mrb[0].mxu0
      %v5701 = vadd.f32 0.0, %v5700
      %v5702 = vpop.f32.mrb[0].mxu0
      %5703 = vmatprep.mubr.bf16.mxu0 0
      %5704 = vmatmul.mubr.bf16.gmra.mrb[0].mxu0 %v5444
      %v5705 = vpop.f32.mrb[0].mxu0
      %v5706 = vadd.f32 0.0, %v5705
      %v5707 = vpop.f32.mrb[0].mxu0
      %v5708 = vpop.f32.mrb[0].mxu0
      %v5709 = vadd.f32 0.0, %v5708
      %v5710 = vpop.f32.mrb[0].mxu0
      %5711 = vmatprep.mubr.bf16.mxu0 0
      %5712 = vmatmul.mubr.bf16.gmra.mrb[0].mxu0 %v5446
      %v5713 = vpop.f32.mrb[0].mxu0
      %v5714 = vadd.f32 0.0, %v5713
      %v5715 = vpop.f32.mrb[0].mxu0
      %v5716 = vpop.f32.mrb[0].mxu0
      %v5717 = vadd.f32 0.0, %v5716
      %v5718 = vpop.f32.mrb[0].mxu0
      %5719 = vmatprep.mubr.bf16.mxu0 0
      %5720 = vmatmul.mubr.bf16.gmra.mrb[0].mxu0 %v5448
      %v5721 = vpop.f32.mrb[0].mxu0
      %v5722 = vadd.f32 0.0, %v5721
      %v5723 = vpop.f32.mrb[0].mxu0
      %v5724 = vpop.f32.mrb[0].mxu0
      %v5725 = vadd.f32 0.0, %v5724
      %v5726 = vpop.f32.mrb[0].mxu0
      %5727 = vmatprep.mubr.bf16.mxu0 0
      %5728 = vmatmul.mubr.bf16.gmra.mrb[0].mxu0 %v5450
      %v5729 = vpop.f32.mrb[0].mxu0
      %v5730 = vadd.f32 0.0, %v5729
      %v5731 = vpop.f32.mrb[0].mxu0
      %v5732 = vpop.f32.mrb[0].mxu0
      %v5733 = vadd.f32 0.0, %v5732
      %v5734 = vpop.f32.mrb[0].mxu0
      %5735 = vmatprep.mubr.bf16.mxu0 0
      %5736 = vmatmul.mubr.bf16.gmra.mrb[0].mxu0 %v5452
      %v5737 = vpop.f32.mrb[0].mxu0
      %v5738 = vadd.f32 0.0, %v5737
      %v5739 = vpop.f32.mrb[0].mxu0
      %v5740 = vpop.f32.mrb[0].mxu0
      %v5741 = vadd.f32 0.0, %v5740
      %v5742 = vpop.f32.mrb[0].mxu0
      %5743 = vmatprep.mubr.bf16.mxu0 0
      %5744 = vmatmul.mubr.bf16.gmra.mrb[0].mxu0 %v5454
      %v5745 = vpop.f32.mrb[0].mxu0
      %v5746 = vadd.f32 0.0, %v5745
      %v5747 = vpop.f32.mrb[0].mxu0
      %v5748 = vpop.f32.mrb[0].mxu0
      %v5749 = vadd.f32 0.0, %v5748
      %v5750 = vpop.f32.mrb[0].mxu0
      %5751 = vmatprep.mubr.bf16.mxu0 0
      %5752 = vmatmul.mubr.bf16.gmra.mrb[0].mxu0 %v5456
      %v5753 = vpop.f32.mrb[0].mxu0
      %v5754 = vadd.f32 0.0, %v5753
      %v5755 = vpop.f32.mrb[0].mxu0
      %v5756 = vpop.f32.mrb[0].mxu0
      %v5757 = vadd.f32 0.0, %v5756
      %v5758 = vpop.f32.mrb[0].mxu0
      %5759 = vmatprep.mubr.bf16.mxu0 0
      %5760 = vmatmul.mubr.bf16.gmra.mrb[0].mxu0 %v5458
      %v5761 = vpop.f32.mrb[0].mxu0
      %v5762 = vadd.f32 0.0, %v5761
      %v5763 = vpop.f32.mrb[0].mxu0
      %v5764 = vpop.f32.mrb[0].mxu0
      %v5765 = vadd.f32 0.0, %v5764
      %v5766 = vpop.f32.mrb[0].mxu0
      %5767 = vmatprep.mubr.bf16.mxu0 0
      %5768 = vmatmul.mubr.bf16.gmra.mrb[0].mxu0 %v5460
      %v5769 = vpop.f32.mrb[0].mxu0
      %v5770 = vadd.f32 0.0, %v5769
      %v5771 = vpop.f32.mrb[0].mxu0
      %v5772 = vpop.f32.mrb[0].mxu0
      %v5773 = vadd.f32 0.0, %v5772
      %v5774 = vpop.f32.mrb[0].mxu0
      %5775 = vmatprep.mubr.bf16.mxu0 0
      %5776 = vmatmul.mubr.bf16.gmra.mrb[0].mxu0 %v5462
      %v5777 = vpop.f32.mrb[0].mxu0
      %v5778 = vadd.f32 0.0, %v5777
      %v5779 = vpop.f32.mrb[0].mxu0
      %v5780 = vpop.f32.mrb[0].mxu0
      %v5781 = vadd.f32 0.0, %v5780
      %v5782 = vpop.f32.mrb[0].mxu0
      %5783 = vmatprep.mubr.bf16.mxu0 0
      %5784 = vmatmul.mubr.bf16.gmra.mrb[0].mxu0 %v5464
      %v5785 = vpop.f32.mrb[0].mxu0
      %v5786 = vadd.f32 0.0, %v5785
      %v5787 = vpop.f32.mrb[0].mxu0
      %v5788 = vpop.f32.mrb[0].mxu0
      %v5789 = vadd.f32 0.0, %v5788
      %v5790 = vpop.f32.mrb[0].mxu0
      %5791 = vmatprep.mubr.bf16.mxu0 0
      %5792 = vmatmul.mubr.bf16.gmra.mrb[0].mxu0 %v5466
      %v5793 = vpop.f32.mrb[0].mxu0
      %v5794 = vadd.f32 0.0, %v5793
      %v5795 = vpop.f32.mrb[0].mxu0
      %v5796 = vpop.f32.mrb[0].mxu0
      %v5797 = vadd.f32 0.0, %v5796
      %v5798 = vpop.f32.mrb[0].mxu0
      %5799 = vmatprep.mubr.bf16.mxu0 0
      %5800 = vmatmul.mubr.bf16.gmra.mrb[0].mxu0 %v5468
      %v5801 = vpop.f32.mrb[0].mxu0
      %v5802 = vadd.f32 0.0, %v5801
      %v5803 = vpop.f32.mrb[0].mxu0
      %v5804 = vpop.f32.mrb[0].mxu0
      %v5805 = vadd.f32 0.0, %v5804
      %v5806 = vpop.f32.mrb[0].mxu0
      %5807 = vmatprep.mubr.bf16.mxu0 0
      %5808 = vmatmul.mubr.bf16.gmra.mrb[0].mxu0 %v5470
      %v5809 = vpop.f32.mrb[0].mxu0
      %v5810 = vadd.f32 0.0, %v5809
      %v5811 = vpop.f32.mrb[0].mxu0
      %v5812 = vpop.f32.mrb[0].mxu0
      %v5813 = vadd.f32 0.0, %v5812
      %v5814 = vpop.f32.mrb[0].mxu0
      %5815 = vmatprep.mubr.bf16.mxu0 0
      %5816 = vmatmul.mubr.bf16.gmra.mrb[0].mxu0 %v5472
      %v5817 = vpop.f32.mrb[0].mxu0
      %v5818 = vadd.f32 0.0, %v5817
      %v5819 = vpop.f32.mrb[0].mxu0
      %v5820 = vpop.f32.mrb[0].mxu0
      %v5821 = vadd.f32 0.0, %v5820
      %v5822 = vpop.f32.mrb[0].mxu0
      %5823 = vmatprep.mubr.bf16.mxu0 0
      %5824 = vmatmul.mubr.bf16.gmra.mrb[0].mxu0 %v5474
      %v5825 = vpop.f32.mrb[0].mxu0
      %v5826 = vadd.f32 0.0, %v5825
      %v5827 = vpop.f32.mrb[0].mxu0
      %v5828 = vpop.f32.mrb[0].mxu0
      %v5829 = vadd.f32 0.0, %v5828
      %v5830 = vpop.f32.mrb[0].mxu0
      %5831 = vmatprep.mubr.bf16.mxu0 0
      %5832 = vmatmul.mubr.bf16.gmra.mrb[0].mxu0 %v5476
      %v5833 = vpop.f32.mrb[0].mxu0
      %v5834 = vadd.f32 0.0, %v5833
      %v5835 = vpop.f32.mrb[0].mxu0
      %v5836 = vpop.f32.mrb[0].mxu0
      %v5837 = vadd.f32 0.0, %v5836
      %v5838 = vpop.f32.mrb[0].mxu0
      %5839 = vmatprep.mubr.bf16.mxu0 0
      %5840 = vmatmul.mubr.bf16.gmra.mrb[0].mxu0 %v5478
      %v5841 = vpop.f32.mrb[0].mxu0
      %v5842 = vadd.f32 0.0, %v5841
      %v5843 = vpop.f32.mrb[0].mxu0
      %v5844 = vpop.f32.mrb[0].mxu0
      %v5845 = vadd.f32 0.0, %v5844
      %v5846 = vpop.f32.mrb[0].mxu0
      %5847 = vdwg.mxu0
      %v5848 = vadd.f32 %v5329, %v5594
      %v5849 = vadd.f32 %v5330, %v5597
      %v5850 = vadd.f32 %v5331, %v5602
      %v5851 = vadd.f32 %v5332, %v5605
      %v5852 = vadd.f32 %v5333, %v5610
      %v5853 = vadd.f32 %v5334, %v5613
      %v5854 = vadd.f32 %v5335, %v5618
      %v5855 = vadd.f32 %v5336, %v5621
      %v5856 = vadd.f32 %v5337, %v5626
      %v5857 = vadd.f32 %v5338, %v5629
      %v5858 = vadd.f32 %v5339, %v5634
      %v5859 = vadd.f32 %v5340, %v5637
      %v5860 = vadd.f32 %v5341, %v5642
      %v5861 = vadd.f32 %v5342, %v5645
      %v5862 = vadd.f32 %v5343, %v5650
      %v5863 = vadd.f32 %v5344, %v5653
      %v5864 = vadd.f32 %v5345, %v5658
      %v5865 = vadd.f32 %v5346, %v5661
      %v5866 = vadd.f32 %v5347, %v5666
      %v5867 = vadd.f32 %v5348, %v5669
      %v5868 = vadd.f32 %v5349, %v5674
      %v5869 = vadd.f32 %v5350, %v5677
      %v5870 = vadd.f32 %v5351, %v5682
      %v5871 = vadd.f32 %v5352, %v5685
      %v5872 = vadd.f32 %v5353, %v5690
      %v5873 = vadd.f32 %v5354, %v5693
      %v5874 = vadd.f32 %v5355, %v5698
      %v5875 = vadd.f32 %v5356, %v5701
      %v5876 = vadd.f32 %v5357, %v5706
      %v5877 = vadd.f32 %v5358, %v5709
      %v5878 = vadd.f32 %v5359, %v5714
      %v5879 = vadd.f32 %v5360, %v5717
      %v5880 = vadd.f32 %v5361, %v5722
      %v5881 = vadd.f32 %v5362, %v5725
      %v5882 = vadd.f32 %v5363, %v5730
      %v5883 = vadd.f32 %v5364, %v5733
      %v5884 = vadd.f32 %v5365, %v5738
      %v5885 = vadd.f32 %v5366, %v5741
      %v5886 = vadd.f32 %v5367, %v5746
      %v5887 = vadd.f32 %v5368, %v5749
      %v5888 = vadd.f32 %v5369, %v5754
      %v5889 = vadd.f32 %v5370, %v5757
      %v5890 = vadd.f32 %v5371, %v5762
      %v5891 = vadd.f32 %v5372, %v5765
      %v5892 = vadd.f32 %v5373, %v5770
      %v5893 = vadd.f32 %v5374, %v5773
      %v5894 = vadd.f32 %v5375, %v5778
      %v5895 = vadd.f32 %v5376, %v5781
      %v5896 = vadd.f32 %v5377, %v5786
      %v5897 = vadd.f32 %v5378, %v5789
      %v5898 = vadd.f32 %v5379, %v5794
      %v5899 = vadd.f32 %v5380, %v5797
      %v5900 = vadd.f32 %v5381, %v5802
      %v5901 = vadd.f32 %v5382, %v5805
      %v5902 = vadd.f32 %v5383, %v5810
      %v5903 = vadd.f32 %v5384, %v5813
      %v5904 = vadd.f32 %v5385, %v5818
      %v5905 = vadd.f32 %v5386, %v5821
      %v5906 = vadd.f32 %v5387, %v5826
      %v5907 = vadd.f32 %v5388, %v5829
      %v5908 = vadd.f32 %v5389, %v5834
      %v5909 = vadd.f32 %v5390, %v5837
      %v5910 = vadd.f32 %v5391, %v5842
      %v5911 = vadd.f32 %v5392, %v5845
      %v5912 = vld [vmem:[%s298] sm:$0x1]
      %v5914 = vlaneseq
      %v5915 = vshrl.u32 %v5914, 7
      %v5916 = vsub.s32 0, %v5915
      %v5917 = vrot.slane %v5912, %v5916
      %v5919 = vadd.f32 %v5848, %v5917
      %v5920 = vadd.f32 %v5849, %v5917
      %v5921 = vadd.f32 %v5850, %v5917
      %v5922 = vadd.f32 %v5851, %v5917
      %v5923 = vadd.f32 %v5852, %v5917
      %v5924 = vadd.f32 %v5853, %v5917
      %v5925 = vadd.f32 %v5854, %v5917
      %v5926 = vadd.f32 %v5855, %v5917
      %v5927 = vadd.f32 %v5856, %v5917
      %v5928 = vadd.f32 %v5857, %v5917
      %v5929 = vadd.f32 %v5858, %v5917
      %v5930 = vadd.f32 %v5859, %v5917
      %v5931 = vadd.f32 %v5860, %v5917
      %v5932 = vadd.f32 %v5861, %v5917
      %v5933 = vadd.f32 %v5862, %v5917
      %v5934 = vadd.f32 %v5863, %v5917
      %v5935 = vadd.f32 %v5864, %v5917
      %v5936 = vadd.f32 %v5865, %v5917
      %v5937 = vadd.f32 %v5866, %v5917
      %v5938 = vadd.f32 %v5867, %v5917
      %v5939 = vadd.f32 %v5868, %v5917
      %v5940 = vadd.f32 %v5869, %v5917
      %v5941 = vadd.f32 %v5870, %v5917
      %v5942 = vadd.f32 %v5871, %v5917
      %v5943 = vadd.f32 %v5872, %v5917
      %v5944 = vadd.f32 %v5873, %v5917
      %v5945 = vadd.f32 %v5874, %v5917
      %v5946 = vadd.f32 %v5875, %v5917
      %v5947 = vadd.f32 %v5876, %v5917
      %v5948 = vadd.f32 %v5877, %v5917
      %v5949 = vadd.f32 %v5878, %v5917
      %v5950 = vadd.f32 %v5879, %v5917
      %v5951 = vadd.f32 %v5880, %v5917
      %v5952 = vadd.f32 %v5881, %v5917
      %v5953 = vadd.f32 %v5882, %v5917
      %v5954 = vadd.f32 %v5883, %v5917
      %v5955 = vadd.f32 %v5884, %v5917
      %v5956 = vadd.f32 %v5885, %v5917
      %v5957 = vadd.f32 %v5886, %v5917
      %v5958 = vadd.f32 %v5887, %v5917
      %v5959 = vadd.f32 %v5888, %v5917
      %v5960 = vadd.f32 %v5889, %v5917
      %v5961 = vadd.f32 %v5890, %v5917
      %v5962 = vadd.f32 %v5891, %v5917
      %v5963 = vadd.f32 %v5892, %v5917
      %v5964 = vadd.f32 %v5893, %v5917
      %v5965 = vadd.f32 %v5894, %v5917
      %v5966 = vadd.f32 %v5895, %v5917
      %v5967 = vadd.f32 %v5896, %v5917
      %v5968 = vadd.f32 %v5897, %v5917
      %v5969 = vadd.f32 %v5898, %v5917
      %v5970 = vadd.f32 %v5899, %v5917
      %v5971 = vadd.f32 %v5900, %v5917
      %v5972 = vadd.f32 %v5901, %v5917
      %v5973 = vadd.f32 %v5902, %v5917
      %v5974 = vadd.f32 %v5903, %v5917
      %v5975 = vadd.f32 %v5904, %v5917
      %v5976 = vadd.f32 %v5905, %v5917
      %v5977 = vadd.f32 %v5906, %v5917
      %v5978 = vadd.f32 %v5907, %v5917
      %v5979 = vadd.f32 %v5908, %v5917
      %v5980 = vadd.f32 %v5909, %v5917
      %v5981 = vadd.f32 %v5910, %v5917
      %v5982 = vadd.f32 %v5911, %v5917
      %v5983 = vmax.f32 %v5919, 0.0
      %v5984 = vmax.f32 %v5920, 0.0
      %v5985 = vmax.f32 %v5921, 0.0
      %v5986 = vmax.f32 %v5922, 0.0
      %v5987 = vmax.f32 %v5923, 0.0
      %v5988 = vmax.f32 %v5924, 0.0
      %v5989 = vmax.f32 %v5925, 0.0
      %v5990 = vmax.f32 %v5926, 0.0
      %v5991 = vmax.f32 %v5927, 0.0
      %v5992 = vmax.f32 %v5928, 0.0
      %v5993 = vmax.f32 %v5929, 0.0
      %v5994 = vmax.f32 %v5930, 0.0
      %v5995 = vmax.f32 %v5931, 0.0
      %v5996 = vmax.f32 %v5932, 0.0
      %v5997 = vmax.f32 %v5933, 0.0
      %v5998 = vmax.f32 %v5934, 0.0
      %v5999 = vmax.f32 %v5935, 0.0
      %v6000 = vmax.f32 %v5936, 0.0
      %v6001 = vmax.f32 %v5937, 0.0
      %v6002 = vmax.f32 %v5938, 0.0
      %v6003 = vmax.f32 %v5939, 0.0
      %v6004 = vmax.f32 %v5940, 0.0
      %v6005 = vmax.f32 %v5941, 0.0
      %v6006 = vmax.f32 %v5942, 0.0
      %v6007 = vmax.f32 %v5943, 0.0
      %v6008 = vmax.f32 %v5944, 0.0
      %v6009 = vmax.f32 %v5945, 0.0
      %v6010 = vmax.f32 %v5946, 0.0
      %v6011 = vmax.f32 %v5947, 0.0
      %v6012 = vmax.f32 %v5948, 0.0
      %v6013 = vmax.f32 %v5949, 0.0
      %v6014 = vmax.f32 %v5950, 0.0
      %v6015 = vmax.f32 %v5951, 0.0
      %v6016 = vmax.f32 %v5952, 0.0
      %v6017 = vmax.f32 %v5953, 0.0
      %v6018 = vmax.f32 %v5954, 0.0
      %v6019 = vmax.f32 %v5955, 0.0
      %v6020 = vmax.f32 %v5956, 0.0
      %v6021 = vmax.f32 %v5957, 0.0
      %v6022 = vmax.f32 %v5958, 0.0
      %v6023 = vmax.f32 %v5959, 0.0
      %v6024 = vmax.f32 %v5960, 0.0
      %v6025 = vmax.f32 %v5961, 0.0
      %v6026 = vmax.f32 %v5962, 0.0
      %v6027 = vmax.f32 %v5963, 0.0
      %v6028 = vmax.f32 %v5964, 0.0
      %v6029 = vmax.f32 %v5965, 0.0
      %v6030 = vmax.f32 %v5966, 0.0
      %v6031 = vmax.f32 %v5967, 0.0
      %v6032 = vmax.f32 %v5968, 0.0
      %v6033 = vmax.f32 %v5969, 0.0
      %v6034 = vmax.f32 %v5970, 0.0
      %v6035 = vmax.f32 %v5971, 0.0
      %v6036 = vmax.f32 %v5972, 0.0
      %v6037 = vmax.f32 %v5973, 0.0
      %v6038 = vmax.f32 %v5974, 0.0
      %v6039 = vmax.f32 %v5975, 0.0
      %v6040 = vmax.f32 %v5976, 0.0
      %v6041 = vmax.f32 %v5977, 0.0
      %v6042 = vmax.f32 %v5978, 0.0
      %v6043 = vmax.f32 %v5979, 0.0
      %v6044 = vmax.f32 %v5980, 0.0
      %v6045 = vmax.f32 %v5981, 0.0
      %v6046 = vmax.f32 %v5982, 0.0
      %v6047 = vpack.c.bf16 %v5984, %v5983
      %v6048 = vpack.c.bf16 %v5986, %v5985
      %v6049 = vpack.c.bf16 %v5988, %v5987
      %v6050 = vpack.c.bf16 %v5990, %v5989
      %v6051 = vpack.c.bf16 %v5992, %v5991
      %v6052 = vpack.c.bf16 %v5994, %v5993
      %v6053 = vpack.c.bf16 %v5996, %v5995
      %v6054 = vpack.c.bf16 %v5998, %v5997
      %v6055 = vpack.c.bf16 %v6000, %v5999
      %v6056 = vpack.c.bf16 %v6002, %v6001
      %v6057 = vpack.c.bf16 %v6004, %v6003
      %v6058 = vpack.c.bf16 %v6006, %v6005
      %v6059 = vpack.c.bf16 %v6008, %v6007
      %v6060 = vpack.c.bf16 %v6010, %v6009
      %v6061 = vpack.c.bf16 %v6012, %v6011
      %v6062 = vpack.c.bf16 %v6014, %v6013
      %v6063 = vpack.c.bf16 %v6016, %v6015
      %v6064 = vpack.c.bf16 %v6018, %v6017
      %v6065 = vpack.c.bf16 %v6020, %v6019
      %v6066 = vpack.c.bf16 %v6022, %v6021
      %v6067 = vpack.c.bf16 %v6024, %v6023
      %v6068 = vpack.c.bf16 %v6026, %v6025
      %v6069 = vpack.c.bf16 %v6028, %v6027
      %v6070 = vpack.c.bf16 %v6030, %v6029
      %v6071 = vpack.c.bf16 %v6032, %v6031
      %v6072 = vpack.c.bf16 %v6034, %v6033
      %v6073 = vpack.c.bf16 %v6036, %v6035
      %v6074 = vpack.c.bf16 %v6038, %v6037
      %v6075 = vpack.c.bf16 %v6040, %v6039
      %v6076 = vpack.c.bf16 %v6042, %v6041
      %v6077 = vpack.c.bf16 %v6044, %v6043
      %v6078 = vpack.c.bf16 %v6046, %v6045
      %v6111 = vunpack.c.l.b16 %v6047
      %v6112 = vunpack.c.h.b16 %v6047
      %v6113 = vunpack.c.l.b16 %v6048
      %v6114 = vunpack.c.h.b16 %v6048
      %v6115 = vunpack.c.l.b16 %v6049
      %v6116 = vunpack.c.h.b16 %v6049
      %v6117 = vunpack.c.l.b16 %v6050
      %v6118 = vunpack.c.h.b16 %v6050
      %v6119 = vunpack.c.l.b16 %v6051
      %v6120 = vunpack.c.h.b16 %v6051
      %v6121 = vunpack.c.l.b16 %v6052
      %v6122 = vunpack.c.h.b16 %v6052
      %v6123 = vunpack.c.l.b16 %v6053
      %v6124 = vunpack.c.h.b16 %v6053
      %v6125 = vunpack.c.l.b16 %v6054
      %v6126 = vunpack.c.h.b16 %v6054
      %v6127 = vunpack.c.l.b16 %v6055
      %v6128 = vunpack.c.h.b16 %v6055
      %v6129 = vunpack.c.l.b16 %v6056
      %v6130 = vunpack.c.h.b16 %v6056
      %v6131 = vunpack.c.l.b16 %v6057
      %v6132 = vunpack.c.h.b16 %v6057
      %v6133 = vunpack.c.l.b16 %v6058
      %v6134 = vunpack.c.h.b16 %v6058
      %v6135 = vunpack.c.l.b16 %v6059
      %v6136 = vunpack.c.h.b16 %v6059
      %v6137 = vunpack.c.l.b16 %v6060
      %v6138 = vunpack.c.h.b16 %v6060
      %v6139 = vunpack.c.l.b16 %v6061
      %v6140 = vunpack.c.h.b16 %v6061
      %v6141 = vunpack.c.l.b16 %v6062
      %v6142 = vunpack.c.h.b16 %v6062
      %v6143 = vunpack.c.l.b16 %v6063
      %v6144 = vunpack.c.h.b16 %v6063
      %v6145 = vunpack.c.l.b16 %v6064
      %v6146 = vunpack.c.h.b16 %v6064
      %v6147 = vunpack.c.l.b16 %v6065
      %v6148 = vunpack.c.h.b16 %v6065
      %v6149 = vunpack.c.l.b16 %v6066
      %v6150 = vunpack.c.h.b16 %v6066
      %v6151 = vunpack.c.l.b16 %v6067
      %v6152 = vunpack.c.h.b16 %v6067
      %v6153 = vunpack.c.l.b16 %v6068
      %v6154 = vunpack.c.h.b16 %v6068
      %v6155 = vunpack.c.l.b16 %v6069
      %v6156 = vunpack.c.h.b16 %v6069
      %v6157 = vunpack.c.l.b16 %v6070
      %v6158 = vunpack.c.h.b16 %v6070
      %v6159 = vunpack.c.l.b16 %v6071
      %v6160 = vunpack.c.h.b16 %v6071
      %v6161 = vunpack.c.l.b16 %v6072
      %v6162 = vunpack.c.h.b16 %v6072
      %v6163 = vunpack.c.l.b16 %v6073
      %v6164 = vunpack.c.h.b16 %v6073
      %v6165 = vunpack.c.l.b16 %v6074
      %v6166 = vunpack.c.h.b16 %v6074
      %v6167 = vunpack.c.l.b16 %v6075
      %v6168 = vunpack.c.h.b16 %v6075
      %v6169 = vunpack.c.l.b16 %v6076
      %v6170 = vunpack.c.h.b16 %v6076
      %v6171 = vunpack.c.l.b16 %v6077
      %v6172 = vunpack.c.h.b16 %v6077
      %v6173 = vunpack.c.l.b16 %v6078
      %v6174 = vunpack.c.h.b16 %v6078
      %v6175 = vpack.c.b16 %v6111, %v6111
      %v6176 = vpack.c.b16 %v6112, %v6112
      %v6177 = vpack.c.b16 %v6113, %v6113
      %v6178 = vpack.c.b16 %v6114, %v6114
      %v6179 = vpack.c.b16 %v6115, %v6115
      %v6180 = vpack.c.b16 %v6116, %v6116
      %v6181 = vpack.c.b16 %v6117, %v6117
      %v6182 = vpack.c.b16 %v6118, %v6118
      %v6183 = vpack.c.b16 %v6119, %v6119
      %v6184 = vpack.c.b16 %v6120, %v6120
      %v6185 = vpack.c.b16 %v6121, %v6121
      %v6186 = vpack.c.b16 %v6122, %v6122
      %v6187 = vpack.c.b16 %v6123, %v6123
      %v6188 = vpack.c.b16 %v6124, %v6124
      %v6189 = vpack.c.b16 %v6125, %v6125
      %v6190 = vpack.c.b16 %v6126, %v6126
      %v6191 = vpack.c.b16 %v6127, %v6127
      %v6192 = vpack.c.b16 %v6128, %v6128
      %v6193 = vpack.c.b16 %v6129, %v6129
      %v6194 = vpack.c.b16 %v6130, %v6130
      %v6195 = vpack.c.b16 %v6131, %v6131
      %v6196 = vpack.c.b16 %v6132, %v6132
      %v6197 = vpack.c.b16 %v6133, %v6133
      %v6198 = vpack.c.b16 %v6134, %v6134
      %v6199 = vpack.c.b16 %v6135, %v6135
      %v6200 = vpack.c.b16 %v6136, %v6136
      %v6201 = vpack.c.b16 %v6137, %v6137
      %v6202 = vpack.c.b16 %v6138, %v6138
      %v6203 = vpack.c.b16 %v6139, %v6139
      %v6204 = vpack.c.b16 %v6140, %v6140
      %v6205 = vpack.c.b16 %v6141, %v6141
      %v6206 = vpack.c.b16 %v6142, %v6142
      %v6207 = vpack.c.b16 %v6143, %v6143
      %v6208 = vpack.c.b16 %v6144, %v6144
      %v6209 = vpack.c.b16 %v6145, %v6145
      %v6210 = vpack.c.b16 %v6146, %v6146
      %v6211 = vpack.c.b16 %v6147, %v6147
      %v6212 = vpack.c.b16 %v6148, %v6148
      %v6213 = vpack.c.b16 %v6149, %v6149
      %v6214 = vpack.c.b16 %v6150, %v6150
      %v6215 = vpack.c.b16 %v6151, %v6151
      %v6216 = vpack.c.b16 %v6152, %v6152
      %v6217 = vpack.c.b16 %v6153, %v6153
      %v6218 = vpack.c.b16 %v6154, %v6154
      %v6219 = vpack.c.b16 %v6155, %v6155
      %v6220 = vpack.c.b16 %v6156, %v6156
      %v6221 = vpack.c.b16 %v6157, %v6157
      %v6222 = vpack.c.b16 %v6158, %v6158
      %v6223 = vpack.c.b16 %v6159, %v6159
      %v6224 = vpack.c.b16 %v6160, %v6160
      %v6225 = vpack.c.b16 %v6161, %v6161
      %v6226 = vpack.c.b16 %v6162, %v6162
      %v6227 = vpack.c.b16 %v6163, %v6163
      %v6228 = vpack.c.b16 %v6164, %v6164
      %v6229 = vpack.c.b16 %v6165, %v6165
      %v6230 = vpack.c.b16 %v6166, %v6166
      %v6231 = vpack.c.b16 %v6167, %v6167
      %v6232 = vpack.c.b16 %v6168, %v6168
      %v6233 = vpack.c.b16 %v6169, %v6169
      %v6234 = vpack.c.b16 %v6170, %v6170
      %v6235 = vpack.c.b16 %v6171, %v6171
      %v6236 = vpack.c.b16 %v6172, %v6172
      %v6237 = vpack.c.b16 %v6173, %v6173
      %v6238 = vpack.c.b16 %v6174, %v6174
      %6303 = vst [vmem:[%s306] sm:$0xf] %v6175
      %6304 = vst [vmem:[%s306 + $0x4] sm:$0xf] %v6176
      %6305 = vst [vmem:[%s306 + $0x8] sm:$0xf] %v6177
      %6306 = vst [vmem:[%s306 + $0xc] sm:$0xf] %v6178
      %6307 = vst [vmem:[%s306 + $0x10] sm:$0xf] %v6179
      %6308 = vst [vmem:[%s306 + $0x14] sm:$0xf] %v6180
      %6309 = vst [vmem:[%s306 + $0x18] sm:$0xf] %v6181
      %6310 = vst [vmem:[%s306 + $0x1c] sm:$0xf] %v6182
      %6311 = vst [vmem:[%s306 + $0x20] sm:$0xf] %v6183
      %6312 = vst [vmem:[%s306 + $0x24] sm:$0xf] %v6184
      %6313 = vst [vmem:[%s306 + $0x28] sm:$0xf] %v6185
      %6314 = vst [vmem:[%s306 + $0x2c] sm:$0xf] %v6186
      %6315 = vst [vmem:[%s306 + $0x30] sm:$0xf] %v6187
      %6316 = vst [vmem:[%s306 + $0x34] sm:$0xf] %v6188
      %6317 = vst [vmem:[%s306 + $0x38] sm:$0xf] %v6189
      %6318 = vst [vmem:[%s306 + $0x3c] sm:$0xf] %v6190
      %6319 = vst [vmem:[%s306 + $0x40] sm:$0xf] %v6191
      %6320 = vst [vmem:[%s306 + $0x44] sm:$0xf] %v6192
      %6321 = vst [vmem:[%s306 + $0x48] sm:$0xf] %v6193
      %6322 = vst [vmem:[%s306 + $0x4c] sm:$0xf] %v6194
      %6323 = vst [vmem:[%s306 + $0x50] sm:$0xf] %v6195
      %6324 = vst [vmem:[%s306 + $0x54] sm:$0xf] %v6196
      %6325 = vst [vmem:[%s306 + $0x58] sm:$0xf] %v6197
      %6326 = vst [vmem:[%s306 + $0x5c] sm:$0xf] %v6198
      %6327 = vst [vmem:[%s306 + $0x60] sm:$0xf] %v6199
      %6328 = vst [vmem:[%s306 + $0x64] sm:$0xf] %v6200
      %6329 = vst [vmem:[%s306 + $0x68] sm:$0xf] %v6201
      %6330 = vst [vmem:[%s306 + $0x6c] sm:$0xf] %v6202
      %6331 = vst [vmem:[%s306 + $0x70] sm:$0xf] %v6203
      %6332 = vst [vmem:[%s306 + $0x74] sm:$0xf] %v6204
      %6333 = vst [vmem:[%s306 + $0x78] sm:$0xf] %v6205
      %6334 = vst [vmem:[%s306 + $0x7c] sm:$0xf] %v6206
      %6335 = vst [vmem:[%s306 + $0x80] sm:$0xf] %v6207
      %6336 = vst [vmem:[%s306 + $0x84] sm:$0xf] %v6208
      %6337 = vst [vmem:[%s306 + $0x88] sm:$0xf] %v6209
      %6338 = vst [vmem:[%s306 + $0x8c] sm:$0xf] %v6210
      %6339 = vst [vmem:[%s306 + $0x90] sm:$0xf] %v6211
      %6340 = vst [vmem:[%s306 + $0x94] sm:$0xf] %v6212
      %6341 = vst [vmem:[%s306 + $0x98] sm:$0xf] %v6213
      %6342 = vst [vmem:[%s306 + $0x9c] sm:$0xf] %v6214
      %6343 = vst [vmem:[%s306 + $0xa0] sm:$0xf] %v6215
      %6344 = vst [vmem:[%s306 + $0xa4] sm:$0xf] %v6216
      %6345 = vst [vmem:[%s306 + $0xa8] sm:$0xf] %v6217
      %6346 = vst [vmem:[%s306 + $0xac] sm:$0xf] %v6218
      %6347 = vst [vmem:[%s306 + $0xb0] sm:$0xf] %v6219
      %6348 = vst [vmem:[%s306 + $0xb4] sm:$0xf] %v6220
      %6349 = vst [vmem:[%s306 + $0xb8] sm:$0xf] %v6221
      %6350 = vst [vmem:[%s306 + $0xbc] sm:$0xf] %v6222
      %6351 = vst [vmem:[%s306 + $0xc0] sm:$0xf] %v6223
      %6352 = vst [vmem:[%s306 + $0xc4] sm:$0xf] %v6224
      %6353 = vst [vmem:[%s306 + $0xc8] sm:$0xf] %v6225
      %6354 = vst [vmem:[%s306 + $0xcc] sm:$0xf] %v6226
      %6355 = vst [vmem:[%s306 + $0xd0] sm:$0xf] %v6227
      %6356 = vst [vmem:[%s306 + $0xd4] sm:$0xf] %v6228
      %6357 = vst [vmem:[%s306 + $0xd8] sm:$0xf] %v6229
      %6358 = vst [vmem:[%s306 + $0xdc] sm:$0xf] %v6230
      %6359 = vst [vmem:[%s306 + $0xe0] sm:$0xf] %v6231
      %6360 = vst [vmem:[%s306 + $0xe4] sm:$0xf] %v6232
      %6361 = vst [vmem:[%s306 + $0xe8] sm:$0xf] %v6233
      %6362 = vst [vmem:[%s306 + $0xec] sm:$0xf] %v6234
      %6363 = vst [vmem:[%s306 + $0xf0] sm:$0xf] %v6235
      %6364 = vst [vmem:[%s306 + $0xf4] sm:$0xf] %v6236
      %6365 = vst [vmem:[%s306 + $0xf8] sm:$0xf] %v6237
      %6366 = vst [vmem:[%s306 + $0xfc] sm:$0xf] %v6238
      %s6367 = smul.u32 64, %s20
      %p6368 = scmp.lt.s32.totalorder %s6367, 127
      %s6369 = scalar_select %p6368, %s6367, 127
      %p6370 = scmp.lt.s32.totalorder %s19, 0
      %s6371 = scalar_select %p6370, %s19, 0
      %s6372 = sadd.s32 %s6371, %s6369
      %s6373 = smul.addr %s6372, 4
      %s6374 = scalar_lea.vmem %s4, %s6373
      // Predicated region
      $region37: #{residual_block_forward.2} parent=35 // pred_check
        %p6375 = pneg %p155
      $region38: #{residual_block_forward.2} parent=35 // pred_check_branch
        %6377 = sbr.rel (%p6375) target = $region40
      $region39: #{residual_block_forward.2} parent=35 // pred_region
        %s6378 = smul.u32 64, %s20
      $region40: #{residual_block_forward.2} parent=35 // pred_fallthru
        _
    $region36: #{residual_block_forward.2} parent=5 // pred_fallthru
      _
    %p6379 = scmp.le.s32.totalorder 2, %s10
    // Predicated region
    $region41: #{residual_block_forward.2} parent=5 // pred_check
      %p6380 = pneg %p6379
    $region42: #{residual_block_forward.2} parent=5 // pred_check_branch
      %6382 = sbr.rel (%p6380) target = $region44
    $region43: #{residual_block_forward.2} parent=5 // pred_region
      %s6383 = ssub.s32 %s10, 2
      // Predicated region
      $region45: #{residual_block_forward.2} parent=43 // pred_check
        %p6384 = pneg %p161
      $region46: #{residual_block_forward.2} parent=43 // pred_check_branch
        %6386 = sbr.rel (%p6384) target = $region48
      $region47: #{residual_block_forward.2} parent=43 // pred_region
        %s6387 = smul.u32 64, %s22
        %p6388 = scmp.lt.s32.totalorder %s6387, 127
        %s6389 = scalar_select %p6388, %s6387, 127
        %p6390 = scmp.lt.s32.totalorder %s21, 0
        %s6391 = scalar_select %p6390, %s21, 0
        %s6392 = sadd.s32 %s6391, %s6389
        %s6393 = smul.addr %s6392, 4
        %s6394 = scalar_lea.vmem %s4, %s6393
      $region48: #{residual_block_forward.2} parent=43 // pred_fallthru
        _
    $region44: #{residual_block_forward.2} parent=5 // pred_fallthru
      _
  $region6: #{residual_block_forward.2} parent=0 // loop_footer
    %s14 = sadd.s32 1, %s10
  $region7: #{residual_block_forward.2} parent=0 // loop_footer_branch
    %9 = sbr.rel target = $region3
  $region8: #{residual_block_forward.2} parent=0 // loop_exit
    _

// kernel: residual_block_forward.3
$region0: #{residual_block_forward.3}
  #allocation0 [shape = 'u32[]', space=smem, size = 0x4, offset = 0x4, fixed_abs, tag = 'smem constant byte address 0x4 - core index']
  #allocation1 [shape = 'u32[144,128]{1,0:T(1,128)}', space=vmem, size = 0x12000, scoped, tag = 'internal scratch']
  #allocation2 [shape = 'bf16[576,128]{1,0:T(16,128)(2,1)}', space=vmem, size = 0x24000, scoped, tag = 'scratch operand']
  %s0 = inlined_call_operand.vmem [shape: bf16[1088,128], index: 0, kind: input, shape index: {}, may-alias: {0,1}]
  %s1 = inlined_call_operand.vmem [shape: bf16[1088,128], index: 1, kind: input, shape index: {}, may-alias: {0,1}]
  %s2 = inlined_call_operand.vmem [shape: bf16[9,128,128], index: 2, kind: input, shape index: {}]
  %s3 = inlined_call_operand.vmem [shape: bf16[1024,128], index: 3, kind: input, shape index: {}]
  %s4 = inlined_call_operand.vmem [shape: bf16[128,128], index: 4, kind: input, shape index: {}]
  %s5 = inlined_call_operand.vmem [shape: f32[1,128], index: 5, kind: input, shape index: {}]
  %s6 = inlined_call_operand.vmem [shape: f32[1024,128], index: 6, kind: output, shape index: {}]
  %s7 = sld [smem:[#allocation0]]
  $region57: #{residual_block_forward.3} parent=0
    _
  %s9 = ssub.s32 1, %s7
  %s10 = scalar_select 0, %s9, %s7
  loop: start=0, step=1, limit=4
  $region2: #{residual_block_forward.3} parent=0 // loop_pre_header
    _
  $region3: #{residual_block_forward.3} parent=0 // loop_header
    %s12 = sphi 0, %s16
    %p13 = scmp.ge.s32.totalorder %s12, 4
    %s19 = sphi 0, %s31
    %s20 = sphi 0, %s27
    %s21 = sphi 0, %s19
    %s22 = sphi 0, %s20
    %s23 = sphi 0, %s21
    %s24 = sphi 0, %s22
    %s34 = sphi 0, %s36
    %s37 = sphi 0, %s34
    %s38 = sphi 0, %s37
    %s54 = sphi 0, %s38
    %s64 = sphi 0, %s66
    %s67 = sphi 0, %s64
    %s68 = sphi 0, %s67
    %s84 = sphi 0, %s68
    %s90 = sphi 0, %s92
    %s93 = sphi 0, %s90
    %s94 = sphi 0, %s93
    %s110 = sphi 0, %s94
    %s116 = sphi 0, %s118
    %s119 = sphi 0, %s116
    %s120 = sphi 0, %s119
    %s136 = sphi 0, %s120
    %s142 = sphi 0, %s144
    %s145 = sphi 0, %s142
    %s146 = sphi 0, %s145
    %s162 = sphi 0, %s146
    %s168 = sphi 0, %s170
    %s171 = sphi 0, %s168
    %s172 = sphi 0, %s171
    %s188 = sphi 0, %s172
    %s196 = sphi 0, %s198
    %s199 = sphi 0, %s196
    %s200 = sphi 0, %s199
    %s216 = sphi 0, %s200
  $region4: #{residual_block_forward.3} parent=0 // loop_header_branch
    %15 = sbr.rel (%p13) target = $region8
  $region5: #{residual_block_forward.3} parent=0 // loop_body
    %s17 = ssub.s32 %s12, 1
    %s18 = ssub.s32 %s12, 2
    %s25 = sadd.s32 1, %s20
    %p26 = scmp.ge.s32.totalorder %s25, 2
    %s27 = scalar_select %p26, 0, %s25
    %s28 = sadd.s32 1, %s19
    %s29 = scalar_select %p26, %s28, %s19
    %p30 = scmp.ge.s32.totalorder %s29, 1
    %s31 = scalar_select %p30, 0, %s29
    %s32 = ssub.s32 %s20, %s27
    %p33 = scmp.eq.s32.totalorder %s32, 0
    %s35 = sadd.s32 %s34, 1
    %s36 = scalar_select %p33, %s34, %s35
    %p39 = pneg %p33
    %p40 = scmp.eq.s32.totalorder %s12, 1
    %p41 = por %p39, %p40
    %p42 = scmp.ne.s32.totalorder %s34, %s37
    %p43 = scmp.eq.s32.totalorder %s12, 0
    %p44 = por %p42, %p43
    %p45 = scmp.ne.s32.totalorder %s34, %s37
    %p46 = scmp.eq.s32.totalorder %s17, 1
    %p47 = por %p45, %p46
    %p48 = scmp.ne.s32.totalorder %s37, %s38
    %p49 = scmp.eq.s32.totalorder %s17, 0
    %p50 = por %p48, %p49
    %p51 = scmp.ne.s32.totalorder %s37, %s38
    %p52 = scmp.eq.s32.totalorder %s18, 1
    %p53 = por %p51, %p52
    %p55 = scmp.ne.s32.totalorder %s38, %s54
    %p56 = scmp.eq.s32.totalorder %s18, 0
    %p57 = por %p55, %p56
    %s58 = sadd.s32 %s20, 1
    %s59 = smul.u32 %s58, 8
    %s60 = sadd.s32 %s27, 1
    %s61 = smul.u32 %s60, 8
    %s62 = ssub.s32 %s59, %s61
    %p63 = scmp.eq.s32.totalorder %s62, 0
    %s65 = sadd.s32 %s64, 1
    %s66 = scalar_select %p63, %s64, %s65
    %p69 = pneg %p63
    %p70 = scmp.eq.s32.totalorder %s12, 1
    %p71 = por %p69, %p70
    %p72 = scmp.ne.s32.totalorder %s64, %s67
    %p73 = scmp.eq.s32.totalorder %s12, 0
    %p74 = por %p72, %p73
    %p75 = scmp.ne.s32.totalorder %s64, %s67
    %p76 = scmp.eq.s32.totalorder %s17, 1
    %p77 = por %p75, %p76
    %p78 = scmp.ne.s32.totalorder %s67, %s68
    %p79 = scmp.eq.s32.totalorder %s17, 0
    %p80 = por %p78, %p79
    %p81 = scmp.ne.s32.totalorder %s67, %s68
    %p82 = scmp.eq.s32.totalorder %s18, 1
    %p83 = por %p81, %p82
    %p85 = scmp.ne.s32.totalorder %s68, %s84
    %p86 = scmp.eq.s32.totalorder %s18, 0
    %p87 = por %p85, %p86
    %s88 = ssub.s32 %s19, %s31
    %p89 = scmp.eq.s32.totalorder %s88, 0
    %s91 = sadd.s32 %s90, 1
    %s92 = scalar_select %p89, %s90, %s91
    %p95 = pneg %p89
    %p96 = scmp.eq.s32.totalorder %s12, 1
    %p97 = por %p95, %p96
    %p98 = scmp.ne.s32.totalorder %s90, %s93
    %p99 = scmp.eq.s32.totalorder %s12, 0
    %p100 = por %p98, %p99
    %p101 = scmp.ne.s32.totalorder %s90, %s93
    %p102 = scmp.eq.s32.totalorder %s17, 1
    %p103 = por %p101, %p102
    %p104 = scmp.ne.s32.totalorder %s93, %s94
    %p105 = scmp.eq.s32.totalorder %s17, 0
    %p106 = por %p104, %p105
    %p107 = scmp.ne.s32.totalorder %s93, %s94
    %p108 = scmp.eq.s32.totalorder %s18, 1
    %p109 = por %p107, %p108
    %p111 = scmp.ne.s32.totalorder %s94, %s110
    %p112 = scmp.eq.s32.totalorder %s18, 0
    %p113 = por %p111, %p112
    %s114 = ssub.s32 %s20, %s27
    %p115 = scmp.eq.s32.totalorder %s114, 0
    %s117 = sadd.s32 %s116, 1
    %s118 = scalar_select %p115, %s116, %s117
    %p121 = pneg %p115
    %p122 = scmp.eq.s32.totalorder %s12, 1
    %p123 = por %p121, %p122
    %p124 = scmp.ne.s32.totalorder %s116, %s119
    %p125 = scmp.eq.s32.totalorder %s12, 0
    %p126 = por %p124, %p125
    %p127 = scmp.ne.s32.totalorder %s116, %s119
    %p128 = scmp.eq.s32.totalorder %s17, 1
    %p129 = por %p127, %p128
    %p130 = scmp.ne.s32.totalorder %s119, %s120
    %p131 = scmp.eq.s32.totalorder %s17, 0
    %p132 = por %p130, %p131
    %p133 = scmp.ne.s32.totalorder %s119, %s120
    %p134 = scmp.eq.s32.totalorder %s18, 1
    %p135 = por %p133, %p134
    %p137 = scmp.ne.s32.totalorder %s120, %s136
    %p138 = scmp.eq.s32.totalorder %s18, 0
    %p139 = por %p137, %p138
    %s140 = ssub.s32 %s19, %s31
    %p141 = scmp.eq.s32.totalorder %s140, 0
    %s143 = sadd.s32 %s142, 1
    %s144 = scalar_select %p141, %s142, %s143
    %p147 = pneg %p141
    %p148 = scmp.eq.s32.totalorder %s12, 1
    %p149 = por %p147, %p148
    %p150 = scmp.ne.s32.totalorder %s142, %s145
    %p151 = scmp.eq.s32.totalorder %s12, 0
    %p152 = por %p150, %p151
    %p153 = scmp.ne.s32.totalorder %s142, %s145
    %p154 = scmp.eq.s32.totalorder %s17, 1
    %p155 = por %p153, %p154
    %p156 = scmp.ne.s32.totalorder %s145, %s146
    %p157 = scmp.eq.s32.totalorder %s17, 0
    %p158 = por %p156, %p157
    %p159 = scmp.ne.s32.totalorder %s145, %s146
    %p160 = scmp.eq.s32.totalorder %s18, 1
    %p161 = por %p159, %p160
    %p163 = scmp.ne.s32.totalorder %s146, %s162
    %p164 = scmp.eq.s32.totalorder %s18, 0
    %p165 = por %p163, %p164
    %s166 = ssub.s32 %s19, %s31
    %p167 = scmp.eq.s32.totalorder %s166, 0
    %s169 = sadd.s32 %s168, 1
    %s170 = scalar_select %p167, %s168, %s169
    %p173 = pneg %p167
    %p174 = scmp.eq.s32.totalorder %s12, 1
    %p175 = por %p173, %p174
    %p176 = scmp.ne.s32.totalorder %s168, %s171
    %p177 = scmp.eq.s32.totalorder %s12, 0
    %p178 = por %p176, %p177
    %p179 = scmp.ne.s32.totalorder %s168, %s171
    %p180 = scmp.eq.s32.totalorder %s17, 1
    %p181 = por %p179, %p180
    %p182 = scmp.ne.s32.totalorder %s171, %s172
    %p183 = scmp.eq.s32.totalorder %s17, 0
    %p184 = por %p182, %p183
    %p185 = scmp.ne.s32.totalorder %s171, %s172
    %p186 = scmp.eq.s32.totalorder %s18, 1
    %p187 = por %p185, %p186
    %p189 = scmp.ne.s32.totalorder %s172, %s188
    %p190 = scmp.eq.s32.totalorder %s18, 0
    %p191 = por %p189, %p190
    %s192 = ssub.s32 %s20, %s27
    %s193 = ssub.s32 %s19, %s31
    %s194 = sor.u32 %s192, %s193
    %p195 = scmp.eq.s32.totalorder %s194, 0
    %s197 = sadd.s32 %s196, 1
    %s198 = scalar_select %p195, %s196, %s197
    %p201 = pneg %p195
    %p202 = scmp.eq.s32.totalorder %s12, 1
    %p203 = por %p201, %p202
    %p204 = scmp.ne.s32.totalorder %s196, %s199
    %p205 = scmp.eq.s32.totalorder %s12, 0
    %p206 = por %p204, %p205
    %p207 = scmp.ne.s32.totalorder %s196, %s199
    %p208 = scmp.eq.s32.totalorder %s17, 1
    %p209 = por %p207, %p208
    %p210 = scmp.ne.s32.totalorder %s199, %s200
    %p211 = scmp.eq.s32.totalorder %s17, 0
    %p212 = por %p210, %p211
    %p213 = scmp.ne.s32.totalorder %s199, %s200
    %p214 = scmp.eq.s32.totalorder %s18, 1
    %p215 = por %p213, %p214
    %p217 = scmp.ne.s32.totalorder %s200, %s216
    %p218 = scmp.eq.s32.totalorder %s18, 0
    %p219 = por %p217, %p218
    %p220 = scmp.le.s32.totalorder 1, %s12
    %p221 = scmp.lt.s32.totalorder %s12, 3
    %p222 = pnand %p220, %p221
    %p223 = pneg %p222
    // Predicated region
    $region9: #{residual_block_forward.3} parent=5 // pred_check
      _
    $region10: #{residual_block_forward.3} parent=5 // pred_check_branch
      %225 = sbr.rel (%p222) target = $region12
    $region11: #{residual_block_forward.3} parent=5 // pred_region
      %s226 = ssub.s32 %s12, 1
      // Predicated region
      $region13: #{residual_block_forward.3} parent=11 // pred_check
        %p227 = pneg %p106
      $region14: #{residual_block_forward.3} parent=11 // pred_check_branch
        %229 = sbr.rel (%p227) target = $region16
      $region15: #{residual_block_forward.3} parent=11 // pred_region
        %p230 = scmp.lt.s32.totalorder %s21, 0
        %s231 = scalar_select %p230, %s21, 0
        %s232 = smul.addr %s231, 4
        %s233 = scalar_lea.vmem %s2, %s232
      $region16: #{residual_block_forward.3} parent=11 // pred_fallthru
        _
      // Predicated region
      $region17: #{residual_block_forward.3} parent=11 // pred_check
        %p234 = pneg %p158
      $region18: #{residual_block_forward.3} parent=11 // pred_check_branch
        %236 = sbr.rel (%p234) target = $region20
      $region19: #{residual_block_forward.3} parent=11 // pred_region
        %p237 = scmp.lt.s32.totalorder %s21, 0
        %s238 = scalar_select %p237, %s21, 0
        %s239 = smul.addr %s238, 4
        %s240 = scalar_lea.vmem %s4, %s239
      $region20: #{residual_block_forward.3} parent=11 // pred_fallthru
        _
      // Predicated region
      $region21: #{residual_block_forward.3} parent=11 // pred_check
        %p241 = pneg %p184
      $region22: #{residual_block_forward.3} parent=11 // pred_check_branch
        %243 = sbr.rel (%p241) target = $region24
      $region23: #{residual_block_forward.3} parent=11 // pred_region
        %p244 = scmp.lt.s32.totalorder %s21, 0
        %s245 = scalar_select %p244, %s21, 0
        %s246 = scalar_lea.vmem %s5, %s245
      $region24: #{residual_block_forward.3} parent=11 // pred_fallthru
        _
    $region12: #{residual_block_forward.3} parent=5 // pred_fallthru
      _
    %p247 = scmp.lt.s32.totalorder %s12, 2
    // Predicated region
    $region25: #{residual_block_forward.3} parent=5 // pred_check
      %p248 = pneg %p247
    $region26: #{residual_block_forward.3} parent=5 // pred_check_branch
      %250 = sbr.rel (%p248) target = $region28
    $region27: #{residual_block_forward.3} parent=5 // pred_region
      // Predicated region
      $region29: #{residual_block_forward.3} parent=27 // pred_check
        %p251 = pneg %p44
      $region30: #{residual_block_forward.3} parent=27 // pred_check_branch
        %253 = sbr.rel (%p251) target = $region32
      $region31: #{residual_block_forward.3} parent=27 // pred_region
        %s254 = smul.u32 64, %s20
        %s255 = ssub.s32 136, %s254
        %p256 = scmp.lt.s32.totalorder %s255, 64
        %s257 = scalar_select %p256, %s255, 64
        %s258 = smul.u32 64, %s257
        %p259 = scmp.lt.s32.totalorder %s254, 135
        %s260 = scalar_select %p259, %s254, 135
        %s261 = smul.addr %s260, 4
        %s262 = scalar_lea.vmem %s0, %s261
        %s263 = smul.u32 64, %s20
        %s264 = ssub.s32 136, %s263
        %p265 = scmp.lt.s32.totalorder %s264, 64
        %s266 = scalar_select %p265, %s264, 64
        %s267 = smul.u32 64, %s266
      $region32: #{residual_block_forward.3} parent=27 // pred_fallthru
        _
      // Predicated region
      $region33: #{residual_block_forward.3} parent=27 // pred_check
        %p268 = pneg %p74
      $region34: #{residual_block_forward.3} parent=27 // pred_check_branch
        %270 = sbr.rel (%p268) target = $region36
      $region35: #{residual_block_forward.3} parent=27 // pred_region
        %s271 = sadd.s32 %s20, 1
        %s272 = smul.u32 %s271, 8
        %s273 = smul.u32 8, %s272
        %p274 = scmp.lt.s32.totalorder %s273, 135
        %s275 = scalar_select %p274, %s273, 135
        %s276 = smul.addr %s275, 4
        %s277 = scalar_lea.vmem %s1, %s276
        %s278 = sadd.s32 %s20, 1
        %s279 = smul.u32 %s278, 8
        %s280 = smul.u32 8, %s279
      $region36: #{residual_block_forward.3} parent=27 // pred_fallthru
        _
      // Predicated region
      $region37: #{residual_block_forward.3} parent=27 // pred_check
        %p281 = pneg %p126
      $region38: #{residual_block_forward.3} parent=27 // pred_check_branch
        %283 = sbr.rel (%p281) target = $region40
      $region39: #{residual_block_forward.3} parent=27 // pred_region
        %s284 = smul.u32 64, %s20
        %p285 = scmp.lt.s32.totalorder %s284, 127
        %s286 = scalar_select %p285, %s284, 127
        %s287 = smul.addr %s286, 4
        %s288 = scalar_lea.vmem %s3, %s287
        %s289 = smul.u32 64, %s20
      $region40: #{residual_block_forward.3} parent=27 // pred_fallthru
        _
    $region28: #{residual_block_forward.3} parent=5 // pred_fallthru
      _
    %p290 = scmp.le.s32.totalorder 1, %s12
    %p291 = scmp.lt.s32.totalorder %s12, 3
    %p292 = pnand %p290, %p291
    %p293 = pneg %p292
    // Predicated region
    $region41: #{residual_block_forward.3} parent=5 // pred_check
      _
    $region42: #{residual_block_forward.3} parent=5 // pred_check_branch
      %295 = sbr.rel (%p292) target = $region44
    $region43: #{residual_block_forward.3} parent=5 // pred_region
      %s296 = ssub.s32 %s12, 1
      %s297 = smul.u32 64, %s22
      %s298 = ssub.s32 136, %s297
      %p299 = scmp.lt.s32.totalorder %s298, 64
      %s300 = scalar_select %p299, %s298, 64
      %s301 = smul.u32 64, %s300
      %p302 = scmp.lt.s32.totalorder %s297, 135
      %s303 = scalar_select %p302, %s297, 135
      %s304 = smul.addr %s303, 4
      %s305 = scalar_lea.vmem %s0, %s304
      %p306 = pneg %p50
      %p307 = pneg %p47
      %s308 = sadd.s32 %s22, 1
      %s309 = smul.u32 %s308, 8
      %s310 = smul.u32 8, %s309
      %p311 = scmp.lt.s32.totalorder %s310, 135
      %s312 = scalar_select %p311, %s310, 135
      %s313 = smul.addr %s312, 4
      %s314 = scalar_lea.vmem %s1, %s313
      %p315 = pneg %p80
      %p316 = pneg %p77
      %p317 = scmp.lt.s32.totalorder %s21, 0
      %s318 = scalar_select %p317, %s21, 0
      %s319 = smul.addr %s318, 4
      %s320 = scalar_lea.vmem %s2, %s319
      %p321 = pneg %p106
      %p322 = pneg %p103
      %s323 = smul.u32 64, %s22
      %p324 = scmp.lt.s32.totalorder %s323, 127
      %s325 = scalar_select %p324, %s323, 127
      %s326 = smul.addr %s325, 4
      %s327 = scalar_lea.vmem %s3, %s326
      %p328 = pneg %p132
      %p329 = pneg %p129
      %p330 = scmp.lt.s32.totalorder %s21, 0
      %s331 = scalar_select %p330, %s21, 0
      %s332 = smul.addr %s331, 4
      %s333 = scalar_lea.vmem %s4, %s332
      %p334 = pneg %p158
      %p335 = pneg %p155
      %p336 = scmp.lt.s32.totalorder %s21, 0
      %s337 = scalar_select %p336, %s21, 0
      %s338 = scalar_lea.vmem %s5, %s337
      %p339 = pneg %p184
      %p340 = pneg %p181
      %p341 = pneg %p212
      %p342 = pneg %p209
      %s343 = smul.u32 64, %s22
      %p344 = scmp.lt.s32.totalorder %s343, 127
      %s345 = scalar_select %p344, %s343, 127
      %p346 = scmp.lt.s32.totalorder %s21, 0
      %s347 = scalar_select %p346, %s21, 0
      %s348 = sadd.s32 %s347, %s345
      %s349 = smul.addr %s348, 8
      %s350 = scalar_lea.vmem %s6, %s349
      %s351 = smul.u32 64, %s22
      %s352 = ssub.s32 136, %s351
      %p353 = scmp.lt.s32.totalorder %s352, 64
      %s354 = scalar_select %p353, %s352, 64
      %s355 = smul.u32 64, %s354
      %p356 = scmp.lt.s32.totalorder %s351, 135
      %s357 = scalar_select %p356, %s351, 135
      %s358 = smul.addr %s357, 4
      %s359 = scalar_lea.vmem %s0, %s358
      %s360 = smul.u32 64, %s22
      %s361 = ssub.s32 136, %s360
      %p362 = scmp.lt.s32.totalorder %s361, 64
      %s363 = scalar_select %p362, %s361, 64
      %s364 = smul.u32 64, %s363
      %s365 = sadd.s32 %s22, 1
      %s366 = smul.u32 %s365, 8
      %s367 = smul.u32 8, %s366
      %p368 = scmp.lt.s32.totalorder %s367, 135
      %s369 = scalar_select %p368, %s367, 135
      %s370 = smul.addr %s369, 4
      %s371 = scalar_lea.vmem %s1, %s370
      %s372 = sadd.s32 %s22, 1
      %s373 = smul.u32 %s372, 8
      %s374 = smul.u32 8, %s373
      %p375 = scmp.lt.s32.totalorder %s21, 0
      %s376 = scalar_select %p375, %s21, 0
      %s377 = smul.addr %s376, 4
      %s378 = scalar_lea.vmem %s2, %s377
      %s379 = smul.u32 64, %s22
      %p380 = scmp.lt.s32.totalorder %s379, 127
      %s381 = scalar_select %p380, %s379, 127
      %s382 = smul.addr %s381, 4
      %s383 = scalar_lea.vmem %s3, %s382
      %s384 = smul.u32 64, %s22
      %p385 = scmp.lt.s32.totalorder %s21, 0
      %s386 = scalar_select %p385, %s21, 0
      %s387 = smul.addr %s386, 4
      %s388 = scalar_lea.vmem %s4, %s387
      %p389 = scmp.lt.s32.totalorder %s21, 0
      %s390 = scalar_select %p389, %s21, 0
      %s391 = scalar_lea.vmem %s5, %s390
      %s392 = smul.u32 64, %s22
      %p393 = scmp.lt.s32.totalorder %s392, 127
      %s394 = scalar_select %p393, %s392, 127
      %p395 = scmp.lt.s32.totalorder %s21, 0
      %s396 = scalar_select %p395, %s21, 0
      %s397 = sadd.s32 %s396, %s394
      %s398 = smul.addr %s397, 8
      %s399 = scalar_lea.vmem %s6, %s398
      %s400 = smul.u32 64, %s22
      %v402 = vld [vmem:[%s359] sm:$0xf]
      %v403 = vld [vmem:[%s359 + $0x4] sm:$0xf]
      %v404 = vld [vmem:[%s359 + $0x8] sm:$0xf]
      %v405 = vld [vmem:[%s359 + $0xc] sm:$0xf]
      %v406 = vld [vmem:[%s359 + $0x10] sm:$0xf]
      %v407 = vld [vmem:[%s359 + $0x14] sm:$0xf]
      %v408 = vld [vmem:[%s359 + $0x18] sm:$0xf]
      %v409 = vld [vmem:[%s359 + $0x1c] sm:$0xf]
      %v410 = vld [vmem:[%s359 + $0x20] sm:$0xf]
      %v411 = vld [vmem:[%s359 + $0x24] sm:$0xf]
      %v412 = vld [vmem:[%s359 + $0x28] sm:$0xf]
      %v413 = vld [vmem:[%s359 + $0x2c] sm:$0xf]
      %v414 = vld [vmem:[%s359 + $0x30] sm:$0xf]
      %v415 = vld [vmem:[%s359 + $0x34] sm:$0xf]
      %v416 = vld [vmem:[%s359 + $0x38] sm:$0xf]
      %v417 = vld [vmem:[%s359 + $0x3c] sm:$0xf]
      %v418 = vld [vmem:[%s359 + $0x40] sm:$0xf]
      %v419 = vld [vmem:[%s359 + $0x44] sm:$0xf]
      %v420 = vld [vmem:[%s359 + $0x48] sm:$0xf]
      %v421 = vld [vmem:[%s359 + $0x4c] sm:$0xf]
      %v422 = vld [vmem:[%s359 + $0x50] sm:$0xf]
      %v423 = vld [vmem:[%s359 + $0x54] sm:$0xf]
      %v424 = vld [vmem:[%s359 + $0x58] sm:$0xf]
      %v425 = vld [vmem:[%s359 + $0x5c] sm:$0xf]
      %v426 = vld [vmem:[%s359 + $0x60] sm:$0xf]
      %v427 = vld [vmem:[%s359 + $0x64] sm:$0xf]
      %v428 = vld [vmem:[%s359 + $0x68] sm:$0xf]
      %v429 = vld [vmem:[%s359 + $0x6c] sm:$0xf]
      %v430 = vld [vmem:[%s359 + $0x70] sm:$0xf]
      %v431 = vld [vmem:[%s359 + $0x74] sm:$0xf]
      %v432 = vld [vmem:[%s359 + $0x78] sm:$0xf]
      %v433 = vld [vmem:[%s359 + $0x7c] sm:$0xf]
      %v434 = vld [vmem:[%s359 + $0x80] sm:$0xf]
      %v435 = vld [vmem:[%s359 + $0x84] sm:$0xf]
      %v436 = vld [vmem:[%s359 + $0x88] sm:$0xf]
      %v437 = vld [vmem:[%s359 + $0x8c] sm:$0xf]
      %v438 = vld [vmem:[%s359 + $0x90] sm:$0xf]
      %v439 = vld [vmem:[%s359 + $0x94] sm:$0xf]
      %v440 = vld [vmem:[%s359 + $0x98] sm:$0xf]
      %v441 = vld [vmem:[%s359 + $0x9c] sm:$0xf]
      %v442 = vld [vmem:[%s359 + $0xa0] sm:$0xf]
      %v443 = vld [vmem:[%s359 + $0xa4] sm:$0xf]
      %v444 = vld [vmem:[%s359 + $0xa8] sm:$0xf]
      %v445 = vld [vmem:[%s359 + $0xac] sm:$0xf]
      %v446 = vld [vmem:[%s359 + $0xb0] sm:$0xf]
      %v447 = vld [vmem:[%s359 + $0xb4] sm:$0xf]
      %v448 = vld [vmem:[%s359 + $0xb8] sm:$0xf]
      %v449 = vld [vmem:[%s359 + $0xbc] sm:$0xf]
      %v450 = vld [vmem:[%s359 + $0xc0] sm:$0xf]
      %v451 = vld [vmem:[%s359 + $0xc4] sm:$0xf]
      %v452 = vld [vmem:[%s359 + $0xc8] sm:$0xf]
      %v453 = vld [vmem:[%s359 + $0xcc] sm:$0xf]
      %v454 = vld [vmem:[%s359 + $0xd0] sm:$0xf]
      %v455 = vld [vmem:[%s359 + $0xd4] sm:$0xf]
      %v456 = vld [vmem:[%s359 + $0xd8] sm:$0xf]
      %v457 = vld [vmem:[%s359 + $0xdc] sm:$0xf]
      %v458 = vld [vmem:[%s359 + $0xe0] sm:$0xf]
      %v459 = vld [vmem:[%s359 + $0xe4] sm:$0xf]
      %v460 = vld [vmem:[%s359 + $0xe8] sm:$0xf]
      %v461 = vld [vmem:[%s359 + $0xec] sm:$0xf]
      %v462 = vld [vmem:[%s359 + $0xf0] sm:$0xf]
      %v463 = vld [vmem:[%s359 + $0xf4] sm:$0xf]
      %v464 = vld [vmem:[%s359 + $0xf8] sm:$0xf]
      %v465 = vld [vmem:[%s359 + $0xfc] sm:$0xf]
      %v530 = vunpack.c.l.b16 %v402
      %v531 = vunpack.c.l.b16 %v403
      %v532 = vunpack.c.l.b16 %v404
      %v533 = vunpack.c.l.b16 %v405
      %v534 = vunpack.c.l.b16 %v406
      %v535 = vunpack.c.l.b16 %v407
      %v536 = vunpack.c.l.b16 %v408
      %v537 = vunpack.c.l.b16 %v409
      %v538 = vunpack.c.l.b16 %v410
      %v539 = vunpack.c.l.b16 %v411
      %v540 = vunpack.c.l.b16 %v412
      %v541 = vunpack.c.l.b16 %v413
      %v542 = vunpack.c.l.b16 %v414
      %v543 = vunpack.c.l.b16 %v415
      %v544 = vunpack.c.l.b16 %v416
      %v545 = vunpack.c.l.b16 %v417
      %v546 = vunpack.c.l.b16 %v418
      %v547 = vunpack.c.l.b16 %v419
      %v548 = vunpack.c.l.b16 %v420
      %v549 = vunpack.c.l.b16 %v421
      %v550 = vunpack.c.l.b16 %v422
      %v551 = vunpack.c.l.b16 %v423
      %v552 = vunpack.c.l.b16 %v424
      %v553 = vunpack.c.l.b16 %v425
      %v554 = vunpack.c.l.b16 %v426
      %v555 = vunpack.c.l.b16 %v427
      %v556 = vunpack.c.l.b16 %v428
      %v557 = vunpack.c.l.b16 %v429
      %v558 = vunpack.c.l.b16 %v430
      %v559 = vunpack.c.l.b16 %v431
      %v560 = vunpack.c.l.b16 %v432
      %v561 = vunpack.c.l.b16 %v433
      %v562 = vunpack.c.l.b16 %v434
      %v563 = vunpack.c.l.b16 %v435
      %v564 = vunpack.c.l.b16 %v436
      %v565 = vunpack.c.l.b16 %v437
      %v566 = vunpack.c.l.b16 %v438
      %v567 = vunpack.c.l.b16 %v439
      %v568 = vunpack.c.l.b16 %v440
      %v569 = vunpack.c.l.b16 %v441
      %v570 = vunpack.c.l.b16 %v442
      %v571 = vunpack.c.l.b16 %v443
      %v572 = vunpack.c.l.b16 %v444
      %v573 = vunpack.c.l.b16 %v445
      %v574 = vunpack.c.l.b16 %v446
      %v575 = vunpack.c.l.b16 %v447
      %v576 = vunpack.c.l.b16 %v448
      %v577 = vunpack.c.l.b16 %v449
      %v578 = vunpack.c.l.b16 %v450
      %v579 = vunpack.c.l.b16 %v451
      %v580 = vunpack.c.l.b16 %v452
      %v581 = vunpack.c.l.b16 %v453
      %v582 = vunpack.c.l.b16 %v454
      %v583 = vunpack.c.l.b16 %v455
      %v584 = vunpack.c.l.b16 %v456
      %v585 = vunpack.c.l.b16 %v457
      %v586 = vunpack.c.l.b16 %v458
      %v587 = vunpack.c.l.b16 %v459
      %v588 = vunpack.c.l.b16 %v460
      %v589 = vunpack.c.l.b16 %v461
      %v590 = vunpack.c.l.b16 %v462
      %v591 = vunpack.c.l.b16 %v463
      %v592 = vunpack.c.l.b16 %v464
      %v593 = vunpack.c.l.b16 %v465
      %v594 = vpack.c.b16 %v531, %v530
      %v595 = vpack.c.b16 %v533, %v532
      %v596 = vpack.c.b16 %v535, %v534
      %v597 = vpack.c.b16 %v537, %v536
      %v598 = vpack.c.b16 %v539, %v538
      %v599 = vpack.c.b16 %v541, %v540
      %v600 = vpack.c.b16 %v543, %v542
      %v601 = vpack.c.b16 %v545, %v544
      %v602 = vpack.c.b16 %v547, %v546
      %v603 = vpack.c.b16 %v549, %v548
      %v604 = vpack.c.b16 %v551, %v550
      %v605 = vpack.c.b16 %v553, %v552
      %v606 = vpack.c.b16 %v555, %v554
      %v607 = vpack.c.b16 %v557, %v556
      %v608 = vpack.c.b16 %v559, %v558
      %v609 = vpack.c.b16 %v561, %v560
      %v610 = vpack.c.b16 %v563, %v562
      %v611 = vpack.c.b16 %v565, %v564
      %v612 = vpack.c.b16 %v567, %v566
      %v613 = vpack.c.b16 %v569, %v568
      %v614 = vpack.c.b16 %v571, %v570
      %v615 = vpack.c.b16 %v573, %v572
      %v616 = vpack.c.b16 %v575, %v574
      %v617 = vpack.c.b16 %v577, %v576
      %v618 = vpack.c.b16 %v579, %v578
      %v619 = vpack.c.b16 %v581, %v580
      %v620 = vpack.c.b16 %v583, %v582
      %v621 = vpack.c.b16 %v585, %v584
      %v622 = vpack.c.b16 %v587, %v586
      %v623 = vpack.c.b16 %v589, %v588
      %v624 = vpack.c.b16 %v591, %v590
      %v625 = vpack.c.b16 %v593, %v592
      %658 = vst [vmem:[#allocation2] sm:$0xff] %v594
      %659 = vst [vmem:[#allocation2 + $0x8] sm:$0xff] %v595
      %660 = vst [vmem:[#allocation2 + $0x10] sm:$0xff] %v596
      %661 = vst [vmem:[#allocation2 + $0x18] sm:$0xff] %v597
      %662 = vst [vmem:[#allocation2 + $0x20] sm:$0xff] %v598
      %663 = vst [vmem:[#allocation2 + $0x28] sm:$0xff] %v599
      %664 = vst [vmem:[#allocation2 + $0x30] sm:$0xff] %v600
      %665 = vst [vmem:[#allocation2 + $0x38] sm:$0xff] %v601
      %666 = vst [vmem:[#allocation2 + $0x40] sm:$0xff] %v602
      %667 = vst [vmem:[#allocation2 + $0x48] sm:$0xff] %v603
      %668 = vst [vmem:[#allocation2 + $0x50] sm:$0xff] %v604
      %669 = vst [vmem:[#allocation2 + $0x58] sm:$0xff] %v605
      %670 = vst [vmem:[#allocation2 + $0x60] sm:$0xff] %v606
      %671 = vst [vmem:[#allocation2 + $0x68] sm:$0xff] %v607
      %672 = vst [vmem:[#allocation2 + $0x70] sm:$0xff] %v608
      %673 = vst [vmem:[#allocation2 + $0x78] sm:$0xff] %v609
      %674 = vst [vmem:[#allocation2 + $0x80] sm:$0xff] %v610
      %675 = vst [vmem:[#allocation2 + $0x88] sm:$0xff] %v611
      %676 = vst [vmem:[#allocation2 + $0x90] sm:$0xff] %v612
      %677 = vst [vmem:[#allocation2 + $0x98] sm:$0xff] %v613
      %678 = vst [vmem:[#allocation2 + $0xa0] sm:$0xff] %v614
      %679 = vst [vmem:[#allocation2 + $0xa8] sm:$0xff] %v615
      %680 = vst [vmem:[#allocation2 + $0xb0] sm:$0xff] %v616
      %681 = vst [vmem:[#allocation2 + $0xb8] sm:$0xff] %v617
      %682 = vst [vmem:[#allocation2 + $0xc0] sm:$0xff] %v618
      %683 = vst [vmem:[#allocation2 + $0xc8] sm:$0xff] %v619
      %684 = vst [vmem:[#allocation2 + $0xd0] sm:$0xff] %v620
      %685 = vst [vmem:[#allocation2 + $0xd8] sm:$0xff] %v621
      %686 = vst [vmem:[#allocation2 + $0xe0] sm:$0xff] %v622
      %687 = vst [vmem:[#allocation2 + $0xe8] sm:$0xff] %v623
      %688 = vst [vmem:[#allocation2 + $0xf0] sm:$0xff] %v624
      %689 = vst [vmem:[#allocation2 + $0xf8] sm:$0xff] %v625
      %v690 = vld [vmem:[%s371] sm:$0xf]
      %v691 = vld [vmem:[%s371 + $0x4] sm:$0xf]
      %v692 = vld [vmem:[%s371 + $0x8] sm:$0xf]
      %v693 = vld [vmem:[%s371 + $0xc] sm:$0xf]
      %v694 = vld [vmem:[%s371 + $0x10] sm:$0xf]
      %v695 = vld [vmem:[%s371 + $0x14] sm:$0xf]
      %v696 = vld [vmem:[%s371 + $0x18] sm:$0xf]
      %v697 = vld [vmem:[%s371 + $0x1c] sm:$0xf]
      %v706 = vunpack.c.l.b16 %v690
      %v707 = vunpack.c.l.b16 %v691
      %v708 = vunpack.c.l.b16 %v692
      %v709 = vunpack.c.l.b16 %v693
      %v710 = vunpack.c.l.b16 %v694
      %v711 = vunpack.c.l.b16 %v695
      %v712 = vunpack.c.l.b16 %v696
      %v713 = vunpack.c.l.b16 %v697
      %v714 = vpack.c.b16 %v707, %v706
      %v715 = vpack.c.b16 %v709, %v708
      %v716 = vpack.c.b16 %v711, %v710
      %v717 = vpack.c.b16 %v713, %v712
      %722 = vst [vmem:[#allocation2 + $0x100] sm:$0xff] %v714
      %723 = vst [vmem:[#allocation2 + $0x108] sm:$0xff] %v715
      %724 = vst [vmem:[#allocation2 + $0x110] sm:$0xff] %v716
      %725 = vst [vmem:[#allocation2 + $0x118] sm:$0xff] %v717
      %v726 = vld [vmem:[#allocation2] sm:$0xff]
      %v727 = vld [vmem:[#allocation2 + $0x8] sm:$0xff]
      %v728 = vld [vmem:[#allocation2 + $0x10] sm:$0xff]
      %v729 = vld [vmem:[#allocation2 + $0x18] sm:$0xff]
      %v730 = vld [vmem:[#allocation2 + $0x20] sm:$0xff]
      %v731 = vld [vmem:[#allocation2 + $0x28] sm:$0xff]
      %v732 = vld [vmem:[#allocation2 + $0x30] sm:$0xff]
      %v733 = vld [vmem:[#allocation2 + $0x38] sm:$0xff]
      %v734 = vld [vmem:[#allocation2 + $0x40] sm:$0xff]
      %v735 = vld [vmem:[#allocation2 + $0x48] sm:$0xff]
      %v736 = vld [vmem:[#allocation2 + $0x50] sm:$0xff]
      %v737 = vld [vmem:[#allocation2 + $0x58] sm:$0xff]
      %v738 = vld [vmem:[#allocation2 + $0x60] sm:$0xff]
      %v739 = vld [vmem:[#allocation2 + $0x68] sm:$0xff]
      %v740 = vld [vmem:[#allocation2 + $0x70] sm:$0xff]
      %v741 = vld [vmem:[#allocation2 + $0x78] sm:$0xff]
      %v742 = vld [vmem:[#allocation2 + $0x80] sm:$0xff]
      %v743 = vld [vmem:[#allocation2 + $0x88] sm:$0xff]
      %v744 = vld [vmem:[#allocation2 + $0x90] sm:$0xff]
      %v745 = vld [vmem:[#allocation2 + $0x98] sm:$0xff]
      %v746 = vld [vmem:[#allocation2 + $0xa0] sm:$0xff]
      %v747 = vld [vmem:[#allocation2 + $0xa8] sm:$0xff]
      %v748 = vld [vmem:[#allocation2 + $0xb0] sm:$0xff]
      %v749 = vld [vmem:[#allocation2 + $0xb8] sm:$0xff]
      %v750 = vld [vmem:[#allocation2 + $0xc0] sm:$0xff]
      %v751 = vld [vmem:[#allocation2 + $0xc8] sm:$0xff]
      %v752 = vld [vmem:[#allocation2 + $0xd0] sm:$0xff]
      %v753 = vld [vmem:[#allocation2 + $0xd8] sm:$0xff]
      %v754 = vld [vmem:[#allocation2 + $0xe0] sm:$0xff]
      %v755 = vld [vmem:[#allocation2 + $0xe8] sm:$0xff]
      %v756 = vld [vmem:[#allocation2 + $0xf0] sm:$0xff]
      %v757 = vld [vmem:[#allocation2 + $0xf8] sm:$0xff]
      %v758 = vld [vmem:[%s378] sm:$0xf]
      %v759 = vld [vmem:[%s378 + $0x4] sm:$0xf]
      %v760 = vld [vmem:[%s378 + $0x8] sm:$0xf]
      %v761 = vld [vmem:[%s378 + $0xc] sm:$0xf]
      %v762 = vld [vmem:[%s378 + $0x10] sm:$0xf]
      %v763 = vld [vmem:[%s378 + $0x14] sm:$0xf]
      %v764 = vld [vmem:[%s378 + $0x18] sm:$0xf]
      %v765 = vld [vmem:[%s378 + $0x1c] sm:$0xf]
      %v766 = vld [vmem:[%s378 + $0x20] sm:$0xf]
      %v767 = vld [vmem:[%s378 + $0x24] sm:$0xf]
      %v768 = vld [vmem:[%s378 + $0x28] sm:$0xf]
      %v769 = vld [vmem:[%s378 + $0x2c] sm:$0xf]
      %v770 = vld [vmem:[%s378 + $0x30] sm:$0xf]
      %v771 = vld [vmem:[%s378 + $0x34] sm:$0xf]
      %v772 = vld [vmem:[%s378 + $0x38] sm:$0xf]
      %v773 = vld [vmem:[%s378 + $0x3c] sm:$0xf]
      %v774 = vld [vmem:[#allocation2 + $0x100] sm:$0x1]
      %s775 = scalar_lea.vmem %s378, 64
      %v776 = vld [vmem:[%s775] sm:$0xf]
      %v777 = vld [vmem:[%s775 + $0x4] sm:$0xf]
      %v778 = vld [vmem:[%s775 + $0x8] sm:$0xf]
      %v779 = vld [vmem:[%s775 + $0xc] sm:$0xf]
      %v780 = vld [vmem:[%s775 + $0x10] sm:$0xf]
      %v781 = vld [vmem:[%s775 + $0x14] sm:$0xf]
      %v782 = vld [vmem:[%s775 + $0x18] sm:$0xf]
      %v783 = vld [vmem:[%s775 + $0x1c] sm:$0xf]
      %v784 = vld [vmem:[%s775 + $0x20] sm:$0xf]
      %v785 = vld [vmem:[%s775 + $0x24] sm:$0xf]
      %v786 = vld [vmem:[%s775 + $0x28] sm:$0xf]
      %v787 = vld [vmem:[%s775 + $0x2c] sm:$0xf]
      %v788 = vld [vmem:[%s775 + $0x30] sm:$0xf]
      %v789 = vld [vmem:[%s775 + $0x34] sm:$0xf]
      %v790 = vld [vmem:[%s775 + $0x38] sm:$0xf]
      %v791 = vld [vmem:[%s775 + $0x3c] sm:$0xf]
      %vm792 = vsmask.f32 7424
      %v794 = vshrl.u32 %v726, 16
      %v796 = vshll.u32 %v726, 16
      %v798 = vrot.slane %v796, 1
      %v799 = vor.u32 %v794, %v798
      %v801 = vshll.u32 %v727, 16
      %v803 = vrot.slane %v801, 1
      %v804 = vsel %vm792, %v799, %v803
      %v805 = vshrl.u32 %v727, 16
      %v807 = vor.u32 %v805, %v803
      %v809 = vshll.u32 %v728, 16
      %v811 = vrot.slane %v809, 1
      %v812 = vsel %vm792, %v807, %v811
      %v813 = vshrl.u32 %v728, 16
      %v815 = vor.u32 %v813, %v811
      %v817 = vshll.u32 %v729, 16
      %v819 = vrot.slane %v817, 1
      %v820 = vsel %vm792, %v815, %v819
      %v821 = vshrl.u32 %v729, 16
      %v823 = vor.u32 %v821, %v819
      %v825 = vshll.u32 %v730, 16
      %v827 = vrot.slane %v825, 1
      %v828 = vsel %vm792, %v823, %v827
      %v829 = vshrl.u32 %v730, 16
      %v831 = vor.u32 %v829, %v827
      %v833 = vshll.u32 %v731, 16
      %v835 = vrot.slane %v833, 1
      %v836 = vsel %vm792, %v831, %v835
      %v837 = vshrl.u32 %v731, 16
      %v839 = vor.u32 %v837, %v835
      %v841 = vshll.u32 %v732, 16
      %v843 = vrot.slane %v841, 1
      %v844 = vsel %vm792, %v839, %v843
      %v845 = vshrl.u32 %v732, 16
      %v847 = vor.u32 %v845, %v843
      %v849 = vshll.u32 %v733, 16
      %v851 = vrot.slane %v849, 1
      %v852 = vsel %vm792, %v847, %v851
      %v853 = vshrl.u32 %v733, 16
      %v855 = vor.u32 %v853, %v851
      %v857 = vshll.u32 %v734, 16
      %v859 = vrot.slane %v857, 1
      %v860 = vsel %vm792, %v855, %v859
      %v861 = vshrl.u32 %v734, 16
      %v863 = vor.u32 %v861, %v859
      %v865 = vshll.u32 %v735, 16
      %v867 = vrot.slane %v865, 1
      %v868 = vsel %vm792, %v863, %v867
      %v869 = vshrl.u32 %v735, 16
      %v871 = vor.u32 %v869, %v867
      %v873 = vshll.u32 %v736, 16
      %v875 = vrot.slane %v873, 1
      %v876 = vsel %vm792, %v871, %v875
      %v877 = vshrl.u32 %v736, 16
      %v879 = vor.u32 %v877, %v875
      %v881 = vshll.u32 %v737, 16
      %v883 = vrot.slane %v881, 1
      %v884 = vsel %vm792, %v879, %v883
      %v885 = vshrl.u32 %v737, 16
      %v887 = vor.u32 %v885, %v883
      %v889 = vshll.u32 %v738, 16
      %v891 = vrot.slane %v889, 1
      %v892 = vsel %vm792, %v887, %v891
      %v893 = vshrl.u32 %v738, 16
      %v895 = vor.u32 %v893, %v891
      %v897 = vshll.u32 %v739, 16
      %v899 = vrot.slane %v897, 1
      %v900 = vsel %vm792, %v895, %v899
      %v901 = vshrl.u32 %v739, 16
      %v903 = vor.u32 %v901, %v899
      %v905 = vshll.u32 %v740, 16
      %v907 = vrot.slane %v905, 1
      %v908 = vsel %vm792, %v903, %v907
      %v909 = vshrl.u32 %v740, 16
      %v911 = vor.u32 %v909, %v907
      %v913 = vshll.u32 %v741, 16
      %v915 = vrot.slane %v913, 1
      %v916 = vsel %vm792, %v911, %v915
      %v917 = vshrl.u32 %v741, 16
      %v919 = vor.u32 %v917, %v915
      %v921 = vshll.u32 %v742, 16
      %v923 = vrot.slane %v921, 1
      %v924 = vsel %vm792, %v919, %v923
      %v925 = vshrl.u32 %v742, 16
      %v927 = vor.u32 %v925, %v923
      %v929 = vshll.u32 %v743, 16
      %v931 = vrot.slane %v929, 1
      %v932 = vsel %vm792, %v927, %v931
      %v933 = vshrl.u32 %v743, 16
      %v935 = vor.u32 %v933, %v931
      %v937 = vshll.u32 %v744, 16
      %v939 = vrot.slane %v937, 1
      %v940 = vsel %vm792, %v935, %v939
      %v941 = vshrl.u32 %v744, 16
      %v943 = vor.u32 %v941, %v939
      %v945 = vshll.u32 %v745, 16
      %v947 = vrot.slane %v945, 1
      %v948 = vsel %vm792, %v943, %v947
      %v949 = vshrl.u32 %v745, 16
      %v951 = vor.u32 %v949, %v947
      %v953 = vshll.u32 %v746, 16
      %v955 = vrot.slane %v953, 1
      %v956 = vsel %vm792, %v951, %v955
      %v957 = vshrl.u32 %v746, 16
      %v959 = vor.u32 %v957, %v955
      %v961 = vshll.u32 %v747, 16
      %v963 = vrot.slane %v961, 1
      %v964 = vsel %vm792, %v959, %v963
      %v965 = vshrl.u32 %v747, 16
      %v967 = vor.u32 %v965, %v963
      %v969 = vshll.u32 %v748, 16
      %v971 = vrot.slane %v969, 1
      %v972 = vsel %vm792, %v967, %v971
      %v973 = vshrl.u32 %v748, 16
      %v975 = vor.u32 %v973, %v971
      %v977 = vshll.u32 %v749, 16
      %v979 = vrot.slane %v977, 1
      %v980 = vsel %vm792, %v975, %v979
      %v981 = vshrl.u32 %v749, 16
      %v983 = vor.u32 %v981, %v979
      %v985 = vshll.u32 %v750, 16
      %v987 = vrot.slane %v985, 1
      %v988 = vsel %vm792, %v983, %v987
      %v989 = vshrl.u32 %v750, 16
      %v991 = vor.u32 %v989, %v987
      %v993 = vshll.u32 %v751, 16
      %v995 = vrot.slane %v993, 1
      %v996 = vsel %vm792, %v991, %v995
      %v997 = vshrl.u32 %v751, 16
      %v999 = vor.u32 %v997, %v995
      %v1001 = vshll.u32 %v752, 16
      %v1003 = vrot.slane %v1001, 1
      %v1004 = vsel %vm792, %v999, %v1003
      %v1005 = vshrl.u32 %v752, 16
      %v1007 = vor.u32 %v1005, %v1003
      %v1009 = vshll.u32 %v753, 16
      %v1011 = vrot.slane %v1009, 1
      %v1012 = vsel %vm792, %v1007, %v1011
      %v1013 = vshrl.u32 %v753, 16
      %v1015 = vor.u32 %v1013, %v1011
      %v1017 = vshll.u32 %v754, 16
      %v1019 = vrot.slane %v1017, 1
      %v1020 = vsel %vm792, %v1015, %v1019
      %v1021 = vshrl.u32 %v754, 16
      %v1023 = vor.u32 %v1021, %v1019
      %v1025 = vshll.u32 %v755, 16
      %v1027 = vrot.slane %v1025, 1
      %v1028 = vsel %vm792, %v1023, %v1027
      %v1029 = vshrl.u32 %v755, 16
      %v1031 = vor.u32 %v1029, %v1027
      %v1033 = vshll.u32 %v756, 16
      %v1035 = vrot.slane %v1033, 1
      %v1036 = vsel %vm792, %v1031, %v1035
      %v1037 = vshrl.u32 %v756, 16
      %v1039 = vor.u32 %v1037, %v1035
      %v1041 = vshll.u32 %v757, 16
      %v1043 = vrot.slane %v1041, 1
      %v1044 = vsel %vm792, %v1039, %v1043
      %v1045 = vshrl.u32 %v757, 16
      %v1047 = vor.u32 %v1045, %v1043
      %v1049 = vshll.u32 %v774, 16
      %v1051 = vrot.slane %v1049, 1
      %v1052 = vsel %vm792, %v1047, %v1051
      %v1101 = vunpack.c.l.b16 %v776
      %v1102 = vunpack.c.l.b16 %v777
      %v1103 = vunpack.c.l.b16 %v778
      %v1104 = vunpack.c.l.b16 %v779
      %v1105 = vunpack.c.l.b16 %v780
      %v1106 = vunpack.c.l.b16 %v781
      %v1107 = vunpack.c.l.b16 %v782
      %v1108 = vunpack.c.l.b16 %v783
      %v1109 = vunpack.c.l.b16 %v784
      %v1110 = vunpack.c.l.b16 %v785
      %v1111 = vunpack.c.l.b16 %v786
      %v1112 = vunpack.c.l.b16 %v787
      %v1113 = vunpack.c.l.b16 %v788
      %v1114 = vunpack.c.l.b16 %v789
      %v1115 = vunpack.c.l.b16 %v790
      %v1116 = vunpack.c.l.b16 %v791
      %v1117 = vpack.c.b16 %v1102, %v1101
      %v1118 = vpack.c.b16 %v1104, %v1103
      %v1119 = vpack.c.b16 %v1106, %v1105
      %v1120 = vpack.c.b16 %v1108, %v1107
      %v1121 = vpack.c.b16 %v1110, %v1109
      %v1122 = vpack.c.b16 %v1112, %v1111
      %v1123 = vpack.c.b16 %v1114, %v1113
      %v1124 = vpack.c.b16 %v1116, %v1115
      %1133 = vmatprep.subr.bf16.mxu0 0
      %1134 = vmatpush1.bf16.msra.mxu0 %v1117
      %1135 = vmatprep.subr.bf16.mxu0 0
      %1136 = vmatpush1.bf16.msra.mxu0 %v1118
      %1137 = vmatprep.subr.bf16.mxu0 0
      %1138 = vmatpush1.bf16.msra.mxu0 %v1119
      %1139 = vmatprep.subr.bf16.mxu0 0
      %1140 = vmatpush1.bf16.msra.mxu0 %v1120
      %1141 = vmatprep.subr.bf16.mxu0 0
      %1142 = vmatpush1.bf16.msra.mxu0 %v1121
      %1143 = vmatprep.subr.bf16.mxu0 0
      %1144 = vmatpush1.bf16.msra.mxu0 %v1122
      %1145 = vmatprep.subr.bf16.mxu0 0
      %1146 = vmatpush1.bf16.msra.mxu0 %v1123
      %1147 = vmatprep.subr.bf16.mxu0 0
      %1148 = vmatpush1.bf16.msra.mxu0 %v1124
      %1149 = vmatprep.subr.bf16.mxu0 0
      %1150 = vmatpush1.bf16.msra.mxu0 0
      %1151 = vmatprep.subr.bf16.mxu0 0
      %1152 = vmatpush1.bf16.msra.mxu0 0
      %1153 = vmatprep.subr.bf16.mxu0 0
      %1154 = vmatpush1.bf16.msra.mxu0 0
      %1155 = vmatprep.subr.bf16.mxu0 0
      %1156 = vmatpush1.bf16.msra.mxu0 0
      %1157 = vmatprep.subr.bf16.mxu0 0
      %1158 = vmatpush1.bf16.msra.mxu0 0
      %1159 = vmatprep.subr.bf16.mxu0 0
      %1160 = vmatpush1.bf16.msra.mxu0 0
      %1161 = vmatprep.subr.bf16.mxu0 0
      %1162 = vmatpush1.bf16.msra.mxu0 0
      %1163 = vmatprep.subr.bf16.mxu0 0
      %1164 = vmatpush1.bf16.msra.mxu0 0
      %1165 = vmatprep.mubr.bf16.mxu0 0
      %1166 = vmatmul.mubr.bf16.gmra.mrb[0].mxu0 %v804
      %v1167 = vpop.f32.mrb[0].mxu0
      %v1168 = vadd.f32 0.0, %v1167
      %v1169 = vpop.f32.mrb[0].mxu0
      %v1170 = vpop.f32.mrb[0].mxu0
      %v1171 = vadd.f32 0.0, %v1170
      %v1172 = vpop.f32.mrb[0].mxu0
      %1173 = vmatprep.mubr.bf16.mxu0 0
      %1174 = vmatmul.mubr.bf16.gmra.mrb[0].mxu0 %v812
      %v1175 = vpop.f32.mrb[0].mxu0
      %v1176 = vadd.f32 0.0, %v1175
      %v1177 = vpop.f32.mrb[0].mxu0
      %v1178 = vpop.f32.mrb[0].mxu0
      %v1179 = vadd.f32 0.0, %v1178
      %v1180 = vpop.f32.mrb[0].mxu0
      %1181 = vmatprep.mubr.bf16.mxu0 0
      %1182 = vmatmul.mubr.bf16.gmra.mrb[0].mxu0 %v820
      %v1183 = vpop.f32.mrb[0].mxu0
      %v1184 = vadd.f32 0.0, %v1183
      %v1185 = vpop.f32.mrb[0].mxu0
      %v1186 = vpop.f32.mrb[0].mxu0
      %v1187 = vadd.f32 0.0, %v1186
      %v1188 = vpop.f32.mrb[0].mxu0
      %1189 = vmatprep.mubr.bf16.mxu0 0
      %1190 = vmatmul.mubr.bf16.gmra.mrb[0].mxu0 %v828
      %v1191 = vpop.f32.mrb[0].mxu0
      %v1192 = vadd.f32 0.0, %v1191
      %v1193 = vpop.f32.mrb[0].mxu0
      %v1194 = vpop.f32.mrb[0].mxu0
      %v1195 = vadd.f32 0.0, %v1194
      %v1196 = vpop.f32.mrb[0].mxu0
      %1197 = vmatprep.mubr.bf16.mxu0 0
      %1198 = vmatmul.mubr.bf16.gmra.mrb[0].mxu0 %v836
      %v1199 = vpop.f32.mrb[0].mxu0
      %v1200 = vadd.f32 0.0, %v1199
      %v1201 = vpop.f32.mrb[0].mxu0
      %v1202 = vpop.f32.mrb[0].mxu0
      %v1203 = vadd.f32 0.0, %v1202
      %v1204 = vpop.f32.mrb[0].mxu0
      %1205 = vmatprep.mubr.bf16.mxu0 0
      %1206 = vmatmul.mubr.bf16.gmra.mrb[0].mxu0 %v844
      %v1207 = vpop.f32.mrb[0].mxu0
      %v1208 = vadd.f32 0.0, %v1207
      %v1209 = vpop.f32.mrb[0].mxu0
      %v1210 = vpop.f32.mrb[0].mxu0
      %v1211 = vadd.f32 0.0, %v1210
      %v1212 = vpop.f32.mrb[0].mxu0
      %1213 = vmatprep.mubr.bf16.mxu0 0
      %1214 = vmatmul.mubr.bf16.gmra.mrb[0].mxu0 %v852
      %v1215 = vpop.f32.mrb[0].mxu0
      %v1216 = vadd.f32 0.0, %v1215
      %v1217 = vpop.f32.mrb[0].mxu0
      %v1218 = vpop.f32.mrb[0].mxu0
      %v1219 = vadd.f32 0.0, %v1218
      %v1220 = vpop.f32.mrb[0].mxu0
      %1221 = vmatprep.mubr.bf16.mxu0 0
      %1222 = vmatmul.mubr.bf16.gmra.mrb[0].mxu0 %v860
      %v1223 = vpop.f32.mrb[0].mxu0
      %v1224 = vadd.f32 0.0, %v1223
      %v1225 = vpop.f32.mrb[0].mxu0
      %v1226 = vpop.f32.mrb[0].mxu0
      %v1227 = vadd.f32 0.0, %v1226
      %v1228 = vpop.f32.mrb[0].mxu0
      %1229 = vmatprep.mubr.bf16.mxu0 0
      %1230 = vmatmul.mubr.bf16.gmra.mrb[0].mxu0 %v868
      %v1231 = vpop.f32.mrb[0].mxu0
      %v1232 = vadd.f32 0.0, %v1231
      %v1233 = vpop.f32.mrb[0].mxu0
      %v1234 = vpop.f32.mrb[0].mxu0
      %v1235 = vadd.f32 0.0, %v1234
      %v1236 = vpop.f32.mrb[0].mxu0
      %1237 = vmatprep.mubr.bf16.mxu0 0
      %1238 = vmatmul.mubr.bf16.gmra.mrb[0].mxu0 %v876
      %v1239 = vpop.f32.mrb[0].mxu0
      %v1240 = vadd.f32 0.0, %v1239
      %v1241 = vpop.f32.mrb[0].mxu0
      %v1242 = vpop.f32.mrb[0].mxu0
      %v1243 = vadd.f32 0.0, %v1242
      %v1244 = vpop.f32.mrb[0].mxu0
      %1245 = vmatprep.mubr.bf16.mxu0 0
      %1246 = vmatmul.mubr.bf16.gmra.mrb[0].mxu0 %v884
      %v1247 = vpop.f32.mrb[0].mxu0
      %v1248 = vadd.f32 0.0, %v1247
      %v1249 = vpop.f32.mrb[0].mxu0
      %v1250 = vpop.f32.mrb[0].mxu0
      %v1251 = vadd.f32 0.0, %v1250
      %v1252 = vpop.f32.mrb[0].mxu0
      %1253 = vmatprep.mubr.bf16.mxu0 0
      %1254 = vmatmul.mubr.bf16.gmra.mrb[0].mxu0 %v892
      %v1255 = vpop.f32.mrb[0].mxu0
      %v1256 = vadd.f32 0.0, %v1255
      %v1257 = vpop.f32.mrb[0].mxu0
      %v1258 = vpop.f32.mrb[0].mxu0
      %v1259 = vadd.f32 0.0, %v1258
      %v1260 = vpop.f32.mrb[0].mxu0
      %1261 = vmatprep.mubr.bf16.mxu0 0
      %1262 = vmatmul.mubr.bf16.gmra.mrb[0].mxu0 %v900
      %v1263 = vpop.f32.mrb[0].mxu0
      %v1264 = vadd.f32 0.0, %v1263
      %v1265 = vpop.f32.mrb[0].mxu0
      %v1266 = vpop.f32.mrb[0].mxu0
      %v1267 = vadd.f32 0.0, %v1266
      %v1268 = vpop.f32.mrb[0].mxu0
      %1269 = vmatprep.mubr.bf16.mxu0 0
      %1270 = vmatmul.mubr.bf16.gmra.mrb[0].mxu0 %v908
      %v1271 = vpop.f32.mrb[0].mxu0
      %v1272 = vadd.f32 0.0, %v1271
      %v1273 = vpop.f32.mrb[0].mxu0
      %v1274 = vpop.f32.mrb[0].mxu0
      %v1275 = vadd.f32 0.0, %v1274
      %v1276 = vpop.f32.mrb[0].mxu0
      %1277 = vmatprep.mubr.bf16.mxu0 0
      %1278 = vmatmul.mubr.bf16.gmra.mrb[0].mxu0 %v916
      %v1279 = vpop.f32.mrb[0].mxu0
      %v1280 = vadd.f32 0.0, %v1279
      %v1281 = vpop.f32.mrb[0].mxu0
      %v1282 = vpop.f32.mrb[0].mxu0
      %v1283 = vadd.f32 0.0, %v1282
      %v1284 = vpop.f32.mrb[0].mxu0
      %1285 = vmatprep.mubr.bf16.mxu0 0
      %1286 = vmatmul.mubr.bf16.gmra.mrb[0].mxu0 %v924
      %v1287 = vpop.f32.mrb[0].mxu0
      %v1288 = vadd.f32 0.0, %v1287
      %v1289 = vpop.f32.mrb[0].mxu0
      %v1290 = vpop.f32.mrb[0].mxu0
      %v1291 = vadd.f32 0.0, %v1290
      %v1292 = vpop.f32.mrb[0].mxu0
      %1293 = vmatprep.mubr.bf16.mxu0 0
      %1294 = vmatmul.mubr.bf16.gmra.mrb[0].mxu0 %v932
      %v1295 = vpop.f32.mrb[0].mxu0
      %v1296 = vadd.f32 0.0, %v1295
      %v1297 = vpop.f32.mrb[0].mxu0
      %v1298 = vpop.f32.mrb[0].mxu0
      %v1299 = vadd.f32 0.0, %v1298
      %v1300 = vpop.f32.mrb[0].mxu0
      %1301 = vmatprep.mubr.bf16.mxu0 0
      %1302 = vmatmul.mubr.bf16.gmra.mrb[0].mxu0 %v940
      %v1303 = vpop.f32.mrb[0].mxu0
      %v1304 = vadd.f32 0.0, %v1303
      %v1305 = vpop.f32.mrb[0].mxu0
      %v1306 = vpop.f32.mrb[0].mxu0
      %v1307 = vadd.f32 0.0, %v1306
      %v1308 = vpop.f32.mrb[0].mxu0
      %1309 = vmatprep.mubr.bf16.mxu0 0
      %1310 = vmatmul.mubr.bf16.gmra.mrb[0].mxu0 %v948
      %v1311 = vpop.f32.mrb[0].mxu0
      %v1312 = vadd.f32 0.0, %v1311
      %v1313 = vpop.f32.mrb[0].mxu0
      %v1314 = vpop.f32.mrb[0].mxu0
      %v1315 = vadd.f32 0.0, %v1314
      %v1316 = vpop.f32.mrb[0].mxu0
      %1317 = vmatprep.mubr.bf16.mxu0 0
      %1318 = vmatmul.mubr.bf16.gmra.mrb[0].mxu0 %v956
      %v1319 = vpop.f32.mrb[0].mxu0
      %v1320 = vadd.f32 0.0, %v1319
      %v1321 = vpop.f32.mrb[0].mxu0
      %v1322 = vpop.f32.mrb[0].mxu0
      %v1323 = vadd.f32 0.0, %v1322
      %v1324 = vpop.f32.mrb[0].mxu0
      %1325 = vmatprep.mubr.bf16.mxu0 0
      %1326 = vmatmul.mubr.bf16.gmra.mrb[0].mxu0 %v964
      %v1327 = vpop.f32.mrb[0].mxu0
      %v1328 = vadd.f32 0.0, %v1327
      %v1329 = vpop.f32.mrb[0].mxu0
      %v1330 = vpop.f32.mrb[0].mxu0
      %v1331 = vadd.f32 0.0, %v1330
      %v1332 = vpop.f32.mrb[0].mxu0
      %1333 = vmatprep.mubr.bf16.mxu0 0
      %1334 = vmatmul.mubr.bf16.gmra.mrb[0].mxu0 %v972
      %v1335 = vpop.f32.mrb[0].mxu0
      %v1336 = vadd.f32 0.0, %v1335
      %v1337 = vpop.f32.mrb[0].mxu0
      %v1338 = vpop.f32.mrb[0].mxu0
      %v1339 = vadd.f32 0.0, %v1338
      %v1340 = vpop.f32.mrb[0].mxu0
      %1341 = vmatprep.mubr.bf16.mxu0 0
      %1342 = vmatmul.mubr.bf16.gmra.mrb[0].mxu0 %v980
      %v1343 = vpop.f32.mrb[0].mxu0
      %v1344 = vadd.f32 0.0, %v1343
      %v1345 = vpop.f32.mrb[0].mxu0
      %v1346 = vpop.f32.mrb[0].mxu0
      %v1347 = vadd.f32 0.0, %v1346
      %v1348 = vpop.f32.mrb[0].mxu0
      %1349 = vmatprep.mubr.bf16.mxu0 0
      %1350 = vmatmul.mubr.bf16.gmra.mrb[0].mxu0 %v988
      %v1351 = vpop.f32.mrb[0].mxu0
      %v1352 = vadd.f32 0.0, %v1351
      %v1353 = vpop.f32.mrb[0].mxu0
      %v1354 = vpop.f32.mrb[0].mxu0
      %v1355 = vadd.f32 0.0, %v1354
      %v1356 = vpop.f32.mrb[0].mxu0
      %1357 = vmatprep.mubr.bf16.mxu0 0
      %1358 = vmatmul.mubr.bf16.gmra.mrb[0].mxu0 %v996
      %v1359 = vpop.f32.mrb[0].mxu0
      %v1360 = vadd.f32 0.0, %v1359
      %v1361 = vpop.f32.mrb[0].mxu0
      %v1362 = vpop.f32.mrb[0].mxu0
      %v1363 = vadd.f32 0.0, %v1362
      %v1364 = vpop.f32.mrb[0].mxu0
      %1365 = vmatprep.mubr.bf16.mxu0 0
      %1366 = vmatmul.mubr.bf16.gmra.mrb[0].mxu0 %v1004
      %v1367 = vpop.f32.mrb[0].mxu0
      %v1368 = vadd.f32 0.0, %v1367
      %v1369 = vpop.f32.mrb[0].mxu0
      %v1370 = vpop.f32.mrb[0].mxu0
      %v1371 = vadd.f32 0.0, %v1370
      %v1372 = vpop.f32.mrb[0].mxu0
      %1373 = vmatprep.mubr.bf16.mxu0 0
      %1374 = vmatmul.mubr.bf16.gmra.mrb[0].mxu0 %v1012
      %v1375 = vpop.f32.mrb[0].mxu0
      %v1376 = vadd.f32 0.0, %v1375
      %v1377 = vpop.f32.mrb[0].mxu0
      %v1378 = vpop.f32.mrb[0].mxu0
      %v1379 = vadd.f32 0.0, %v1378
      %v1380 = vpop.f32.mrb[0].mxu0
      %1381 = vmatprep.mubr.bf16.mxu0 0
      %1382 = vmatmul.mubr.bf16.gmra.mrb[0].mxu0 %v1020
      %v1383 = vpop.f32.mrb[0].mxu0
      %v1384 = vadd.f32 0.0, %v1383
      %v1385 = vpop.f32.mrb[0].mxu0
      %v1386 = vpop.f32.mrb[0].mxu0
      %v1387 = vadd.f32 0.0, %v1386
      %v1388 = vpop.f32.mrb[0].mxu0
      %1389 = vmatprep.mubr.bf16.mxu0 0
      %1390 = vmatmul.mubr.bf16.gmra.mrb[0].mxu0 %v1028
      %v1391 = vpop.f32.mrb[0].mxu0
      %v1392 = vadd.f32 0.0, %v1391
      %v1393 = vpop.f32.mrb[0].mxu0
      %v1394 = vpop.f32.mrb[0].mxu0
      %v1395 = vadd.f32 0.0, %v1394
      %v1396 = vpop.f32.mrb[0].mxu0
      %1397 = vmatprep.mubr.bf16.mxu0 0
      %1398 = vmatmul.mubr.bf16.gmra.mrb[0].mxu0 %v1036
      %v1399 = vpop.f32.mrb[0].mxu0
      %v1400 = vadd.f32 0.0, %v1399
      %v1401 = vpop.f32.mrb[0].mxu0
      %v1402 = vpop.f32.mrb[0].mxu0
      %v1403 = vadd.f32 0.0, %v1402
      %v1404 = vpop.f32.mrb[0].mxu0
      %1405 = vmatprep.mubr.bf16.mxu0 0
      %1406 = vmatmul.mubr.bf16.gmra.mrb[0].mxu0 %v1044
      %v1407 = vpop.f32.mrb[0].mxu0
      %v1408 = vadd.f32 0.0, %v1407
      %v1409 = vpop.f32.mrb[0].mxu0
      %v1410 = vpop.f32.mrb[0].mxu0
      %v1411 = vadd.f32 0.0, %v1410
      %v1412 = vpop.f32.mrb[0].mxu0
      %1413 = vmatprep.mubr.bf16.mxu0 0
      %1414 = vmatmul.mubr.bf16.gmra.mrb[0].mxu0 %v1052
      %v1415 = vpop.f32.mrb[0].mxu0
      %v1416 = vadd.f32 0.0, %v1415
      %v1417 = vpop.f32.mrb[0].mxu0
      %v1418 = vpop.f32.mrb[0].mxu0
      %v1419 = vadd.f32 0.0, %v1418
      %v1420 = vpop.f32.mrb[0].mxu0
      %1421 = vdwg.mxu0
      %v1438 = vunpack.c.l.b16 %v758
      %v1439 = vunpack.c.l.b16 %v759
      %v1440 = vunpack.c.l.b16 %v760
      %v1441 = vunpack.c.l.b16 %v761
      %v1442 = vunpack.c.l.b16 %v762
      %v1443 = vunpack.c.l.b16 %v763
      %v1444 = vunpack.c.l.b16 %v764
      %v1445 = vunpack.c.l.b16 %v765
      %v1446 = vunpack.c.l.b16 %v766
      %v1447 = vunpack.c.l.b16 %v767
      %v1448 = vunpack.c.l.b16 %v768
      %v1449 = vunpack.c.l.b16 %v769
      %v1450 = vunpack.c.l.b16 %v770
      %v1451 = vunpack.c.l.b16 %v771
      %v1452 = vunpack.c.l.b16 %v772
      %v1453 = vunpack.c.l.b16 %v773
      %v1454 = vpack.c.b16 %v1439, %v1438
      %v1455 = vpack.c.b16 %v1441, %v1440
      %v1456 = vpack.c.b16 %v1443, %v1442
      %v1457 = vpack.c.b16 %v1445, %v1444
      %v1458 = vpack.c.b16 %v1447, %v1446
      %v1459 = vpack.c.b16 %v1449, %v1448
      %v1460 = vpack.c.b16 %v1451, %v1450
      %v1461 = vpack.c.b16 %v1453, %v1452
      %1470 = vmatprep.subr.bf16.mxu0 0
      %1471 = vmatpush1.bf16.msra.mxu0 %v1454
      %1472 = vmatprep.subr.bf16.mxu0 0
      %1473 = vmatpush1.bf16.msra.mxu0 %v1455
      %1474 = vmatprep.subr.bf16.mxu0 0
      %1475 = vmatpush1.bf16.msra.mxu0 %v1456
      %1476 = vmatprep.subr.bf16.mxu0 0
      %1477 = vmatpush1.bf16.msra.mxu0 %v1457
      %1478 = vmatprep.subr.bf16.mxu0 0
      %1479 = vmatpush1.bf16.msra.mxu0 %v1458
      %1480 = vmatprep.subr.bf16.mxu0 0
      %1481 = vmatpush1.bf16.msra.mxu0 %v1459
      %1482 = vmatprep.subr.bf16.mxu0 0
      %1483 = vmatpush1.bf16.msra.mxu0 %v1460
      %1484 = vmatprep.subr.bf16.mxu0 0
      %1485 = vmatpush1.bf16.msra.mxu0 %v1461
      %1486 = vmatprep.subr.bf16.mxu0 0
      %1487 = vmatpush1.bf16.msra.mxu0 0
      %1488 = vmatprep.subr.bf16.mxu0 0
      %1489 = vmatpush1.bf16.msra.mxu0 0
      %1490 = vmatprep.subr.bf16.mxu0 0
      %1491 = vmatpush1.bf16.msra.mxu0 0
      %1492 = vmatprep.subr.bf16.mxu0 0
      %1493 = vmatpush1.bf16.msra.mxu0 0
      %1494 = vmatprep.subr.bf16.mxu0 0
      %1495 = vmatpush1.bf16.msra.mxu0 0
      %1496 = vmatprep.subr.bf16.mxu0 0
      %1497 = vmatpush1.bf16.msra.mxu0 0
      %1498 = vmatprep.subr.bf16.mxu0 0
      %1499 = vmatpush1.bf16.msra.mxu0 0
      %1500 = vmatprep.subr.bf16.mxu0 0
      %1501 = vmatpush1.bf16.msra.mxu0 0
      %1502 = vmatprep.mubr.bf16.mxu0 0
      %1503 = vmatmul.mubr.bf16.gmra.mrb[0].mxu0 %v726
      %v1504 = vpop.f32.mrb[0].mxu0
      %v1505 = vadd.f32 %v1168, %v1504
      %v1506 = vpop.f32.mrb[0].mxu0
      %v1507 = vpop.f32.mrb[0].mxu0
      %v1508 = vadd.f32 %v1171, %v1507
      %v1509 = vpop.f32.mrb[0].mxu0
      %1510 = vmatprep.mubr.bf16.mxu0 0
      %1511 = vmatmul.mubr.bf16.gmra.mrb[0].mxu0 %v727
      %v1512 = vpop.f32.mrb[0].mxu0
      %v1513 = vadd.f32 %v1176, %v1512
      %v1514 = vpop.f32.mrb[0].mxu0
      %v1515 = vpop.f32.mrb[0].mxu0
      %v1516 = vadd.f32 %v1179, %v1515
      %v1517 = vpop.f32.mrb[0].mxu0
      %1518 = vmatprep.mubr.bf16.mxu0 0
      %1519 = vmatmul.mubr.bf16.gmra.mrb[0].mxu0 %v728
      %v1520 = vpop.f32.mrb[0].mxu0
      %v1521 = vadd.f32 %v1184, %v1520
      %v1522 = vpop.f32.mrb[0].mxu0
      %v1523 = vpop.f32.mrb[0].mxu0
      %v1524 = vadd.f32 %v1187, %v1523
      %v1525 = vpop.f32.mrb[0].mxu0
      %1526 = vmatprep.mubr.bf16.mxu0 0
      %1527 = vmatmul.mubr.bf16.gmra.mrb[0].mxu0 %v729
      %v1528 = vpop.f32.mrb[0].mxu0
      %v1529 = vadd.f32 %v1192, %v1528
      %v1530 = vpop.f32.mrb[0].mxu0
      %v1531 = vpop.f32.mrb[0].mxu0
      %v1532 = vadd.f32 %v1195, %v1531
      %v1533 = vpop.f32.mrb[0].mxu0
      %1534 = vmatprep.mubr.bf16.mxu0 0
      %1535 = vmatmul.mubr.bf16.gmra.mrb[0].mxu0 %v730
      %v1536 = vpop.f32.mrb[0].mxu0
      %v1537 = vadd.f32 %v1200, %v1536
      %v1538 = vpop.f32.mrb[0].mxu0
      %v1539 = vpop.f32.mrb[0].mxu0
      %v1540 = vadd.f32 %v1203, %v1539
      %v1541 = vpop.f32.mrb[0].mxu0
      %1542 = vmatprep.mubr.bf16.mxu0 0
      %1543 = vmatmul.mubr.bf16.gmra.mrb[0].mxu0 %v731
      %v1544 = vpop.f32.mrb[0].mxu0
      %v1545 = vadd.f32 %v1208, %v1544
      %v1546 = vpop.f32.mrb[0].mxu0
      %v1547 = vpop.f32.mrb[0].mxu0
      %v1548 = vadd.f32 %v1211, %v1547
      %v1549 = vpop.f32.mrb[0].mxu0
      %1550 = vmatprep.mubr.bf16.mxu0 0
      %1551 = vmatmul.mubr.bf16.gmra.mrb[0].mxu0 %v732
      %v1552 = vpop.f32.mrb[0].mxu0
      %v1553 = vadd.f32 %v1216, %v1552
      %v1554 = vpop.f32.mrb[0].mxu0
      %v1555 = vpop.f32.mrb[0].mxu0
      %v1556 = vadd.f32 %v1219, %v1555
      %v1557 = vpop.f32.mrb[0].mxu0
      %1558 = vmatprep.mubr.bf16.mxu0 0
      %1559 = vmatmul.mubr.bf16.gmra.mrb[0].mxu0 %v733
      %v1560 = vpop.f32.mrb[0].mxu0
      %v1561 = vadd.f32 %v1224, %v1560
      %v1562 = vpop.f32.mrb[0].mxu0
      %v1563 = vpop.f32.mrb[0].mxu0
      %v1564 = vadd.f32 %v1227, %v1563
      %v1565 = vpop.f32.mrb[0].mxu0
      %1566 = vmatprep.mubr.bf16.mxu0 0
      %1567 = vmatmul.mubr.bf16.gmra.mrb[0].mxu0 %v734
      %v1568 = vpop.f32.mrb[0].mxu0
      %v1569 = vadd.f32 %v1232, %v1568
      %v1570 = vpop.f32.mrb[0].mxu0
      %v1571 = vpop.f32.mrb[0].mxu0
      %v1572 = vadd.f32 %v1235, %v1571
      %v1573 = vpop.f32.mrb[0].mxu0
      %1574 = vmatprep.mubr.bf16.mxu0 0
      %1575 = vmatmul.mubr.bf16.gmra.mrb[0].mxu0 %v735
      %v1576 = vpop.f32.mrb[0].mxu0
      %v1577 = vadd.f32 %v1240, %v1576
      %v1578 = vpop.f32.mrb[0].mxu0
      %v1579 = vpop.f32.mrb[0].mxu0
      %v1580 = vadd.f32 %v1243, %v1579
      %v1581 = vpop.f32.mrb[0].mxu0
      %1582 = vmatprep.mubr.bf16.mxu0 0
      %1583 = vmatmul.mubr.bf16.gmra.mrb[0].mxu0 %v736
      %v1584 = vpop.f32.mrb[0].mxu0
      %v1585 = vadd.f32 %v1248, %v1584
      %v1586 = vpop.f32.mrb[0].mxu0
      %v1587 = vpop.f32.mrb[0].mxu0
      %v1588 = vadd.f32 %v1251, %v1587
      %v1589 = vpop.f32.mrb[0].mxu0
      %1590 = vmatprep.mubr.bf16.mxu0 0
      %1591 = vmatmul.mubr.bf16.gmra.mrb[0].mxu0 %v737
      %v1592 = vpop.f32.mrb[0].mxu0
      %v1593 = vadd.f32 %v1256, %v1592
      %v1594 = vpop.f32.mrb[0].mxu0
      %v1595 = vpop.f32.mrb[0].mxu0
      %v1596 = vadd.f32 %v1259, %v1595
      %v1597 = vpop.f32.mrb[0].mxu0
      %1598 = vmatprep.mubr.bf16.mxu0 0
      %1599 = vmatmul.mubr.bf16.gmra.mrb[0].mxu0 %v738
      %v1600 = vpop.f32.mrb[0].mxu0
      %v1601 = vadd.f32 %v1264, %v1600
      %v1602 = vpop.f32.mrb[0].mxu0
      %v1603 = vpop.f32.mrb[0].mxu0
      %v1604 = vadd.f32 %v1267, %v1603
      %v1605 = vpop.f32.mrb[0].mxu0
      %1606 = vmatprep.mubr.bf16.mxu0 0
      %1607 = vmatmul.mubr.bf16.gmra.mrb[0].mxu0 %v739
      %v1608 = vpop.f32.mrb[0].mxu0
      %v1609 = vadd.f32 %v1272, %v1608
      %v1610 = vpop.f32.mrb[0].mxu0
      %v1611 = vpop.f32.mrb[0].mxu0
      %v1612 = vadd.f32 %v1275, %v1611
      %v1613 = vpop.f32.mrb[0].mxu0
      %1614 = vmatprep.mubr.bf16.mxu0 0
      %1615 = vmatmul.mubr.bf16.gmra.mrb[0].mxu0 %v740
      %v1616 = vpop.f32.mrb[0].mxu0
      %v1617 = vadd.f32 %v1280, %v1616
      %v1618 = vpop.f32.mrb[0].mxu0
      %v1619 = vpop.f32.mrb[0].mxu0
      %v1620 = vadd.f32 %v1283, %v1619
      %v1621 = vpop.f32.mrb[0].mxu0
      %1622 = vmatprep.mubr.bf16.mxu0 0
      %1623 = vmatmul.mubr.bf16.gmra.mrb[0].mxu0 %v741
      %v1624 = vpop.f32.mrb[0].mxu0
      %v1625 = vadd.f32 %v1288, %v1624
      %v1626 = vpop.f32.mrb[0].mxu0
      %v1627 = vpop.f32.mrb[0].mxu0
      %v1628 = vadd.f32 %v1291, %v1627
      %v1629 = vpop.f32.mrb[0].mxu0
      %1630 = vmatprep.mubr.bf16.mxu0 0
      %1631 = vmatmul.mubr.bf16.gmra.mrb[0].mxu0 %v742
      %v1632 = vpop.f32.mrb[0].mxu0
      %v1633 = vadd.f32 %v1296, %v1632
      %v1634 = vpop.f32.mrb[0].mxu0
      %v1635 = vpop.f32.mrb[0].mxu0
      %v1636 = vadd.f32 %v1299, %v1635
      %v1637 = vpop.f32.mrb[0].mxu0
      %1638 = vmatprep.mubr.bf16.mxu0 0
      %1639 = vmatmul.mubr.bf16.gmra.mrb[0].mxu0 %v743
      %v1640 = vpop.f32.mrb[0].mxu0
      %v1641 = vadd.f32 %v1304, %v1640
      %v1642 = vpop.f32.mrb[0].mxu0
      %v1643 = vpop.f32.mrb[0].mxu0
      %v1644 = vadd.f32 %v1307, %v1643
      %v1645 = vpop.f32.mrb[0].mxu0
      %1646 = vmatprep.mubr.bf16.mxu0 0
      %1647 = vmatmul.mubr.bf16.gmra.mrb[0].mxu0 %v744
      %v1648 = vpop.f32.mrb[0].mxu0
      %v1649 = vadd.f32 %v1312, %v1648
      %v1650 = vpop.f32.mrb[0].mxu0
      %v1651 = vpop.f32.mrb[0].mxu0
      %v1652 = vadd.f32 %v1315, %v1651
      %v1653 = vpop.f32.mrb[0].mxu0
      %1654 = vmatprep.mubr.bf16.mxu0 0
      %1655 = vmatmul.mubr.bf16.gmra.mrb[0].mxu0 %v745
      %v1656 = vpop.f32.mrb[0].mxu0
      %v1657 = vadd.f32 %v1320, %v1656
      %v1658 = vpop.f32.mrb[0].mxu0
      %v1659 = vpop.f32.mrb[0].mxu0
      %v1660 = vadd.f32 %v1323, %v1659
      %v1661 = vpop.f32.mrb[0].mxu0
      %1662 = vmatprep.mubr.bf16.mxu0 0
      %1663 = vmatmul.mubr.bf16.gmra.mrb[0].mxu0 %v746
      %v1664 = vpop.f32.mrb[0].mxu0
      %v1665 = vadd.f32 %v1328, %v1664
      %v1666 = vpop.f32.mrb[0].mxu0
      %v1667 = vpop.f32.mrb[0].mxu0
      %v1668 = vadd.f32 %v1331, %v1667
      %v1669 = vpop.f32.mrb[0].mxu0
      %1670 = vmatprep.mubr.bf16.mxu0 0
      %1671 = vmatmul.mubr.bf16.gmra.mrb[0].mxu0 %v747
      %v1672 = vpop.f32.mrb[0].mxu0
      %v1673 = vadd.f32 %v1336, %v1672
      %v1674 = vpop.f32.mrb[0].mxu0
      %v1675 = vpop.f32.mrb[0].mxu0
      %v1676 = vadd.f32 %v1339, %v1675
      %v1677 = vpop.f32.mrb[0].mxu0
      %1678 = vmatprep.mubr.bf16.mxu0 0
      %1679 = vmatmul.mubr.bf16.gmra.mrb[0].mxu0 %v748
      %v1680 = vpop.f32.mrb[0].mxu0
      %v1681 = vadd.f32 %v1344, %v1680
      %v1682 = vpop.f32.mrb[0].mxu0
      %v1683 = vpop.f32.mrb[0].mxu0
      %v1684 = vadd.f32 %v1347, %v1683
      %v1685 = vpop.f32.mrb[0].mxu0
      %1686 = vmatprep.mubr.bf16.mxu0 0
      %1687 = vmatmul.mubr.bf16.gmra.mrb[0].mxu0 %v749
      %v1688 = vpop.f32.mrb[0].mxu0
      %v1689 = vadd.f32 %v1352, %v1688
      %v1690 = vpop.f32.mrb[0].mxu0
      %v1691 = vpop.f32.mrb[0].mxu0
      %v1692 = vadd.f32 %v1355, %v1691
      %v1693 = vpop.f32.mrb[0].mxu0
      %1694 = vmatprep.mubr.bf16.mxu0 0
      %1695 = vmatmul.mubr.bf16.gmra.mrb[0].mxu0 %v750
      %v1696 = vpop.f32.mrb[0].mxu0
      %v1697 = vadd.f32 %v1360, %v1696
      %v1698 = vpop.f32.mrb[0].mxu0
      %v1699 = vpop.f32.mrb[0].mxu0
      %v1700 = vadd.f32 %v1363, %v1699
      %v1701 = vpop.f32.mrb[0].mxu0
      %1702 = vmatprep.mubr.bf16.mxu0 0
      %1703 = vmatmul.mubr.bf16.gmra.mrb[0].mxu0 %v751
      %v1704 = vpop.f32.mrb[0].mxu0
      %v1705 = vadd.f32 %v1368, %v1704
      %v1706 = vpop.f32.mrb[0].mxu0
      %v1707 = vpop.f32.mrb[0].mxu0
      %v1708 = vadd.f32 %v1371, %v1707
      %v1709 = vpop.f32.mrb[0].mxu0
      %1710 = vmatprep.mubr.bf16.mxu0 0
      %1711 = vmatmul.mubr.bf16.gmra.mrb[0].mxu0 %v752
      %v1712 = vpop.f32.mrb[0].mxu0
      %v1713 = vadd.f32 %v1376, %v1712
      %v1714 = vpop.f32.mrb[0].mxu0
      %v1715 = vpop.f32.mrb[0].mxu0
      %v1716 = vadd.f32 %v1379, %v1715
      %v1717 = vpop.f32.mrb[0].mxu0
      %1718 = vmatprep.mubr.bf16.mxu0 0
      %1719 = vmatmul.mubr.bf16.gmra.mrb[0].mxu0 %v753
      %v1720 = vpop.f32.mrb[0].mxu0
      %v1721 = vadd.f32 %v1384, %v1720
      %v1722 = vpop.f32.mrb[0].mxu0
      %v1723 = vpop.f32.mrb[0].mxu0
      %v1724 = vadd.f32 %v1387, %v1723
      %v1725 = vpop.f32.mrb[0].mxu0
      %1726 = vmatprep.mubr.bf16.mxu0 0
      %1727 = vmatmul.mubr.bf16.gmra.mrb[0].mxu0 %v754
      %v1728 = vpop.f32.mrb[0].mxu0
      %v1729 = vadd.f32 %v1392, %v1728
      %v1730 = vpop.f32.mrb[0].mxu0
      %v1731 = vpop.f32.mrb[0].mxu0
      %v1732 = vadd.f32 %v1395, %v1731
      %v1733 = vpop.f32.mrb[0].mxu0
      %1734 = vmatprep.mubr.bf16.mxu0 0
      %1735 = vmatmul.mubr.bf16.gmra.mrb[0].mxu0 %v755
      %v1736 = vpop.f32.mrb[0].mxu0
      %v1737 = vadd.f32 %v1400, %v1736
      %v1738 = vpop.f32.mrb[0].mxu0
      %v1739 = vpop.f32.mrb[0].mxu0
      %v1740 = vadd.f32 %v1403, %v1739
      %v1741 = vpop.f32.mrb[0].mxu0
      %1742 = vmatprep.mubr.bf16.mxu0 0
      %1743 = vmatmul.mubr.bf16.gmra.mrb[0].mxu0 %v756
      %v1744 = vpop.f32.mrb[0].mxu0
      %v1745 = vadd.f32 %v1408, %v1744
      %v1746 = vpop.f32.mrb[0].mxu0
      %v1747 = vpop.f32.mrb[0].mxu0
      %v1748 = vadd.f32 %v1411, %v1747
      %v1749 = vpop.f32.mrb[0].mxu0
      %1750 = vmatprep.mubr.bf16.mxu0 0
      %1751 = vmatmul.mubr.bf16.gmra.mrb[0].mxu0 %v757
      %v1752 = vpop.f32.mrb[0].mxu0
      %v1753 = vadd.f32 %v1416, %v1752
      %v1754 = vpop.f32.mrb[0].mxu0
      %v1755 = vpop.f32.mrb[0].mxu0
      %v1756 = vadd.f32 %v1419, %v1755
      %v1757 = vpop.f32.mrb[0].mxu0
      %1758 = vdwg.mxu0
      %v1759 = vld [vmem:[#allocation2] sm:$0xfe]
      %s1760 = scalar_lea.vmem %s378, 128
      %v1761 = vld [vmem:[%s1760] sm:$0xf]
      %v1762 = vld [vmem:[%s1760 + $0x4] sm:$0xf]
      %v1763 = vld [vmem:[%s1760 + $0x8] sm:$0xf]
      %v1764 = vld [vmem:[%s1760 + $0xc] sm:$0xf]
      %v1765 = vld [vmem:[%s1760 + $0x10] sm:$0xf]
      %v1766 = vld [vmem:[%s1760 + $0x14] sm:$0xf]
      %v1767 = vld [vmem:[%s1760 + $0x18] sm:$0xf]
      %v1768 = vld [vmem:[%s1760 + $0x1c] sm:$0xf]
      %v1769 = vld [vmem:[%s1760 + $0x20] sm:$0xf]
      %v1770 = vld [vmem:[%s1760 + $0x24] sm:$0xf]
      %v1771 = vld [vmem:[%s1760 + $0x28] sm:$0xf]
      %v1772 = vld [vmem:[%s1760 + $0x2c] sm:$0xf]
      %v1773 = vld [vmem:[%s1760 + $0x30] sm:$0xf]
      %v1774 = vld [vmem:[%s1760 + $0x34] sm:$0xf]
      %v1775 = vld [vmem:[%s1760 + $0x38] sm:$0xf]
      %v1776 = vld [vmem:[%s1760 + $0x3c] sm:$0xf]
      %vm1810 = vcmask 1046528
      %v1811 = vrot.slane %v1759, 1
      %v1812 = vrot.slane %v727, 1
      %v1813 = vsel %vm1810, %v1811, %v1812
      %v1814 = vrot.slane %v728, 1
      %v1815 = vsel %vm1810, %v1812, %v1814
      %v1816 = vrot.slane %v729, 1
      %v1817 = vsel %vm1810, %v1814, %v1816
      %v1818 = vrot.slane %v730, 1
      %v1819 = vsel %vm1810, %v1816, %v1818
      %v1820 = vrot.slane %v731, 1
      %v1821 = vsel %vm1810, %v1818, %v1820
      %v1822 = vrot.slane %v732, 1
      %v1823 = vsel %vm1810, %v1820, %v1822
      %v1824 = vrot.slane %v733, 1
      %v1825 = vsel %vm1810, %v1822, %v1824
      %v1826 = vrot.slane %v734, 1
      %v1827 = vsel %vm1810, %v1824, %v1826
      %v1828 = vrot.slane %v735, 1
      %v1829 = vsel %vm1810, %v1826, %v1828
      %v1830 = vrot.slane %v736, 1
      %v1831 = vsel %vm1810, %v1828, %v1830
      %v1832 = vrot.slane %v737, 1
      %v1833 = vsel %vm1810, %v1830, %v1832
      %v1834 = vrot.slane %v738, 1
      %v1835 = vsel %vm1810, %v1832, %v1834
      %v1836 = vrot.slane %v739, 1
      %v1837 = vsel %vm1810, %v1834, %v1836
      %v1838 = vrot.slane %v740, 1
      %v1839 = vsel %vm1810, %v1836, %v1838
      %v1840 = vrot.slane %v741, 1
      %v1841 = vsel %vm1810, %v1838, %v1840
      %v1842 = vrot.slane %v742, 1
      %v1843 = vsel %vm1810, %v1840, %v1842
      %v1844 = vrot.slane %v743, 1
      %v1845 = vsel %vm1810, %v1842, %v1844
      %v1846 = vrot.slane %v744, 1
      %v1847 = vsel %vm1810, %v1844, %v1846
      %v1848 = vrot.slane %v745, 1
      %v1849 = vsel %vm1810, %v1846, %v1848
      %v1850 = vrot.slane %v746, 1
      %v1851 = vsel %vm1810, %v1848, %v1850
      %v1852 = vrot.slane %v747, 1
      %v1853 = vsel %vm1810, %v1850, %v1852
      %v1854 = vrot.slane %v748, 1
      %v1855 = vsel %vm1810, %v1852, %v1854
      %v1856 = vrot.slane %v749, 1
      %v1857 = vsel %vm1810, %v1854, %v1856
      %v1858 = vrot.slane %v750, 1
      %v1859 = vsel %vm1810, %v1856, %v1858
      %v1860 = vrot.slane %v751, 1
      %v1861 = vsel %vm1810, %v1858, %v1860
      %v1862 = vrot.slane %v752, 1
      %v1863 = vsel %vm1810, %v1860, %v1862
      %v1864 = vrot.slane %v753, 1
      %v1865 = vsel %vm1810, %v1862, %v1864
      %v1866 = vrot.slane %v754, 1
      %v1867 = vsel %vm1810, %v1864, %v1866
      %v1868 = vrot.slane %v755, 1
      %v1869 = vsel %vm1810, %v1866, %v1868
      %v1870 = vrot.slane %v756, 1
      %v1871 = vsel %vm1810, %v1868, %v1870
      %v1872 = vrot.slane %v757, 1
      %v1873 = vsel %vm1810, %v1870, %v1872
      %v1874 = vrot.slane %v774, 1
      %v1875 = vsel %vm1810, %v1872, %v1874
      %v1924 = vunpack.c.l.b16 %v1761
      %v1925 = vunpack.c.l.b16 %v1762
      %v1926 = vunpack.c.l.b16 %v1763
      %v1927 = vunpack.c.l.b16 %v1764
      %v1928 = vunpack.c.l.b16 %v1765
      %v1929 = vunpack.c.l.b16 %v1766
      %v1930 = vunpack.c.l.b16 %v1767
      %v1931 = vunpack.c.l.b16 %v1768
      %v1932 = vunpack.c.l.b16 %v1769
      %v1933 = vunpack.c.l.b16 %v1770
      %v1934 = vunpack.c.l.b16 %v1771
      %v1935 = vunpack.c.l.b16 %v1772
      %v1936 = vunpack.c.l.b16 %v1773
      %v1937 = vunpack.c.l.b16 %v1774
      %v1938 = vunpack.c.l.b16 %v1775
      %v1939 = vunpack.c.l.b16 %v1776
      %v1940 = vpack.c.b16 %v1925, %v1924
      %v1941 = vpack.c.b16 %v1927, %v1926
      %v1942 = vpack.c.b16 %v1929, %v1928
      %v1943 = vpack.c.b16 %v1931, %v1930
      %v1944 = vpack.c.b16 %v1933, %v1932
      %v1945 = vpack.c.b16 %v1935, %v1934
      %v1946 = vpack.c.b16 %v1937, %v1936
      %v1947 = vpack.c.b16 %v1939, %v1938
      %1956 = vmatprep.subr.bf16.mxu0 0
      %1957 = vmatpush1.bf16.msra.mxu0 %v1940
      %1958 = vmatprep.subr.bf16.mxu0 0
      %1959 = vmatpush1.bf16.msra.mxu0 %v1941
      %1960 = vmatprep.subr.bf16.mxu0 0
      %1961 = vmatpush1.bf16.msra.mxu0 %v1942
      %1962 = vmatprep.subr.bf16.mxu0 0
      %1963 = vmatpush1.bf16.msra.mxu0 %v1943
      %1964 = vmatprep.subr.bf16.mxu0 0
      %1965 = vmatpush1.bf16.msra.mxu0 %v1944
      %1966 = vmatprep.subr.bf16.mxu0 0
      %1967 = vmatpush1.bf16.msra.mxu0 %v1945
      %1968 = vmatprep.subr.bf16.mxu0 0
      %1969 = vmatpush1.bf16.msra.mxu0 %v1946
      %1970 = vmatprep.subr.bf16.mxu0 0
      %1971 = vmatpush1.bf16.msra.mxu0 %v1947
      %1972 = vmatprep.subr.bf16.mxu0 0
      %1973 = vmatpush1.bf16.msra.mxu0 0
      %1974 = vmatprep.subr.bf16.mxu0 0
      %1975 = vmatpush1.bf16.msra.mxu0 0
      %1976 = vmatprep.subr.bf16.mxu0 0
      %1977 = vmatpush1.bf16.msra.mxu0 0
      %1978 = vmatprep.subr.bf16.mxu0 0
      %1979 = vmatpush1.bf16.msra.mxu0 0
      %1980 = vmatprep.subr.bf16.mxu0 0
      %1981 = vmatpush1.bf16.msra.mxu0 0
      %1982 = vmatprep.subr.bf16.mxu0 0
      %1983 = vmatpush1.bf16.msra.mxu0 0
      %1984 = vmatprep.subr.bf16.mxu0 0
      %1985 = vmatpush1.bf16.msra.mxu0 0
      %1986 = vmatprep.subr.bf16.mxu0 0
      %1987 = vmatpush1.bf16.msra.mxu0 0
      %1988 = vmatprep.mubr.bf16.mxu0 0
      %1989 = vmatmul.mubr.bf16.gmra.mrb[0].mxu0 %v1813
      %v1990 = vpop.f32.mrb[0].mxu0
      %v1991 = vadd.f32 0.0, %v1990
      %v1992 = vpop.f32.mrb[0].mxu0
      %v1993 = vpop.f32.mrb[0].mxu0
      %v1994 = vadd.f32 0.0, %v1993
      %v1995 = vpop.f32.mrb[0].mxu0
      %1996 = vmatprep.mubr.bf16.mxu0 0
      %1997 = vmatmul.mubr.bf16.gmra.mrb[0].mxu0 %v1815
      %v1998 = vpop.f32.mrb[0].mxu0
      %v1999 = vadd.f32 0.0, %v1998
      %v2000 = vpop.f32.mrb[0].mxu0
      %v2001 = vpop.f32.mrb[0].mxu0
      %v2002 = vadd.f32 0.0, %v2001
      %v2003 = vpop.f32.mrb[0].mxu0
      %2004 = vmatprep.mubr.bf16.mxu0 0
      %2005 = vmatmul.mubr.bf16.gmra.mrb[0].mxu0 %v1817
      %v2006 = vpop.f32.mrb[0].mxu0
      %v2007 = vadd.f32 0.0, %v2006
      %v2008 = vpop.f32.mrb[0].mxu0
      %v2009 = vpop.f32.mrb[0].mxu0
      %v2010 = vadd.f32 0.0, %v2009
      %v2011 = vpop.f32.mrb[0].mxu0
      %2012 = vmatprep.mubr.bf16.mxu0 0
      %2013 = vmatmul.mubr.bf16.gmra.mrb[0].mxu0 %v1819
      %v2014 = vpop.f32.mrb[0].mxu0
      %v2015 = vadd.f32 0.0, %v2014
      %v2016 = vpop.f32.mrb[0].mxu0
      %v2017 = vpop.f32.mrb[0].mxu0
      %v2018 = vadd.f32 0.0, %v2017
      %v2019 = vpop.f32.mrb[0].mxu0
      %2020 = vmatprep.mubr.bf16.mxu0 0
      %2021 = vmatmul.mubr.bf16.gmra.mrb[0].mxu0 %v1821
      %v2022 = vpop.f32.mrb[0].mxu0
      %v2023 = vadd.f32 0.0, %v2022
      %v2024 = vpop.f32.mrb[0].mxu0
      %v2025 = vpop.f32.mrb[0].mxu0
      %v2026 = vadd.f32 0.0, %v2025
      %v2027 = vpop.f32.mrb[0].mxu0
      %2028 = vmatprep.mubr.bf16.mxu0 0
      %2029 = vmatmul.mubr.bf16.gmra.mrb[0].mxu0 %v1823
      %v2030 = vpop.f32.mrb[0].mxu0
      %v2031 = vadd.f32 0.0, %v2030
      %v2032 = vpop.f32.mrb[0].mxu0
      %v2033 = vpop.f32.mrb[0].mxu0
      %v2034 = vadd.f32 0.0, %v2033
      %v2035 = vpop.f32.mrb[0].mxu0
      %2036 = vmatprep.mubr.bf16.mxu0 0
      %2037 = vmatmul.mubr.bf16.gmra.mrb[0].mxu0 %v1825
      %v2038 = vpop.f32.mrb[0].mxu0
      %v2039 = vadd.f32 0.0, %v2038
      %v2040 = vpop.f32.mrb[0].mxu0
      %v2041 = vpop.f32.mrb[0].mxu0
      %v2042 = vadd.f32 0.0, %v2041
      %v2043 = vpop.f32.mrb[0].mxu0
      %2044 = vmatprep.mubr.bf16.mxu0 0
      %2045 = vmatmul.mubr.bf16.gmra.mrb[0].mxu0 %v1827
      %v2046 = vpop.f32.mrb[0].mxu0
      %v2047 = vadd.f32 0.0, %v2046
      %v2048 = vpop.f32.mrb[0].mxu0
      %v2049 = vpop.f32.mrb[0].mxu0
      %v2050 = vadd.f32 0.0, %v2049
      %v2051 = vpop.f32.mrb[0].mxu0
      %2052 = vmatprep.mubr.bf16.mxu0 0
      %2053 = vmatmul.mubr.bf16.gmra.mrb[0].mxu0 %v1829
      %v2054 = vpop.f32.mrb[0].mxu0
      %v2055 = vadd.f32 0.0, %v2054
      %v2056 = vpop.f32.mrb[0].mxu0
      %v2057 = vpop.f32.mrb[0].mxu0
      %v2058 = vadd.f32 0.0, %v2057
      %v2059 = vpop.f32.mrb[0].mxu0
      %2060 = vmatprep.mubr.bf16.mxu0 0
      %2061 = vmatmul.mubr.bf16.gmra.mrb[0].mxu0 %v1831
      %v2062 = vpop.f32.mrb[0].mxu0
      %v2063 = vadd.f32 0.0, %v2062
      %v2064 = vpop.f32.mrb[0].mxu0
      %v2065 = vpop.f32.mrb[0].mxu0
      %v2066 = vadd.f32 0.0, %v2065
      %v2067 = vpop.f32.mrb[0].mxu0
      %2068 = vmatprep.mubr.bf16.mxu0 0
      %2069 = vmatmul.mubr.bf16.gmra.mrb[0].mxu0 %v1833
      %v2070 = vpop.f32.mrb[0].mxu0
      %v2071 = vadd.f32 0.0, %v2070
      %v2072 = vpop.f32.mrb[0].mxu0
      %v2073 = vpop.f32.mrb[0].mxu0
      %v2074 = vadd.f32 0.0, %v2073
      %v2075 = vpop.f32.mrb[0].mxu0
      %2076 = vmatprep.mubr.bf16.mxu0 0
      %2077 = vmatmul.mubr.bf16.gmra.mrb[0].mxu0 %v1835
      %v2078 = vpop.f32.mrb[0].mxu0
      %v2079 = vadd.f32 0.0, %v2078
      %v2080 = vpop.f32.mrb[0].mxu0
      %v2081 = vpop.f32.mrb[0].mxu0
      %v2082 = vadd.f32 0.0, %v2081
      %v2083 = vpop.f32.mrb[0].mxu0
      %2084 = vmatprep.mubr.bf16.mxu0 0
      %2085 = vmatmul.mubr.bf16.gmra.mrb[0].mxu0 %v1837
      %v2086 = vpop.f32.mrb[0].mxu0
      %v2087 = vadd.f32 0.0, %v2086
      %v2088 = vpop.f32.mrb[0].mxu0
      %v2089 = vpop.f32.mrb[0].mxu0
      %v2090 = vadd.f32 0.0, %v2089
      %v2091 = vpop.f32.mrb[0].mxu0
      %2092 = vmatprep.mubr.bf16.mxu0 0
      %2093 = vmatmul.mubr.bf16.gmra.mrb[0].mxu0 %v1839
      %v2094 = vpop.f32.mrb[0].mxu0
      %v2095 = vadd.f32 0.0, %v2094
      %v2096 = vpop.f32.mrb[0].mxu0
      %v2097 = vpop.f32.mrb[0].mxu0
      %v2098 = vadd.f32 0.0, %v2097
      %v2099 = vpop.f32.mrb[0].mxu0
      %2100 = vmatprep.mubr.bf16.mxu0 0
      %2101 = vmatmul.mubr.bf16.gmra.mrb[0].mxu0 %v1841
      %v2102 = vpop.f32.mrb[0].mxu0
      %v2103 = vadd.f32 0.0, %v2102
      %v2104 = vpop.f32.mrb[0].mxu0
      %v2105 = vpop.f32.mrb[0].mxu0
      %v2106 = vadd.f32 0.0, %v2105
      %v2107 = vpop.f32.mrb[0].mxu0
      %2108 = vmatprep.mubr.bf16.mxu0 0
      %2109 = vmatmul.mubr.bf16.gmra.mrb[0].mxu0 %v1843
      %v2110 = vpop.f32.mrb[0].mxu0
      %v2111 = vadd.f32 0.0, %v2110
      %v2112 = vpop.f32.mrb[0].mxu0
      %v2113 = vpop.f32.mrb[0].mxu0
      %v2114 = vadd.f32 0.0, %v2113
      %v2115 = vpop.f32.mrb[0].mxu0
      %2116 = vmatprep.mubr.bf16.mxu0 0
      %2117 = vmatmul.mubr.bf16.gmra.mrb[0].mxu0 %v1845
      %v2118 = vpop.f32.mrb[0].mxu0
      %v2119 = vadd.f32 0.0, %v2118
      %v2120 = vpop.f32.mrb[0].mxu0
      %v2121 = vpop.f32.mrb[0].mxu0
      %v2122 = vadd.f32 0.0, %v2121
      %v2123 = vpop.f32.mrb[0].mxu0
      %2124 = vmatprep.mubr.bf16.mxu0 0
      %2125 = vmatmul.mubr.bf16.gmra.mrb[0].mxu0 %v1847
      %v2126 = vpop.f32.mrb[0].mxu0
      %v2127 = vadd.f32 0.0, %v2126
      %v2128 = vpop.f32.mrb[0].mxu0
      %v2129 = vpop.f32.mrb[0].mxu0
      %v2130 = vadd.f32 0.0, %v2129
      %v2131 = vpop.f32.mrb[0].mxu0
      %2132 = vmatprep.mubr.bf16.mxu0 0
      %2133 = vmatmul.mubr.bf16.gmra.mrb[0].mxu0 %v1849
      %v2134 = vpop.f32.mrb[0].mxu0
      %v2135 = vadd.f32 0.0, %v2134
      %v2136 = vpop.f32.mrb[0].mxu0
      %v2137 = vpop.f32.mrb[0].mxu0
      %v2138 = vadd.f32 0.0, %v2137
      %v2139 = vpop.f32.mrb[0].mxu0
      %2140 = vmatprep.mubr.bf16.mxu0 0
      %2141 = vmatmul.mubr.bf16.gmra.mrb[0].mxu0 %v1851
      %v2142 = vpop.f32.mrb[0].mxu0
      %v2143 = vadd.f32 0.0, %v2142
      %v2144 = vpop.f32.mrb[0].mxu0
      %v2145 = vpop.f32.mrb[0].mxu0
      %v2146 = vadd.f32 0.0, %v2145
      %v2147 = vpop.f32.mrb[0].mxu0
      %2148 = vmatprep.mubr.bf16.mxu0 0
      %2149 = vmatmul.mubr.bf16.gmra.mrb[0].mxu0 %v1853
      %v2150 = vpop.f32.mrb[0].mxu0
      %v2151 = vadd.f32 0.0, %v2150
      %v2152 = vpop.f32.mrb[0].mxu0
      %v2153 = vpop.f32.mrb[0].mxu0
      %v2154 = vadd.f32 0.0, %v2153
      %v2155 = vpop.f32.mrb[0].mxu0
      %2156 = vmatprep.mubr.bf16.mxu0 0
      %2157 = vmatmul.mubr.bf16.gmra.mrb[0].mxu0 %v1855
      %v2158 = vpop.f32.mrb[0].mxu0
      %v2159 = vadd.f32 0.0, %v2158
      %v2160 = vpop.f32.mrb[0].mxu0
      %v2161 = vpop.f32.mrb[0].mxu0
      %v2162 = vadd.f32 0.0, %v2161
      %v2163 = vpop.f32.mrb[0].mxu0
      %2164 = vmatprep.mubr.bf16.mxu0 0
      %2165 = vmatmul.mubr.bf16.gmra.mrb[0].mxu0 %v1857
      %v2166 = vpop.f32.mrb[0].mxu0
      %v2167 = vadd.f32 0.0, %v2166
      %v2168 = vpop.f32.mrb[0].mxu0
      %v2169 = vpop.f32.mrb[0].mxu0
      %v2170 = vadd.f32 0.0, %v2169
      %v2171 = vpop.f32.mrb[0].mxu0
      %2172 = vmatprep.mubr.bf16.mxu0 0
      %2173 = vmatmul.mubr.bf16.gmra.mrb[0].mxu0 %v1859
      %v2174 = vpop.f32.mrb[0].mxu0
      %v2175 = vadd.f32 0.0, %v2174
      %v2176 = vpop.f32.mrb[0].mxu0
      %v2177 = vpop.f32.mrb[0].mxu0
      %v2178 = vadd.f32 0.0, %v2177
      %v2179 = vpop.f32.mrb[0].mxu0
      %2180 = vmatprep.mubr.bf16.mxu0 0
      %2181 = vmatmul.mubr.bf16.gmra.mrb[0].mxu0 %v1861
      %v2182 = vpop.f32.mrb[0].mxu0
      %v2183 = vadd.f32 0.0, %v2182
      %v2184 = vpop.f32.mrb[0].mxu0
      %v2185 = vpop.f32.mrb[0].mxu0
      %v2186 = vadd.f32 0.0, %v2185
      %v2187 = vpop.f32.mrb[0].mxu0
      %2188 = vmatprep.mubr.bf16.mxu0 0
      %2189 = vmatmul.mubr.bf16.gmra.mrb[0].mxu0 %v1863
      %v2190 = vpop.f32.mrb[0].mxu0
      %v2191 = vadd.f32 0.0, %v2190
      %v2192 = vpop.f32.mrb[0].mxu0
      %v2193 = vpop.f32.mrb[0].mxu0
      %v2194 = vadd.f32 0.0, %v2193
      %v2195 = vpop.f32.mrb[0].mxu0
      %2196 = vmatprep.mubr.bf16.mxu0 0
      %2197 = vmatmul.mubr.bf16.gmra.mrb[0].mxu0 %v1865
      %v2198 = vpop.f32.mrb[0].mxu0
      %v2199 = vadd.f32 0.0, %v2198
      %v2200 = vpop.f32.mrb[0].mxu0
      %v2201 = vpop.f32.mrb[0].mxu0
      %v2202 = vadd.f32 0.0, %v2201
      %v2203 = vpop.f32.mrb[0].mxu0
      %2204 = vmatprep.mubr.bf16.mxu0 0
      %2205 = vmatmul.mubr.bf16.gmra.mrb[0].mxu0 %v1867
      %v2206 = vpop.f32.mrb[0].mxu0
      %v2207 = vadd.f32 0.0, %v2206
      %v2208 = vpop.f32.mrb[0].mxu0
      %v2209 = vpop.f32.mrb[0].mxu0
      %v2210 = vadd.f32 0.0, %v2209
      %v2211 = vpop.f32.mrb[0].mxu0
      %2212 = vmatprep.mubr.bf16.mxu0 0
      %2213 = vmatmul.mubr.bf16.gmra.mrb[0].mxu0 %v1869
      %v2214 = vpop.f32.mrb[0].mxu0
      %v2215 = vadd.f32 0.0, %v2214
      %v2216 = vpop.f32.mrb[0].mxu0
      %v2217 = vpop.f32.mrb[0].mxu0
      %v2218 = vadd.f32 0.0, %v2217
      %v2219 = vpop.f32.mrb[0].mxu0
      %2220 = vmatprep.mubr.bf16.mxu0 0
      %2221 = vmatmul.mubr.bf16.gmra.mrb[0].mxu0 %v1871
      %v2222 = vpop.f32.mrb[0].mxu0
      %v2223 = vadd.f32 0.0, %v2222
      %v2224 = vpop.f32.mrb[0].mxu0
      %v2225 = vpop.f32.mrb[0].mxu0
      %v2226 = vadd.f32 0.0, %v2225
      %v2227 = vpop.f32.mrb[0].mxu0
      %2228 = vmatprep.mubr.bf16.mxu0 0
      %2229 = vmatmul.mubr.bf16.gmra.mrb[0].mxu0 %v1873
      %v2230 = vpop.f32.mrb[0].mxu0
      %v2231 = vadd.f32 0.0, %v2230
      %v2232 = vpop.f32.mrb[0].mxu0
      %v2233 = vpop.f32.mrb[0].mxu0
      %v2234 = vadd.f32 0.0, %v2233
      %v2235 = vpop.f32.mrb[0].mxu0
      %2236 = vmatprep.mubr.bf16.mxu0 0
      %2237 = vmatmul.mubr.bf16.gmra.mrb[0].mxu0 %v1875
      %v2238 = vpop.f32.mrb[0].mxu0
      %v2239 = vadd.f32 0.0, %v2238
      %v2240 = vpop.f32.mrb[0].mxu0
      %v2241 = vpop.f32.mrb[0].mxu0
      %v2242 = vadd.f32 0.0, %v2241
      %v2243 = vpop.f32.mrb[0].mxu0
      %2244 = vdwg.mxu0
      %v2245 = vadd.f32 %v1505, %v1991
      %v2246 = vadd.f32 %v1508, %v1994
      %v2247 = vadd.f32 %v1513, %v1999
      %v2248 = vadd.f32 %v1516, %v2002
      %v2249 = vadd.f32 %v1521, %v2007
      %v2250 = vadd.f32 %v1524, %v2010
      %v2251 = vadd.f32 %v1529, %v2015
      %v2252 = vadd.f32 %v1532, %v2018
      %v2253 = vadd.f32 %v1537, %v2023
      %v2254 = vadd.f32 %v1540, %v2026
      %v2255 = vadd.f32 %v1545, %v2031
      %v2256 = vadd.f32 %v1548, %v2034
      %v2257 = vadd.f32 %v1553, %v2039
      %v2258 = vadd.f32 %v1556, %v2042
      %v2259 = vadd.f32 %v1561, %v2047
      %v2260 = vadd.f32 %v1564, %v2050
      %v2261 = vadd.f32 %v1569, %v2055
      %v2262 = vadd.f32 %v1572, %v2058
      %v2263 = vadd.f32 %v1577, %v2063
      %v2264 = vadd.f32 %v1580, %v2066
      %v2265 = vadd.f32 %v1585, %v2071
      %v2266 = vadd.f32 %v1588, %v2074
      %v2267 = vadd.f32 %v1593, %v2079
      %v2268 = vadd.f32 %v1596, %v2082
      %v2269 = vadd.f32 %v1601, %v2087
      %v2270 = vadd.f32 %v1604, %v2090
      %v2271 = vadd.f32 %v1609, %v2095
      %v2272 = vadd.f32 %v1612, %v2098
      %v2273 = vadd.f32 %v1617, %v2103
      %v2274 = vadd.f32 %v1620, %v2106
      %v2275 = vadd.f32 %v1625, %v2111
      %v2276 = vadd.f32 %v1628, %v2114
      %v2277 = vadd.f32 %v1633, %v2119
      %v2278 = vadd.f32 %v1636, %v2122
      %v2279 = vadd.f32 %v1641, %v2127
      %v2280 = vadd.f32 %v1644, %v2130
      %v2281 = vadd.f32 %v1649, %v2135
      %v2282 = vadd.f32 %v1652, %v2138
      %v2283 = vadd.f32 %v1657, %v2143
      %v2284 = vadd.f32 %v1660, %v2146
      %v2285 = vadd.f32 %v1665, %v2151
      %v2286 = vadd.f32 %v1668, %v2154
      %v2287 = vadd.f32 %v1673, %v2159
      %v2288 = vadd.f32 %v1676, %v2162
      %v2289 = vadd.f32 %v1681, %v2167
      %v2290 = vadd.f32 %v1684, %v2170
      %v2291 = vadd.f32 %v1689, %v2175
      %v2292 = vadd.f32 %v1692, %v2178
      %v2293 = vadd.f32 %v1697, %v2183
      %v2294 = vadd.f32 %v1700, %v2186
      %v2295 = vadd.f32 %v1705, %v2191
      %v2296 = vadd.f32 %v1708, %v2194
      %v2297 = vadd.f32 %v1713, %v2199
      %v2298 = vadd.f32 %v1716, %v2202
      %v2299 = vadd.f32 %v1721, %v2207
      %v2300 = vadd.f32 %v1724, %v2210
      %v2301 = vadd.f32 %v1729, %v2215
      %v2302 = vadd.f32 %v1732, %v2218
      %v2303 = vadd.f32 %v1737, %v2223
      %v2304 = vadd.f32 %v1740, %v2226
      %v2305 = vadd.f32 %v1745, %v2231
      %v2306 = vadd.f32 %v1748, %v2234
      %v2307 = vadd.f32 %v1753, %v2239
      %v2308 = vadd.f32 %v1756, %v2242
      %v2309 = vld [vmem:[#allocation2 + $0x8] sm:$0xfe]
      %v2310 = vld [vmem:[#allocation2 + $0x10] sm:$0xff]
      %v2311 = vld [vmem:[#allocation2 + $0x18] sm:$0xff]
      %v2312 = vld [vmem:[#allocation2 + $0x20] sm:$0xff]
      %v2313 = vld [vmem:[#allocation2 + $0x28] sm:$0xff]
      %v2314 = vld [vmem:[#allocation2 + $0x30] sm:$0xff]
      %v2315 = vld [vmem:[#allocation2 + $0x38] sm:$0xff]
      %v2316 = vld [vmem:[#allocation2 + $0x40] sm:$0xff]
      %v2317 = vld [vmem:[#allocation2 + $0x48] sm:$0xff]
      %v2318 = vld [vmem:[#allocation2 + $0x50] sm:$0xff]
      %v2319 = vld [vmem:[#allocation2 + $0x58] sm:$0xff]
      %v2320 = vld [vmem:[#allocation2 + $0x60] sm:$0xff]
      %v2321 = vld [vmem:[#allocation2 + $0x68] sm:$0xff]
      %v2322 = vld [vmem:[#allocation2 + $0x70] sm:$0xff]
      %v2323 = vld [vmem:[#allocation2 + $0x78] sm:$0xff]
      %v2324 = vld [vmem:[#allocation2 + $0x80] sm:$0xff]
      %v2325 = vld [vmem:[#allocation2 + $0x88] sm:$0xff]
      %v2326 = vld [vmem:[#allocation2 + $0x90] sm:$0xff]
      %v2327 = vld [vmem:[#allocation2 + $0x98] sm:$0xff]
      %v2328 = vld [vmem:[#allocation2 + $0xa0] sm:$0xff]
      %v2329 = vld [vmem:[#allocation2 + $0xa8] sm:$0xff]
      %v2330 = vld [vmem:[#allocation2 + $0xb0] sm:$0xff]
      %v2331 = vld [vmem:[#allocation2 + $0xb8] sm:$0xff]
      %v2332 = vld [vmem:[#allocation2 + $0xc0] sm:$0xff]
      %v2333 = vld [vmem:[#allocation2 + $0xc8] sm:$0xff]
      %v2334 = vld [vmem:[#allocation2 + $0xd0] sm:$0xff]
      %v2335 = vld [vmem:[#allocation2 + $0xd8] sm:$0xff]
      %v2336 = vld [vmem:[#allocation2 + $0xe0] sm:$0xff]
      %v2337 = vld [vmem:[#allocation2 + $0xe8] sm:$0xff]
      %v2338 = vld [vmem:[#allocation2 + $0xf0] sm:$0xff]
      %v2339 = vld [vmem:[#allocation2 + $0xf8] sm:$0xff]
      %v2340 = vld [vmem:[#allocation2 + $0x100] sm:$0xff]
      %v2341 = vld [vmem:[#allocation2 + $0x108] sm:$0x1]
      %s2342 = scalar_lea.vmem %s378, 192
      %v2343 = vld [vmem:[%s2342] sm:$0xf]
      %v2344 = vld [vmem:[%s2342 + $0x4] sm:$0xf]
      %v2345 = vld [vmem:[%s2342 + $0x8] sm:$0xf]
      %v2346 = vld [vmem:[%s2342 + $0xc] sm:$0xf]
      %v2347 = vld [vmem:[%s2342 + $0x10] sm:$0xf]
      %v2348 = vld [vmem:[%s2342 + $0x14] sm:$0xf]
      %v2349 = vld [vmem:[%s2342 + $0x18] sm:$0xf]
      %v2350 = vld [vmem:[%s2342 + $0x1c] sm:$0xf]
      %v2351 = vld [vmem:[%s2342 + $0x20] sm:$0xf]
      %v2352 = vld [vmem:[%s2342 + $0x24] sm:$0xf]
      %v2353 = vld [vmem:[%s2342 + $0x28] sm:$0xf]
      %v2354 = vld [vmem:[%s2342 + $0x2c] sm:$0xf]
      %v2355 = vld [vmem:[%s2342 + $0x30] sm:$0xf]
      %v2356 = vld [vmem:[%s2342 + $0x34] sm:$0xf]
      %v2357 = vld [vmem:[%s2342 + $0x38] sm:$0xf]
      %v2358 = vld [vmem:[%s2342 + $0x3c] sm:$0xf]
      %v2392 = vrot.slane %v2309, 1
      %v2393 = vrot.slane %v2310, 1
      %v2394 = vsel %vm1810, %v2392, %v2393
      %v2395 = vrot.slane %v2311, 1
      %v2396 = vsel %vm1810, %v2393, %v2395
      %v2397 = vrot.slane %v2312, 1
      %v2398 = vsel %vm1810, %v2395, %v2397
      %v2399 = vrot.slane %v2313, 1
      %v2400 = vsel %vm1810, %v2397, %v2399
      %v2401 = vrot.slane %v2314, 1
      %v2402 = vsel %vm1810, %v2399, %v2401
      %v2403 = vrot.slane %v2315, 1
      %v2404 = vsel %vm1810, %v2401, %v2403
      %v2405 = vrot.slane %v2316, 1
      %v2406 = vsel %vm1810, %v2403, %v2405
      %v2407 = vrot.slane %v2317, 1
      %v2408 = vsel %vm1810, %v2405, %v2407
      %v2409 = vrot.slane %v2318, 1
      %v2410 = vsel %vm1810, %v2407, %v2409
      %v2411 = vrot.slane %v2319, 1
      %v2412 = vsel %vm1810, %v2409, %v2411
      %v2413 = vrot.slane %v2320, 1
      %v2414 = vsel %vm1810, %v2411, %v2413
      %v2415 = vrot.slane %v2321, 1
      %v2416 = vsel %vm1810, %v2413, %v2415
      %v2417 = vrot.slane %v2322, 1
      %v2418 = vsel %vm1810, %v2415, %v2417
      %v2419 = vrot.slane %v2323, 1
      %v2420 = vsel %vm1810, %v2417, %v2419
      %v2421 = vrot.slane %v2324, 1
      %v2422 = vsel %vm1810, %v2419, %v2421
      %v2423 = vrot.slane %v2325, 1
      %v2424 = vsel %vm1810, %v2421, %v2423
      %v2425 = vrot.slane %v2326, 1
      %v2426 = vsel %vm1810, %v2423, %v2425
      %v2427 = vrot.slane %v2327, 1
      %v2428 = vsel %vm1810, %v2425, %v2427
      %v2429 = vrot.slane %v2328, 1
      %v2430 = vsel %vm1810, %v2427, %v2429
      %v2431 = vrot.slane %v2329, 1
      %v2432 = vsel %vm1810, %v2429, %v2431
      %v2433 = vrot.slane %v2330, 1
      %v2434 = vsel %vm1810, %v2431, %v2433
      %v2435 = vrot.slane %v2331, 1
      %v2436 = vsel %vm1810, %v2433, %v2435
      %v2437 = vrot.slane %v2332, 1
      %v2438 = vsel %vm1810, %v2435, %v2437
      %v2439 = vrot.slane %v2333, 1
      %v2440 = vsel %vm1810, %v2437, %v2439
      %v2441 = vrot.slane %v2334, 1
      %v2442 = vsel %vm1810, %v2439, %v2441
      %v2443 = vrot.slane %v2335, 1
      %v2444 = vsel %vm1810, %v2441, %v2443
      %v2445 = vrot.slane %v2336, 1
      %v2446 = vsel %vm1810, %v2443, %v2445
      %v2447 = vrot.slane %v2337, 1
      %v2448 = vsel %vm1810, %v2445, %v2447
      %v2449 = vrot.slane %v2338, 1
      %v2450 = vsel %vm1810, %v2447, %v2449
      %v2451 = vrot.slane %v2339, 1
      %v2452 = vsel %vm1810, %v2449, %v2451
      %v2453 = vrot.slane %v2340, 1
      %v2454 = vsel %vm1810, %v2451, %v2453
      %v2455 = vrot.slane %v2341, 1
      %v2456 = vsel %vm1810, %v2453, %v2455
      %v2505 = vunpack.c.l.b16 %v2343
      %v2506 = vunpack.c.l.b16 %v2344
      %v2507 = vunpack.c.l.b16 %v2345
      %v2508 = vunpack.c.l.b16 %v2346
      %v2509 = vunpack.c.l.b16 %v2347
      %v2510 = vunpack.c.l.b16 %v2348
      %v2511 = vunpack.c.l.b16 %v2349
      %v2512 = vunpack.c.l.b16 %v2350
      %v2513 = vunpack.c.l.b16 %v2351
      %v2514 = vunpack.c.l.b16 %v2352
      %v2515 = vunpack.c.l.b16 %v2353
      %v2516 = vunpack.c.l.b16 %v2354
      %v2517 = vunpack.c.l.b16 %v2355
      %v2518 = vunpack.c.l.b16 %v2356
      %v2519 = vunpack.c.l.b16 %v2357
      %v2520 = vunpack.c.l.b16 %v2358
      %v2521 = vpack.c.b16 %v2506, %v2505
      %v2522 = vpack.c.b16 %v2508, %v2507
      %v2523 = vpack.c.b16 %v2510, %v2509
      %v2524 = vpack.c.b16 %v2512, %v2511
      %v2525 = vpack.c.b16 %v2514, %v2513
      %v2526 = vpack.c.b16 %v2516, %v2515
      %v2527 = vpack.c.b16 %v2518, %v2517
      %v2528 = vpack.c.b16 %v2520, %v2519
      %2537 = vmatprep.subr.bf16.mxu0 0
      %2538 = vmatpush1.bf16.msra.mxu0 %v2521
      %2539 = vmatprep.subr.bf16.mxu0 0
      %2540 = vmatpush1.bf16.msra.mxu0 %v2522
      %2541 = vmatprep.subr.bf16.mxu0 0
      %2542 = vmatpush1.bf16.msra.mxu0 %v2523
      %2543 = vmatprep.subr.bf16.mxu0 0
      %2544 = vmatpush1.bf16.msra.mxu0 %v2524
      %2545 = vmatprep.subr.bf16.mxu0 0
      %2546 = vmatpush1.bf16.msra.mxu0 %v2525
      %2547 = vmatprep.subr.bf16.mxu0 0
      %2548 = vmatpush1.bf16.msra.mxu0 %v2526
      %2549 = vmatprep.subr.bf16.mxu0 0
      %2550 = vmatpush1.bf16.msra.mxu0 %v2527
      %2551 = vmatprep.subr.bf16.mxu0 0
      %2552 = vmatpush1.bf16.msra.mxu0 %v2528
      %2553 = vmatprep.subr.bf16.mxu0 0
      %2554 = vmatpush1.bf16.msra.mxu0 0
      %2555 = vmatprep.subr.bf16.mxu0 0
      %2556 = vmatpush1.bf16.msra.mxu0 0
      %2557 = vmatprep.subr.bf16.mxu0 0
      %2558 = vmatpush1.bf16.msra.mxu0 0
      %2559 = vmatprep.subr.bf16.mxu0 0
      %2560 = vmatpush1.bf16.msra.mxu0 0
      %2561 = vmatprep.subr.bf16.mxu0 0
      %2562 = vmatpush1.bf16.msra.mxu0 0
      %2563 = vmatprep.subr.bf16.mxu0 0
      %2564 = vmatpush1.bf16.msra.mxu0 0
      %2565 = vmatprep.subr.bf16.mxu0 0
      %2566 = vmatpush1.bf16.msra.mxu0 0
      %2567 = vmatprep.subr.bf16.mxu0 0
      %2568 = vmatpush1.bf16.msra.mxu0 0
      %2569 = vmatprep.mubr.bf16.mxu0 0
      %2570 = vmatmul.mubr.bf16.gmra.mrb[0].mxu0 %v2394
      %v2571 = vpop.f32.mrb[0].mxu0
      %v2572 = vadd.f32 0.0, %v2571
      %v2573 = vpop.f32.mrb[0].mxu0
      %v2574 = vpop.f32.mrb[0].mxu0
      %v2575 = vadd.f32 0.0, %v2574
      %v2576 = vpop.f32.mrb[0].mxu0
      %2577 = vmatprep.mubr.bf16.mxu0 0
      %2578 = vmatmul.mubr.bf16.gmra.mrb[0].mxu0 %v2396
      %v2579 = vpop.f32.mrb[0].mxu0
      %v2580 = vadd.f32 0.0, %v2579
      %v2581 = vpop.f32.mrb[0].mxu0
      %v2582 = vpop.f32.mrb[0].mxu0
      %v2583 = vadd.f32 0.0, %v2582
      %v2584 = vpop.f32.mrb[0].mxu0
      %2585 = vmatprep.mubr.bf16.mxu0 0
      %2586 = vmatmul.mubr.bf16.gmra.mrb[0].mxu0 %v2398
      %v2587 = vpop.f32.mrb[0].mxu0
      %v2588 = vadd.f32 0.0, %v2587
      %v2589 = vpop.f32.mrb[0].mxu0
      %v2590 = vpop.f32.mrb[0].mxu0
      %v2591 = vadd.f32 0.0, %v2590
      %v2592 = vpop.f32.mrb[0].mxu0
      %2593 = vmatprep.mubr.bf16.mxu0 0
      %2594 = vmatmul.mubr.bf16.gmra.mrb[0].mxu0 %v2400
      %v2595 = vpop.f32.mrb[0].mxu0
      %v2596 = vadd.f32 0.0, %v2595
      %v2597 = vpop.f32.mrb[0].mxu0
      %v2598 = vpop.f32.mrb[0].mxu0
      %v2599 = vadd.f32 0.0, %v2598
      %v2600 = vpop.f32.mrb[0].mxu0
      %2601 = vmatprep.mubr.bf16.mxu0 0
      %2602 = vmatmul.mubr.bf16.gmra.mrb[0].mxu0 %v2402
      %v2603 = vpop.f32.mrb[0].mxu0
      %v2604 = vadd.f32 0.0, %v2603
      %v2605 = vpop.f32.mrb[0].mxu0
      %v2606 = vpop.f32.mrb[0].mxu0
      %v2607 = vadd.f32 0.0, %v2606
      %v2608 = vpop.f32.mrb[0].mxu0
      %2609 = vmatprep.mubr.bf16.mxu0 0
      %2610 = vmatmul.mubr.bf16.gmra.mrb[0].mxu0 %v2404
      %v2611 = vpop.f32.mrb[0].mxu0
      %v2612 = vadd.f32 0.0, %v2611
      %v2613 = vpop.f32.mrb[0].mxu0
      %v2614 = vpop.f32.mrb[0].mxu0
      %v2615 = vadd.f32 0.0, %v2614
      %v2616 = vpop.f32.mrb[0].mxu0
      %2617 = vmatprep.mubr.bf16.mxu0 0
      %2618 = vmatmul.mubr.bf16.gmra.mrb[0].mxu0 %v2406
      %v2619 = vpop.f32.mrb[0].mxu0
      %v2620 = vadd.f32 0.0, %v2619
      %v2621 = vpop.f32.mrb[0].mxu0
      %v2622 = vpop.f32.mrb[0].mxu0
      %v2623 = vadd.f32 0.0, %v2622
      %v2624 = vpop.f32.mrb[0].mxu0
      %2625 = vmatprep.mubr.bf16.mxu0 0
      %2626 = vmatmul.mubr.bf16.gmra.mrb[0].mxu0 %v2408
      %v2627 = vpop.f32.mrb[0].mxu0
      %v2628 = vadd.f32 0.0, %v2627
      %v2629 = vpop.f32.mrb[0].mxu0
      %v2630 = vpop.f32.mrb[0].mxu0
      %v2631 = vadd.f32 0.0, %v2630
      %v2632 = vpop.f32.mrb[0].mxu0
      %2633 = vmatprep.mubr.bf16.mxu0 0
      %2634 = vmatmul.mubr.bf16.gmra.mrb[0].mxu0 %v2410
      %v2635 = vpop.f32.mrb[0].mxu0
      %v2636 = vadd.f32 0.0, %v2635
      %v2637 = vpop.f32.mrb[0].mxu0
      %v2638 = vpop.f32.mrb[0].mxu0
      %v2639 = vadd.f32 0.0, %v2638
      %v2640 = vpop.f32.mrb[0].mxu0
      %2641 = vmatprep.mubr.bf16.mxu0 0
      %2642 = vmatmul.mubr.bf16.gmra.mrb[0].mxu0 %v2412
      %v2643 = vpop.f32.mrb[0].mxu0
      %v2644 = vadd.f32 0.0, %v2643
      %v2645 = vpop.f32.mrb[0].mxu0
      %v2646 = vpop.f32.mrb[0].mxu0
      %v2647 = vadd.f32 0.0, %v2646
      %v2648 = vpop.f32.mrb[0].mxu0
      %2649 = vmatprep.mubr.bf16.mxu0 0
      %2650 = vmatmul.mubr.bf16.gmra.mrb[0].mxu0 %v2414
      %v2651 = vpop.f32.mrb[0].mxu0
      %v2652 = vadd.f32 0.0, %v2651
      %v2653 = vpop.f32.mrb[0].mxu0
      %v2654 = vpop.f32.mrb[0].mxu0
      %v2655 = vadd.f32 0.0, %v2654
      %v2656 = vpop.f32.mrb[0].mxu0
      %2657 = vmatprep.mubr.bf16.mxu0 0
      %2658 = vmatmul.mubr.bf16.gmra.mrb[0].mxu0 %v2416
      %v2659 = vpop.f32.mrb[0].mxu0
      %v2660 = vadd.f32 0.0, %v2659
      %v2661 = vpop.f32.mrb[0].mxu0
      %v2662 = vpop.f32.mrb[0].mxu0
      %v2663 = vadd.f32 0.0, %v2662
      %v2664 = vpop.f32.mrb[0].mxu0
      %2665 = vmatprep.mubr.bf16.mxu0 0
      %2666 = vmatmul.mubr.bf16.gmra.mrb[0].mxu0 %v2418
      %v2667 = vpop.f32.mrb[0].mxu0
      %v2668 = vadd.f32 0.0, %v2667
      %v2669 = vpop.f32.mrb[0].mxu0
      %v2670 = vpop.f32.mrb[0].mxu0
      %v2671 = vadd.f32 0.0, %v2670
      %v2672 = vpop.f32.mrb[0].mxu0
      %2673 = vmatprep.mubr.bf16.mxu0 0
      %2674 = vmatmul.mubr.bf16.gmra.mrb[0].mxu0 %v2420
      %v2675 = vpop.f32.mrb[0].mxu0
      %v2676 = vadd.f32 0.0, %v2675
      %v2677 = vpop.f32.mrb[0].mxu0
      %v2678 = vpop.f32.mrb[0].mxu0
      %v2679 = vadd.f32 0.0, %v2678
      %v2680 = vpop.f32.mrb[0].mxu0
      %2681 = vmatprep.mubr.bf16.mxu0 0
      %2682 = vmatmul.mubr.bf16.gmra.mrb[0].mxu0 %v2422
      %v2683 = vpop.f32.mrb[0].mxu0
      %v2684 = vadd.f32 0.0, %v2683
      %v2685 = vpop.f32.mrb[0].mxu0
      %v2686 = vpop.f32.mrb[0].mxu0
      %v2687 = vadd.f32 0.0, %v2686
      %v2688 = vpop.f32.mrb[0].mxu0
      %2689 = vmatprep.mubr.bf16.mxu0 0
      %2690 = vmatmul.mubr.bf16.gmra.mrb[0].mxu0 %v2424
      %v2691 = vpop.f32.mrb[0].mxu0
      %v2692 = vadd.f32 0.0, %v2691
      %v2693 = vpop.f32.mrb[0].mxu0
      %v2694 = vpop.f32.mrb[0].mxu0
      %v2695 = vadd.f32 0.0, %v2694
      %v2696 = vpop.f32.mrb[0].mxu0
      %2697 = vmatprep.mubr.bf16.mxu0 0
      %2698 = vmatmul.mubr.bf16.gmra.mrb[0].mxu0 %v2426
      %v2699 = vpop.f32.mrb[0].mxu0
      %v2700 = vadd.f32 0.0, %v2699
      %v2701 = vpop.f32.mrb[0].mxu0
      %v2702 = vpop.f32.mrb[0].mxu0
      %v2703 = vadd.f32 0.0, %v2702
      %v2704 = vpop.f32.mrb[0].mxu0
      %2705 = vmatprep.mubr.bf16.mxu0 0
      %2706 = vmatmul.mubr.bf16.gmra.mrb[0].mxu0 %v2428
      %v2707 = vpop.f32.mrb[0].mxu0
      %v2708 = vadd.f32 0.0, %v2707
      %v2709 = vpop.f32.mrb[0].mxu0
      %v2710 = vpop.f32.mrb[0].mxu0
      %v2711 = vadd.f32 0.0, %v2710
      %v2712 = vpop.f32.mrb[0].mxu0
      %2713 = vmatprep.mubr.bf16.mxu0 0
      %2714 = vmatmul.mubr.bf16.gmra.mrb[0].mxu0 %v2430
      %v2715 = vpop.f32.mrb[0].mxu0
      %v2716 = vadd.f32 0.0, %v2715
      %v2717 = vpop.f32.mrb[0].mxu0
      %v2718 = vpop.f32.mrb[0].mxu0
      %v2719 = vadd.f32 0.0, %v2718
      %v2720 = vpop.f32.mrb[0].mxu0
      %2721 = vmatprep.mubr.bf16.mxu0 0
      %2722 = vmatmul.mubr.bf16.gmra.mrb[0].mxu0 %v2432
      %v2723 = vpop.f32.mrb[0].mxu0
      %v2724 = vadd.f32 0.0, %v2723
      %v2725 = vpop.f32.mrb[0].mxu0
      %v2726 = vpop.f32.mrb[0].mxu0
      %v2727 = vadd.f32 0.0, %v2726
      %v2728 = vpop.f32.mrb[0].mxu0
      %2729 = vmatprep.mubr.bf16.mxu0 0
      %2730 = vmatmul.mubr.bf16.gmra.mrb[0].mxu0 %v2434
      %v2731 = vpop.f32.mrb[0].mxu0
      %v2732 = vadd.f32 0.0, %v2731
      %v2733 = vpop.f32.mrb[0].mxu0
      %v2734 = vpop.f32.mrb[0].mxu0
      %v2735 = vadd.f32 0.0, %v2734
      %v2736 = vpop.f32.mrb[0].mxu0
      %2737 = vmatprep.mubr.bf16.mxu0 0
      %2738 = vmatmul.mubr.bf16.gmra.mrb[0].mxu0 %v2436
      %v2739 = vpop.f32.mrb[0].mxu0
      %v2740 = vadd.f32 0.0, %v2739
      %v2741 = vpop.f32.mrb[0].mxu0
      %v2742 = vpop.f32.mrb[0].mxu0
      %v2743 = vadd.f32 0.0, %v2742
      %v2744 = vpop.f32.mrb[0].mxu0
      %2745 = vmatprep.mubr.bf16.mxu0 0
      %2746 = vmatmul.mubr.bf16.gmra.mrb[0].mxu0 %v2438
      %v2747 = vpop.f32.mrb[0].mxu0
      %v2748 = vadd.f32 0.0, %v2747
      %v2749 = vpop.f32.mrb[0].mxu0
      %v2750 = vpop.f32.mrb[0].mxu0
      %v2751 = vadd.f32 0.0, %v2750
      %v2752 = vpop.f32.mrb[0].mxu0
      %2753 = vmatprep.mubr.bf16.mxu0 0
      %2754 = vmatmul.mubr.bf16.gmra.mrb[0].mxu0 %v2440
      %v2755 = vpop.f32.mrb[0].mxu0
      %v2756 = vadd.f32 0.0, %v2755
      %v2757 = vpop.f32.mrb[0].mxu0
      %v2758 = vpop.f32.mrb[0].mxu0
      %v2759 = vadd.f32 0.0, %v2758
      %v2760 = vpop.f32.mrb[0].mxu0
      %2761 = vmatprep.mubr.bf16.mxu0 0
      %2762 = vmatmul.mubr.bf16.gmra.mrb[0].mxu0 %v2442
      %v2763 = vpop.f32.mrb[0].mxu0
      %v2764 = vadd.f32 0.0, %v2763
      %v2765 = vpop.f32.mrb[0].mxu0
      %v2766 = vpop.f32.mrb[0].mxu0
      %v2767 = vadd.f32 0.0, %v2766
      %v2768 = vpop.f32.mrb[0].mxu0
      %2769 = vmatprep.mubr.bf16.mxu0 0
      %2770 = vmatmul.mubr.bf16.gmra.mrb[0].mxu0 %v2444
      %v2771 = vpop.f32.mrb[0].mxu0
      %v2772 = vadd.f32 0.0, %v2771
      %v2773 = vpop.f32.mrb[0].mxu0
      %v2774 = vpop.f32.mrb[0].mxu0
      %v2775 = vadd.f32 0.0, %v2774
      %v2776 = vpop.f32.mrb[0].mxu0
      %2777 = vmatprep.mubr.bf16.mxu0 0
      %2778 = vmatmul.mubr.bf16.gmra.mrb[0].mxu0 %v2446
      %v2779 = vpop.f32.mrb[0].mxu0
      %v2780 = vadd.f32 0.0, %v2779
      %v2781 = vpop.f32.mrb[0].mxu0
      %v2782 = vpop.f32.mrb[0].mxu0
      %v2783 = vadd.f32 0.0, %v2782
      %v2784 = vpop.f32.mrb[0].mxu0
      %2785 = vmatprep.mubr.bf16.mxu0 0
      %2786 = vmatmul.mubr.bf16.gmra.mrb[0].mxu0 %v2448
      %v2787 = vpop.f32.mrb[0].mxu0
      %v2788 = vadd.f32 0.0, %v2787
      %v2789 = vpop.f32.mrb[0].mxu0
      %v2790 = vpop.f32.mrb[0].mxu0
      %v2791 = vadd.f32 0.0, %v2790
      %v2792 = vpop.f32.mrb[0].mxu0
      %2793 = vmatprep.mubr.bf16.mxu0 0
      %2794 = vmatmul.mubr.bf16.gmra.mrb[0].mxu0 %v2450
      %v2795 = vpop.f32.mrb[0].mxu0
      %v2796 = vadd.f32 0.0, %v2795
      %v2797 = vpop.f32.mrb[0].mxu0
      %v2798 = vpop.f32.mrb[0].mxu0
      %v2799 = vadd.f32 0.0, %v2798
      %v2800 = vpop.f32.mrb[0].mxu0
      %2801 = vmatprep.mubr.bf16.mxu0 0
      %2802 = vmatmul.mubr.bf16.gmra.mrb[0].mxu0 %v2452
      %v2803 = vpop.f32.mrb[0].mxu0
      %v2804 = vadd.f32 0.0, %v2803
      %v2805 = vpop.f32.mrb[0].mxu0
      %v2806 = vpop.f32.mrb[0].mxu0
      %v2807 = vadd.f32 0.0, %v2806
      %v2808 = vpop.f32.mrb[0].mxu0
      %2809 = vmatprep.mubr.bf16.mxu0 0
      %2810 = vmatmul.mubr.bf16.gmra.mrb[0].mxu0 %v2454
      %v2811 = vpop.f32.mrb[0].mxu0
      %v2812 = vadd.f32 0.0, %v2811
      %v2813 = vpop.f32.mrb[0].mxu0
      %v2814 = vpop.f32.mrb[0].mxu0
      %v2815 = vadd.f32 0.0, %v2814
      %v2816 = vpop.f32.mrb[0].mxu0
      %2817 = vmatprep.mubr.bf16.mxu0 0
      %2818 = vmatmul.mubr.bf16.gmra.mrb[0].mxu0 %v2456
      %v2819 = vpop.f32.mrb[0].mxu0
      %v2820 = vadd.f32 0.0, %v2819
      %v2821 = vpop.f32.mrb[0].mxu0
      %v2822 = vpop.f32.mrb[0].mxu0
      %v2823 = vadd.f32 0.0, %v2822
      %v2824 = vpop.f32.mrb[0].mxu0
      %2825 = vdwg.mxu0
      %v2826 = vadd.f32 %v2245, %v2572
      %v2827 = vadd.f32 %v2246, %v2575
      %v2828 = vadd.f32 %v2247, %v2580
      %v2829 = vadd.f32 %v2248, %v2583
      %v2830 = vadd.f32 %v2249, %v2588
      %v2831 = vadd.f32 %v2250, %v2591
      %v2832 = vadd.f32 %v2251, %v2596
      %v2833 = vadd.f32 %v2252, %v2599
      %v2834 = vadd.f32 %v2253, %v2604
      %v2835 = vadd.f32 %v2254, %v2607
      %v2836 = vadd.f32 %v2255, %v2612
      %v2837 = vadd.f32 %v2256, %v2615
      %v2838 = vadd.f32 %v2257, %v2620
      %v2839 = vadd.f32 %v2258, %v2623
      %v2840 = vadd.f32 %v2259, %v2628
      %v2841 = vadd.f32 %v2260, %v2631
      %v2842 = vadd.f32 %v2261, %v2636
      %v2843 = vadd.f32 %v2262, %v2639
      %v2844 = vadd.f32 %v2263, %v2644
      %v2845 = vadd.f32 %v2264, %v2647
      %v2846 = vadd.f32 %v2265, %v2652
      %v2847 = vadd.f32 %v2266, %v2655
      %v2848 = vadd.f32 %v2267, %v2660
      %v2849 = vadd.f32 %v2268, %v2663
      %v2850 = vadd.f32 %v2269, %v2668
      %v2851 = vadd.f32 %v2270, %v2671
      %v2852 = vadd.f32 %v2271, %v2676
      %v2853 = vadd.f32 %v2272, %v2679
      %v2854 = vadd.f32 %v2273, %v2684
      %v2855 = vadd.f32 %v2274, %v2687
      %v2856 = vadd.f32 %v2275, %v2692
      %v2857 = vadd.f32 %v2276, %v2695
      %v2858 = vadd.f32 %v2277, %v2700
      %v2859 = vadd.f32 %v2278, %v2703
      %v2860 = vadd.f32 %v2279, %v2708
      %v2861 = vadd.f32 %v2280, %v2711
      %v2862 = vadd.f32 %v2281, %v2716
      %v2863 = vadd.f32 %v2282, %v2719
      %v2864 = vadd.f32 %v2283, %v2724
      %v2865 = vadd.f32 %v2284, %v2727
      %v2866 = vadd.f32 %v2285, %v2732
      %v2867 = vadd.f32 %v2286, %v2735
      %v2868 = vadd.f32 %v2287, %v2740
      %v2869 = vadd.f32 %v2288, %v2743
      %v2870 = vadd.f32 %v2289, %v2748
      %v2871 = vadd.f32 %v2290, %v2751
      %v2872 = vadd.f32 %v2291, %v2756
      %v2873 = vadd.f32 %v2292, %v2759
      %v2874 = vadd.f32 %v2293, %v2764
      %v2875 = vadd.f32 %v2294, %v2767
      %v2876 = vadd.f32 %v2295, %v2772
      %v2877 = vadd.f32 %v2296, %v2775
      %v2878 = vadd.f32 %v2297, %v2780
      %v2879 = vadd.f32 %v2298, %v2783
      %v2880 = vadd.f32 %v2299, %v2788
      %v2881 = vadd.f32 %v2300, %v2791
      %v2882 = vadd.f32 %v2301, %v2796
      %v2883 = vadd.f32 %v2302, %v2799
      %v2884 = vadd.f32 %v2303, %v2804
      %v2885 = vadd.f32 %v2304, %v2807
      %v2886 = vadd.f32 %v2305, %v2812
      %v2887 = vadd.f32 %v2306, %v2815
      %v2888 = vadd.f32 %v2307, %v2820
      %v2889 = vadd.f32 %v2308, %v2823
      %v2890 = vld [vmem:[#allocation2 + $0x108] sm:$0x3]
      %s2891 = scalar_lea.vmem %s378, 256
      %v2892 = vld [vmem:[%s2891] sm:$0xf]
      %v2893 = vld [vmem:[%s2891 + $0x4] sm:$0xf]
      %v2894 = vld [vmem:[%s2891 + $0x8] sm:$0xf]
      %v2895 = vld [vmem:[%s2891 + $0xc] sm:$0xf]
      %v2896 = vld [vmem:[%s2891 + $0x10] sm:$0xf]
      %v2897 = vld [vmem:[%s2891 + $0x14] sm:$0xf]
      %v2898 = vld [vmem:[%s2891 + $0x18] sm:$0xf]
      %v2899 = vld [vmem:[%s2891 + $0x1c] sm:$0xf]
      %v2900 = vld [vmem:[%s2891 + $0x20] sm:$0xf]
      %v2901 = vld [vmem:[%s2891 + $0x24] sm:$0xf]
      %v2902 = vld [vmem:[%s2891 + $0x28] sm:$0xf]
      %v2903 = vld [vmem:[%s2891 + $0x2c] sm:$0xf]
      %v2904 = vld [vmem:[%s2891 + $0x30] sm:$0xf]
      %v2905 = vld [vmem:[%s2891 + $0x34] sm:$0xf]
      %v2906 = vld [vmem:[%s2891 + $0x38] sm:$0xf]
      %v2907 = vld [vmem:[%s2891 + $0x3c] sm:$0xf]
      %vm2908 = vsmask.f32 6400
      %v2910 = vshrl.u32 %v2309, 16
      %v2912 = vrot.slane %v2910, 1
      %v2913 = vshll.u32 %v2309, 16
      %v2915 = vrot.slane %v2913, 2
      %v2916 = vor.u32 %v2912, %v2915
      %v2918 = vshrl.u32 %v2310, 16
      %v2920 = vrot.slane %v2918, 1
      %v2921 = vshll.u32 %v2310, 16
      %v2923 = vrot.slane %v2921, 2
      %v2924 = vor.u32 %v2920, %v2923
      %v2925 = vsel %vm2908, %v2916, %v2924
      %v2927 = vshrl.u32 %v2311, 16
      %v2929 = vrot.slane %v2927, 1
      %v2930 = vshll.u32 %v2311, 16
      %v2932 = vrot.slane %v2930, 2
      %v2933 = vor.u32 %v2929, %v2932
      %v2934 = vsel %vm2908, %v2924, %v2933
      %v2936 = vshrl.u32 %v2312, 16
      %v2938 = vrot.slane %v2936, 1
      %v2939 = vshll.u32 %v2312, 16
      %v2941 = vrot.slane %v2939, 2
      %v2942 = vor.u32 %v2938, %v2941
      %v2943 = vsel %vm2908, %v2933, %v2942
      %v2945 = vshrl.u32 %v2313, 16
      %v2947 = vrot.slane %v2945, 1
      %v2948 = vshll.u32 %v2313, 16
      %v2950 = vrot.slane %v2948, 2
      %v2951 = vor.u32 %v2947, %v2950
      %v2952 = vsel %vm2908, %v2942, %v2951
      %v2954 = vshrl.u32 %v2314, 16
      %v2956 = vrot.slane %v2954, 1
      %v2957 = vshll.u32 %v2314, 16
      %v2959 = vrot.slane %v2957, 2
      %v2960 = vor.u32 %v2956, %v2959
      %v2961 = vsel %vm2908, %v2951, %v2960
      %v2963 = vshrl.u32 %v2315, 16
      %v2965 = vrot.slane %v2963, 1
      %v2966 = vshll.u32 %v2315, 16
      %v2968 = vrot.slane %v2966, 2
      %v2969 = vor.u32 %v2965, %v2968
      %v2970 = vsel %vm2908, %v2960, %v2969
      %v2972 = vshrl.u32 %v2316, 16
      %v2974 = vrot.slane %v2972, 1
      %v2975 = vshll.u32 %v2316, 16
      %v2977 = vrot.slane %v2975, 2
      %v2978 = vor.u32 %v2974, %v2977
      %v2979 = vsel %vm2908, %v2969, %v2978
      %v2981 = vshrl.u32 %v2317, 16
      %v2983 = vrot.slane %v2981, 1
      %v2984 = vshll.u32 %v2317, 16
      %v2986 = vrot.slane %v2984, 2
      %v2987 = vor.u32 %v2983, %v2986
      %v2988 = vsel %vm2908, %v2978, %v2987
      %v2990 = vshrl.u32 %v2318, 16
      %v2992 = vrot.slane %v2990, 1
      %v2993 = vshll.u32 %v2318, 16
      %v2995 = vrot.slane %v2993, 2
      %v2996 = vor.u32 %v2992, %v2995
      %v2997 = vsel %vm2908, %v2987, %v2996
      %v2999 = vshrl.u32 %v2319, 16
      %v3001 = vrot.slane %v2999, 1
      %v3002 = vshll.u32 %v2319, 16
      %v3004 = vrot.slane %v3002, 2
      %v3005 = vor.u32 %v3001, %v3004
      %v3006 = vsel %vm2908, %v2996, %v3005
      %v3008 = vshrl.u32 %v2320, 16
      %v3010 = vrot.slane %v3008, 1
      %v3011 = vshll.u32 %v2320, 16
      %v3013 = vrot.slane %v3011, 2
      %v3014 = vor.u32 %v3010, %v3013
      %v3015 = vsel %vm2908, %v3005, %v3014
      %v3017 = vshrl.u32 %v2321, 16
      %v3019 = vrot.slane %v3017, 1
      %v3020 = vshll.u32 %v2321, 16
      %v3022 = vrot.slane %v3020, 2
      %v3023 = vor.u32 %v3019, %v3022
      %v3024 = vsel %vm2908, %v3014, %v3023
      %v3026 = vshrl.u32 %v2322, 16
      %v3028 = vrot.slane %v3026, 1
      %v3029 = vshll.u32 %v2322, 16
      %v3031 = vrot.slane %v3029, 2
      %v3032 = vor.u32 %v3028, %v3031
      %v3033 = vsel %vm2908, %v3023, %v3032
      %v3035 = vshrl.u32 %v2323, 16
      %v3037 = vrot.slane %v3035, 1
      %v3038 = vshll.u32 %v2323, 16
      %v3040 = vrot.slane %v3038, 2
      %v3041 = vor.u32 %v3037, %v3040
      %v3042 = vsel %vm2908, %v3032, %v3041
      %v3044 = vshrl.u32 %v2324, 16
      %v3046 = vrot.slane %v3044, 1
      %v3047 = vshll.u32 %v2324, 16
      %v3049 = vrot.slane %v3047, 2
      %v3050 = vor.u32 %v3046, %v3049
      %v3051 = vsel %vm2908, %v3041, %v3050
      %v3053 = vshrl.u32 %v2325, 16
      %v3055 = vrot.slane %v3053, 1
      %v3056 = vshll.u32 %v2325, 16
      %v3058 = vrot.slane %v3056, 2
      %v3059 = vor.u32 %v3055, %v3058
      %v3060 = vsel %vm2908, %v3050, %v3059
      %v3062 = vshrl.u32 %v2326, 16
      %v3064 = vrot.slane %v3062, 1
      %v3065 = vshll.u32 %v2326, 16
      %v3067 = vrot.slane %v3065, 2
      %v3068 = vor.u32 %v3064, %v3067
      %v3069 = vsel %vm2908, %v3059, %v3068
      %v3071 = vshrl.u32 %v2327, 16
      %v3073 = vrot.slane %v3071, 1
      %v3074 = vshll.u32 %v2327, 16
      %v3076 = vrot.slane %v3074, 2
      %v3077 = vor.u32 %v3073, %v3076
      %v3078 = vsel %vm2908, %v3068, %v3077
      %v3080 = vshrl.u32 %v2328, 16
      %v3082 = vrot.slane %v3080, 1
      %v3083 = vshll.u32 %v2328, 16
      %v3085 = vrot.slane %v3083, 2
      %v3086 = vor.u32 %v3082, %v3085
      %v3087 = vsel %vm2908, %v3077, %v3086
      %v3089 = vshrl.u32 %v2329, 16
      %v3091 = vrot.slane %v3089, 1
      %v3092 = vshll.u32 %v2329, 16
      %v3094 = vrot.slane %v3092, 2
      %v3095 = vor.u32 %v3091, %v3094
      %v3096 = vsel %vm2908, %v3086, %v3095
      %v3098 = vshrl.u32 %v2330, 16
      %v3100 = vrot.slane %v3098, 1
      %v3101 = vshll.u32 %v2330, 16
      %v3103 = vrot.slane %v3101, 2
      %v3104 = vor.u32 %v3100, %v3103
      %v3105 = vsel %vm2908, %v3095, %v3104
      %v3107 = vshrl.u32 %v2331, 16
      %v3109 = vrot.slane %v3107, 1
      %v3110 = vshll.u32 %v2331, 16
      %v3112 = vrot.slane %v3110, 2
      %v3113 = vor.u32 %v3109, %v3112
      %v3114 = vsel %vm2908, %v3104, %v3113
      %v3116 = vshrl.u32 %v2332, 16
      %v3118 = vrot.slane %v3116, 1
      %v3119 = vshll.u32 %v2332, 16
      %v3121 = vrot.slane %v3119, 2
      %v3122 = vor.u32 %v3118, %v3121
      %v3123 = vsel %vm2908, %v3113, %v3122
      %v3125 = vshrl.u32 %v2333, 16
      %v3127 = vrot.slane %v3125, 1
      %v3128 = vshll.u32 %v2333, 16
      %v3130 = vrot.slane %v3128, 2
      %v3131 = vor.u32 %v3127, %v3130
      %v3132 = vsel %vm2908, %v3122, %v3131
      %v3134 = vshrl.u32 %v2334, 16
      %v3136 = vrot.slane %v3134, 1
      %v3137 = vshll.u32 %v2334, 16
      %v3139 = vrot.slane %v3137, 2
      %v3140 = vor.u32 %v3136, %v3139
      %v3141 = vsel %vm2908, %v3131, %v3140
      %v3143 = vshrl.u32 %v2335, 16
      %v3145 = vrot.slane %v3143, 1
      %v3146 = vshll.u32 %v2335, 16
      %v3148 = vrot.slane %v3146, 2
      %v3149 = vor.u32 %v3145, %v3148
      %v3150 = vsel %vm2908, %v3140, %v3149
      %v3152 = vshrl.u32 %v2336, 16
      %v3154 = vrot.slane %v3152, 1
      %v3155 = vshll.u32 %v2336, 16
      %v3157 = vrot.slane %v3155, 2
      %v3158 = vor.u32 %v3154, %v3157
      %v3159 = vsel %vm2908, %v3149, %v3158
      %v3161 = vshrl.u32 %v2337, 16
      %v3163 = vrot.slane %v3161, 1
      %v3164 = vshll.u32 %v2337, 16
      %v3166 = vrot.slane %v3164, 2
      %v3167 = vor.u32 %v3163, %v3166
      %v3168 = vsel %vm2908, %v3158, %v3167
      %v3170 = vshrl.u32 %v2338, 16
      %v3172 = vrot.slane %v3170, 1
      %v3173 = vshll.u32 %v2338, 16
      %v3175 = vrot.slane %v3173, 2
      %v3176 = vor.u32 %v3172, %v3175
      %v3177 = vsel %vm2908, %v3167, %v3176
      %v3179 = vshrl.u32 %v2339, 16
      %v3181 = vrot.slane %v3179, 1
      %v3182 = vshll.u32 %v2339, 16
      %v3184 = vrot.slane %v3182, 2
      %v3185 = vor.u32 %v3181, %v3184
      %v3186 = vsel %vm2908, %v3176, %v3185
      %v3188 = vshrl.u32 %v2340, 16
      %v3190 = vrot.slane %v3188, 1
      %v3191 = vshll.u32 %v2340, 16
      %v3193 = vrot.slane %v3191, 2
      %v3194 = vor.u32 %v3190, %v3193
      %v3195 = vsel %vm2908, %v3185, %v3194
      %v3197 = vshrl.u32 %v2890, 16
      %v3199 = vrot.slane %v3197, 1
      %v3200 = vshll.u32 %v2890, 16
      %v3202 = vrot.slane %v3200, 2
      %v3203 = vor.u32 %v3199, %v3202
      %v3204 = vsel %vm2908, %v3194, %v3203
      %v3253 = vunpack.c.l.b16 %v2892
      %v3254 = vunpack.c.l.b16 %v2893
      %v3255 = vunpack.c.l.b16 %v2894
      %v3256 = vunpack.c.l.b16 %v2895
      %v3257 = vunpack.c.l.b16 %v2896
      %v3258 = vunpack.c.l.b16 %v2897
      %v3259 = vunpack.c.l.b16 %v2898
      %v3260 = vunpack.c.l.b16 %v2899
      %v3261 = vunpack.c.l.b16 %v2900
      %v3262 = vunpack.c.l.b16 %v2901
      %v3263 = vunpack.c.l.b16 %v2902
      %v3264 = vunpack.c.l.b16 %v2903
      %v3265 = vunpack.c.l.b16 %v2904
      %v3266 = vunpack.c.l.b16 %v2905
      %v3267 = vunpack.c.l.b16 %v2906
      %v3268 = vunpack.c.l.b16 %v2907
      %v3269 = vpack.c.b16 %v3254, %v3253
      %v3270 = vpack.c.b16 %v3256, %v3255
      %v3271 = vpack.c.b16 %v3258, %v3257
      %v3272 = vpack.c.b16 %v3260, %v3259
      %v3273 = vpack.c.b16 %v3262, %v3261
      %v3274 = vpack.c.b16 %v3264, %v3263
      %v3275 = vpack.c.b16 %v3266, %v3265
      %v3276 = vpack.c.b16 %v3268, %v3267
      %3285 = vmatprep.subr.bf16.mxu0 0
      %3286 = vmatpush1.bf16.msra.mxu0 %v3269
      %3287 = vmatprep.subr.bf16.mxu0 0
      %3288 = vmatpush1.bf16.msra.mxu0 %v3270
      %3289 = vmatprep.subr.bf16.mxu0 0
      %3290 = vmatpush1.bf16.msra.mxu0 %v3271
      %3291 = vmatprep.subr.bf16.mxu0 0
      %3292 = vmatpush1.bf16.msra.mxu0 %v3272
      %3293 = vmatprep.subr.bf16.mxu0 0
      %3294 = vmatpush1.bf16.msra.mxu0 %v3273
      %3295 = vmatprep.subr.bf16.mxu0 0
      %3296 = vmatpush1.bf16.msra.mxu0 %v3274
      %3297 = vmatprep.subr.bf16.mxu0 0
      %3298 = vmatpush1.bf16.msra.mxu0 %v3275
      %3299 = vmatprep.subr.bf16.mxu0 0
      %3300 = vmatpush1.bf16.msra.mxu0 %v3276
      %3301 = vmatprep.subr.bf16.mxu0 0
      %3302 = vmatpush1.bf16.msra.mxu0 0
      %3303 = vmatprep.subr.bf16.mxu0 0
      %3304 = vmatpush1.bf16.msra.mxu0 0
      %3305 = vmatprep.subr.bf16.mxu0 0
      %3306 = vmatpush1.bf16.msra.mxu0 0
      %3307 = vmatprep.subr.bf16.mxu0 0
      %3308 = vmatpush1.bf16.msra.mxu0 0
      %3309 = vmatprep.subr.bf16.mxu0 0
      %3310 = vmatpush1.bf16.msra.mxu0 0
      %3311 = vmatprep.subr.bf16.mxu0 0
      %3312 = vmatpush1.bf16.msra.mxu0 0
      %3313 = vmatprep.subr.bf16.mxu0 0
      %3314 = vmatpush1.bf16.msra.mxu0 0
      %3315 = vmatprep.subr.bf16.mxu0 0
      %3316 = vmatpush1.bf16.msra.mxu0 0
      %3317 = vmatprep.mubr.bf16.mxu0 0
      %3318 = vmatmul.mubr.bf16.gmra.mrb[0].mxu0 %v2925
      %v3319 = vpop.f32.mrb[0].mxu0
      %v3320 = vadd.f32 0.0, %v3319
      %v3321 = vpop.f32.mrb[0].mxu0
      %v3322 = vpop.f32.mrb[0].mxu0
      %v3323 = vadd.f32 0.0, %v3322
      %v3324 = vpop.f32.mrb[0].mxu0
      %3325 = vmatprep.mubr.bf16.mxu0 0
      %3326 = vmatmul.mubr.bf16.gmra.mrb[0].mxu0 %v2934
      %v3327 = vpop.f32.mrb[0].mxu0
      %v3328 = vadd.f32 0.0, %v3327
      %v3329 = vpop.f32.mrb[0].mxu0
      %v3330 = vpop.f32.mrb[0].mxu0
      %v3331 = vadd.f32 0.0, %v3330
      %v3332 = vpop.f32.mrb[0].mxu0
      %3333 = vmatprep.mubr.bf16.mxu0 0
      %3334 = vmatmul.mubr.bf16.gmra.mrb[0].mxu0 %v2943
      %v3335 = vpop.f32.mrb[0].mxu0
      %v3336 = vadd.f32 0.0, %v3335
      %v3337 = vpop.f32.mrb[0].mxu0
      %v3338 = vpop.f32.mrb[0].mxu0
      %v3339 = vadd.f32 0.0, %v3338
      %v3340 = vpop.f32.mrb[0].mxu0
      %3341 = vmatprep.mubr.bf16.mxu0 0
      %3342 = vmatmul.mubr.bf16.gmra.mrb[0].mxu0 %v2952
      %v3343 = vpop.f32.mrb[0].mxu0
      %v3344 = vadd.f32 0.0, %v3343
      %v3345 = vpop.f32.mrb[0].mxu0
      %v3346 = vpop.f32.mrb[0].mxu0
      %v3347 = vadd.f32 0.0, %v3346
      %v3348 = vpop.f32.mrb[0].mxu0
      %3349 = vmatprep.mubr.bf16.mxu0 0
      %3350 = vmatmul.mubr.bf16.gmra.mrb[0].mxu0 %v2961
      %v3351 = vpop.f32.mrb[0].mxu0
      %v3352 = vadd.f32 0.0, %v3351
      %v3353 = vpop.f32.mrb[0].mxu0
      %v3354 = vpop.f32.mrb[0].mxu0
      %v3355 = vadd.f32 0.0, %v3354
      %v3356 = vpop.f32.mrb[0].mxu0
      %3357 = vmatprep.mubr.bf16.mxu0 0
      %3358 = vmatmul.mubr.bf16.gmra.mrb[0].mxu0 %v2970
      %v3359 = vpop.f32.mrb[0].mxu0
      %v3360 = vadd.f32 0.0, %v3359
      %v3361 = vpop.f32.mrb[0].mxu0
      %v3362 = vpop.f32.mrb[0].mxu0
      %v3363 = vadd.f32 0.0, %v3362
      %v3364 = vpop.f32.mrb[0].mxu0
      %3365 = vmatprep.mubr.bf16.mxu0 0
      %3366 = vmatmul.mubr.bf16.gmra.mrb[0].mxu0 %v2979
      %v3367 = vpop.f32.mrb[0].mxu0
      %v3368 = vadd.f32 0.0, %v3367
      %v3369 = vpop.f32.mrb[0].mxu0
      %v3370 = vpop.f32.mrb[0].mxu0
      %v3371 = vadd.f32 0.0, %v3370
      %v3372 = vpop.f32.mrb[0].mxu0
      %3373 = vmatprep.mubr.bf16.mxu0 0
      %3374 = vmatmul.mubr.bf16.gmra.mrb[0].mxu0 %v2988
      %v3375 = vpop.f32.mrb[0].mxu0
      %v3376 = vadd.f32 0.0, %v3375
      %v3377 = vpop.f32.mrb[0].mxu0
      %v3378 = vpop.f32.mrb[0].mxu0
      %v3379 = vadd.f32 0.0, %v3378
      %v3380 = vpop.f32.mrb[0].mxu0
      %3381 = vmatprep.mubr.bf16.mxu0 0
      %3382 = vmatmul.mubr.bf16.gmra.mrb[0].mxu0 %v2997
      %v3383 = vpop.f32.mrb[0].mxu0
      %v3384 = vadd.f32 0.0, %v3383
      %v3385 = vpop.f32.mrb[0].mxu0
      %v3386 = vpop.f32.mrb[0].mxu0
      %v3387 = vadd.f32 0.0, %v3386
      %v3388 = vpop.f32.mrb[0].mxu0
      %3389 = vmatprep.mubr.bf16.mxu0 0
      %3390 = vmatmul.mubr.bf16.gmra.mrb[0].mxu0 %v3006
      %v3391 = vpop.f32.mrb[0].mxu0
      %v3392 = vadd.f32 0.0, %v3391
      %v3393 = vpop.f32.mrb[0].mxu0
      %v3394 = vpop.f32.mrb[0].mxu0
      %v3395 = vadd.f32 0.0, %v3394
      %v3396 = vpop.f32.mrb[0].mxu0
      %3397 = vmatprep.mubr.bf16.mxu0 0
      %3398 = vmatmul.mubr.bf16.gmra.mrb[0].mxu0 %v3015
      %v3399 = vpop.f32.mrb[0].mxu0
      %v3400 = vadd.f32 0.0, %v3399
      %v3401 = vpop.f32.mrb[0].mxu0
      %v3402 = vpop.f32.mrb[0].mxu0
      %v3403 = vadd.f32 0.0, %v3402
      %v3404 = vpop.f32.mrb[0].mxu0
      %3405 = vmatprep.mubr.bf16.mxu0 0
      %3406 = vmatmul.mubr.bf16.gmra.mrb[0].mxu0 %v3024
      %v3407 = vpop.f32.mrb[0].mxu0
      %v3408 = vadd.f32 0.0, %v3407
      %v3409 = vpop.f32.mrb[0].mxu0
      %v3410 = vpop.f32.mrb[0].mxu0
      %v3411 = vadd.f32 0.0, %v3410
      %v3412 = vpop.f32.mrb[0].mxu0
      %3413 = vmatprep.mubr.bf16.mxu0 0
      %3414 = vmatmul.mubr.bf16.gmra.mrb[0].mxu0 %v3033
      %v3415 = vpop.f32.mrb[0].mxu0
      %v3416 = vadd.f32 0.0, %v3415
      %v3417 = vpop.f32.mrb[0].mxu0
      %v3418 = vpop.f32.mrb[0].mxu0
      %v3419 = vadd.f32 0.0, %v3418
      %v3420 = vpop.f32.mrb[0].mxu0
      %3421 = vmatprep.mubr.bf16.mxu0 0
      %3422 = vmatmul.mubr.bf16.gmra.mrb[0].mxu0 %v3042
      %v3423 = vpop.f32.mrb[0].mxu0
      %v3424 = vadd.f32 0.0, %v3423
      %v3425 = vpop.f32.mrb[0].mxu0
      %v3426 = vpop.f32.mrb[0].mxu0
      %v3427 = vadd.f32 0.0, %v3426
      %v3428 = vpop.f32.mrb[0].mxu0
      %3429 = vmatprep.mubr.bf16.mxu0 0
      %3430 = vmatmul.mubr.bf16.gmra.mrb[0].mxu0 %v3051
      %v3431 = vpop.f32.mrb[0].mxu0
      %v3432 = vadd.f32 0.0, %v3431
      %v3433 = vpop.f32.mrb[0].mxu0
      %v3434 = vpop.f32.mrb[0].mxu0
      %v3435 = vadd.f32 0.0, %v3434
      %v3436 = vpop.f32.mrb[0].mxu0
      %3437 = vmatprep.mubr.bf16.mxu0 0
      %3438 = vmatmul.mubr.bf16.gmra.mrb[0].mxu0 %v3060
      %v3439 = vpop.f32.mrb[0].mxu0
      %v3440 = vadd.f32 0.0, %v3439
      %v3441 = vpop.f32.mrb[0].mxu0
      %v3442 = vpop.f32.mrb[0].mxu0
      %v3443 = vadd.f32 0.0, %v3442
      %v3444 = vpop.f32.mrb[0].mxu0
      %3445 = vmatprep.mubr.bf16.mxu0 0
      %3446 = vmatmul.mubr.bf16.gmra.mrb[0].mxu0 %v3069
      %v3447 = vpop.f32.mrb[0].mxu0
      %v3448 = vadd.f32 0.0, %v3447
      %v3449 = vpop.f32.mrb[0].mxu0
      %v3450 = vpop.f32.mrb[0].mxu0
      %v3451 = vadd.f32 0.0, %v3450
      %v3452 = vpop.f32.mrb[0].mxu0
      %3453 = vmatprep.mubr.bf16.mxu0 0
      %3454 = vmatmul.mubr.bf16.gmra.mrb[0].mxu0 %v3078
      %v3455 = vpop.f32.mrb[0].mxu0
      %v3456 = vadd.f32 0.0, %v3455
      %v3457 = vpop.f32.mrb[0].mxu0
      %v3458 = vpop.f32.mrb[0].mxu0
      %v3459 = vadd.f32 0.0, %v3458
      %v3460 = vpop.f32.mrb[0].mxu0
      %3461 = vmatprep.mubr.bf16.mxu0 0
      %3462 = vmatmul.mubr.bf16.gmra.mrb[0].mxu0 %v3087
      %v3463 = vpop.f32.mrb[0].mxu0
      %v3464 = vadd.f32 0.0, %v3463
      %v3465 = vpop.f32.mrb[0].mxu0
      %v3466 = vpop.f32.mrb[0].mxu0
      %v3467 = vadd.f32 0.0, %v3466
      %v3468 = vpop.f32.mrb[0].mxu0
      %3469 = vmatprep.mubr.bf16.mxu0 0
      %3470 = vmatmul.mubr.bf16.gmra.mrb[0].mxu0 %v3096
      %v3471 = vpop.f32.mrb[0].mxu0
      %v3472 = vadd.f32 0.0, %v3471
      %v3473 = vpop.f32.mrb[0].mxu0
      %v3474 = vpop.f32.mrb[0].mxu0
      %v3475 = vadd.f32 0.0, %v3474
      %v3476 = vpop.f32.mrb[0].mxu0
      %3477 = vmatprep.mubr.bf16.mxu0 0
      %3478 = vmatmul.mubr.bf16.gmra.mrb[0].mxu0 %v3105
      %v3479 = vpop.f32.mrb[0].mxu0
      %v3480 = vadd.f32 0.0, %v3479
      %v3481 = vpop.f32.mrb[0].mxu0
      %v3482 = vpop.f32.mrb[0].mxu0
      %v3483 = vadd.f32 0.0, %v3482
      %v3484 = vpop.f32.mrb[0].mxu0
      %3485 = vmatprep.mubr.bf16.mxu0 0
      %3486 = vmatmul.mubr.bf16.gmra.mrb[0].mxu0 %v3114
      %v3487 = vpop.f32.mrb[0].mxu0
      %v3488 = vadd.f32 0.0, %v3487
      %v3489 = vpop.f32.mrb[0].mxu0
      %v3490 = vpop.f32.mrb[0].mxu0
      %v3491 = vadd.f32 0.0, %v3490
      %v3492 = vpop.f32.mrb[0].mxu0
      %3493 = vmatprep.mubr.bf16.mxu0 0
      %3494 = vmatmul.mubr.bf16.gmra.mrb[0].mxu0 %v3123
      %v3495 = vpop.f32.mrb[0].mxu0
      %v3496 = vadd.f32 0.0, %v3495
      %v3497 = vpop.f32.mrb[0].mxu0
      %v3498 = vpop.f32.mrb[0].mxu0
      %v3499 = vadd.f32 0.0, %v3498
      %v3500 = vpop.f32.mrb[0].mxu0
      %3501 = vmatprep.mubr.bf16.mxu0 0
      %3502 = vmatmul.mubr.bf16.gmra.mrb[0].mxu0 %v3132
      %v3503 = vpop.f32.mrb[0].mxu0
      %v3504 = vadd.f32 0.0, %v3503
      %v3505 = vpop.f32.mrb[0].mxu0
      %v3506 = vpop.f32.mrb[0].mxu0
      %v3507 = vadd.f32 0.0, %v3506
      %v3508 = vpop.f32.mrb[0].mxu0
      %3509 = vmatprep.mubr.bf16.mxu0 0
      %3510 = vmatmul.mubr.bf16.gmra.mrb[0].mxu0 %v3141
      %v3511 = vpop.f32.mrb[0].mxu0
      %v3512 = vadd.f32 0.0, %v3511
      %v3513 = vpop.f32.mrb[0].mxu0
      %v3514 = vpop.f32.mrb[0].mxu0
      %v3515 = vadd.f32 0.0, %v3514
      %v3516 = vpop.f32.mrb[0].mxu0
      %3517 = vmatprep.mubr.bf16.mxu0 0
      %3518 = vmatmul.mubr.bf16.gmra.mrb[0].mxu0 %v3150
      %v3519 = vpop.f32.mrb[0].mxu0
      %v3520 = vadd.f32 0.0, %v3519
      %v3521 = vpop.f32.mrb[0].mxu0
      %v3522 = vpop.f32.mrb[0].mxu0
      %v3523 = vadd.f32 0.0, %v3522
      %v3524 = vpop.f32.mrb[0].mxu0
      %3525 = vmatprep.mubr.bf16.mxu0 0
      %3526 = vmatmul.mubr.bf16.gmra.mrb[0].mxu0 %v3159
      %v3527 = vpop.f32.mrb[0].mxu0
      %v3528 = vadd.f32 0.0, %v3527
      %v3529 = vpop.f32.mrb[0].mxu0
      %v3530 = vpop.f32.mrb[0].mxu0
      %v3531 = vadd.f32 0.0, %v3530
      %v3532 = vpop.f32.mrb[0].mxu0
      %3533 = vmatprep.mubr.bf16.mxu0 0
      %3534 = vmatmul.mubr.bf16.gmra.mrb[0].mxu0 %v3168
      %v3535 = vpop.f32.mrb[0].mxu0
      %v3536 = vadd.f32 0.0, %v3535
      %v3537 = vpop.f32.mrb[0].mxu0
      %v3538 = vpop.f32.mrb[0].mxu0
      %v3539 = vadd.f32 0.0, %v3538
      %v3540 = vpop.f32.mrb[0].mxu0
      %3541 = vmatprep.mubr.bf16.mxu0 0
      %3542 = vmatmul.mubr.bf16.gmra.mrb[0].mxu0 %v3177
      %v3543 = vpop.f32.mrb[0].mxu0
      %v3544 = vadd.f32 0.0, %v3543
      %v3545 = vpop.f32.mrb[0].mxu0
      %v3546 = vpop.f32.mrb[0].mxu0
      %v3547 = vadd.f32 0.0, %v3546
      %v3548 = vpop.f32.mrb[0].mxu0
      %3549 = vmatprep.mubr.bf16.mxu0 0
      %3550 = vmatmul.mubr.bf16.gmra.mrb[0].mxu0 %v3186
      %v3551 = vpop.f32.mrb[0].mxu0
      %v3552 = vadd.f32 0.0, %v3551
      %v3553 = vpop.f32.mrb[0].mxu0
      %v3554 = vpop.f32.mrb[0].mxu0
      %v3555 = vadd.f32 0.0, %v3554
      %v3556 = vpop.f32.mrb[0].mxu0
      %3557 = vmatprep.mubr.bf16.mxu0 0
      %3558 = vmatmul.mubr.bf16.gmra.mrb[0].mxu0 %v3195
      %v3559 = vpop.f32.mrb[0].mxu0
      %v3560 = vadd.f32 0.0, %v3559
      %v3561 = vpop.f32.mrb[0].mxu0
      %v3562 = vpop.f32.mrb[0].mxu0
      %v3563 = vadd.f32 0.0, %v3562
      %v3564 = vpop.f32.mrb[0].mxu0
      %3565 = vmatprep.mubr.bf16.mxu0 0
      %3566 = vmatmul.mubr.bf16.gmra.mrb[0].mxu0 %v3204
      %v3567 = vpop.f32.mrb[0].mxu0
      %v3568 = vadd.f32 0.0, %v3567
      %v3569 = vpop.f32.mrb[0].mxu0
      %v3570 = vpop.f32.mrb[0].mxu0
      %v3571 = vadd.f32 0.0, %v3570
      %v3572 = vpop.f32.mrb[0].mxu0
      %3573 = vdwg.mxu0
      %v3574 = vadd.f32 %v2826, %v3320
      %v3575 = vadd.f32 %v2827, %v3323
      %v3576 = vadd.f32 %v2828, %v3328
      %v3577 = vadd.f32 %v2829, %v3331
      %v3578 = vadd.f32 %v2830, %v3336
      %v3579 = vadd.f32 %v2831, %v3339
      %v3580 = vadd.f32 %v2832, %v3344
      %v3581 = vadd.f32 %v2833, %v3347
      %v3582 = vadd.f32 %v2834, %v3352
      %v3583 = vadd.f32 %v2835, %v3355
      %v3584 = vadd.f32 %v2836, %v3360
      %v3585 = vadd.f32 %v2837, %v3363
      %v3586 = vadd.f32 %v2838, %v3368
      %v3587 = vadd.f32 %v2839, %v3371
      %v3588 = vadd.f32 %v2840, %v3376
      %v3589 = vadd.f32 %v2841, %v3379
      %v3590 = vadd.f32 %v2842, %v3384
      %v3591 = vadd.f32 %v2843, %v3387
      %v3592 = vadd.f32 %v2844, %v3392
      %v3593 = vadd.f32 %v2845, %v3395
      %v3594 = vadd.f32 %v2846, %v3400
      %v3595 = vadd.f32 %v2847, %v3403
      %v3596 = vadd.f32 %v2848, %v3408
      %v3597 = vadd.f32 %v2849, %v3411
      %v3598 = vadd.f32 %v2850, %v3416
      %v3599 = vadd.f32 %v2851, %v3419
      %v3600 = vadd.f32 %v2852, %v3424
      %v3601 = vadd.f32 %v2853, %v3427
      %v3602 = vadd.f32 %v2854, %v3432
      %v3603 = vadd.f32 %v2855, %v3435
      %v3604 = vadd.f32 %v2856, %v3440
      %v3605 = vadd.f32 %v2857, %v3443
      %v3606 = vadd.f32 %v2858, %v3448
      %v3607 = vadd.f32 %v2859, %v3451
      %v3608 = vadd.f32 %v2860, %v3456
      %v3609 = vadd.f32 %v2861, %v3459
      %v3610 = vadd.f32 %v2862, %v3464
      %v3611 = vadd.f32 %v2863, %v3467
      %v3612 = vadd.f32 %v2864, %v3472
      %v3613 = vadd.f32 %v2865, %v3475
      %v3614 = vadd.f32 %v2866, %v3480
      %v3615 = vadd.f32 %v2867, %v3483
      %v3616 = vadd.f32 %v2868, %v3488
      %v3617 = vadd.f32 %v2869, %v3491
      %v3618 = vadd.f32 %v2870, %v3496
      %v3619 = vadd.f32 %v2871, %v3499
      %v3620 = vadd.f32 %v2872, %v3504
      %v3621 = vadd.f32 %v2873, %v3507
      %v3622 = vadd.f32 %v2874, %v3512
      %v3623 = vadd.f32 %v2875, %v3515
      %v3624 = vadd.f32 %v2876, %v3520
      %v3625 = vadd.f32 %v2877, %v3523
      %v3626 = vadd.f32 %v2878, %v3528
      %v3627 = vadd.f32 %v2879, %v3531
      %v3628 = vadd.f32 %v2880, %v3536
      %v3629 = vadd.f32 %v2881, %v3539
      %v3630 = vadd.f32 %v2882, %v3544
      %v3631 = vadd.f32 %v2883, %v3547
      %v3632 = vadd.f32 %v2884, %v3552
      %v3633 = vadd.f32 %v2885, %v3555
      %v3634 = vadd.f32 %v2886, %v3560
      %v3635 = vadd.f32 %v2887, %v3563
      %v3636 = vadd.f32 %v2888, %v3568
      %v3637 = vadd.f32 %v2889, %v3571
      %v3638 = vld [vmem:[#allocation2 + $0x8] sm:$0xfc]
      %s3639 = scalar_lea.vmem %s378, 320
      %v3640 = vld [vmem:[%s3639] sm:$0xf]
      %v3641 = vld [vmem:[%s3639 + $0x4] sm:$0xf]
      %v3642 = vld [vmem:[%s3639 + $0x8] sm:$0xf]
      %v3643 = vld [vmem:[%s3639 + $0xc] sm:$0xf]
      %v3644 = vld [vmem:[%s3639 + $0x10] sm:$0xf]
      %v3645 = vld [vmem:[%s3639 + $0x14] sm:$0xf]
      %v3646 = vld [vmem:[%s3639 + $0x18] sm:$0xf]
      %v3647 = vld [vmem:[%s3639 + $0x1c] sm:$0xf]
      %v3648 = vld [vmem:[%s3639 + $0x20] sm:$0xf]
      %v3649 = vld [vmem:[%s3639 + $0x24] sm:$0xf]
      %v3650 = vld [vmem:[%s3639 + $0x28] sm:$0xf]
      %v3651 = vld [vmem:[%s3639 + $0x2c] sm:$0xf]
      %v3652 = vld [vmem:[%s3639 + $0x30] sm:$0xf]
      %v3653 = vld [vmem:[%s3639 + $0x34] sm:$0xf]
      %v3654 = vld [vmem:[%s3639 + $0x38] sm:$0xf]
      %v3655 = vld [vmem:[%s3639 + $0x3c] sm:$0xf]
      %vm3658 = vcmask 1045504
      %v3659 = vrot.slane %v3638, 2
      %v3660 = vrot.slane %v2310, 2
      %v3661 = vsel %vm3658, %v3659, %v3660
      %v3662 = vrot.slane %v2311, 2
      %v3663 = vsel %vm3658, %v3660, %v3662
      %v3664 = vrot.slane %v2312, 2
      %v3665 = vsel %vm3658, %v3662, %v3664
      %v3666 = vrot.slane %v2313, 2
      %v3667 = vsel %vm3658, %v3664, %v3666
      %v3668 = vrot.slane %v2314, 2
      %v3669 = vsel %vm3658, %v3666, %v3668
      %v3670 = vrot.slane %v2315, 2
      %v3671 = vsel %vm3658, %v3668, %v3670
      %v3672 = vrot.slane %v2316, 2
      %v3673 = vsel %vm3658, %v3670, %v3672
      %v3674 = vrot.slane %v2317, 2
      %v3675 = vsel %vm3658, %v3672, %v3674
      %v3676 = vrot.slane %v2318, 2
      %v3677 = vsel %vm3658, %v3674, %v3676
      %v3678 = vrot.slane %v2319, 2
      %v3679 = vsel %vm3658, %v3676, %v3678
      %v3680 = vrot.slane %v2320, 2
      %v3681 = vsel %vm3658, %v3678, %v3680
      %v3682 = vrot.slane %v2321, 2
      %v3683 = vsel %vm3658, %v3680, %v3682
      %v3684 = vrot.slane %v2322, 2
      %v3685 = vsel %vm3658, %v3682, %v3684
      %v3686 = vrot.slane %v2323, 2
      %v3687 = vsel %vm3658, %v3684, %v3686
      %v3688 = vrot.slane %v2324, 2
      %v3689 = vsel %vm3658, %v3686, %v3688
      %v3690 = vrot.slane %v2325, 2
      %v3691 = vsel %vm3658, %v3688, %v3690
      %v3692 = vrot.slane %v2326, 2
      %v3693 = vsel %vm3658, %v3690, %v3692
      %v3694 = vrot.slane %v2327, 2
      %v3695 = vsel %vm3658, %v3692, %v3694
      %v3696 = vrot.slane %v2328, 2
      %v3697 = vsel %vm3658, %v3694, %v3696
      %v3698 = vrot.slane %v2329, 2
      %v3699 = vsel %vm3658, %v3696, %v3698
      %v3700 = vrot.slane %v2330, 2
      %v3701 = vsel %vm3658, %v3698, %v3700
      %v3702 = vrot.slane %v2331, 2
      %v3703 = vsel %vm3658, %v3700, %v3702
      %v3704 = vrot.slane %v2332, 2
      %v3705 = vsel %vm3658, %v3702, %v3704
      %v3706 = vrot.slane %v2333, 2
      %v3707 = vsel %vm3658, %v3704, %v3706
      %v3708 = vrot.slane %v2334, 2
      %v3709 = vsel %vm3658, %v3706, %v3708
      %v3710 = vrot.slane %v2335, 2
      %v3711 = vsel %vm3658, %v3708, %v3710
      %v3712 = vrot.slane %v2336, 2
      %v3713 = vsel %vm3658, %v3710, %v3712
      %v3714 = vrot.slane %v2337, 2
      %v3715 = vsel %vm3658, %v3712, %v3714
      %v3716 = vrot.slane %v2338, 2
      %v3717 = vsel %vm3658, %v3714, %v3716
      %v3718 = vrot.slane %v2339, 2
      %v3719 = vsel %vm3658, %v3716, %v3718
      %v3720 = vrot.slane %v2340, 2
      %v3721 = vsel %vm3658, %v3718, %v3720
      %v3722 = vrot.slane %v2890, 2
      %v3723 = vsel %vm3658, %v3720, %v3722
      %v3772 = vunpack.c.l.b16 %v3640
      %v3773 = vunpack.c.l.b16 %v3641
      %v3774 = vunpack.c.l.b16 %v3642
      %v3775 = vunpack.c.l.b16 %v3643
      %v3776 = vunpack.c.l.b16 %v3644
      %v3777 = vunpack.c.l.b16 %v3645
      %v3778 = vunpack.c.l.b16 %v3646
      %v3779 = vunpack.c.l.b16 %v3647
      %v3780 = vunpack.c.l.b16 %v3648
      %v3781 = vunpack.c.l.b16 %v3649
      %v3782 = vunpack.c.l.b16 %v3650
      %v3783 = vunpack.c.l.b16 %v3651
      %v3784 = vunpack.c.l.b16 %v3652
      %v3785 = vunpack.c.l.b16 %v3653
      %v3786 = vunpack.c.l.b16 %v3654
      %v3787 = vunpack.c.l.b16 %v3655
      %v3788 = vpack.c.b16 %v3773, %v3772
      %v3789 = vpack.c.b16 %v3775, %v3774
      %v3790 = vpack.c.b16 %v3777, %v3776
      %v3791 = vpack.c.b16 %v3779, %v3778
      %v3792 = vpack.c.b16 %v3781, %v3780
      %v3793 = vpack.c.b16 %v3783, %v3782
      %v3794 = vpack.c.b16 %v3785, %v3784
      %v3795 = vpack.c.b16 %v3787, %v3786
      %3804 = vmatprep.subr.bf16.mxu0 0
      %3805 = vmatpush1.bf16.msra.mxu0 %v3788
      %3806 = vmatprep.subr.bf16.mxu0 0
      %3807 = vmatpush1.bf16.msra.mxu0 %v3789
      %3808 = vmatprep.subr.bf16.mxu0 0
      %3809 = vmatpush1.bf16.msra.mxu0 %v3790
      %3810 = vmatprep.subr.bf16.mxu0 0
      %3811 = vmatpush1.bf16.msra.mxu0 %v3791
      %3812 = vmatprep.subr.bf16.mxu0 0
      %3813 = vmatpush1.bf16.msra.mxu0 %v3792
      %3814 = vmatprep.subr.bf16.mxu0 0
      %3815 = vmatpush1.bf16.msra.mxu0 %v3793
      %3816 = vmatprep.subr.bf16.mxu0 0
      %3817 = vmatpush1.bf16.msra.mxu0 %v3794
      %3818 = vmatprep.subr.bf16.mxu0 0
      %3819 = vmatpush1.bf16.msra.mxu0 %v3795
      %3820 = vmatprep.subr.bf16.mxu0 0
      %3821 = vmatpush1.bf16.msra.mxu0 0
      %3822 = vmatprep.subr.bf16.mxu0 0
      %3823 = vmatpush1.bf16.msra.mxu0 0
      %3824 = vmatprep.subr.bf16.mxu0 0
      %3825 = vmatpush1.bf16.msra.mxu0 0
      %3826 = vmatprep.subr.bf16.mxu0 0
      %3827 = vmatpush1.bf16.msra.mxu0 0
      %3828 = vmatprep.subr.bf16.mxu0 0
      %3829 = vmatpush1.bf16.msra.mxu0 0
      %3830 = vmatprep.subr.bf16.mxu0 0
      %3831 = vmatpush1.bf16.msra.mxu0 0
      %3832 = vmatprep.subr.bf16.mxu0 0
      %3833 = vmatpush1.bf16.msra.mxu0 0
      %3834 = vmatprep.subr.bf16.mxu0 0
      %3835 = vmatpush1.bf16.msra.mxu0 0
      %3836 = vmatprep.mubr.bf16.mxu0 0
      %3837 = vmatmul.mubr.bf16.gmra.mrb[0].mxu0 %v3661
      %v3838 = vpop.f32.mrb[0].mxu0
      %v3839 = vadd.f32 0.0, %v3838
      %v3840 = vpop.f32.mrb[0].mxu0
      %v3841 = vpop.f32.mrb[0].mxu0
      %v3842 = vadd.f32 0.0, %v3841
      %v3843 = vpop.f32.mrb[0].mxu0
      %3844 = vmatprep.mubr.bf16.mxu0 0
      %3845 = vmatmul.mubr.bf16.gmra.mrb[0].mxu0 %v3663
      %v3846 = vpop.f32.mrb[0].mxu0
      %v3847 = vadd.f32 0.0, %v3846
      %v3848 = vpop.f32.mrb[0].mxu0
      %v3849 = vpop.f32.mrb[0].mxu0
      %v3850 = vadd.f32 0.0, %v3849
      %v3851 = vpop.f32.mrb[0].mxu0
      %3852 = vmatprep.mubr.bf16.mxu0 0
      %3853 = vmatmul.mubr.bf16.gmra.mrb[0].mxu0 %v3665
      %v3854 = vpop.f32.mrb[0].mxu0
      %v3855 = vadd.f32 0.0, %v3854
      %v3856 = vpop.f32.mrb[0].mxu0
      %v3857 = vpop.f32.mrb[0].mxu0
      %v3858 = vadd.f32 0.0, %v3857
      %v3859 = vpop.f32.mrb[0].mxu0
      %3860 = vmatprep.mubr.bf16.mxu0 0
      %3861 = vmatmul.mubr.bf16.gmra.mrb[0].mxu0 %v3667
      %v3862 = vpop.f32.mrb[0].mxu0
      %v3863 = vadd.f32 0.0, %v3862
      %v3864 = vpop.f32.mrb[0].mxu0
      %v3865 = vpop.f32.mrb[0].mxu0
      %v3866 = vadd.f32 0.0, %v3865
      %v3867 = vpop.f32.mrb[0].mxu0
      %3868 = vmatprep.mubr.bf16.mxu0 0
      %3869 = vmatmul.mubr.bf16.gmra.mrb[0].mxu0 %v3669
      %v3870 = vpop.f32.mrb[0].mxu0
      %v3871 = vadd.f32 0.0, %v3870
      %v3872 = vpop.f32.mrb[0].mxu0
      %v3873 = vpop.f32.mrb[0].mxu0
      %v3874 = vadd.f32 0.0, %v3873
      %v3875 = vpop.f32.mrb[0].mxu0
      %3876 = vmatprep.mubr.bf16.mxu0 0
      %3877 = vmatmul.mubr.bf16.gmra.mrb[0].mxu0 %v3671
      %v3878 = vpop.f32.mrb[0].mxu0
      %v3879 = vadd.f32 0.0, %v3878
      %v3880 = vpop.f32.mrb[0].mxu0
      %v3881 = vpop.f32.mrb[0].mxu0
      %v3882 = vadd.f32 0.0, %v3881
      %v3883 = vpop.f32.mrb[0].mxu0
      %3884 = vmatprep.mubr.bf16.mxu0 0
      %3885 = vmatmul.mubr.bf16.gmra.mrb[0].mxu0 %v3673
      %v3886 = vpop.f32.mrb[0].mxu0
      %v3887 = vadd.f32 0.0, %v3886
      %v3888 = vpop.f32.mrb[0].mxu0
      %v3889 = vpop.f32.mrb[0].mxu0
      %v3890 = vadd.f32 0.0, %v3889
      %v3891 = vpop.f32.mrb[0].mxu0
      %3892 = vmatprep.mubr.bf16.mxu0 0
      %3893 = vmatmul.mubr.bf16.gmra.mrb[0].mxu0 %v3675
      %v3894 = vpop.f32.mrb[0].mxu0
      %v3895 = vadd.f32 0.0, %v3894
      %v3896 = vpop.f32.mrb[0].mxu0
      %v3897 = vpop.f32.mrb[0].mxu0
      %v3898 = vadd.f32 0.0, %v3897
      %v3899 = vpop.f32.mrb[0].mxu0
      %3900 = vmatprep.mubr.bf16.mxu0 0
      %3901 = vmatmul.mubr.bf16.gmra.mrb[0].mxu0 %v3677
      %v3902 = vpop.f32.mrb[0].mxu0
      %v3903 = vadd.f32 0.0, %v3902
      %v3904 = vpop.f32.mrb[0].mxu0
      %v3905 = vpop.f32.mrb[0].mxu0
      %v3906 = vadd.f32 0.0, %v3905
      %v3907 = vpop.f32.mrb[0].mxu0
      %3908 = vmatprep.mubr.bf16.mxu0 0
      %3909 = vmatmul.mubr.bf16.gmra.mrb[0].mxu0 %v3679
      %v3910 = vpop.f32.mrb[0].mxu0
      %v3911 = vadd.f32 0.0, %v3910
      %v3912 = vpop.f32.mrb[0].mxu0
      %v3913 = vpop.f32.mrb[0].mxu0
      %v3914 = vadd.f32 0.0, %v3913
      %v3915 = vpop.f32.mrb[0].mxu0
      %3916 = vmatprep.mubr.bf16.mxu0 0
      %3917 = vmatmul.mubr.bf16.gmra.mrb[0].mxu0 %v3681
      %v3918 = vpop.f32.mrb[0].mxu0
      %v3919 = vadd.f32 0.0, %v3918
      %v3920 = vpop.f32.mrb[0].mxu0
      %v3921 = vpop.f32.mrb[0].mxu0
      %v3922 = vadd.f32 0.0, %v3921
      %v3923 = vpop.f32.mrb[0].mxu0
      %3924 = vmatprep.mubr.bf16.mxu0 0
      %3925 = vmatmul.mubr.bf16.gmra.mrb[0].mxu0 %v3683
      %v3926 = vpop.f32.mrb[0].mxu0
      %v3927 = vadd.f32 0.0, %v3926
      %v3928 = vpop.f32.mrb[0].mxu0
      %v3929 = vpop.f32.mrb[0].mxu0
      %v3930 = vadd.f32 0.0, %v3929
      %v3931 = vpop.f32.mrb[0].mxu0
      %3932 = vmatprep.mubr.bf16.mxu0 0
      %3933 = vmatmul.mubr.bf16.gmra.mrb[0].mxu0 %v3685
      %v3934 = vpop.f32.mrb[0].mxu0
      %v3935 = vadd.f32 0.0, %v3934
      %v3936 = vpop.f32.mrb[0].mxu0
      %v3937 = vpop.f32.mrb[0].mxu0
      %v3938 = vadd.f32 0.0, %v3937
      %v3939 = vpop.f32.mrb[0].mxu0
      %3940 = vmatprep.mubr.bf16.mxu0 0
      %3941 = vmatmul.mubr.bf16.gmra.mrb[0].mxu0 %v3687
      %v3942 = vpop.f32.mrb[0].mxu0
      %v3943 = vadd.f32 0.0, %v3942
      %v3944 = vpop.f32.mrb[0].mxu0
      %v3945 = vpop.f32.mrb[0].mxu0
      %v3946 = vadd.f32 0.0, %v3945
      %v3947 = vpop.f32.mrb[0].mxu0
      %3948 = vmatprep.mubr.bf16.mxu0 0
      %3949 = vmatmul.mubr.bf16.gmra.mrb[0].mxu0 %v3689
      %v3950 = vpop.f32.mrb[0].mxu0
      %v3951 = vadd.f32 0.0, %v3950
      %v3952 = vpop.f32.mrb[0].mxu0
      %v3953 = vpop.f32.mrb[0].mxu0
      %v3954 = vadd.f32 0.0, %v3953
      %v3955 = vpop.f32.mrb[0].mxu0
      %3956 = vmatprep.mubr.bf16.mxu0 0
      %3957 = vmatmul.mubr.bf16.gmra.mrb[0].mxu0 %v3691
      %v3958 = vpop.f32.mrb[0].mxu0
      %v3959 = vadd.f32 0.0, %v3958
      %v3960 = vpop.f32.mrb[0].mxu0
      %v3961 = vpop.f32.mrb[0].mxu0
      %v3962 = vadd.f32 0.0, %v3961
      %v3963 = vpop.f32.mrb[0].mxu0
      %3964 = vmatprep.mubr.bf16.mxu0 0
      %3965 = vmatmul.mubr.bf16.gmra.mrb[0].mxu0 %v3693
      %v3966 = vpop.f32.mrb[0].mxu0
      %v3967 = vadd.f32 0.0, %v3966
      %v3968 = vpop.f32.mrb[0].mxu0
      %v3969 = vpop.f32.mrb[0].mxu0
      %v3970 = vadd.f32 0.0, %v3969
      %v3971 = vpop.f32.mrb[0].mxu0
      %3972 = vmatprep.mubr.bf16.mxu0 0
      %3973 = vmatmul.mubr.bf16.gmra.mrb[0].mxu0 %v3695
      %v3974 = vpop.f32.mrb[0].mxu0
      %v3975 = vadd.f32 0.0, %v3974
      %v3976 = vpop.f32.mrb[0].mxu0
      %v3977 = vpop.f32.mrb[0].mxu0
      %v3978 = vadd.f32 0.0, %v3977
      %v3979 = vpop.f32.mrb[0].mxu0
      %3980 = vmatprep.mubr.bf16.mxu0 0
      %3981 = vmatmul.mubr.bf16.gmra.mrb[0].mxu0 %v3697
      %v3982 = vpop.f32.mrb[0].mxu0
      %v3983 = vadd.f32 0.0, %v3982
      %v3984 = vpop.f32.mrb[0].mxu0
      %v3985 = vpop.f32.mrb[0].mxu0
      %v3986 = vadd.f32 0.0, %v3985
      %v3987 = vpop.f32.mrb[0].mxu0
      %3988 = vmatprep.mubr.bf16.mxu0 0
      %3989 = vmatmul.mubr.bf16.gmra.mrb[0].mxu0 %v3699
      %v3990 = vpop.f32.mrb[0].mxu0
      %v3991 = vadd.f32 0.0, %v3990
      %v3992 = vpop.f32.mrb[0].mxu0
      %v3993 = vpop.f32.mrb[0].mxu0
      %v3994 = vadd.f32 0.0, %v3993
      %v3995 = vpop.f32.mrb[0].mxu0
      %3996 = vmatprep.mubr.bf16.mxu0 0
      %3997 = vmatmul.mubr.bf16.gmra.mrb[0].mxu0 %v3701
      %v3998 = vpop.f32.mrb[0].mxu0
      %v3999 = vadd.f32 0.0, %v3998
      %v4000 = vpop.f32.mrb[0].mxu0
      %v4001 = vpop.f32.mrb[0].mxu0
      %v4002 = vadd.f32 0.0, %v4001
      %v4003 = vpop.f32.mrb[0].mxu0
      %4004 = vmatprep.mubr.bf16.mxu0 0
      %4005 = vmatmul.mubr.bf16.gmra.mrb[0].mxu0 %v3703
      %v4006 = vpop.f32.mrb[0].mxu0
      %v4007 = vadd.f32 0.0, %v4006
      %v4008 = vpop.f32.mrb[0].mxu0
      %v4009 = vpop.f32.mrb[0].mxu0
      %v4010 = vadd.f32 0.0, %v4009
      %v4011 = vpop.f32.mrb[0].mxu0
      %4012 = vmatprep.mubr.bf16.mxu0 0
      %4013 = vmatmul.mubr.bf16.gmra.mrb[0].mxu0 %v3705
      %v4014 = vpop.f32.mrb[0].mxu0
      %v4015 = vadd.f32 0.0, %v4014
      %v4016 = vpop.f32.mrb[0].mxu0
      %v4017 = vpop.f32.mrb[0].mxu0
      %v4018 = vadd.f32 0.0, %v4017
      %v4019 = vpop.f32.mrb[0].mxu0
      %4020 = vmatprep.mubr.bf16.mxu0 0
      %4021 = vmatmul.mubr.bf16.gmra.mrb[0].mxu0 %v3707
      %v4022 = vpop.f32.mrb[0].mxu0
      %v4023 = vadd.f32 0.0, %v4022
      %v4024 = vpop.f32.mrb[0].mxu0
      %v4025 = vpop.f32.mrb[0].mxu0
      %v4026 = vadd.f32 0.0, %v4025
      %v4027 = vpop.f32.mrb[0].mxu0
      %4028 = vmatprep.mubr.bf16.mxu0 0
      %4029 = vmatmul.mubr.bf16.gmra.mrb[0].mxu0 %v3709
      %v4030 = vpop.f32.mrb[0].mxu0
      %v4031 = vadd.f32 0.0, %v4030
      %v4032 = vpop.f32.mrb[0].mxu0
      %v4033 = vpop.f32.mrb[0].mxu0
      %v4034 = vadd.f32 0.0, %v4033
      %v4035 = vpop.f32.mrb[0].mxu0
      %4036 = vmatprep.mubr.bf16.mxu0 0
      %4037 = vmatmul.mubr.bf16.gmra.mrb[0].mxu0 %v3711
      %v4038 = vpop.f32.mrb[0].mxu0
      %v4039 = vadd.f32 0.0, %v4038
      %v4040 = vpop.f32.mrb[0].mxu0
      %v4041 = vpop.f32.mrb[0].mxu0
      %v4042 = vadd.f32 0.0, %v4041
      %v4043 = vpop.f32.mrb[0].mxu0
      %4044 = vmatprep.mubr.bf16.mxu0 0
      %4045 = vmatmul.mubr.bf16.gmra.mrb[0].mxu0 %v3713
      %v4046 = vpop.f32.mrb[0].mxu0
      %v4047 = vadd.f32 0.0, %v4046
      %v4048 = vpop.f32.mrb[0].mxu0
      %v4049 = vpop.f32.mrb[0].mxu0
      %v4050 = vadd.f32 0.0, %v4049
      %v4051 = vpop.f32.mrb[0].mxu0
      %4052 = vmatprep.mubr.bf16.mxu0 0
      %4053 = vmatmul.mubr.bf16.gmra.mrb[0].mxu0 %v3715
      %v4054 = vpop.f32.mrb[0].mxu0
      %v4055 = vadd.f32 0.0, %v4054
      %v4056 = vpop.f32.mrb[0].mxu0
      %v4057 = vpop.f32.mrb[0].mxu0
      %v4058 = vadd.f32 0.0, %v4057
      %v4059 = vpop.f32.mrb[0].mxu0
      %4060 = vmatprep.mubr.bf16.mxu0 0
      %4061 = vmatmul.mubr.bf16.gmra.mrb[0].mxu0 %v3717
      %v4062 = vpop.f32.mrb[0].mxu0
      %v4063 = vadd.f32 0.0, %v4062
      %v4064 = vpop.f32.mrb[0].mxu0
      %v4065 = vpop.f32.mrb[0].mxu0
      %v4066 = vadd.f32 0.0, %v4065
      %v4067 = vpop.f32.mrb[0].mxu0
      %4068 = vmatprep.mubr.bf16.mxu0 0
      %4069 = vmatmul.mubr.bf16.gmra.mrb[0].mxu0 %v3719
      %v4070 = vpop.f32.mrb[0].mxu0
      %v4071 = vadd.f32 0.0, %v4070
      %v4072 = vpop.f32.mrb[0].mxu0
      %v4073 = vpop.f32.mrb[0].mxu0
      %v4074 = vadd.f32 0.0, %v4073
      %v4075 = vpop.f32.mrb[0].mxu0
      %4076 = vmatprep.mubr.bf16.mxu0 0
      %4077 = vmatmul.mubr.bf16.gmra.mrb[0].mxu0 %v3721
      %v4078 = vpop.f32.mrb[0].mxu0
      %v4079 = vadd.f32 0.0, %v4078
      %v4080 = vpop.f32.mrb[0].mxu0
      %v4081 = vpop.f32.mrb[0].mxu0
      %v4082 = vadd.f32 0.0, %v4081
      %v4083 = vpop.f32.mrb[0].mxu0
      %4084 = vmatprep.mubr.bf16.mxu0 0
      %4085 = vmatmul.mubr.bf16.gmra.mrb[0].mxu0 %v3723
      %v4086 = vpop.f32.mrb[0].mxu0
      %v4087 = vadd.f32 0.0, %v4086
      %v4088 = vpop.f32.mrb[0].mxu0
      %v4089 = vpop.f32.mrb[0].mxu0
      %v4090 = vadd.f32 0.0, %v4089
      %v4091 = vpop.f32.mrb[0].mxu0
      %4092 = vdwg.mxu0
      %v4093 = vadd.f32 %v3574, %v3839
      %v4094 = vadd.f32 %v3575, %v3842
      %v4095 = vadd.f32 %v3576, %v3847
      %v4096 = vadd.f32 %v3577, %v3850
      %v4097 = vadd.f32 %v3578, %v3855
      %v4098 = vadd.f32 %v3579, %v3858
      %v4099 = vadd.f32 %v3580, %v3863
      %v4100 = vadd.f32 %v3581, %v3866
      %v4101 = vadd.f32 %v3582, %v3871
      %v4102 = vadd.f32 %v3583, %v3874
      %v4103 = vadd.f32 %v3584, %v3879
      %v4104 = vadd.f32 %v3585, %v3882
      %v4105 = vadd.f32 %v3586, %v3887
      %v4106 = vadd.f32 %v3587, %v3890
      %v4107 = vadd.f32 %v3588, %v3895
      %v4108 = vadd.f32 %v3589, %v3898
      %v4109 = vadd.f32 %v3590, %v3903
      %v4110 = vadd.f32 %v3591, %v3906
      %v4111 = vadd.f32 %v3592, %v3911
      %v4112 = vadd.f32 %v3593, %v3914
      %v4113 = vadd.f32 %v3594, %v3919
      %v4114 = vadd.f32 %v3595, %v3922
      %v4115 = vadd.f32 %v3596, %v3927
      %v4116 = vadd.f32 %v3597, %v3930
      %v4117 = vadd.f32 %v3598, %v3935
      %v4118 = vadd.f32 %v3599, %v3938
      %v4119 = vadd.f32 %v3600, %v3943
      %v4120 = vadd.f32 %v3601, %v3946
      %v4121 = vadd.f32 %v3602, %v3951
      %v4122 = vadd.f32 %v3603, %v3954
      %v4123 = vadd.f32 %v3604, %v3959
      %v4124 = vadd.f32 %v3605, %v3962
      %v4125 = vadd.f32 %v3606, %v3967
      %v4126 = vadd.f32 %v3607, %v3970
      %v4127 = vadd.f32 %v3608, %v3975
      %v4128 = vadd.f32 %v3609, %v3978
      %v4129 = vadd.f32 %v3610, %v3983
      %v4130 = vadd.f32 %v3611, %v3986
      %v4131 = vadd.f32 %v3612, %v3991
      %v4132 = vadd.f32 %v3613, %v3994
      %v4133 = vadd.f32 %v3614, %v3999
      %v4134 = vadd.f32 %v3615, %v4002
      %v4135 = vadd.f32 %v3616, %v4007
      %v4136 = vadd.f32 %v3617, %v4010
      %v4137 = vadd.f32 %v3618, %v4015
      %v4138 = vadd.f32 %v3619, %v4018
      %v4139 = vadd.f32 %v3620, %v4023
      %v4140 = vadd.f32 %v3621, %v4026
      %v4141 = vadd.f32 %v3622, %v4031
      %v4142 = vadd.f32 %v3623, %v4034
      %v4143 = vadd.f32 %v3624, %v4039
      %v4144 = vadd.f32 %v3625, %v4042
      %v4145 = vadd.f32 %v3626, %v4047
      %v4146 = vadd.f32 %v3627, %v4050
      %v4147 = vadd.f32 %v3628, %v4055
      %v4148 = vadd.f32 %v3629, %v4058
      %v4149 = vadd.f32 %v3630, %v4063
      %v4150 = vadd.f32 %v3631, %v4066
      %v4151 = vadd.f32 %v3632, %v4071
      %v4152 = vadd.f32 %v3633, %v4074
      %v4153 = vadd.f32 %v3634, %v4079
      %v4154 = vadd.f32 %v3635, %v4082
      %v4155 = vadd.f32 %v3636, %v4087
      %v4156 = vadd.f32 %v3637, %v4090
      %v4157 = vld [vmem:[#allocation2 + $0x10] sm:$0xfc]
      %v4158 = vld [vmem:[#allocation2 + $0x18] sm:$0xff]
      %v4159 = vld [vmem:[#allocation2 + $0x20] sm:$0xff]
      %v4160 = vld [vmem:[#allocation2 + $0x28] sm:$0xff]
      %v4161 = vld [vmem:[#allocation2 + $0x30] sm:$0xff]
      %v4162 = vld [vmem:[#allocation2 + $0x38] sm:$0xff]
      %v4163 = vld [vmem:[#allocation2 + $0x40] sm:$0xff]
      %v4164 = vld [vmem:[#allocation2 + $0x48] sm:$0xff]
      %v4165 = vld [vmem:[#allocation2 + $0x50] sm:$0xff]
      %v4166 = vld [vmem:[#allocation2 + $0x58] sm:$0xff]
      %v4167 = vld [vmem:[#allocation2 + $0x60] sm:$0xff]
      %v4168 = vld [vmem:[#allocation2 + $0x68] sm:$0xff]
      %v4169 = vld [vmem:[#allocation2 + $0x70] sm:$0xff]
      %v4170 = vld [vmem:[#allocation2 + $0x78] sm:$0xff]
      %v4171 = vld [vmem:[#allocation2 + $0x80] sm:$0xff]
      %v4172 = vld [vmem:[#allocation2 + $0x88] sm:$0xff]
      %v4173 = vld [vmem:[#allocation2 + $0x90] sm:$0xff]
      %v4174 = vld [vmem:[#allocation2 + $0x98] sm:$0xff]
      %v4175 = vld [vmem:[#allocation2 + $0xa0] sm:$0xff]
      %v4176 = vld [vmem:[#allocation2 + $0xa8] sm:$0xff]
      %v4177 = vld [vmem:[#allocation2 + $0xb0] sm:$0xff]
      %v4178 = vld [vmem:[#allocation2 + $0xb8] sm:$0xff]
      %v4179 = vld [vmem:[#allocation2 + $0xc0] sm:$0xff]
      %v4180 = vld [vmem:[#allocation2 + $0xc8] sm:$0xff]
      %v4181 = vld [vmem:[#allocation2 + $0xd0] sm:$0xff]
      %v4182 = vld [vmem:[#allocation2 + $0xd8] sm:$0xff]
      %v4183 = vld [vmem:[#allocation2 + $0xe0] sm:$0xff]
      %v4184 = vld [vmem:[#allocation2 + $0xe8] sm:$0xff]
      %v4185 = vld [vmem:[#allocation2 + $0xf0] sm:$0xff]
      %v4186 = vld [vmem:[#allocation2 + $0xf8] sm:$0xff]
      %v4187 = vld [vmem:[#allocation2 + $0x100] sm:$0xff]
      %v4188 = vld [vmem:[#allocation2 + $0x108] sm:$0xff]
      %v4189 = vld [vmem:[#allocation2 + $0x110] sm:$0x3]
      %s4190 = scalar_lea.vmem %s378, 384
      %v4191 = vld [vmem:[%s4190] sm:$0xf]
      %v4192 = vld [vmem:[%s4190 + $0x4] sm:$0xf]
      %v4193 = vld [vmem:[%s4190 + $0x8] sm:$0xf]
      %v4194 = vld [vmem:[%s4190 + $0xc] sm:$0xf]
      %v4195 = vld [vmem:[%s4190 + $0x10] sm:$0xf]
      %v4196 = vld [vmem:[%s4190 + $0x14] sm:$0xf]
      %v4197 = vld [vmem:[%s4190 + $0x18] sm:$0xf]
      %v4198 = vld [vmem:[%s4190 + $0x1c] sm:$0xf]
      %v4199 = vld [vmem:[%s4190 + $0x20] sm:$0xf]
      %v4200 = vld [vmem:[%s4190 + $0x24] sm:$0xf]
      %v4201 = vld [vmem:[%s4190 + $0x28] sm:$0xf]
      %v4202 = vld [vmem:[%s4190 + $0x2c] sm:$0xf]
      %v4203 = vld [vmem:[%s4190 + $0x30] sm:$0xf]
      %v4204 = vld [vmem:[%s4190 + $0x34] sm:$0xf]
      %v4205 = vld [vmem:[%s4190 + $0x38] sm:$0xf]
      %v4206 = vld [vmem:[%s4190 + $0x3c] sm:$0xf]
      %v4240 = vrot.slane %v4157, 2
      %v4241 = vrot.slane %v4158, 2
      %v4242 = vsel %vm3658, %v4240, %v4241
      %v4243 = vrot.slane %v4159, 2
      %v4244 = vsel %vm3658, %v4241, %v4243
      %v4245 = vrot.slane %v4160, 2
      %v4246 = vsel %vm3658, %v4243, %v4245
      %v4247 = vrot.slane %v4161, 2
      %v4248 = vsel %vm3658, %v4245, %v4247
      %v4249 = vrot.slane %v4162, 2
      %v4250 = vsel %vm3658, %v4247, %v4249
      %v4251 = vrot.slane %v4163, 2
      %v4252 = vsel %vm3658, %v4249, %v4251
      %v4253 = vrot.slane %v4164, 2
      %v4254 = vsel %vm3658, %v4251, %v4253
      %v4255 = vrot.slane %v4165, 2
      %v4256 = vsel %vm3658, %v4253, %v4255
      %v4257 = vrot.slane %v4166, 2
      %v4258 = vsel %vm3658, %v4255, %v4257
      %v4259 = vrot.slane %v4167, 2
      %v4260 = vsel %vm3658, %v4257, %v4259
      %v4261 = vrot.slane %v4168, 2
      %v4262 = vsel %vm3658, %v4259, %v4261
      %v4263 = vrot.slane %v4169, 2
      %v4264 = vsel %vm3658, %v4261, %v4263
      %v4265 = vrot.slane %v4170, 2
      %v4266 = vsel %vm3658, %v4263, %v4265
      %v4267 = vrot.slane %v4171, 2
      %v4268 = vsel %vm3658, %v4265, %v4267
      %v4269 = vrot.slane %v4172, 2
      %v4270 = vsel %vm3658, %v4267, %v4269
      %v4271 = vrot.slane %v4173, 2
      %v4272 = vsel %vm3658, %v4269, %v4271
      %v4273 = vrot.slane %v4174, 2
      %v4274 = vsel %vm3658, %v4271, %v4273
      %v4275 = vrot.slane %v4175, 2
      %v4276 = vsel %vm3658, %v4273, %v4275
      %v4277 = vrot.slane %v4176, 2
      %v4278 = vsel %vm3658, %v4275, %v4277
      %v4279 = vrot.slane %v4177, 2
      %v4280 = vsel %vm3658, %v4277, %v4279
      %v4281 = vrot.slane %v4178, 2
      %v4282 = vsel %vm3658, %v4279, %v4281
      %v4283 = vrot.slane %v4179, 2
      %v4284 = vsel %vm3658, %v4281, %v4283
      %v4285 = vrot.slane %v4180, 2
      %v4286 = vsel %vm3658, %v4283, %v4285
      %v4287 = vrot.slane %v4181, 2
      %v4288 = vsel %vm3658, %v4285, %v4287
      %v4289 = vrot.slane %v4182, 2
      %v4290 = vsel %vm3658, %v4287, %v4289
      %v4291 = vrot.slane %v4183, 2
      %v4292 = vsel %vm3658, %v4289, %v4291
      %v4293 = vrot.slane %v4184, 2
      %v4294 = vsel %vm3658, %v4291, %v4293
      %v4295 = vrot.slane %v4185, 2
      %v4296 = vsel %vm3658, %v4293, %v4295
      %v4297 = vrot.slane %v4186, 2
      %v4298 = vsel %vm3658, %v4295, %v4297
      %v4299 = vrot.slane %v4187, 2
      %v4300 = vsel %vm3658, %v4297, %v4299
      %v4301 = vrot.slane %v4188, 2
      %v4302 = vsel %vm3658, %v4299, %v4301
      %v4303 = vrot.slane %v4189, 2
      %v4304 = vsel %vm3658, %v4301, %v4303
      %v4353 = vunpack.c.l.b16 %v4191
      %v4354 = vunpack.c.l.b16 %v4192
      %v4355 = vunpack.c.l.b16 %v4193
      %v4356 = vunpack.c.l.b16 %v4194
      %v4357 = vunpack.c.l.b16 %v4195
      %v4358 = vunpack.c.l.b16 %v4196
      %v4359 = vunpack.c.l.b16 %v4197
      %v4360 = vunpack.c.l.b16 %v4198
      %v4361 = vunpack.c.l.b16 %v4199
      %v4362 = vunpack.c.l.b16 %v4200
      %v4363 = vunpack.c.l.b16 %v4201
      %v4364 = vunpack.c.l.b16 %v4202
      %v4365 = vunpack.c.l.b16 %v4203
      %v4366 = vunpack.c.l.b16 %v4204
      %v4367 = vunpack.c.l.b16 %v4205
      %v4368 = vunpack.c.l.b16 %v4206
      %v4369 = vpack.c.b16 %v4354, %v4353
      %v4370 = vpack.c.b16 %v4356, %v4355
      %v4371 = vpack.c.b16 %v4358, %v4357
      %v4372 = vpack.c.b16 %v4360, %v4359
      %v4373 = vpack.c.b16 %v4362, %v4361
      %v4374 = vpack.c.b16 %v4364, %v4363
      %v4375 = vpack.c.b16 %v4366, %v4365
      %v4376 = vpack.c.b16 %v4368, %v4367
      %4385 = vmatprep.subr.bf16.mxu0 0
      %4386 = vmatpush1.bf16.msra.mxu0 %v4369
      %4387 = vmatprep.subr.bf16.mxu0 0
      %4388 = vmatpush1.bf16.msra.mxu0 %v4370
      %4389 = vmatprep.subr.bf16.mxu0 0
      %4390 = vmatpush1.bf16.msra.mxu0 %v4371
      %4391 = vmatprep.subr.bf16.mxu0 0
      %4392 = vmatpush1.bf16.msra.mxu0 %v4372
      %4393 = vmatprep.subr.bf16.mxu0 0
      %4394 = vmatpush1.bf16.msra.mxu0 %v4373
      %4395 = vmatprep.subr.bf16.mxu0 0
      %4396 = vmatpush1.bf16.msra.mxu0 %v4374
      %4397 = vmatprep.subr.bf16.mxu0 0
      %4398 = vmatpush1.bf16.msra.mxu0 %v4375
      %4399 = vmatprep.subr.bf16.mxu0 0
      %4400 = vmatpush1.bf16.msra.mxu0 %v4376
      %4401 = vmatprep.subr.bf16.mxu0 0
      %4402 = vmatpush1.bf16.msra.mxu0 0
      %4403 = vmatprep.subr.bf16.mxu0 0
      %4404 = vmatpush1.bf16.msra.mxu0 0
      %4405 = vmatprep.subr.bf16.mxu0 0
      %4406 = vmatpush1.bf16.msra.mxu0 0
      %4407 = vmatprep.subr.bf16.mxu0 0
      %4408 = vmatpush1.bf16.msra.mxu0 0
      %4409 = vmatprep.subr.bf16.mxu0 0
      %4410 = vmatpush1.bf16.msra.mxu0 0
      %4411 = vmatprep.subr.bf16.mxu0 0
      %4412 = vmatpush1.bf16.msra.mxu0 0
      %4413 = vmatprep.subr.bf16.mxu0 0
      %4414 = vmatpush1.bf16.msra.mxu0 0
      %4415 = vmatprep.subr.bf16.mxu0 0
      %4416 = vmatpush1.bf16.msra.mxu0 0
      %4417 = vmatprep.mubr.bf16.mxu0 0
      %4418 = vmatmul.mubr.bf16.gmra.mrb[0].mxu0 %v4242
      %v4419 = vpop.f32.mrb[0].mxu0
      %v4420 = vadd.f32 0.0, %v4419
      %v4421 = vpop.f32.mrb[0].mxu0
      %v4422 = vpop.f32.mrb[0].mxu0
      %v4423 = vadd.f32 0.0, %v4422
      %v4424 = vpop.f32.mrb[0].mxu0
      %4425 = vmatprep.mubr.bf16.mxu0 0
      %4426 = vmatmul.mubr.bf16.gmra.mrb[0].mxu0 %v4244
      %v4427 = vpop.f32.mrb[0].mxu0
      %v4428 = vadd.f32 0.0, %v4427
      %v4429 = vpop.f32.mrb[0].mxu0
      %v4430 = vpop.f32.mrb[0].mxu0
      %v4431 = vadd.f32 0.0, %v4430
      %v4432 = vpop.f32.mrb[0].mxu0
      %4433 = vmatprep.mubr.bf16.mxu0 0
      %4434 = vmatmul.mubr.bf16.gmra.mrb[0].mxu0 %v4246
      %v4435 = vpop.f32.mrb[0].mxu0
      %v4436 = vadd.f32 0.0, %v4435
      %v4437 = vpop.f32.mrb[0].mxu0
      %v4438 = vpop.f32.mrb[0].mxu0
      %v4439 = vadd.f32 0.0, %v4438
      %v4440 = vpop.f32.mrb[0].mxu0
      %4441 = vmatprep.mubr.bf16.mxu0 0
      %4442 = vmatmul.mubr.bf16.gmra.mrb[0].mxu0 %v4248
      %v4443 = vpop.f32.mrb[0].mxu0
      %v4444 = vadd.f32 0.0, %v4443
      %v4445 = vpop.f32.mrb[0].mxu0
      %v4446 = vpop.f32.mrb[0].mxu0
      %v4447 = vadd.f32 0.0, %v4446
      %v4448 = vpop.f32.mrb[0].mxu0
      %4449 = vmatprep.mubr.bf16.mxu0 0
      %4450 = vmatmul.mubr.bf16.gmra.mrb[0].mxu0 %v4250
      %v4451 = vpop.f32.mrb[0].mxu0
      %v4452 = vadd.f32 0.0, %v4451
      %v4453 = vpop.f32.mrb[0].mxu0
      %v4454 = vpop.f32.mrb[0].mxu0
      %v4455 = vadd.f32 0.0, %v4454
      %v4456 = vpop.f32.mrb[0].mxu0
      %4457 = vmatprep.mubr.bf16.mxu0 0
      %4458 = vmatmul.mubr.bf16.gmra.mrb[0].mxu0 %v4252
      %v4459 = vpop.f32.mrb[0].mxu0
      %v4460 = vadd.f32 0.0, %v4459
      %v4461 = vpop.f32.mrb[0].mxu0
      %v4462 = vpop.f32.mrb[0].mxu0
      %v4463 = vadd.f32 0.0, %v4462
      %v4464 = vpop.f32.mrb[0].mxu0
      %4465 = vmatprep.mubr.bf16.mxu0 0
      %4466 = vmatmul.mubr.bf16.gmra.mrb[0].mxu0 %v4254
      %v4467 = vpop.f32.mrb[0].mxu0
      %v4468 = vadd.f32 0.0, %v4467
      %v4469 = vpop.f32.mrb[0].mxu0
      %v4470 = vpop.f32.mrb[0].mxu0
      %v4471 = vadd.f32 0.0, %v4470
      %v4472 = vpop.f32.mrb[0].mxu0
      %4473 = vmatprep.mubr.bf16.mxu0 0
      %4474 = vmatmul.mubr.bf16.gmra.mrb[0].mxu0 %v4256
      %v4475 = vpop.f32.mrb[0].mxu0
      %v4476 = vadd.f32 0.0, %v4475
      %v4477 = vpop.f32.mrb[0].mxu0
      %v4478 = vpop.f32.mrb[0].mxu0
      %v4479 = vadd.f32 0.0, %v4478
      %v4480 = vpop.f32.mrb[0].mxu0
      %4481 = vmatprep.mubr.bf16.mxu0 0
      %4482 = vmatmul.mubr.bf16.gmra.mrb[0].mxu0 %v4258
      %v4483 = vpop.f32.mrb[0].mxu0
      %v4484 = vadd.f32 0.0, %v4483
      %v4485 = vpop.f32.mrb[0].mxu0
      %v4486 = vpop.f32.mrb[0].mxu0
      %v4487 = vadd.f32 0.0, %v4486
      %v4488 = vpop.f32.mrb[0].mxu0
      %4489 = vmatprep.mubr.bf16.mxu0 0
      %4490 = vmatmul.mubr.bf16.gmra.mrb[0].mxu0 %v4260
      %v4491 = vpop.f32.mrb[0].mxu0
      %v4492 = vadd.f32 0.0, %v4491
      %v4493 = vpop.f32.mrb[0].mxu0
      %v4494 = vpop.f32.mrb[0].mxu0
      %v4495 = vadd.f32 0.0, %v4494
      %v4496 = vpop.f32.mrb[0].mxu0
      %4497 = vmatprep.mubr.bf16.mxu0 0
      %4498 = vmatmul.mubr.bf16.gmra.mrb[0].mxu0 %v4262
      %v4499 = vpop.f32.mrb[0].mxu0
      %v4500 = vadd.f32 0.0, %v4499
      %v4501 = vpop.f32.mrb[0].mxu0
      %v4502 = vpop.f32.mrb[0].mxu0
      %v4503 = vadd.f32 0.0, %v4502
      %v4504 = vpop.f32.mrb[0].mxu0
      %4505 = vmatprep.mubr.bf16.mxu0 0
      %4506 = vmatmul.mubr.bf16.gmra.mrb[0].mxu0 %v4264
      %v4507 = vpop.f32.mrb[0].mxu0
      %v4508 = vadd.f32 0.0, %v4507
      %v4509 = vpop.f32.mrb[0].mxu0
      %v4510 = vpop.f32.mrb[0].mxu0
      %v4511 = vadd.f32 0.0, %v4510
      %v4512 = vpop.f32.mrb[0].mxu0
      %4513 = vmatprep.mubr.bf16.mxu0 0
      %4514 = vmatmul.mubr.bf16.gmra.mrb[0].mxu0 %v4266
      %v4515 = vpop.f32.mrb[0].mxu0
      %v4516 = vadd.f32 0.0, %v4515
      %v4517 = vpop.f32.mrb[0].mxu0
      %v4518 = vpop.f32.mrb[0].mxu0
      %v4519 = vadd.f32 0.0, %v4518
      %v4520 = vpop.f32.mrb[0].mxu0
      %4521 = vmatprep.mubr.bf16.mxu0 0
      %4522 = vmatmul.mubr.bf16.gmra.mrb[0].mxu0 %v4268
      %v4523 = vpop.f32.mrb[0].mxu0
      %v4524 = vadd.f32 0.0, %v4523
      %v4525 = vpop.f32.mrb[0].mxu0
      %v4526 = vpop.f32.mrb[0].mxu0
      %v4527 = vadd.f32 0.0, %v4526
      %v4528 = vpop.f32.mrb[0].mxu0
      %4529 = vmatprep.mubr.bf16.mxu0 0
      %4530 = vmatmul.mubr.bf16.gmra.mrb[0].mxu0 %v4270
      %v4531 = vpop.f32.mrb[0].mxu0
      %v4532 = vadd.f32 0.0, %v4531
      %v4533 = vpop.f32.mrb[0].mxu0
      %v4534 = vpop.f32.mrb[0].mxu0
      %v4535 = vadd.f32 0.0, %v4534
      %v4536 = vpop.f32.mrb[0].mxu0
      %4537 = vmatprep.mubr.bf16.mxu0 0
      %4538 = vmatmul.mubr.bf16.gmra.mrb[0].mxu0 %v4272
      %v4539 = vpop.f32.mrb[0].mxu0
      %v4540 = vadd.f32 0.0, %v4539
      %v4541 = vpop.f32.mrb[0].mxu0
      %v4542 = vpop.f32.mrb[0].mxu0
      %v4543 = vadd.f32 0.0, %v4542
      %v4544 = vpop.f32.mrb[0].mxu0
      %4545 = vmatprep.mubr.bf16.mxu0 0
      %4546 = vmatmul.mubr.bf16.gmra.mrb[0].mxu0 %v4274
      %v4547 = vpop.f32.mrb[0].mxu0
      %v4548 = vadd.f32 0.0, %v4547
      %v4549 = vpop.f32.mrb[0].mxu0
      %v4550 = vpop.f32.mrb[0].mxu0
      %v4551 = vadd.f32 0.0, %v4550
      %v4552 = vpop.f32.mrb[0].mxu0
      %4553 = vmatprep.mubr.bf16.mxu0 0
      %4554 = vmatmul.mubr.bf16.gmra.mrb[0].mxu0 %v4276
      %v4555 = vpop.f32.mrb[0].mxu0
      %v4556 = vadd.f32 0.0, %v4555
      %v4557 = vpop.f32.mrb[0].mxu0
      %v4558 = vpop.f32.mrb[0].mxu0
      %v4559 = vadd.f32 0.0, %v4558
      %v4560 = vpop.f32.mrb[0].mxu0
      %4561 = vmatprep.mubr.bf16.mxu0 0
      %4562 = vmatmul.mubr.bf16.gmra.mrb[0].mxu0 %v4278
      %v4563 = vpop.f32.mrb[0].mxu0
      %v4564 = vadd.f32 0.0, %v4563
      %v4565 = vpop.f32.mrb[0].mxu0
      %v4566 = vpop.f32.mrb[0].mxu0
      %v4567 = vadd.f32 0.0, %v4566
      %v4568 = vpop.f32.mrb[0].mxu0
      %4569 = vmatprep.mubr.bf16.mxu0 0
      %4570 = vmatmul.mubr.bf16.gmra.mrb[0].mxu0 %v4280
      %v4571 = vpop.f32.mrb[0].mxu0
      %v4572 = vadd.f32 0.0, %v4571
      %v4573 = vpop.f32.mrb[0].mxu0
      %v4574 = vpop.f32.mrb[0].mxu0
      %v4575 = vadd.f32 0.0, %v4574
      %v4576 = vpop.f32.mrb[0].mxu0
      %4577 = vmatprep.mubr.bf16.mxu0 0
      %4578 = vmatmul.mubr.bf16.gmra.mrb[0].mxu0 %v4282
      %v4579 = vpop.f32.mrb[0].mxu0
      %v4580 = vadd.f32 0.0, %v4579
      %v4581 = vpop.f32.mrb[0].mxu0
      %v4582 = vpop.f32.mrb[0].mxu0
      %v4583 = vadd.f32 0.0, %v4582
      %v4584 = vpop.f32.mrb[0].mxu0
      %4585 = vmatprep.mubr.bf16.mxu0 0
      %4586 = vmatmul.mubr.bf16.gmra.mrb[0].mxu0 %v4284
      %v4587 = vpop.f32.mrb[0].mxu0
      %v4588 = vadd.f32 0.0, %v4587
      %v4589 = vpop.f32.mrb[0].mxu0
      %v4590 = vpop.f32.mrb[0].mxu0
      %v4591 = vadd.f32 0.0, %v4590
      %v4592 = vpop.f32.mrb[0].mxu0
      %4593 = vmatprep.mubr.bf16.mxu0 0
      %4594 = vmatmul.mubr.bf16.gmra.mrb[0].mxu0 %v4286
      %v4595 = vpop.f32.mrb[0].mxu0
      %v4596 = vadd.f32 0.0, %v4595
      %v4597 = vpop.f32.mrb[0].mxu0
      %v4598 = vpop.f32.mrb[0].mxu0
      %v4599 = vadd.f32 0.0, %v4598
      %v4600 = vpop.f32.mrb[0].mxu0
      %4601 = vmatprep.mubr.bf16.mxu0 0
      %4602 = vmatmul.mubr.bf16.gmra.mrb[0].mxu0 %v4288
      %v4603 = vpop.f32.mrb[0].mxu0
      %v4604 = vadd.f32 0.0, %v4603
      %v4605 = vpop.f32.mrb[0].mxu0
      %v4606 = vpop.f32.mrb[0].mxu0
      %v4607 = vadd.f32 0.0, %v4606
      %v4608 = vpop.f32.mrb[0].mxu0
      %4609 = vmatprep.mubr.bf16.mxu0 0
      %4610 = vmatmul.mubr.bf16.gmra.mrb[0].mxu0 %v4290
      %v4611 = vpop.f32.mrb[0].mxu0
      %v4612 = vadd.f32 0.0, %v4611
      %v4613 = vpop.f32.mrb[0].mxu0
      %v4614 = vpop.f32.mrb[0].mxu0
      %v4615 = vadd.f32 0.0, %v4614
      %v4616 = vpop.f32.mrb[0].mxu0
      %4617 = vmatprep.mubr.bf16.mxu0 0
      %4618 = vmatmul.mubr.bf16.gmra.mrb[0].mxu0 %v4292
      %v4619 = vpop.f32.mrb[0].mxu0
      %v4620 = vadd.f32 0.0, %v4619
      %v4621 = vpop.f32.mrb[0].mxu0
      %v4622 = vpop.f32.mrb[0].mxu0
      %v4623 = vadd.f32 0.0, %v4622
      %v4624 = vpop.f32.mrb[0].mxu0
      %4625 = vmatprep.mubr.bf16.mxu0 0
      %4626 = vmatmul.mubr.bf16.gmra.mrb[0].mxu0 %v4294
      %v4627 = vpop.f32.mrb[0].mxu0
      %v4628 = vadd.f32 0.0, %v4627
      %v4629 = vpop.f32.mrb[0].mxu0
      %v4630 = vpop.f32.mrb[0].mxu0
      %v4631 = vadd.f32 0.0, %v4630
      %v4632 = vpop.f32.mrb[0].mxu0
      %4633 = vmatprep.mubr.bf16.mxu0 0
      %4634 = vmatmul.mubr.bf16.gmra.mrb[0].mxu0 %v4296
      %v4635 = vpop.f32.mrb[0].mxu0
      %v4636 = vadd.f32 0.0, %v4635
      %v4637 = vpop.f32.mrb[0].mxu0
      %v4638 = vpop.f32.mrb[0].mxu0
      %v4639 = vadd.f32 0.0, %v4638
      %v4640 = vpop.f32.mrb[0].mxu0
      %4641 = vmatprep.mubr.bf16.mxu0 0
      %4642 = vmatmul.mubr.bf16.gmra.mrb[0].mxu0 %v4298
      %v4643 = vpop.f32.mrb[0].mxu0
      %v4644 = vadd.f32 0.0, %v4643
      %v4645 = vpop.f32.mrb[0].mxu0
      %v4646 = vpop.f32.mrb[0].mxu0
      %v4647 = vadd.f32 0.0, %v4646
      %v4648 = vpop.f32.mrb[0].mxu0
      %4649 = vmatprep.mubr.bf16.mxu0 0
      %4650 = vmatmul.mubr.bf16.gmra.mrb[0].mxu0 %v4300
      %v4651 = vpop.f32.mrb[0].mxu0
      %v4652 = vadd.f32 0.0, %v4651
      %v4653 = vpop.f32.mrb[0].mxu0
      %v4654 = vpop.f32.mrb[0].mxu0
      %v4655 = vadd.f32 0.0, %v4654
      %v4656 = vpop.f32.mrb[0].mxu0
      %4657 = vmatprep.mubr.bf16.mxu0 0
      %4658 = vmatmul.mubr.bf16.gmra.mrb[0].mxu0 %v4302
      %v4659 = vpop.f32.mrb[0].mxu0
      %v4660 = vadd.f32 0.0, %v4659
      %v4661 = vpop.f32.mrb[0].mxu0
      %v4662 = vpop.f32.mrb[0].mxu0
      %v4663 = vadd.f32 0.0, %v4662
      %v4664 = vpop.f32.mrb[0].mxu0
      %4665 = vmatprep.mubr.bf16.mxu0 0
      %4666 = vmatmul.mubr.bf16.gmra.mrb[0].mxu0 %v4304
      %v4667 = vpop.f32.mrb[0].mxu0
      %v4668 = vadd.f32 0.0, %v4667
      %v4669 = vpop.f32.mrb[0].mxu0
      %v4670 = vpop.f32.mrb[0].mxu0
      %v4671 = vadd.f32 0.0, %v4670
      %v4672 = vpop.f32.mrb[0].mxu0
      %4673 = vdwg.mxu0
      %v4674 = vadd.f32 %v4093, %v4420
      %v4675 = vadd.f32 %v4094, %v4423
      %v4676 = vadd.f32 %v4095, %v4428
      %v4677 = vadd.f32 %v4096, %v4431
      %v4678 = vadd.f32 %v4097, %v4436
      %v4679 = vadd.f32 %v4098, %v4439
      %v4680 = vadd.f32 %v4099, %v4444
      %v4681 = vadd.f32 %v4100, %v4447
      %v4682 = vadd.f32 %v4101, %v4452
      %v4683 = vadd.f32 %v4102, %v4455
      %v4684 = vadd.f32 %v4103, %v4460
      %v4685 = vadd.f32 %v4104, %v4463
      %v4686 = vadd.f32 %v4105, %v4468
      %v4687 = vadd.f32 %v4106, %v4471
      %v4688 = vadd.f32 %v4107, %v4476
      %v4689 = vadd.f32 %v4108, %v4479
      %v4690 = vadd.f32 %v4109, %v4484
      %v4691 = vadd.f32 %v4110, %v4487
      %v4692 = vadd.f32 %v4111, %v4492
      %v4693 = vadd.f32 %v4112, %v4495
      %v4694 = vadd.f32 %v4113, %v4500
      %v4695 = vadd.f32 %v4114, %v4503
      %v4696 = vadd.f32 %v4115, %v4508
      %v4697 = vadd.f32 %v4116, %v4511
      %v4698 = vadd.f32 %v4117, %v4516
      %v4699 = vadd.f32 %v4118, %v4519
      %v4700 = vadd.f32 %v4119, %v4524
      %v4701 = vadd.f32 %v4120, %v4527
      %v4702 = vadd.f32 %v4121, %v4532
      %v4703 = vadd.f32 %v4122, %v4535
      %v4704 = vadd.f32 %v4123, %v4540
      %v4705 = vadd.f32 %v4124, %v4543
      %v4706 = vadd.f32 %v4125, %v4548
      %v4707 = vadd.f32 %v4126, %v4551
      %v4708 = vadd.f32 %v4127, %v4556
      %v4709 = vadd.f32 %v4128, %v4559
      %v4710 = vadd.f32 %v4129, %v4564
      %v4711 = vadd.f32 %v4130, %v4567
      %v4712 = vadd.f32 %v4131, %v4572
      %v4713 = vadd.f32 %v4132, %v4575
      %v4714 = vadd.f32 %v4133, %v4580
      %v4715 = vadd.f32 %v4134, %v4583
      %v4716 = vadd.f32 %v4135, %v4588
      %v4717 = vadd.f32 %v4136, %v4591
      %v4718 = vadd.f32 %v4137, %v4596
      %v4719 = vadd.f32 %v4138, %v4599
      %v4720 = vadd.f32 %v4139, %v4604
      %v4721 = vadd.f32 %v4140, %v4607
      %v4722 = vadd.f32 %v4141, %v4612
      %v4723 = vadd.f32 %v4142, %v4615
      %v4724 = vadd.f32 %v4143, %v4620
      %v4725 = vadd.f32 %v4144, %v4623
      %v4726 = vadd.f32 %v4145, %v4628
      %v4727 = vadd.f32 %v4146, %v4631
      %v4728 = vadd.f32 %v4147, %v4636
      %v4729 = vadd.f32 %v4148, %v4639
      %v4730 = vadd.f32 %v4149, %v4644
      %v4731 = vadd.f32 %v4150, %v4647
      %v4732 = vadd.f32 %v4151, %v4652
      %v4733 = vadd.f32 %v4152, %v4655
      %v4734 = vadd.f32 %v4153, %v4660
      %v4735 = vadd.f32 %v4154, %v4663
      %v4736 = vadd.f32 %v4155, %v4668
      %v4737 = vadd.f32 %v4156, %v4671
      %v4738 = vld [vmem:[#allocation2 + $0x110] sm:$0x7]
      %s4739 = scalar_lea.vmem %s378, 448
      %v4740 = vld [vmem:[%s4739] sm:$0xf]
      %v4741 = vld [vmem:[%s4739 + $0x4] sm:$0xf]
      %v4742 = vld [vmem:[%s4739 + $0x8] sm:$0xf]
      %v4743 = vld [vmem:[%s4739 + $0xc] sm:$0xf]
      %v4744 = vld [vmem:[%s4739 + $0x10] sm:$0xf]
      %v4745 = vld [vmem:[%s4739 + $0x14] sm:$0xf]
      %v4746 = vld [vmem:[%s4739 + $0x18] sm:$0xf]
      %v4747 = vld [vmem:[%s4739 + $0x1c] sm:$0xf]
      %v4748 = vld [vmem:[%s4739 + $0x20] sm:$0xf]
      %v4749 = vld [vmem:[%s4739 + $0x24] sm:$0xf]
      %v4750 = vld [vmem:[%s4739 + $0x28] sm:$0xf]
      %v4751 = vld [vmem:[%s4739 + $0x2c] sm:$0xf]
      %v4752 = vld [vmem:[%s4739 + $0x30] sm:$0xf]
      %v4753 = vld [vmem:[%s4739 + $0x34] sm:$0xf]
      %v4754 = vld [vmem:[%s4739 + $0x38] sm:$0xf]
      %v4755 = vld [vmem:[%s4739 + $0x3c] sm:$0xf]
      %vm4756 = vsmask.f32 5376
      %v4758 = vshrl.u32 %v4157, 16
      %v4760 = vrot.slane %v4758, 2
      %v4761 = vshll.u32 %v4157, 16
      %v4763 = vrot.slane %v4761, 3
      %v4764 = vor.u32 %v4760, %v4763
      %v4766 = vshrl.u32 %v4158, 16
      %v4768 = vrot.slane %v4766, 2
      %v4769 = vshll.u32 %v4158, 16
      %v4771 = vrot.slane %v4769, 3
      %v4772 = vor.u32 %v4768, %v4771
      %v4773 = vsel %vm4756, %v4764, %v4772
      %v4775 = vshrl.u32 %v4159, 16
      %v4777 = vrot.slane %v4775, 2
      %v4778 = vshll.u32 %v4159, 16
      %v4780 = vrot.slane %v4778, 3
      %v4781 = vor.u32 %v4777, %v4780
      %v4782 = vsel %vm4756, %v4772, %v4781
      %v4784 = vshrl.u32 %v4160, 16
      %v4786 = vrot.slane %v4784, 2
      %v4787 = vshll.u32 %v4160, 16
      %v4789 = vrot.slane %v4787, 3
      %v4790 = vor.u32 %v4786, %v4789
      %v4791 = vsel %vm4756, %v4781, %v4790
      %v4793 = vshrl.u32 %v4161, 16
      %v4795 = vrot.slane %v4793, 2
      %v4796 = vshll.u32 %v4161, 16
      %v4798 = vrot.slane %v4796, 3
      %v4799 = vor.u32 %v4795, %v4798
      %v4800 = vsel %vm4756, %v4790, %v4799
      %v4802 = vshrl.u32 %v4162, 16
      %v4804 = vrot.slane %v4802, 2
      %v4805 = vshll.u32 %v4162, 16
      %v4807 = vrot.slane %v4805, 3
      %v4808 = vor.u32 %v4804, %v4807
      %v4809 = vsel %vm4756, %v4799, %v4808
      %v4811 = vshrl.u32 %v4163, 16
      %v4813 = vrot.slane %v4811, 2
      %v4814 = vshll.u32 %v4163, 16
      %v4816 = vrot.slane %v4814, 3
      %v4817 = vor.u32 %v4813, %v4816
      %v4818 = vsel %vm4756, %v4808, %v4817
      %v4820 = vshrl.u32 %v4164, 16
      %v4822 = vrot.slane %v4820, 2
      %v4823 = vshll.u32 %v4164, 16
      %v4825 = vrot.slane %v4823, 3
      %v4826 = vor.u32 %v4822, %v4825
      %v4827 = vsel %vm4756, %v4817, %v4826
      %v4829 = vshrl.u32 %v4165, 16
      %v4831 = vrot.slane %v4829, 2
      %v4832 = vshll.u32 %v4165, 16
      %v4834 = vrot.slane %v4832, 3
      %v4835 = vor.u32 %v4831, %v4834
      %v4836 = vsel %vm4756, %v4826, %v4835
      %v4838 = vshrl.u32 %v4166, 16
      %v4840 = vrot.slane %v4838, 2
      %v4841 = vshll.u32 %v4166, 16
      %v4843 = vrot.slane %v4841, 3
      %v4844 = vor.u32 %v4840, %v4843
      %v4845 = vsel %vm4756, %v4835, %v4844
      %v4847 = vshrl.u32 %v4167, 16
      %v4849 = vrot.slane %v4847, 2
      %v4850 = vshll.u32 %v4167, 16
      %v4852 = vrot.slane %v4850, 3
      %v4853 = vor.u32 %v4849, %v4852
      %v4854 = vsel %vm4756, %v4844, %v4853
      %v4856 = vshrl.u32 %v4168, 16
      %v4858 = vrot.slane %v4856, 2
      %v4859 = vshll.u32 %v4168, 16
      %v4861 = vrot.slane %v4859, 3
      %v4862 = vor.u32 %v4858, %v4861
      %v4863 = vsel %vm4756, %v4853, %v4862
      %v4865 = vshrl.u32 %v4169, 16
      %v4867 = vrot.slane %v4865, 2
      %v4868 = vshll.u32 %v4169, 16
      %v4870 = vrot.slane %v4868, 3
      %v4871 = vor.u32 %v4867, %v4870
      %v4872 = vsel %vm4756, %v4862, %v4871
      %v4874 = vshrl.u32 %v4170, 16
      %v4876 = vrot.slane %v4874, 2
      %v4877 = vshll.u32 %v4170, 16
      %v4879 = vrot.slane %v4877, 3
      %v4880 = vor.u32 %v4876, %v4879
      %v4881 = vsel %vm4756, %v4871, %v4880
      %v4883 = vshrl.u32 %v4171, 16
      %v4885 = vrot.slane %v4883, 2
      %v4886 = vshll.u32 %v4171, 16
      %v4888 = vrot.slane %v4886, 3
      %v4889 = vor.u32 %v4885, %v4888
      %v4890 = vsel %vm4756, %v4880, %v4889
      %v4892 = vshrl.u32 %v4172, 16
      %v4894 = vrot.slane %v4892, 2
      %v4895 = vshll.u32 %v4172, 16
      %v4897 = vrot.slane %v4895, 3
      %v4898 = vor.u32 %v4894, %v4897
      %v4899 = vsel %vm4756, %v4889, %v4898
      %v4901 = vshrl.u32 %v4173, 16
      %v4903 = vrot.slane %v4901, 2
      %v4904 = vshll.u32 %v4173, 16
      %v4906 = vrot.slane %v4904, 3
      %v4907 = vor.u32 %v4903, %v4906
      %v4908 = vsel %vm4756, %v4898, %v4907
      %v4910 = vshrl.u32 %v4174, 16
      %v4912 = vrot.slane %v4910, 2
      %v4913 = vshll.u32 %v4174, 16
      %v4915 = vrot.slane %v4913, 3
      %v4916 = vor.u32 %v4912, %v4915
      %v4917 = vsel %vm4756, %v4907, %v4916
      %v4919 = vshrl.u32 %v4175, 16
      %v4921 = vrot.slane %v4919, 2
      %v4922 = vshll.u32 %v4175, 16
      %v4924 = vrot.slane %v4922, 3
      %v4925 = vor.u32 %v4921, %v4924
      %v4926 = vsel %vm4756, %v4916, %v4925
      %v4928 = vshrl.u32 %v4176, 16
      %v4930 = vrot.slane %v4928, 2
      %v4931 = vshll.u32 %v4176, 16
      %v4933 = vrot.slane %v4931, 3
      %v4934 = vor.u32 %v4930, %v4933
      %v4935 = vsel %vm4756, %v4925, %v4934
      %v4937 = vshrl.u32 %v4177, 16
      %v4939 = vrot.slane %v4937, 2
      %v4940 = vshll.u32 %v4177, 16
      %v4942 = vrot.slane %v4940, 3
      %v4943 = vor.u32 %v4939, %v4942
      %v4944 = vsel %vm4756, %v4934, %v4943
      %v4946 = vshrl.u32 %v4178, 16
      %v4948 = vrot.slane %v4946, 2
      %v4949 = vshll.u32 %v4178, 16
      %v4951 = vrot.slane %v4949, 3
      %v4952 = vor.u32 %v4948, %v4951
      %v4953 = vsel %vm4756, %v4943, %v4952
      %v4955 = vshrl.u32 %v4179, 16
      %v4957 = vrot.slane %v4955, 2
      %v4958 = vshll.u32 %v4179, 16
      %v4960 = vrot.slane %v4958, 3
      %v4961 = vor.u32 %v4957, %v4960
      %v4962 = vsel %vm4756, %v4952, %v4961
      %v4964 = vshrl.u32 %v4180, 16
      %v4966 = vrot.slane %v4964, 2
      %v4967 = vshll.u32 %v4180, 16
      %v4969 = vrot.slane %v4967, 3
      %v4970 = vor.u32 %v4966, %v4969
      %v4971 = vsel %vm4756, %v4961, %v4970
      %v4973 = vshrl.u32 %v4181, 16
      %v4975 = vrot.slane %v4973, 2
      %v4976 = vshll.u32 %v4181, 16
      %v4978 = vrot.slane %v4976, 3
      %v4979 = vor.u32 %v4975, %v4978
      %v4980 = vsel %vm4756, %v4970, %v4979
      %v4982 = vshrl.u32 %v4182, 16
      %v4984 = vrot.slane %v4982, 2
      %v4985 = vshll.u32 %v4182, 16
      %v4987 = vrot.slane %v4985, 3
      %v4988 = vor.u32 %v4984, %v4987
      %v4989 = vsel %vm4756, %v4979, %v4988
      %v4991 = vshrl.u32 %v4183, 16
      %v4993 = vrot.slane %v4991, 2
      %v4994 = vshll.u32 %v4183, 16
      %v4996 = vrot.slane %v4994, 3
      %v4997 = vor.u32 %v4993, %v4996
      %v4998 = vsel %vm4756, %v4988, %v4997
      %v5000 = vshrl.u32 %v4184, 16
      %v5002 = vrot.slane %v5000, 2
      %v5003 = vshll.u32 %v4184, 16
      %v5005 = vrot.slane %v5003, 3
      %v5006 = vor.u32 %v5002, %v5005
      %v5007 = vsel %vm4756, %v4997, %v5006
      %v5009 = vshrl.u32 %v4185, 16
      %v5011 = vrot.slane %v5009, 2
      %v5012 = vshll.u32 %v4185, 16
      %v5014 = vrot.slane %v5012, 3
      %v5015 = vor.u32 %v5011, %v5014
      %v5016 = vsel %vm4756, %v5006, %v5015
      %v5018 = vshrl.u32 %v4186, 16
      %v5020 = vrot.slane %v5018, 2
      %v5021 = vshll.u32 %v4186, 16
      %v5023 = vrot.slane %v5021, 3
      %v5024 = vor.u32 %v5020, %v5023
      %v5025 = vsel %vm4756, %v5015, %v5024
      %v5027 = vshrl.u32 %v4187, 16
      %v5029 = vrot.slane %v5027, 2
      %v5030 = vshll.u32 %v4187, 16
      %v5032 = vrot.slane %v5030, 3
      %v5033 = vor.u32 %v5029, %v5032
      %v5034 = vsel %vm4756, %v5024, %v5033
      %v5036 = vshrl.u32 %v4188, 16
      %v5038 = vrot.slane %v5036, 2
      %v5039 = vshll.u32 %v4188, 16
      %v5041 = vrot.slane %v5039, 3
      %v5042 = vor.u32 %v5038, %v5041
      %v5043 = vsel %vm4756, %v5033, %v5042
      %v5045 = vshrl.u32 %v4738, 16
      %v5047 = vrot.slane %v5045, 2
      %v5048 = vshll.u32 %v4738, 16
      %v5050 = vrot.slane %v5048, 3
      %v5051 = vor.u32 %v5047, %v5050
      %v5052 = vsel %vm4756, %v5042, %v5051
      %v5101 = vunpack.c.l.b16 %v4740
      %v5102 = vunpack.c.l.b16 %v4741
      %v5103 = vunpack.c.l.b16 %v4742
      %v5104 = vunpack.c.l.b16 %v4743
      %v5105 = vunpack.c.l.b16 %v4744
      %v5106 = vunpack.c.l.b16 %v4745
      %v5107 = vunpack.c.l.b16 %v4746
      %v5108 = vunpack.c.l.b16 %v4747
      %v5109 = vunpack.c.l.b16 %v4748
      %v5110 = vunpack.c.l.b16 %v4749
      %v5111 = vunpack.c.l.b16 %v4750
      %v5112 = vunpack.c.l.b16 %v4751
      %v5113 = vunpack.c.l.b16 %v4752
      %v5114 = vunpack.c.l.b16 %v4753
      %v5115 = vunpack.c.l.b16 %v4754
      %v5116 = vunpack.c.l.b16 %v4755
      %v5117 = vpack.c.b16 %v5102, %v5101
      %v5118 = vpack.c.b16 %v5104, %v5103
      %v5119 = vpack.c.b16 %v5106, %v5105
      %v5120 = vpack.c.b16 %v5108, %v5107
      %v5121 = vpack.c.b16 %v5110, %v5109
      %v5122 = vpack.c.b16 %v5112, %v5111
      %v5123 = vpack.c.b16 %v5114, %v5113
      %v5124 = vpack.c.b16 %v5116, %v5115
      %5133 = vmatprep.subr.bf16.mxu0 0
      %5134 = vmatpush1.bf16.msra.mxu0 %v5117
      %5135 = vmatprep.subr.bf16.mxu0 0
      %5136 = vmatpush1.bf16.msra.mxu0 %v5118
      %5137 = vmatprep.subr.bf16.mxu0 0
      %5138 = vmatpush1.bf16.msra.mxu0 %v5119
      %5139 = vmatprep.subr.bf16.mxu0 0
      %5140 = vmatpush1.bf16.msra.mxu0 %v5120
      %5141 = vmatprep.subr.bf16.mxu0 0
      %5142 = vmatpush1.bf16.msra.mxu0 %v5121
      %5143 = vmatprep.subr.bf16.mxu0 0
      %5144 = vmatpush1.bf16.msra.mxu0 %v5122
      %5145 = vmatprep.subr.bf16.mxu0 0
      %5146 = vmatpush1.bf16.msra.mxu0 %v5123
      %5147 = vmatprep.subr.bf16.mxu0 0
      %5148 = vmatpush1.bf16.msra.mxu0 %v5124
      %5149 = vmatprep.subr.bf16.mxu0 0
      %5150 = vmatpush1.bf16.msra.mxu0 0
      %5151 = vmatprep.subr.bf16.mxu0 0
      %5152 = vmatpush1.bf16.msra.mxu0 0
      %5153 = vmatprep.subr.bf16.mxu0 0
      %5154 = vmatpush1.bf16.msra.mxu0 0
      %5155 = vmatprep.subr.bf16.mxu0 0
      %5156 = vmatpush1.bf16.msra.mxu0 0
      %5157 = vmatprep.subr.bf16.mxu0 0
      %5158 = vmatpush1.bf16.msra.mxu0 0
      %5159 = vmatprep.subr.bf16.mxu0 0
      %5160 = vmatpush1.bf16.msra.mxu0 0
      %5161 = vmatprep.subr.bf16.mxu0 0
      %5162 = vmatpush1.bf16.msra.mxu0 0
      %5163 = vmatprep.subr.bf16.mxu0 0
      %5164 = vmatpush1.bf16.msra.mxu0 0
      %5165 = vmatprep.mubr.bf16.mxu0 0
      %5166 = vmatmul.mubr.bf16.gmra.mrb[0].mxu0 %v4773
      %v5167 = vpop.f32.mrb[0].mxu0
      %v5168 = vadd.f32 0.0, %v5167
      %v5169 = vpop.f32.mrb[0].mxu0
      %v5170 = vpop.f32.mrb[0].mxu0
      %v5171 = vadd.f32 0.0, %v5170
      %v5172 = vpop.f32.mrb[0].mxu0
      %5173 = vmatprep.mubr.bf16.mxu0 0
      %5174 = vmatmul.mubr.bf16.gmra.mrb[0].mxu0 %v4782
      %v5175 = vpop.f32.mrb[0].mxu0
      %v5176 = vadd.f32 0.0, %v5175
      %v5177 = vpop.f32.mrb[0].mxu0
      %v5178 = vpop.f32.mrb[0].mxu0
      %v5179 = vadd.f32 0.0, %v5178
      %v5180 = vpop.f32.mrb[0].mxu0
      %5181 = vmatprep.mubr.bf16.mxu0 0
      %5182 = vmatmul.mubr.bf16.gmra.mrb[0].mxu0 %v4791
      %v5183 = vpop.f32.mrb[0].mxu0
      %v5184 = vadd.f32 0.0, %v5183
      %v5185 = vpop.f32.mrb[0].mxu0
      %v5186 = vpop.f32.mrb[0].mxu0
      %v5187 = vadd.f32 0.0, %v5186
      %v5188 = vpop.f32.mrb[0].mxu0
      %5189 = vmatprep.mubr.bf16.mxu0 0
      %5190 = vmatmul.mubr.bf16.gmra.mrb[0].mxu0 %v4800
      %v5191 = vpop.f32.mrb[0].mxu0
      %v5192 = vadd.f32 0.0, %v5191
      %v5193 = vpop.f32.mrb[0].mxu0
      %v5194 = vpop.f32.mrb[0].mxu0
      %v5195 = vadd.f32 0.0, %v5194
      %v5196 = vpop.f32.mrb[0].mxu0
      %5197 = vmatprep.mubr.bf16.mxu0 0
      %5198 = vmatmul.mubr.bf16.gmra.mrb[0].mxu0 %v4809
      %v5199 = vpop.f32.mrb[0].mxu0
      %v5200 = vadd.f32 0.0, %v5199
      %v5201 = vpop.f32.mrb[0].mxu0
      %v5202 = vpop.f32.mrb[0].mxu0
      %v5203 = vadd.f32 0.0, %v5202
      %v5204 = vpop.f32.mrb[0].mxu0
      %5205 = vmatprep.mubr.bf16.mxu0 0
      %5206 = vmatmul.mubr.bf16.gmra.mrb[0].mxu0 %v4818
      %v5207 = vpop.f32.mrb[0].mxu0
      %v5208 = vadd.f32 0.0, %v5207
      %v5209 = vpop.f32.mrb[0].mxu0
      %v5210 = vpop.f32.mrb[0].mxu0
      %v5211 = vadd.f32 0.0, %v5210
      %v5212 = vpop.f32.mrb[0].mxu0
      %5213 = vmatprep.mubr.bf16.mxu0 0
      %5214 = vmatmul.mubr.bf16.gmra.mrb[0].mxu0 %v4827
      %v5215 = vpop.f32.mrb[0].mxu0
      %v5216 = vadd.f32 0.0, %v5215
      %v5217 = vpop.f32.mrb[0].mxu0
      %v5218 = vpop.f32.mrb[0].mxu0
      %v5219 = vadd.f32 0.0, %v5218
      %v5220 = vpop.f32.mrb[0].mxu0
      %5221 = vmatprep.mubr.bf16.mxu0 0
      %5222 = vmatmul.mubr.bf16.gmra.mrb[0].mxu0 %v4836
      %v5223 = vpop.f32.mrb[0].mxu0
      %v5224 = vadd.f32 0.0, %v5223
      %v5225 = vpop.f32.mrb[0].mxu0
      %v5226 = vpop.f32.mrb[0].mxu0
      %v5227 = vadd.f32 0.0, %v5226
      %v5228 = vpop.f32.mrb[0].mxu0
      %5229 = vmatprep.mubr.bf16.mxu0 0
      %5230 = vmatmul.mubr.bf16.gmra.mrb[0].mxu0 %v4845
      %v5231 = vpop.f32.mrb[0].mxu0
      %v5232 = vadd.f32 0.0, %v5231
      %v5233 = vpop.f32.mrb[0].mxu0
      %v5234 = vpop.f32.mrb[0].mxu0
      %v5235 = vadd.f32 0.0, %v5234
      %v5236 = vpop.f32.mrb[0].mxu0
      %5237 = vmatprep.mubr.bf16.mxu0 0
      %5238 = vmatmul.mubr.bf16.gmra.mrb[0].mxu0 %v4854
      %v5239 = vpop.f32.mrb[0].mxu0
      %v5240 = vadd.f32 0.0, %v5239
      %v5241 = vpop.f32.mrb[0].mxu0
      %v5242 = vpop.f32.mrb[0].mxu0
      %v5243 = vadd.f32 0.0, %v5242
      %v5244 = vpop.f32.mrb[0].mxu0
      %5245 = vmatprep.mubr.bf16.mxu0 0
      %5246 = vmatmul.mubr.bf16.gmra.mrb[0].mxu0 %v4863
      %v5247 = vpop.f32.mrb[0].mxu0
      %v5248 = vadd.f32 0.0, %v5247
      %v5249 = vpop.f32.mrb[0].mxu0
      %v5250 = vpop.f32.mrb[0].mxu0
      %v5251 = vadd.f32 0.0, %v5250
      %v5252 = vpop.f32.mrb[0].mxu0
      %5253 = vmatprep.mubr.bf16.mxu0 0
      %5254 = vmatmul.mubr.bf16.gmra.mrb[0].mxu0 %v4872
      %v5255 = vpop.f32.mrb[0].mxu0
      %v5256 = vadd.f32 0.0, %v5255
      %v5257 = vpop.f32.mrb[0].mxu0
      %v5258 = vpop.f32.mrb[0].mxu0
      %v5259 = vadd.f32 0.0, %v5258
      %v5260 = vpop.f32.mrb[0].mxu0
      %5261 = vmatprep.mubr.bf16.mxu0 0
      %5262 = vmatmul.mubr.bf16.gmra.mrb[0].mxu0 %v4881
      %v5263 = vpop.f32.mrb[0].mxu0
      %v5264 = vadd.f32 0.0, %v5263
      %v5265 = vpop.f32.mrb[0].mxu0
      %v5266 = vpop.f32.mrb[0].mxu0
      %v5267 = vadd.f32 0.0, %v5266
      %v5268 = vpop.f32.mrb[0].mxu0
      %5269 = vmatprep.mubr.bf16.mxu0 0
      %5270 = vmatmul.mubr.bf16.gmra.mrb[0].mxu0 %v4890
      %v5271 = vpop.f32.mrb[0].mxu0
      %v5272 = vadd.f32 0.0, %v5271
      %v5273 = vpop.f32.mrb[0].mxu0
      %v5274 = vpop.f32.mrb[0].mxu0
      %v5275 = vadd.f32 0.0, %v5274
      %v5276 = vpop.f32.mrb[0].mxu0
      %5277 = vmatprep.mubr.bf16.mxu0 0
      %5278 = vmatmul.mubr.bf16.gmra.mrb[0].mxu0 %v4899
      %v5279 = vpop.f32.mrb[0].mxu0
      %v5280 = vadd.f32 0.0, %v5279
      %v5281 = vpop.f32.mrb[0].mxu0
      %v5282 = vpop.f32.mrb[0].mxu0
      %v5283 = vadd.f32 0.0, %v5282
      %v5284 = vpop.f32.mrb[0].mxu0
      %5285 = vmatprep.mubr.bf16.mxu0 0
      %5286 = vmatmul.mubr.bf16.gmra.mrb[0].mxu0 %v4908
      %v5287 = vpop.f32.mrb[0].mxu0
      %v5288 = vadd.f32 0.0, %v5287
      %v5289 = vpop.f32.mrb[0].mxu0
      %v5290 = vpop.f32.mrb[0].mxu0
      %v5291 = vadd.f32 0.0, %v5290
      %v5292 = vpop.f32.mrb[0].mxu0
      %5293 = vmatprep.mubr.bf16.mxu0 0
      %5294 = vmatmul.mubr.bf16.gmra.mrb[0].mxu0 %v4917
      %v5295 = vpop.f32.mrb[0].mxu0
      %v5296 = vadd.f32 0.0, %v5295
      %v5297 = vpop.f32.mrb[0].mxu0
      %v5298 = vpop.f32.mrb[0].mxu0
      %v5299 = vadd.f32 0.0, %v5298
      %v5300 = vpop.f32.mrb[0].mxu0
      %5301 = vmatprep.mubr.bf16.mxu0 0
      %5302 = vmatmul.mubr.bf16.gmra.mrb[0].mxu0 %v4926
      %v5303 = vpop.f32.mrb[0].mxu0
      %v5304 = vadd.f32 0.0, %v5303
      %v5305 = vpop.f32.mrb[0].mxu0
      %v5306 = vpop.f32.mrb[0].mxu0
      %v5307 = vadd.f32 0.0, %v5306
      %v5308 = vpop.f32.mrb[0].mxu0
      %5309 = vmatprep.mubr.bf16.mxu0 0
      %5310 = vmatmul.mubr.bf16.gmra.mrb[0].mxu0 %v4935
      %v5311 = vpop.f32.mrb[0].mxu0
      %v5312 = vadd.f32 0.0, %v5311
      %v5313 = vpop.f32.mrb[0].mxu0
      %v5314 = vpop.f32.mrb[0].mxu0
      %v5315 = vadd.f32 0.0, %v5314
      %v5316 = vpop.f32.mrb[0].mxu0
      %5317 = vmatprep.mubr.bf16.mxu0 0
      %5318 = vmatmul.mubr.bf16.gmra.mrb[0].mxu0 %v4944
      %v5319 = vpop.f32.mrb[0].mxu0
      %v5320 = vadd.f32 0.0, %v5319
      %v5321 = vpop.f32.mrb[0].mxu0
      %v5322 = vpop.f32.mrb[0].mxu0
      %v5323 = vadd.f32 0.0, %v5322
      %v5324 = vpop.f32.mrb[0].mxu0
      %5325 = vmatprep.mubr.bf16.mxu0 0
      %5326 = vmatmul.mubr.bf16.gmra.mrb[0].mxu0 %v4953
      %v5327 = vpop.f32.mrb[0].mxu0
      %v5328 = vadd.f32 0.0, %v5327
      %v5329 = vpop.f32.mrb[0].mxu0
      %v5330 = vpop.f32.mrb[0].mxu0
      %v5331 = vadd.f32 0.0, %v5330
      %v5332 = vpop.f32.mrb[0].mxu0
      %5333 = vmatprep.mubr.bf16.mxu0 0
      %5334 = vmatmul.mubr.bf16.gmra.mrb[0].mxu0 %v4962
      %v5335 = vpop.f32.mrb[0].mxu0
      %v5336 = vadd.f32 0.0, %v5335
      %v5337 = vpop.f32.mrb[0].mxu0
      %v5338 = vpop.f32.mrb[0].mxu0
      %v5339 = vadd.f32 0.0, %v5338
      %v5340 = vpop.f32.mrb[0].mxu0
      %5341 = vmatprep.mubr.bf16.mxu0 0
      %5342 = vmatmul.mubr.bf16.gmra.mrb[0].mxu0 %v4971
      %v5343 = vpop.f32.mrb[0].mxu0
      %v5344 = vadd.f32 0.0, %v5343
      %v5345 = vpop.f32.mrb[0].mxu0
      %v5346 = vpop.f32.mrb[0].mxu0
      %v5347 = vadd.f32 0.0, %v5346
      %v5348 = vpop.f32.mrb[0].mxu0
      %5349 = vmatprep.mubr.bf16.mxu0 0
      %5350 = vmatmul.mubr.bf16.gmra.mrb[0].mxu0 %v4980
      %v5351 = vpop.f32.mrb[0].mxu0
      %v5352 = vadd.f32 0.0, %v5351
      %v5353 = vpop.f32.mrb[0].mxu0
      %v5354 = vpop.f32.mrb[0].mxu0
      %v5355 = vadd.f32 0.0, %v5354
      %v5356 = vpop.f32.mrb[0].mxu0
      %5357 = vmatprep.mubr.bf16.mxu0 0
      %5358 = vmatmul.mubr.bf16.gmra.mrb[0].mxu0 %v4989
      %v5359 = vpop.f32.mrb[0].mxu0
      %v5360 = vadd.f32 0.0, %v5359
      %v5361 = vpop.f32.mrb[0].mxu0
      %v5362 = vpop.f32.mrb[0].mxu0
      %v5363 = vadd.f32 0.0, %v5362
      %v5364 = vpop.f32.mrb[0].mxu0
      %5365 = vmatprep.mubr.bf16.mxu0 0
      %5366 = vmatmul.mubr.bf16.gmra.mrb[0].mxu0 %v4998
      %v5367 = vpop.f32.mrb[0].mxu0
      %v5368 = vadd.f32 0.0, %v5367
      %v5369 = vpop.f32.mrb[0].mxu0
      %v5370 = vpop.f32.mrb[0].mxu0
      %v5371 = vadd.f32 0.0, %v5370
      %v5372 = vpop.f32.mrb[0].mxu0
      %5373 = vmatprep.mubr.bf16.mxu0 0
      %5374 = vmatmul.mubr.bf16.gmra.mrb[0].mxu0 %v5007
      %v5375 = vpop.f32.mrb[0].mxu0
      %v5376 = vadd.f32 0.0, %v5375
      %v5377 = vpop.f32.mrb[0].mxu0
      %v5378 = vpop.f32.mrb[0].mxu0
      %v5379 = vadd.f32 0.0, %v5378
      %v5380 = vpop.f32.mrb[0].mxu0
      %5381 = vmatprep.mubr.bf16.mxu0 0
      %5382 = vmatmul.mubr.bf16.gmra.mrb[0].mxu0 %v5016
      %v5383 = vpop.f32.mrb[0].mxu0
      %v5384 = vadd.f32 0.0, %v5383
      %v5385 = vpop.f32.mrb[0].mxu0
      %v5386 = vpop.f32.mrb[0].mxu0
      %v5387 = vadd.f32 0.0, %v5386
      %v5388 = vpop.f32.mrb[0].mxu0
      %5389 = vmatprep.mubr.bf16.mxu0 0
      %5390 = vmatmul.mubr.bf16.gmra.mrb[0].mxu0 %v5025
      %v5391 = vpop.f32.mrb[0].mxu0
      %v5392 = vadd.f32 0.0, %v5391
      %v5393 = vpop.f32.mrb[0].mxu0
      %v5394 = vpop.f32.mrb[0].mxu0
      %v5395 = vadd.f32 0.0, %v5394
      %v5396 = vpop.f32.mrb[0].mxu0
      %5397 = vmatprep.mubr.bf16.mxu0 0
      %5398 = vmatmul.mubr.bf16.gmra.mrb[0].mxu0 %v5034
      %v5399 = vpop.f32.mrb[0].mxu0
      %v5400 = vadd.f32 0.0, %v5399
      %v5401 = vpop.f32.mrb[0].mxu0
      %v5402 = vpop.f32.mrb[0].mxu0
      %v5403 = vadd.f32 0.0, %v5402
      %v5404 = vpop.f32.mrb[0].mxu0
      %5405 = vmatprep.mubr.bf16.mxu0 0
      %5406 = vmatmul.mubr.bf16.gmra.mrb[0].mxu0 %v5043
      %v5407 = vpop.f32.mrb[0].mxu0
      %v5408 = vadd.f32 0.0, %v5407
      %v5409 = vpop.f32.mrb[0].mxu0
      %v5410 = vpop.f32.mrb[0].mxu0
      %v5411 = vadd.f32 0.0, %v5410
      %v5412 = vpop.f32.mrb[0].mxu0
      %5413 = vmatprep.mubr.bf16.mxu0 0
      %5414 = vmatmul.mubr.bf16.gmra.mrb[0].mxu0 %v5052
      %v5415 = vpop.f32.mrb[0].mxu0
      %v5416 = vadd.f32 0.0, %v5415
      %v5417 = vpop.f32.mrb[0].mxu0
      %v5418 = vpop.f32.mrb[0].mxu0
      %v5419 = vadd.f32 0.0, %v5418
      %v5420 = vpop.f32.mrb[0].mxu0
      %5421 = vdwg.mxu0
      %v5422 = vadd.f32 %v4674, %v5168
      %v5423 = vadd.f32 %v4675, %v5171
      %v5424 = vadd.f32 %v4676, %v5176
      %v5425 = vadd.f32 %v4677, %v5179
      %v5426 = vadd.f32 %v4678, %v5184
      %v5427 = vadd.f32 %v4679, %v5187
      %v5428 = vadd.f32 %v4680, %v5192
      %v5429 = vadd.f32 %v4681, %v5195
      %v5430 = vadd.f32 %v4682, %v5200
      %v5431 = vadd.f32 %v4683, %v5203
      %v5432 = vadd.f32 %v4684, %v5208
      %v5433 = vadd.f32 %v4685, %v5211
      %v5434 = vadd.f32 %v4686, %v5216
      %v5435 = vadd.f32 %v4687, %v5219
      %v5436 = vadd.f32 %v4688, %v5224
      %v5437 = vadd.f32 %v4689, %v5227
      %v5438 = vadd.f32 %v4690, %v5232
      %v5439 = vadd.f32 %v4691, %v5235
      %v5440 = vadd.f32 %v4692, %v5240
      %v5441 = vadd.f32 %v4693, %v5243
      %v5442 = vadd.f32 %v4694, %v5248
      %v5443 = vadd.f32 %v4695, %v5251
      %v5444 = vadd.f32 %v4696, %v5256
      %v5445 = vadd.f32 %v4697, %v5259
      %v5446 = vadd.f32 %v4698, %v5264
      %v5447 = vadd.f32 %v4699, %v5267
      %v5448 = vadd.f32 %v4700, %v5272
      %v5449 = vadd.f32 %v4701, %v5275
      %v5450 = vadd.f32 %v4702, %v5280
      %v5451 = vadd.f32 %v4703, %v5283
      %v5452 = vadd.f32 %v4704, %v5288
      %v5453 = vadd.f32 %v4705, %v5291
      %v5454 = vadd.f32 %v4706, %v5296
      %v5455 = vadd.f32 %v4707, %v5299
      %v5456 = vadd.f32 %v4708, %v5304
      %v5457 = vadd.f32 %v4709, %v5307
      %v5458 = vadd.f32 %v4710, %v5312
      %v5459 = vadd.f32 %v4711, %v5315
      %v5460 = vadd.f32 %v4712, %v5320
      %v5461 = vadd.f32 %v4713, %v5323
      %v5462 = vadd.f32 %v4714, %v5328
      %v5463 = vadd.f32 %v4715, %v5331
      %v5464 = vadd.f32 %v4716, %v5336
      %v5465 = vadd.f32 %v4717, %v5339
      %v5466 = vadd.f32 %v4718, %v5344
      %v5467 = vadd.f32 %v4719, %v5347
      %v5468 = vadd.f32 %v4720, %v5352
      %v5469 = vadd.f32 %v4721, %v5355
      %v5470 = vadd.f32 %v4722, %v5360
      %v5471 = vadd.f32 %v4723, %v5363
      %v5472 = vadd.f32 %v4724, %v5368
      %v5473 = vadd.f32 %v4725, %v5371
      %v5474 = vadd.f32 %v4726, %v5376
      %v5475 = vadd.f32 %v4727, %v5379
      %v5476 = vadd.f32 %v4728, %v5384
      %v5477 = vadd.f32 %v4729, %v5387
      %v5478 = vadd.f32 %v4730, %v5392
      %v5479 = vadd.f32 %v4731, %v5395
      %v5480 = vadd.f32 %v4732, %v5400
      %v5481 = vadd.f32 %v4733, %v5403
      %v5482 = vadd.f32 %v4734, %v5408
      %v5483 = vadd.f32 %v4735, %v5411
      %v5484 = vadd.f32 %v4736, %v5416
      %v5485 = vadd.f32 %v4737, %v5419
      %v5486 = vld [vmem:[#allocation2 + $0x10] sm:$0xf8]
      %s5487 = scalar_lea.vmem %s378, 512
      %v5488 = vld [vmem:[%s5487] sm:$0xf]
      %v5489 = vld [vmem:[%s5487 + $0x4] sm:$0xf]
      %v5490 = vld [vmem:[%s5487 + $0x8] sm:$0xf]
      %v5491 = vld [vmem:[%s5487 + $0xc] sm:$0xf]
      %v5492 = vld [vmem:[%s5487 + $0x10] sm:$0xf]
      %v5493 = vld [vmem:[%s5487 + $0x14] sm:$0xf]
      %v5494 = vld [vmem:[%s5487 + $0x18] sm:$0xf]
      %v5495 = vld [vmem:[%s5487 + $0x1c] sm:$0xf]
      %v5496 = vld [vmem:[%s5487 + $0x20] sm:$0xf]
      %v5497 = vld [vmem:[%s5487 + $0x24] sm:$0xf]
      %v5498 = vld [vmem:[%s5487 + $0x28] sm:$0xf]
      %v5499 = vld [vmem:[%s5487 + $0x2c] sm:$0xf]
      %v5500 = vld [vmem:[%s5487 + $0x30] sm:$0xf]
      %v5501 = vld [vmem:[%s5487 + $0x34] sm:$0xf]
      %v5502 = vld [vmem:[%s5487 + $0x38] sm:$0xf]
      %v5503 = vld [vmem:[%s5487 + $0x3c] sm:$0xf]
      %vm5506 = vcmask 1044480
      %v5507 = vrot.slane %v5486, 3
      %v5508 = vrot.slane %v4158, 3
      %v5509 = vsel %vm5506, %v5507, %v5508
      %v5510 = vrot.slane %v4159, 3
      %v5511 = vsel %vm5506, %v5508, %v5510
      %v5512 = vrot.slane %v4160, 3
      %v5513 = vsel %vm5506, %v5510, %v5512
      %v5514 = vrot.slane %v4161, 3
      %v5515 = vsel %vm5506, %v5512, %v5514
      %v5516 = vrot.slane %v4162, 3
      %v5517 = vsel %vm5506, %v5514, %v5516
      %v5518 = vrot.slane %v4163, 3
      %v5519 = vsel %vm5506, %v5516, %v5518
      %v5520 = vrot.slane %v4164, 3
      %v5521 = vsel %vm5506, %v5518, %v5520
      %v5522 = vrot.slane %v4165, 3
      %v5523 = vsel %vm5506, %v5520, %v5522
      %v5524 = vrot.slane %v4166, 3
      %v5525 = vsel %vm5506, %v5522, %v5524
      %v5526 = vrot.slane %v4167, 3
      %v5527 = vsel %vm5506, %v5524, %v5526
      %v5528 = vrot.slane %v4168, 3
      %v5529 = vsel %vm5506, %v5526, %v5528
      %v5530 = vrot.slane %v4169, 3
      %v5531 = vsel %vm5506, %v5528, %v5530
      %v5532 = vrot.slane %v4170, 3
      %v5533 = vsel %vm5506, %v5530, %v5532
      %v5534 = vrot.slane %v4171, 3
      %v5535 = vsel %vm5506, %v5532, %v5534
      %v5536 = vrot.slane %v4172, 3
      %v5537 = vsel %vm5506, %v5534, %v5536
      %v5538 = vrot.slane %v4173, 3
      %v5539 = vsel %vm5506, %v5536, %v5538
      %v5540 = vrot.slane %v4174, 3
      %v5541 = vsel %vm5506, %v5538, %v5540
      %v5542 = vrot.slane %v4175, 3
      %v5543 = vsel %vm5506, %v5540, %v5542
      %v5544 = vrot.slane %v4176, 3
      %v5545 = vsel %vm5506, %v5542, %v5544
      %v5546 = vrot.slane %v4177, 3
      %v5547 = vsel %vm5506, %v5544, %v5546
      %v5548 = vrot.slane %v4178, 3
      %v5549 = vsel %vm5506, %v5546, %v5548
      %v5550 = vrot.slane %v4179, 3
      %v5551 = vsel %vm5506, %v5548, %v5550
      %v5552 = vrot.slane %v4180, 3
      %v5553 = vsel %vm5506, %v5550, %v5552
      %v5554 = vrot.slane %v4181, 3
      %v5555 = vsel %vm5506, %v5552, %v5554
      %v5556 = vrot.slane %v4182, 3
      %v5557 = vsel %vm5506, %v5554, %v5556
      %v5558 = vrot.slane %v4183, 3
      %v5559 = vsel %vm5506, %v5556, %v5558
      %v5560 = vrot.slane %v4184, 3
      %v5561 = vsel %vm5506, %v5558, %v5560
      %v5562 = vrot.slane %v4185, 3
      %v5563 = vsel %vm5506, %v5560, %v5562
      %v5564 = vrot.slane %v4186, 3
      %v5565 = vsel %vm5506, %v5562, %v5564
      %v5566 = vrot.slane %v4187, 3
      %v5567 = vsel %vm5506, %v5564, %v5566
      %v5568 = vrot.slane %v4188, 3
      %v5569 = vsel %vm5506, %v5566, %v5568
      %v5570 = vrot.slane %v4738, 3
      %v5571 = vsel %vm5506, %v5568, %v5570
      %v5620 = vunpack.c.l.b16 %v5488
      %v5621 = vunpack.c.l.b16 %v5489
      %v5622 = vunpack.c.l.b16 %v5490
      %v5623 = vunpack.c.l.b16 %v5491
      %v5624 = vunpack.c.l.b16 %v5492
      %v5625 = vunpack.c.l.b16 %v5493
      %v5626 = vunpack.c.l.b16 %v5494
      %v5627 = vunpack.c.l.b16 %v5495
      %v5628 = vunpack.c.l.b16 %v5496
      %v5629 = vunpack.c.l.b16 %v5497
      %v5630 = vunpack.c.l.b16 %v5498
      %v5631 = vunpack.c.l.b16 %v5499
      %v5632 = vunpack.c.l.b16 %v5500
      %v5633 = vunpack.c.l.b16 %v5501
      %v5634 = vunpack.c.l.b16 %v5502
      %v5635 = vunpack.c.l.b16 %v5503
      %v5636 = vpack.c.b16 %v5621, %v5620
      %v5637 = vpack.c.b16 %v5623, %v5622
      %v5638 = vpack.c.b16 %v5625, %v5624
      %v5639 = vpack.c.b16 %v5627, %v5626
      %v5640 = vpack.c.b16 %v5629, %v5628
      %v5641 = vpack.c.b16 %v5631, %v5630
      %v5642 = vpack.c.b16 %v5633, %v5632
      %v5643 = vpack.c.b16 %v5635, %v5634
      %5652 = vmatprep.subr.bf16.mxu0 0
      %5653 = vmatpush1.bf16.msra.mxu0 %v5636
      %5654 = vmatprep.subr.bf16.mxu0 0
      %5655 = vmatpush1.bf16.msra.mxu0 %v5637
      %5656 = vmatprep.subr.bf16.mxu0 0
      %5657 = vmatpush1.bf16.msra.mxu0 %v5638
      %5658 = vmatprep.subr.bf16.mxu0 0
      %5659 = vmatpush1.bf16.msra.mxu0 %v5639
      %5660 = vmatprep.subr.bf16.mxu0 0
      %5661 = vmatpush1.bf16.msra.mxu0 %v5640
      %5662 = vmatprep.subr.bf16.mxu0 0
      %5663 = vmatpush1.bf16.msra.mxu0 %v5641
      %5664 = vmatprep.subr.bf16.mxu0 0
      %5665 = vmatpush1.bf16.msra.mxu0 %v5642
      %5666 = vmatprep.subr.bf16.mxu0 0
      %5667 = vmatpush1.bf16.msra.mxu0 %v5643
      %5668 = vmatprep.subr.bf16.mxu0 0
      %5669 = vmatpush1.bf16.msra.mxu0 0
      %5670 = vmatprep.subr.bf16.mxu0 0
      %5671 = vmatpush1.bf16.msra.mxu0 0
      %5672 = vmatprep.subr.bf16.mxu0 0
      %5673 = vmatpush1.bf16.msra.mxu0 0
      %5674 = vmatprep.subr.bf16.mxu0 0
      %5675 = vmatpush1.bf16.msra.mxu0 0
      %5676 = vmatprep.subr.bf16.mxu0 0
      %5677 = vmatpush1.bf16.msra.mxu0 0
      %5678 = vmatprep.subr.bf16.mxu0 0
      %5679 = vmatpush1.bf16.msra.mxu0 0
      %5680 = vmatprep.subr.bf16.mxu0 0
      %5681 = vmatpush1.bf16.msra.mxu0 0
      %5682 = vmatprep.subr.bf16.mxu0 0
      %5683 = vmatpush1.bf16.msra.mxu0 0
      %5684 = vmatprep.mubr.bf16.mxu0 0
      %5685 = vmatmul.mubr.bf16.gmra.mrb[0].mxu0 %v5509
      %v5686 = vpop.f32.mrb[0].mxu0
      %v5687 = vadd.f32 0.0, %v5686
      %v5688 = vpop.f32.mrb[0].mxu0
      %v5689 = vpop.f32.mrb[0].mxu0
      %v5690 = vadd.f32 0.0, %v5689
      %v5691 = vpop.f32.mrb[0].mxu0
      %5692 = vmatprep.mubr.bf16.mxu0 0
      %5693 = vmatmul.mubr.bf16.gmra.mrb[0].mxu0 %v5511
      %v5694 = vpop.f32.mrb[0].mxu0
      %v5695 = vadd.f32 0.0, %v5694
      %v5696 = vpop.f32.mrb[0].mxu0
      %v5697 = vpop.f32.mrb[0].mxu0
      %v5698 = vadd.f32 0.0, %v5697
      %v5699 = vpop.f32.mrb[0].mxu0
      %5700 = vmatprep.mubr.bf16.mxu0 0
      %5701 = vmatmul.mubr.bf16.gmra.mrb[0].mxu0 %v5513
      %v5702 = vpop.f32.mrb[0].mxu0
      %v5703 = vadd.f32 0.0, %v5702
      %v5704 = vpop.f32.mrb[0].mxu0
      %v5705 = vpop.f32.mrb[0].mxu0
      %v5706 = vadd.f32 0.0, %v5705
      %v5707 = vpop.f32.mrb[0].mxu0
      %5708 = vmatprep.mubr.bf16.mxu0 0
      %5709 = vmatmul.mubr.bf16.gmra.mrb[0].mxu0 %v5515
      %v5710 = vpop.f32.mrb[0].mxu0
      %v5711 = vadd.f32 0.0, %v5710
      %v5712 = vpop.f32.mrb[0].mxu0
      %v5713 = vpop.f32.mrb[0].mxu0
      %v5714 = vadd.f32 0.0, %v5713
      %v5715 = vpop.f32.mrb[0].mxu0
      %5716 = vmatprep.mubr.bf16.mxu0 0
      %5717 = vmatmul.mubr.bf16.gmra.mrb[0].mxu0 %v5517
      %v5718 = vpop.f32.mrb[0].mxu0
      %v5719 = vadd.f32 0.0, %v5718
      %v5720 = vpop.f32.mrb[0].mxu0
      %v5721 = vpop.f32.mrb[0].mxu0
      %v5722 = vadd.f32 0.0, %v5721
      %v5723 = vpop.f32.mrb[0].mxu0
      %5724 = vmatprep.mubr.bf16.mxu0 0
      %5725 = vmatmul.mubr.bf16.gmra.mrb[0].mxu0 %v5519
      %v5726 = vpop.f32.mrb[0].mxu0
      %v5727 = vadd.f32 0.0, %v5726
      %v5728 = vpop.f32.mrb[0].mxu0
      %v5729 = vpop.f32.mrb[0].mxu0
      %v5730 = vadd.f32 0.0, %v5729
      %v5731 = vpop.f32.mrb[0].mxu0
      %5732 = vmatprep.mubr.bf16.mxu0 0
      %5733 = vmatmul.mubr.bf16.gmra.mrb[0].mxu0 %v5521
      %v5734 = vpop.f32.mrb[0].mxu0
      %v5735 = vadd.f32 0.0, %v5734
      %v5736 = vpop.f32.mrb[0].mxu0
      %v5737 = vpop.f32.mrb[0].mxu0
      %v5738 = vadd.f32 0.0, %v5737
      %v5739 = vpop.f32.mrb[0].mxu0
      %5740 = vmatprep.mubr.bf16.mxu0 0
      %5741 = vmatmul.mubr.bf16.gmra.mrb[0].mxu0 %v5523
      %v5742 = vpop.f32.mrb[0].mxu0
      %v5743 = vadd.f32 0.0, %v5742
      %v5744 = vpop.f32.mrb[0].mxu0
      %v5745 = vpop.f32.mrb[0].mxu0
      %v5746 = vadd.f32 0.0, %v5745
      %v5747 = vpop.f32.mrb[0].mxu0
      %5748 = vmatprep.mubr.bf16.mxu0 0
      %5749 = vmatmul.mubr.bf16.gmra.mrb[0].mxu0 %v5525
      %v5750 = vpop.f32.mrb[0].mxu0
      %v5751 = vadd.f32 0.0, %v5750
      %v5752 = vpop.f32.mrb[0].mxu0
      %v5753 = vpop.f32.mrb[0].mxu0
      %v5754 = vadd.f32 0.0, %v5753
      %v5755 = vpop.f32.mrb[0].mxu0
      %5756 = vmatprep.mubr.bf16.mxu0 0
      %5757 = vmatmul.mubr.bf16.gmra.mrb[0].mxu0 %v5527
      %v5758 = vpop.f32.mrb[0].mxu0
      %v5759 = vadd.f32 0.0, %v5758
      %v5760 = vpop.f32.mrb[0].mxu0
      %v5761 = vpop.f32.mrb[0].mxu0
      %v5762 = vadd.f32 0.0, %v5761
      %v5763 = vpop.f32.mrb[0].mxu0
      %5764 = vmatprep.mubr.bf16.mxu0 0
      %5765 = vmatmul.mubr.bf16.gmra.mrb[0].mxu0 %v5529
      %v5766 = vpop.f32.mrb[0].mxu0
      %v5767 = vadd.f32 0.0, %v5766
      %v5768 = vpop.f32.mrb[0].mxu0
      %v5769 = vpop.f32.mrb[0].mxu0
      %v5770 = vadd.f32 0.0, %v5769
      %v5771 = vpop.f32.mrb[0].mxu0
      %5772 = vmatprep.mubr.bf16.mxu0 0
      %5773 = vmatmul.mubr.bf16.gmra.mrb[0].mxu0 %v5531
      %v5774 = vpop.f32.mrb[0].mxu0
      %v5775 = vadd.f32 0.0, %v5774
      %v5776 = vpop.f32.mrb[0].mxu0
      %v5777 = vpop.f32.mrb[0].mxu0
      %v5778 = vadd.f32 0.0, %v5777
      %v5779 = vpop.f32.mrb[0].mxu0
      %5780 = vmatprep.mubr.bf16.mxu0 0
      %5781 = vmatmul.mubr.bf16.gmra.mrb[0].mxu0 %v5533
      %v5782 = vpop.f32.mrb[0].mxu0
      %v5783 = vadd.f32 0.0, %v5782
      %v5784 = vpop.f32.mrb[0].mxu0
      %v5785 = vpop.f32.mrb[0].mxu0
      %v5786 = vadd.f32 0.0, %v5785
      %v5787 = vpop.f32.mrb[0].mxu0
      %5788 = vmatprep.mubr.bf16.mxu0 0
      %5789 = vmatmul.mubr.bf16.gmra.mrb[0].mxu0 %v5535
      %v5790 = vpop.f32.mrb[0].mxu0
      %v5791 = vadd.f32 0.0, %v5790
      %v5792 = vpop.f32.mrb[0].mxu0
      %v5793 = vpop.f32.mrb[0].mxu0
      %v5794 = vadd.f32 0.0, %v5793
      %v5795 = vpop.f32.mrb[0].mxu0
      %5796 = vmatprep.mubr.bf16.mxu0 0
      %5797 = vmatmul.mubr.bf16.gmra.mrb[0].mxu0 %v5537
      %v5798 = vpop.f32.mrb[0].mxu0
      %v5799 = vadd.f32 0.0, %v5798
      %v5800 = vpop.f32.mrb[0].mxu0
      %v5801 = vpop.f32.mrb[0].mxu0
      %v5802 = vadd.f32 0.0, %v5801
      %v5803 = vpop.f32.mrb[0].mxu0
      %5804 = vmatprep.mubr.bf16.mxu0 0
      %5805 = vmatmul.mubr.bf16.gmra.mrb[0].mxu0 %v5539
      %v5806 = vpop.f32.mrb[0].mxu0
      %v5807 = vadd.f32 0.0, %v5806
      %v5808 = vpop.f32.mrb[0].mxu0
      %v5809 = vpop.f32.mrb[0].mxu0
      %v5810 = vadd.f32 0.0, %v5809
      %v5811 = vpop.f32.mrb[0].mxu0
      %5812 = vmatprep.mubr.bf16.mxu0 0
      %5813 = vmatmul.mubr.bf16.gmra.mrb[0].mxu0 %v5541
      %v5814 = vpop.f32.mrb[0].mxu0
      %v5815 = vadd.f32 0.0, %v5814
      %v5816 = vpop.f32.mrb[0].mxu0
      %v5817 = vpop.f32.mrb[0].mxu0
      %v5818 = vadd.f32 0.0, %v5817
      %v5819 = vpop.f32.mrb[0].mxu0
      %5820 = vmatprep.mubr.bf16.mxu0 0
      %5821 = vmatmul.mubr.bf16.gmra.mrb[0].mxu0 %v5543
      %v5822 = vpop.f32.mrb[0].mxu0
      %v5823 = vadd.f32 0.0, %v5822
      %v5824 = vpop.f32.mrb[0].mxu0
      %v5825 = vpop.f32.mrb[0].mxu0
      %v5826 = vadd.f32 0.0, %v5825
      %v5827 = vpop.f32.mrb[0].mxu0
      %5828 = vmatprep.mubr.bf16.mxu0 0
      %5829 = vmatmul.mubr.bf16.gmra.mrb[0].mxu0 %v5545
      %v5830 = vpop.f32.mrb[0].mxu0
      %v5831 = vadd.f32 0.0, %v5830
      %v5832 = vpop.f32.mrb[0].mxu0
      %v5833 = vpop.f32.mrb[0].mxu0
      %v5834 = vadd.f32 0.0, %v5833
      %v5835 = vpop.f32.mrb[0].mxu0
      %5836 = vmatprep.mubr.bf16.mxu0 0
      %5837 = vmatmul.mubr.bf16.gmra.mrb[0].mxu0 %v5547
      %v5838 = vpop.f32.mrb[0].mxu0
      %v5839 = vadd.f32 0.0, %v5838
      %v5840 = vpop.f32.mrb[0].mxu0
      %v5841 = vpop.f32.mrb[0].mxu0
      %v5842 = vadd.f32 0.0, %v5841
      %v5843 = vpop.f32.mrb[0].mxu0
      %5844 = vmatprep.mubr.bf16.mxu0 0
      %5845 = vmatmul.mubr.bf16.gmra.mrb[0].mxu0 %v5549
      %v5846 = vpop.f32.mrb[0].mxu0
      %v5847 = vadd.f32 0.0, %v5846
      %v5848 = vpop.f32.mrb[0].mxu0
      %v5849 = vpop.f32.mrb[0].mxu0
      %v5850 = vadd.f32 0.0, %v5849
      %v5851 = vpop.f32.mrb[0].mxu0
      %5852 = vmatprep.mubr.bf16.mxu0 0
      %5853 = vmatmul.mubr.bf16.gmra.mrb[0].mxu0 %v5551
      %v5854 = vpop.f32.mrb[0].mxu0
      %v5855 = vadd.f32 0.0, %v5854
      %v5856 = vpop.f32.mrb[0].mxu0
      %v5857 = vpop.f32.mrb[0].mxu0
      %v5858 = vadd.f32 0.0, %v5857
      %v5859 = vpop.f32.mrb[0].mxu0
      %5860 = vmatprep.mubr.bf16.mxu0 0
      %5861 = vmatmul.mubr.bf16.gmra.mrb[0].mxu0 %v5553
      %v5862 = vpop.f32.mrb[0].mxu0
      %v5863 = vadd.f32 0.0, %v5862
      %v5864 = vpop.f32.mrb[0].mxu0
      %v5865 = vpop.f32.mrb[0].mxu0
      %v5866 = vadd.f32 0.0, %v5865
      %v5867 = vpop.f32.mrb[0].mxu0
      %5868 = vmatprep.mubr.bf16.mxu0 0
      %5869 = vmatmul.mubr.bf16.gmra.mrb[0].mxu0 %v5555
      %v5870 = vpop.f32.mrb[0].mxu0
      %v5871 = vadd.f32 0.0, %v5870
      %v5872 = vpop.f32.mrb[0].mxu0
      %v5873 = vpop.f32.mrb[0].mxu0
      %v5874 = vadd.f32 0.0, %v5873
      %v5875 = vpop.f32.mrb[0].mxu0
      %5876 = vmatprep.mubr.bf16.mxu0 0
      %5877 = vmatmul.mubr.bf16.gmra.mrb[0].mxu0 %v5557
      %v5878 = vpop.f32.mrb[0].mxu0
      %v5879 = vadd.f32 0.0, %v5878
      %v5880 = vpop.f32.mrb[0].mxu0
      %v5881 = vpop.f32.mrb[0].mxu0
      %v5882 = vadd.f32 0.0, %v5881
      %v5883 = vpop.f32.mrb[0].mxu0
      %5884 = vmatprep.mubr.bf16.mxu0 0
      %5885 = vmatmul.mubr.bf16.gmra.mrb[0].mxu0 %v5559
      %v5886 = vpop.f32.mrb[0].mxu0
      %v5887 = vadd.f32 0.0, %v5886
      %v5888 = vpop.f32.mrb[0].mxu0
      %v5889 = vpop.f32.mrb[0].mxu0
      %v5890 = vadd.f32 0.0, %v5889
      %v5891 = vpop.f32.mrb[0].mxu0
      %5892 = vmatprep.mubr.bf16.mxu0 0
      %5893 = vmatmul.mubr.bf16.gmra.mrb[0].mxu0 %v5561
      %v5894 = vpop.f32.mrb[0].mxu0
      %v5895 = vadd.f32 0.0, %v5894
      %v5896 = vpop.f32.mrb[0].mxu0
      %v5897 = vpop.f32.mrb[0].mxu0
      %v5898 = vadd.f32 0.0, %v5897
      %v5899 = vpop.f32.mrb[0].mxu0
      %5900 = vmatprep.mubr.bf16.mxu0 0
      %5901 = vmatmul.mubr.bf16.gmra.mrb[0].mxu0 %v5563
      %v5902 = vpop.f32.mrb[0].mxu0
      %v5903 = vadd.f32 0.0, %v5902
      %v5904 = vpop.f32.mrb[0].mxu0
      %v5905 = vpop.f32.mrb[0].mxu0
      %v5906 = vadd.f32 0.0, %v5905
      %v5907 = vpop.f32.mrb[0].mxu0
      %5908 = vmatprep.mubr.bf16.mxu0 0
      %5909 = vmatmul.mubr.bf16.gmra.mrb[0].mxu0 %v5565
      %v5910 = vpop.f32.mrb[0].mxu0
      %v5911 = vadd.f32 0.0, %v5910
      %v5912 = vpop.f32.mrb[0].mxu0
      %v5913 = vpop.f32.mrb[0].mxu0
      %v5914 = vadd.f32 0.0, %v5913
      %v5915 = vpop.f32.mrb[0].mxu0
      %5916 = vmatprep.mubr.bf16.mxu0 0
      %5917 = vmatmul.mubr.bf16.gmra.mrb[0].mxu0 %v5567
      %v5918 = vpop.f32.mrb[0].mxu0
      %v5919 = vadd.f32 0.0, %v5918
      %v5920 = vpop.f32.mrb[0].mxu0
      %v5921 = vpop.f32.mrb[0].mxu0
      %v5922 = vadd.f32 0.0, %v5921
      %v5923 = vpop.f32.mrb[0].mxu0
      %5924 = vmatprep.mubr.bf16.mxu0 0
      %5925 = vmatmul.mubr.bf16.gmra.mrb[0].mxu0 %v5569
      %v5926 = vpop.f32.mrb[0].mxu0
      %v5927 = vadd.f32 0.0, %v5926
      %v5928 = vpop.f32.mrb[0].mxu0
      %v5929 = vpop.f32.mrb[0].mxu0
      %v5930 = vadd.f32 0.0, %v5929
      %v5931 = vpop.f32.mrb[0].mxu0
      %5932 = vmatprep.mubr.bf16.mxu0 0
      %5933 = vmatmul.mubr.bf16.gmra.mrb[0].mxu0 %v5571
      %v5934 = vpop.f32.mrb[0].mxu0
      %v5935 = vadd.f32 0.0, %v5934
      %v5936 = vpop.f32.mrb[0].mxu0
      %v5937 = vpop.f32.mrb[0].mxu0
      %v5938 = vadd.f32 0.0, %v5937
      %v5939 = vpop.f32.mrb[0].mxu0
      %5940 = vdwg.mxu0
      %v5941 = vadd.f32 %v5422, %v5687
      %v5942 = vadd.f32 %v5423, %v5690
      %v5943 = vadd.f32 %v5424, %v5695
      %v5944 = vadd.f32 %v5425, %v5698
      %v5945 = vadd.f32 %v5426, %v5703
      %v5946 = vadd.f32 %v5427, %v5706
      %v5947 = vadd.f32 %v5428, %v5711
      %v5948 = vadd.f32 %v5429, %v5714
      %v5949 = vadd.f32 %v5430, %v5719
      %v5950 = vadd.f32 %v5431, %v5722
      %v5951 = vadd.f32 %v5432, %v5727
      %v5952 = vadd.f32 %v5433, %v5730
      %v5953 = vadd.f32 %v5434, %v5735
      %v5954 = vadd.f32 %v5435, %v5738
      %v5955 = vadd.f32 %v5436, %v5743
      %v5956 = vadd.f32 %v5437, %v5746
      %v5957 = vadd.f32 %v5438, %v5751
      %v5958 = vadd.f32 %v5439, %v5754
      %v5959 = vadd.f32 %v5440, %v5759
      %v5960 = vadd.f32 %v5441, %v5762
      %v5961 = vadd.f32 %v5442, %v5767
      %v5962 = vadd.f32 %v5443, %v5770
      %v5963 = vadd.f32 %v5444, %v5775
      %v5964 = vadd.f32 %v5445, %v5778
      %v5965 = vadd.f32 %v5446, %v5783
      %v5966 = vadd.f32 %v5447, %v5786
      %v5967 = vadd.f32 %v5448, %v5791
      %v5968 = vadd.f32 %v5449, %v5794
      %v5969 = vadd.f32 %v5450, %v5799
      %v5970 = vadd.f32 %v5451, %v5802
      %v5971 = vadd.f32 %v5452, %v5807
      %v5972 = vadd.f32 %v5453, %v5810
      %v5973 = vadd.f32 %v5454, %v5815
      %v5974 = vadd.f32 %v5455, %v5818
      %v5975 = vadd.f32 %v5456, %v5823
      %v5976 = vadd.f32 %v5457, %v5826
      %v5977 = vadd.f32 %v5458, %v5831
      %v5978 = vadd.f32 %v5459, %v5834
      %v5979 = vadd.f32 %v5460, %v5839
      %v5980 = vadd.f32 %v5461, %v5842
      %v5981 = vadd.f32 %v5462, %v5847
      %v5982 = vadd.f32 %v5463, %v5850
      %v5983 = vadd.f32 %v5464, %v5855
      %v5984 = vadd.f32 %v5465, %v5858
      %v5985 = vadd.f32 %v5466, %v5863
      %v5986 = vadd.f32 %v5467, %v5866
      %v5987 = vadd.f32 %v5468, %v5871
      %v5988 = vadd.f32 %v5469, %v5874
      %v5989 = vadd.f32 %v5470, %v5879
      %v5990 = vadd.f32 %v5471, %v5882
      %v5991 = vadd.f32 %v5472, %v5887
      %v5992 = vadd.f32 %v5473, %v5890
      %v5993 = vadd.f32 %v5474, %v5895
      %v5994 = vadd.f32 %v5475, %v5898
      %v5995 = vadd.f32 %v5476, %v5903
      %v5996 = vadd.f32 %v5477, %v5906
      %v5997 = vadd.f32 %v5478, %v5911
      %v5998 = vadd.f32 %v5479, %v5914
      %v5999 = vadd.f32 %v5480, %v5919
      %v6000 = vadd.f32 %v5481, %v5922
      %v6001 = vadd.f32 %v5482, %v5927
      %v6002 = vadd.f32 %v5483, %v5930
      %v6003 = vadd.f32 %v5484, %v5935
      %v6004 = vadd.f32 %v5485, %v5938
      %v6005 = vld [vmem:[%s383] sm:$0xf]
      %v6006 = vld [vmem:[%s383 + $0x4] sm:$0xf]
      %v6007 = vld [vmem:[%s383 + $0x8] sm:$0xf]
      %v6008 = vld [vmem:[%s383 + $0xc] sm:$0xf]
      %v6009 = vld [vmem:[%s383 + $0x10] sm:$0xf]
      %v6010 = vld [vmem:[%s383 + $0x14] sm:$0xf]
      %v6011 = vld [vmem:[%s383 + $0x18] sm:$0xf]
      %v6012 = vld [vmem:[%s383 + $0x1c] sm:$0xf]
      %v6013 = vld [vmem:[%s383 + $0x20] sm:$0xf]
      %v6014 = vld [vmem:[%s383 + $0x24] sm:$0xf]
      %v6015 = vld [vmem:[%s383 + $0x28] sm:$0xf]
      %v6016 = vld [vmem:[%s383 + $0x2c] sm:$0xf]
      %v6017 = vld [vmem:[%s383 + $0x30] sm:$0xf]
      %v6018 = vld [vmem:[%s383 + $0x34] sm:$0xf]
      %v6019 = vld [vmem:[%s383 + $0x38] sm:$0xf]
      %v6020 = vld [vmem:[%s383 + $0x3c] sm:$0xf]
      %v6021 = vld [vmem:[%s383 + $0x40] sm:$0xf]
      %v6022 = vld [vmem:[%s383 + $0x44] sm:$0xf]
      %v6023 = vld [vmem:[%s383 + $0x48] sm:$0xf]
      %v6024 = vld [vmem:[%s383 + $0x4c] sm:$0xf]
      %v6025 = vld [vmem:[%s383 + $0x50] sm:$0xf]
      %v6026 = vld [vmem:[%s383 + $0x54] sm:$0xf]
      %v6027 = vld [vmem:[%s383 + $0x58] sm:$0xf]
      %v6028 = vld [vmem:[%s383 + $0x5c] sm:$0xf]
      %v6029 = vld [vmem:[%s383 + $0x60] sm:$0xf]
      %v6030 = vld [vmem:[%s383 + $0x64] sm:$0xf]
      %v6031 = vld [vmem:[%s383 + $0x68] sm:$0xf]
      %v6032 = vld [vmem:[%s383 + $0x6c] sm:$0xf]
      %v6033 = vld [vmem:[%s383 + $0x70] sm:$0xf]
      %v6034 = vld [vmem:[%s383 + $0x74] sm:$0xf]
      %v6035 = vld [vmem:[%s383 + $0x78] sm:$0xf]
      %v6036 = vld [vmem:[%s383 + $0x7c] sm:$0xf]
      %v6037 = vld [vmem:[%s383 + $0x80] sm:$0xf]
      %v6038 = vld [vmem:[%s383 + $0x84] sm:$0xf]
      %v6039 = vld [vmem:[%s383 + $0x88] sm:$0xf]
      %v6040 = vld [vmem:[%s383 + $0x8c] sm:$0xf]
      %v6041 = vld [vmem:[%s383 + $0x90] sm:$0xf]
      %v6042 = vld [vmem:[%s383 + $0x94] sm:$0xf]
      %v6043 = vld [vmem:[%s383 + $0x98] sm:$0xf]
      %v6044 = vld [vmem:[%s383 + $0x9c] sm:$0xf]
      %v6045 = vld [vmem:[%s383 + $0xa0] sm:$0xf]
      %v6046 = vld [vmem:[%s383 + $0xa4] sm:$0xf]
      %v6047 = vld [vmem:[%s383 + $0xa8] sm:$0xf]
      %v6048 = vld [vmem:[%s383 + $0xac] sm:$0xf]
      %v6049 = vld [vmem:[%s383 + $0xb0] sm:$0xf]
      %v6050 = vld [vmem:[%s383 + $0xb4] sm:$0xf]
      %v6051 = vld [vmem:[%s383 + $0xb8] sm:$0xf]
      %v6052 = vld [vmem:[%s383 + $0xbc] sm:$0xf]
      %v6053 = vld [vmem:[%s383 + $0xc0] sm:$0xf]
      %v6054 = vld [vmem:[%s383 + $0xc4] sm:$0xf]
      %v6055 = vld [vmem:[%s383 + $0xc8] sm:$0xf]
      %v6056 = vld [vmem:[%s383 + $0xcc] sm:$0xf]
      %v6057 = vld [vmem:[%s383 + $0xd0] sm:$0xf]
      %v6058 = vld [vmem:[%s383 + $0xd4] sm:$0xf]
      %v6059 = vld [vmem:[%s383 + $0xd8] sm:$0xf]
      %v6060 = vld [vmem:[%s383 + $0xdc] sm:$0xf]
      %v6061 = vld [vmem:[%s383 + $0xe0] sm:$0xf]
      %v6062 = vld [vmem:[%s383 + $0xe4] sm:$0xf]
      %v6063 = vld [vmem:[%s383 + $0xe8] sm:$0xf]
      %v6064 = vld [vmem:[%s383 + $0xec] sm:$0xf]
      %v6065 = vld [vmem:[%s383 + $0xf0] sm:$0xf]
      %v6066 = vld [vmem:[%s383 + $0xf4] sm:$0xf]
      %v6067 = vld [vmem:[%s383 + $0xf8] sm:$0xf]
      %v6068 = vld [vmem:[%s383 + $0xfc] sm:$0xf]
      %v6069 = vld [vmem:[%s388] sm:$0xf]
      %v6070 = vld [vmem:[%s388 + $0x4] sm:$0xf]
      %v6071 = vld [vmem:[%s388 + $0x8] sm:$0xf]
      %v6072 = vld [vmem:[%s388 + $0xc] sm:$0xf]
      %v6073 = vld [vmem:[%s388 + $0x10] sm:$0xf]
      %v6074 = vld [vmem:[%s388 + $0x14] sm:$0xf]
      %v6075 = vld [vmem:[%s388 + $0x18] sm:$0xf]
      %v6076 = vld [vmem:[%s388 + $0x1c] sm:$0xf]
      %v6077 = vld [vmem:[%s388 + $0x20] sm:$0xf]
      %v6078 = vld [vmem:[%s388 + $0x24] sm:$0xf]
      %v6079 = vld [vmem:[%s388 + $0x28] sm:$0xf]
      %v6080 = vld [vmem:[%s388 + $0x2c] sm:$0xf]
      %v6081 = vld [vmem:[%s388 + $0x30] sm:$0xf]
      %v6082 = vld [vmem:[%s388 + $0x34] sm:$0xf]
      %v6083 = vld [vmem:[%s388 + $0x38] sm:$0xf]
      %v6084 = vld [vmem:[%s388 + $0x3c] sm:$0xf]
      %v6149 = vunpack.c.l.b16 %v6005
      %v6150 = vunpack.c.l.b16 %v6006
      %v6151 = vunpack.c.l.b16 %v6007
      %v6152 = vunpack.c.l.b16 %v6008
      %v6153 = vunpack.c.l.b16 %v6009
      %v6154 = vunpack.c.l.b16 %v6010
      %v6155 = vunpack.c.l.b16 %v6011
      %v6156 = vunpack.c.l.b16 %v6012
      %v6157 = vunpack.c.l.b16 %v6013
      %v6158 = vunpack.c.l.b16 %v6014
      %v6159 = vunpack.c.l.b16 %v6015
      %v6160 = vunpack.c.l.b16 %v6016
      %v6161 = vunpack.c.l.b16 %v6017
      %v6162 = vunpack.c.l.b16 %v6018
      %v6163 = vunpack.c.l.b16 %v6019
      %v6164 = vunpack.c.l.b16 %v6020
      %v6165 = vunpack.c.l.b16 %v6021
      %v6166 = vunpack.c.l.b16 %v6022
      %v6167 = vunpack.c.l.b16 %v6023
      %v6168 = vunpack.c.l.b16 %v6024
      %v6169 = vunpack.c.l.b16 %v6025
      %v6170 = vunpack.c.l.b16 %v6026
      %v6171 = vunpack.c.l.b16 %v6027
      %v6172 = vunpack.c.l.b16 %v6028
      %v6173 = vunpack.c.l.b16 %v6029
      %v6174 = vunpack.c.l.b16 %v6030
      %v6175 = vunpack.c.l.b16 %v6031
      %v6176 = vunpack.c.l.b16 %v6032
      %v6177 = vunpack.c.l.b16 %v6033
      %v6178 = vunpack.c.l.b16 %v6034
      %v6179 = vunpack.c.l.b16 %v6035
      %v6180 = vunpack.c.l.b16 %v6036
      %v6181 = vunpack.c.l.b16 %v6037
      %v6182 = vunpack.c.l.b16 %v6038
      %v6183 = vunpack.c.l.b16 %v6039
      %v6184 = vunpack.c.l.b16 %v6040
      %v6185 = vunpack.c.l.b16 %v6041
      %v6186 = vunpack.c.l.b16 %v6042
      %v6187 = vunpack.c.l.b16 %v6043
      %v6188 = vunpack.c.l.b16 %v6044
      %v6189 = vunpack.c.l.b16 %v6045
      %v6190 = vunpack.c.l.b16 %v6046
      %v6191 = vunpack.c.l.b16 %v6047
      %v6192 = vunpack.c.l.b16 %v6048
      %v6193 = vunpack.c.l.b16 %v6049
      %v6194 = vunpack.c.l.b16 %v6050
      %v6195 = vunpack.c.l.b16 %v6051
      %v6196 = vunpack.c.l.b16 %v6052
      %v6197 = vunpack.c.l.b16 %v6053
      %v6198 = vunpack.c.l.b16 %v6054
      %v6199 = vunpack.c.l.b16 %v6055
      %v6200 = vunpack.c.l.b16 %v6056
      %v6201 = vunpack.c.l.b16 %v6057
      %v6202 = vunpack.c.l.b16 %v6058
      %v6203 = vunpack.c.l.b16 %v6059
      %v6204 = vunpack.c.l.b16 %v6060
      %v6205 = vunpack.c.l.b16 %v6061
      %v6206 = vunpack.c.l.b16 %v6062
      %v6207 = vunpack.c.l.b16 %v6063
      %v6208 = vunpack.c.l.b16 %v6064
      %v6209 = vunpack.c.l.b16 %v6065
      %v6210 = vunpack.c.l.b16 %v6066
      %v6211 = vunpack.c.l.b16 %v6067
      %v6212 = vunpack.c.l.b16 %v6068
      %v6213 = vpack.c.b16 %v6150, %v6149
      %v6214 = vpack.c.b16 %v6152, %v6151
      %v6215 = vpack.c.b16 %v6154, %v6153
      %v6216 = vpack.c.b16 %v6156, %v6155
      %v6217 = vpack.c.b16 %v6158, %v6157
      %v6218 = vpack.c.b16 %v6160, %v6159
      %v6219 = vpack.c.b16 %v6162, %v6161
      %v6220 = vpack.c.b16 %v6164, %v6163
      %v6221 = vpack.c.b16 %v6166, %v6165
      %v6222 = vpack.c.b16 %v6168, %v6167
      %v6223 = vpack.c.b16 %v6170, %v6169
      %v6224 = vpack.c.b16 %v6172, %v6171
      %v6225 = vpack.c.b16 %v6174, %v6173
      %v6226 = vpack.c.b16 %v6176, %v6175
      %v6227 = vpack.c.b16 %v6178, %v6177
      %v6228 = vpack.c.b16 %v6180, %v6179
      %v6229 = vpack.c.b16 %v6182, %v6181
      %v6230 = vpack.c.b16 %v6184, %v6183
      %v6231 = vpack.c.b16 %v6186, %v6185
      %v6232 = vpack.c.b16 %v6188, %v6187
      %v6233 = vpack.c.b16 %v6190, %v6189
      %v6234 = vpack.c.b16 %v6192, %v6191
      %v6235 = vpack.c.b16 %v6194, %v6193
      %v6236 = vpack.c.b16 %v6196, %v6195
      %v6237 = vpack.c.b16 %v6198, %v6197
      %v6238 = vpack.c.b16 %v6200, %v6199
      %v6239 = vpack.c.b16 %v6202, %v6201
      %v6240 = vpack.c.b16 %v6204, %v6203
      %v6241 = vpack.c.b16 %v6206, %v6205
      %v6242 = vpack.c.b16 %v6208, %v6207
      %v6243 = vpack.c.b16 %v6210, %v6209
      %v6244 = vpack.c.b16 %v6212, %v6211
      %v6293 = vunpack.c.l.b16 %v6069
      %v6294 = vunpack.c.l.b16 %v6070
      %v6295 = vunpack.c.l.b16 %v6071
      %v6296 = vunpack.c.l.b16 %v6072
      %v6297 = vunpack.c.l.b16 %v6073
      %v6298 = vunpack.c.l.b16 %v6074
      %v6299 = vunpack.c.l.b16 %v6075
      %v6300 = vunpack.c.l.b16 %v6076
      %v6301 = vunpack.c.l.b16 %v6077
      %v6302 = vunpack.c.l.b16 %v6078
      %v6303 = vunpack.c.l.b16 %v6079
      %v6304 = vunpack.c.l.b16 %v6080
      %v6305 = vunpack.c.l.b16 %v6081
      %v6306 = vunpack.c.l.b16 %v6082
      %v6307 = vunpack.c.l.b16 %v6083
      %v6308 = vunpack.c.l.b16 %v6084
      %v6309 = vpack.c.b16 %v6294, %v6293
      %v6310 = vpack.c.b16 %v6296, %v6295
      %v6311 = vpack.c.b16 %v6298, %v6297
      %v6312 = vpack.c.b16 %v6300, %v6299
      %v6313 = vpack.c.b16 %v6302, %v6301
      %v6314 = vpack.c.b16 %v6304, %v6303
      %v6315 = vpack.c.b16 %v6306, %v6305
      %v6316 = vpack.c.b16 %v6308, %v6307
      %6325 = vmatprep.subr.bf16.mxu0 0
      %6326 = vmatpush1.bf16.msra.mxu0 %v6309
      %6327 = vmatprep.subr.bf16.mxu0 0
      %6328 = vmatpush1.bf16.msra.mxu0 %v6310
      %6329 = vmatprep.subr.bf16.mxu0 0
      %6330 = vmatpush1.bf16.msra.mxu0 %v6311
      %6331 = vmatprep.subr.bf16.mxu0 0
      %6332 = vmatpush1.bf16.msra.mxu0 %v6312
      %6333 = vmatprep.subr.bf16.mxu0 0
      %6334 = vmatpush1.bf16.msra.mxu0 %v6313
      %6335 = vmatprep.subr.bf16.mxu0 0
      %6336 = vmatpush1.bf16.msra.mxu0 %v6314
      %6337 = vmatprep.subr.bf16.mxu0 0
      %6338 = vmatpush1.bf16.msra.mxu0 %v6315
      %6339 = vmatprep.subr.bf16.mxu0 0
      %6340 = vmatpush1.bf16.msra.mxu0 %v6316
      %6341 = vmatprep.subr.bf16.mxu0 0
      %6342 = vmatpush1.bf16.msra.mxu0 0
      %6343 = vmatprep.subr.bf16.mxu0 0
      %6344 = vmatpush1.bf16.msra.mxu0 0
      %6345 = vmatprep.subr.bf16.mxu0 0
      %6346 = vmatpush1.bf16.msra.mxu0 0
      %6347 = vmatprep.subr.bf16.mxu0 0
      %6348 = vmatpush1.bf16.msra.mxu0 0
      %6349 = vmatprep.subr.bf16.mxu0 0
      %6350 = vmatpush1.bf16.msra.mxu0 0
      %6351 = vmatprep.subr.bf16.mxu0 0
      %6352 = vmatpush1.bf16.msra.mxu0 0
      %6353 = vmatprep.subr.bf16.mxu0 0
      %6354 = vmatpush1.bf16.msra.mxu0 0
      %6355 = vmatprep.subr.bf16.mxu0 0
      %6356 = vmatpush1.bf16.msra.mxu0 0
      %6357 = vmatprep.mubr.bf16.mxu0 0
      %6358 = vmatmul.mubr.bf16.gmra.mrb[0].mxu0 %v6213
      %v6359 = vpop.f32.mrb[0].mxu0
      %v6360 = vadd.f32 0.0, %v6359
      %v6361 = vpop.f32.mrb[0].mxu0
      %v6362 = vpop.f32.mrb[0].mxu0
      %v6363 = vadd.f32 0.0, %v6362
      %v6364 = vpop.f32.mrb[0].mxu0
      %6365 = vmatprep.mubr.bf16.mxu0 0
      %6366 = vmatmul.mubr.bf16.gmra.mrb[0].mxu0 %v6214
      %v6367 = vpop.f32.mrb[0].mxu0
      %v6368 = vadd.f32 0.0, %v6367
      %v6369 = vpop.f32.mrb[0].mxu0
      %v6370 = vpop.f32.mrb[0].mxu0
      %v6371 = vadd.f32 0.0, %v6370
      %v6372 = vpop.f32.mrb[0].mxu0
      %6373 = vmatprep.mubr.bf16.mxu0 0
      %6374 = vmatmul.mubr.bf16.gmra.mrb[0].mxu0 %v6215
      %v6375 = vpop.f32.mrb[0].mxu0
      %v6376 = vadd.f32 0.0, %v6375
      %v6377 = vpop.f32.mrb[0].mxu0
      %v6378 = vpop.f32.mrb[0].mxu0
      %v6379 = vadd.f32 0.0, %v6378
      %v6380 = vpop.f32.mrb[0].mxu0
      %6381 = vmatprep.mubr.bf16.mxu0 0
      %6382 = vmatmul.mubr.bf16.gmra.mrb[0].mxu0 %v6216
      %v6383 = vpop.f32.mrb[0].mxu0
      %v6384 = vadd.f32 0.0, %v6383
      %v6385 = vpop.f32.mrb[0].mxu0
      %v6386 = vpop.f32.mrb[0].mxu0
      %v6387 = vadd.f32 0.0, %v6386
      %v6388 = vpop.f32.mrb[0].mxu0
      %6389 = vmatprep.mubr.bf16.mxu0 0
      %6390 = vmatmul.mubr.bf16.gmra.mrb[0].mxu0 %v6217
      %v6391 = vpop.f32.mrb[0].mxu0
      %v6392 = vadd.f32 0.0, %v6391
      %v6393 = vpop.f32.mrb[0].mxu0
      %v6394 = vpop.f32.mrb[0].mxu0
      %v6395 = vadd.f32 0.0, %v6394
      %v6396 = vpop.f32.mrb[0].mxu0
      %6397 = vmatprep.mubr.bf16.mxu0 0
      %6398 = vmatmul.mubr.bf16.gmra.mrb[0].mxu0 %v6218
      %v6399 = vpop.f32.mrb[0].mxu0
      %v6400 = vadd.f32 0.0, %v6399
      %v6401 = vpop.f32.mrb[0].mxu0
      %v6402 = vpop.f32.mrb[0].mxu0
      %v6403 = vadd.f32 0.0, %v6402
      %v6404 = vpop.f32.mrb[0].mxu0
      %6405 = vmatprep.mubr.bf16.mxu0 0
      %6406 = vmatmul.mubr.bf16.gmra.mrb[0].mxu0 %v6219
      %v6407 = vpop.f32.mrb[0].mxu0
      %v6408 = vadd.f32 0.0, %v6407
      %v6409 = vpop.f32.mrb[0].mxu0
      %v6410 = vpop.f32.mrb[0].mxu0
      %v6411 = vadd.f32 0.0, %v6410
      %v6412 = vpop.f32.mrb[0].mxu0
      %6413 = vmatprep.mubr.bf16.mxu0 0
      %6414 = vmatmul.mubr.bf16.gmra.mrb[0].mxu0 %v6220
      %v6415 = vpop.f32.mrb[0].mxu0
      %v6416 = vadd.f32 0.0, %v6415
      %v6417 = vpop.f32.mrb[0].mxu0
      %v6418 = vpop.f32.mrb[0].mxu0
      %v6419 = vadd.f32 0.0, %v6418
      %v6420 = vpop.f32.mrb[0].mxu0
      %6421 = vmatprep.mubr.bf16.mxu0 0
      %6422 = vmatmul.mubr.bf16.gmra.mrb[0].mxu0 %v6221
      %v6423 = vpop.f32.mrb[0].mxu0
      %v6424 = vadd.f32 0.0, %v6423
      %v6425 = vpop.f32.mrb[0].mxu0
      %v6426 = vpop.f32.mrb[0].mxu0
      %v6427 = vadd.f32 0.0, %v6426
      %v6428 = vpop.f32.mrb[0].mxu0
      %6429 = vmatprep.mubr.bf16.mxu0 0
      %6430 = vmatmul.mubr.bf16.gmra.mrb[0].mxu0 %v6222
      %v6431 = vpop.f32.mrb[0].mxu0
      %v6432 = vadd.f32 0.0, %v6431
      %v6433 = vpop.f32.mrb[0].mxu0
      %v6434 = vpop.f32.mrb[0].mxu0
      %v6435 = vadd.f32 0.0, %v6434
      %v6436 = vpop.f32.mrb[0].mxu0
      %6437 = vmatprep.mubr.bf16.mxu0 0
      %6438 = vmatmul.mubr.bf16.gmra.mrb[0].mxu0 %v6223
      %v6439 = vpop.f32.mrb[0].mxu0
      %v6440 = vadd.f32 0.0, %v6439
      %v6441 = vpop.f32.mrb[0].mxu0
      %v6442 = vpop.f32.mrb[0].mxu0
      %v6443 = vadd.f32 0.0, %v6442
      %v6444 = vpop.f32.mrb[0].mxu0
      %6445 = vmatprep.mubr.bf16.mxu0 0
      %6446 = vmatmul.mubr.bf16.gmra.mrb[0].mxu0 %v6224
      %v6447 = vpop.f32.mrb[0].mxu0
      %v6448 = vadd.f32 0.0, %v6447
      %v6449 = vpop.f32.mrb[0].mxu0
      %v6450 = vpop.f32.mrb[0].mxu0
      %v6451 = vadd.f32 0.0, %v6450
      %v6452 = vpop.f32.mrb[0].mxu0
      %6453 = vmatprep.mubr.bf16.mxu0 0
      %6454 = vmatmul.mubr.bf16.gmra.mrb[0].mxu0 %v6225
      %v6455 = vpop.f32.mrb[0].mxu0
      %v6456 = vadd.f32 0.0, %v6455
      %v6457 = vpop.f32.mrb[0].mxu0
      %v6458 = vpop.f32.mrb[0].mxu0
      %v6459 = vadd.f32 0.0, %v6458
      %v6460 = vpop.f32.mrb[0].mxu0
      %6461 = vmatprep.mubr.bf16.mxu0 0
      %6462 = vmatmul.mubr.bf16.gmra.mrb[0].mxu0 %v6226
      %v6463 = vpop.f32.mrb[0].mxu0
      %v6464 = vadd.f32 0.0, %v6463
      %v6465 = vpop.f32.mrb[0].mxu0
      %v6466 = vpop.f32.mrb[0].mxu0
      %v6467 = vadd.f32 0.0, %v6466
      %v6468 = vpop.f32.mrb[0].mxu0
      %6469 = vmatprep.mubr.bf16.mxu0 0
      %6470 = vmatmul.mubr.bf16.gmra.mrb[0].mxu0 %v6227
      %v6471 = vpop.f32.mrb[0].mxu0
      %v6472 = vadd.f32 0.0, %v6471
      %v6473 = vpop.f32.mrb[0].mxu0
      %v6474 = vpop.f32.mrb[0].mxu0
      %v6475 = vadd.f32 0.0, %v6474
      %v6476 = vpop.f32.mrb[0].mxu0
      %6477 = vmatprep.mubr.bf16.mxu0 0
      %6478 = vmatmul.mubr.bf16.gmra.mrb[0].mxu0 %v6228
      %v6479 = vpop.f32.mrb[0].mxu0
      %v6480 = vadd.f32 0.0, %v6479
      %v6481 = vpop.f32.mrb[0].mxu0
      %v6482 = vpop.f32.mrb[0].mxu0
      %v6483 = vadd.f32 0.0, %v6482
      %v6484 = vpop.f32.mrb[0].mxu0
      %6485 = vmatprep.mubr.bf16.mxu0 0
      %6486 = vmatmul.mubr.bf16.gmra.mrb[0].mxu0 %v6229
      %v6487 = vpop.f32.mrb[0].mxu0
      %v6488 = vadd.f32 0.0, %v6487
      %v6489 = vpop.f32.mrb[0].mxu0
      %v6490 = vpop.f32.mrb[0].mxu0
      %v6491 = vadd.f32 0.0, %v6490
      %v6492 = vpop.f32.mrb[0].mxu0
      %6493 = vmatprep.mubr.bf16.mxu0 0
      %6494 = vmatmul.mubr.bf16.gmra.mrb[0].mxu0 %v6230
      %v6495 = vpop.f32.mrb[0].mxu0
      %v6496 = vadd.f32 0.0, %v6495
      %v6497 = vpop.f32.mrb[0].mxu0
      %v6498 = vpop.f32.mrb[0].mxu0
      %v6499 = vadd.f32 0.0, %v6498
      %v6500 = vpop.f32.mrb[0].mxu0
      %6501 = vmatprep.mubr.bf16.mxu0 0
      %6502 = vmatmul.mubr.bf16.gmra.mrb[0].mxu0 %v6231
      %v6503 = vpop.f32.mrb[0].mxu0
      %v6504 = vadd.f32 0.0, %v6503
      %v6505 = vpop.f32.mrb[0].mxu0
      %v6506 = vpop.f32.mrb[0].mxu0
      %v6507 = vadd.f32 0.0, %v6506
      %v6508 = vpop.f32.mrb[0].mxu0
      %6509 = vmatprep.mubr.bf16.mxu0 0
      %6510 = vmatmul.mubr.bf16.gmra.mrb[0].mxu0 %v6232
      %v6511 = vpop.f32.mrb[0].mxu0
      %v6512 = vadd.f32 0.0, %v6511
      %v6513 = vpop.f32.mrb[0].mxu0
      %v6514 = vpop.f32.mrb[0].mxu0
      %v6515 = vadd.f32 0.0, %v6514
      %v6516 = vpop.f32.mrb[0].mxu0
      %6517 = vmatprep.mubr.bf16.mxu0 0
      %6518 = vmatmul.mubr.bf16.gmra.mrb[0].mxu0 %v6233
      %v6519 = vpop.f32.mrb[0].mxu0
      %v6520 = vadd.f32 0.0, %v6519
      %v6521 = vpop.f32.mrb[0].mxu0
      %v6522 = vpop.f32.mrb[0].mxu0
      %v6523 = vadd.f32 0.0, %v6522
      %v6524 = vpop.f32.mrb[0].mxu0
      %6525 = vmatprep.mubr.bf16.mxu0 0
      %6526 = vmatmul.mubr.bf16.gmra.mrb[0].mxu0 %v6234
      %v6527 = vpop.f32.mrb[0].mxu0
      %v6528 = vadd.f32 0.0, %v6527
      %v6529 = vpop.f32.mrb[0].mxu0
      %v6530 = vpop.f32.mrb[0].mxu0
      %v6531 = vadd.f32 0.0, %v6530
      %v6532 = vpop.f32.mrb[0].mxu0
      %6533 = vmatprep.mubr.bf16.mxu0 0
      %6534 = vmatmul.mubr.bf16.gmra.mrb[0].mxu0 %v6235
      %v6535 = vpop.f32.mrb[0].mxu0
      %v6536 = vadd.f32 0.0, %v6535
      %v6537 = vpop.f32.mrb[0].mxu0
      %v6538 = vpop.f32.mrb[0].mxu0
      %v6539 = vadd.f32 0.0, %v6538
      %v6540 = vpop.f32.mrb[0].mxu0
      %6541 = vmatprep.mubr.bf16.mxu0 0
      %6542 = vmatmul.mubr.bf16.gmra.mrb[0].mxu0 %v6236
      %v6543 = vpop.f32.mrb[0].mxu0
      %v6544 = vadd.f32 0.0, %v6543
      %v6545 = vpop.f32.mrb[0].mxu0
      %v6546 = vpop.f32.mrb[0].mxu0
      %v6547 = vadd.f32 0.0, %v6546
      %v6548 = vpop.f32.mrb[0].mxu0
      %6549 = vmatprep.mubr.bf16.mxu0 0
      %6550 = vmatmul.mubr.bf16.gmra.mrb[0].mxu0 %v6237
      %v6551 = vpop.f32.mrb[0].mxu0
      %v6552 = vadd.f32 0.0, %v6551
      %v6553 = vpop.f32.mrb[0].mxu0
      %v6554 = vpop.f32.mrb[0].mxu0
      %v6555 = vadd.f32 0.0, %v6554
      %v6556 = vpop.f32.mrb[0].mxu0
      %6557 = vmatprep.mubr.bf16.mxu0 0
      %6558 = vmatmul.mubr.bf16.gmra.mrb[0].mxu0 %v6238
      %v6559 = vpop.f32.mrb[0].mxu0
      %v6560 = vadd.f32 0.0, %v6559
      %v6561 = vpop.f32.mrb[0].mxu0
      %v6562 = vpop.f32.mrb[0].mxu0
      %v6563 = vadd.f32 0.0, %v6562
      %v6564 = vpop.f32.mrb[0].mxu0
      %6565 = vmatprep.mubr.bf16.mxu0 0
      %6566 = vmatmul.mubr.bf16.gmra.mrb[0].mxu0 %v6239
      %v6567 = vpop.f32.mrb[0].mxu0
      %v6568 = vadd.f32 0.0, %v6567
      %v6569 = vpop.f32.mrb[0].mxu0
      %v6570 = vpop.f32.mrb[0].mxu0
      %v6571 = vadd.f32 0.0, %v6570
      %v6572 = vpop.f32.mrb[0].mxu0
      %6573 = vmatprep.mubr.bf16.mxu0 0
      %6574 = vmatmul.mubr.bf16.gmra.mrb[0].mxu0 %v6240
      %v6575 = vpop.f32.mrb[0].mxu0
      %v6576 = vadd.f32 0.0, %v6575
      %v6577 = vpop.f32.mrb[0].mxu0
      %v6578 = vpop.f32.mrb[0].mxu0
      %v6579 = vadd.f32 0.0, %v6578
      %v6580 = vpop.f32.mrb[0].mxu0
      %6581 = vmatprep.mubr.bf16.mxu0 0
      %6582 = vmatmul.mubr.bf16.gmra.mrb[0].mxu0 %v6241
      %v6583 = vpop.f32.mrb[0].mxu0
      %v6584 = vadd.f32 0.0, %v6583
      %v6585 = vpop.f32.mrb[0].mxu0
      %v6586 = vpop.f32.mrb[0].mxu0
      %v6587 = vadd.f32 0.0, %v6586
      %v6588 = vpop.f32.mrb[0].mxu0
      %6589 = vmatprep.mubr.bf16.mxu0 0
      %6590 = vmatmul.mubr.bf16.gmra.mrb[0].mxu0 %v6242
      %v6591 = vpop.f32.mrb[0].mxu0
      %v6592 = vadd.f32 0.0, %v6591
      %v6593 = vpop.f32.mrb[0].mxu0
      %v6594 = vpop.f32.mrb[0].mxu0
      %v6595 = vadd.f32 0.0, %v6594
      %v6596 = vpop.f32.mrb[0].mxu0
      %6597 = vmatprep.mubr.bf16.mxu0 0
      %6598 = vmatmul.mubr.bf16.gmra.mrb[0].mxu0 %v6243
      %v6599 = vpop.f32.mrb[0].mxu0
      %v6600 = vadd.f32 0.0, %v6599
      %v6601 = vpop.f32.mrb[0].mxu0
      %v6602 = vpop.f32.mrb[0].mxu0
      %v6603 = vadd.f32 0.0, %v6602
      %v6604 = vpop.f32.mrb[0].mxu0
      %6605 = vmatprep.mubr.bf16.mxu0 0
      %6606 = vmatmul.mubr.bf16.gmra.mrb[0].mxu0 %v6244
      %v6607 = vpop.f32.mrb[0].mxu0
      %v6608 = vadd.f32 0.0, %v6607
      %v6609 = vpop.f32.mrb[0].mxu0
      %v6610 = vpop.f32.mrb[0].mxu0
      %v6611 = vadd.f32 0.0, %v6610
      %v6612 = vpop.f32.mrb[0].mxu0
      %6613 = vdwg.mxu0
      %v6614 = vadd.f32 %v5941, %v6360
      %v6615 = vadd.f32 %v5942, %v6363
      %v6616 = vadd.f32 %v5943, %v6368
      %v6617 = vadd.f32 %v5944, %v6371
      %v6618 = vadd.f32 %v5945, %v6376
      %v6619 = vadd.f32 %v5946, %v6379
      %v6620 = vadd.f32 %v5947, %v6384
      %v6621 = vadd.f32 %v5948, %v6387
      %v6622 = vadd.f32 %v5949, %v6392
      %v6623 = vadd.f32 %v5950, %v6395
      %v6624 = vadd.f32 %v5951, %v6400
      %v6625 = vadd.f32 %v5952, %v6403
      %v6626 = vadd.f32 %v5953, %v6408
      %v6627 = vadd.f32 %v5954, %v6411
      %v6628 = vadd.f32 %v5955, %v6416
      %v6629 = vadd.f32 %v5956, %v6419
      %v6630 = vadd.f32 %v5957, %v6424
      %v6631 = vadd.f32 %v5958, %v6427
      %v6632 = vadd.f32 %v5959, %v6432
      %v6633 = vadd.f32 %v5960, %v6435
      %v6634 = vadd.f32 %v5961, %v6440
      %v6635 = vadd.f32 %v5962, %v6443
      %v6636 = vadd.f32 %v5963, %v6448
      %v6637 = vadd.f32 %v5964, %v6451
      %v6638 = vadd.f32 %v5965, %v6456
      %v6639 = vadd.f32 %v5966, %v6459
      %v6640 = vadd.f32 %v5967, %v6464
      %v6641 = vadd.f32 %v5968, %v6467
      %v6642 = vadd.f32 %v5969, %v6472
      %v6643 = vadd.f32 %v5970, %v6475
      %v6644 = vadd.f32 %v5971, %v6480
      %v6645 = vadd.f32 %v5972, %v6483
      %v6646 = vadd.f32 %v5973, %v6488
      %v6647 = vadd.f32 %v5974, %v6491
      %v6648 = vadd.f32 %v5975, %v6496
      %v6649 = vadd.f32 %v5976, %v6499
      %v6650 = vadd.f32 %v5977, %v6504
      %v6651 = vadd.f32 %v5978, %v6507
      %v6652 = vadd.f32 %v5979, %v6512
      %v6653 = vadd.f32 %v5980, %v6515
      %v6654 = vadd.f32 %v5981, %v6520
      %v6655 = vadd.f32 %v5982, %v6523
      %v6656 = vadd.f32 %v5983, %v6528
      %v6657 = vadd.f32 %v5984, %v6531
      %v6658 = vadd.f32 %v5985, %v6536
      %v6659 = vadd.f32 %v5986, %v6539
      %v6660 = vadd.f32 %v5987, %v6544
      %v6661 = vadd.f32 %v5988, %v6547
      %v6662 = vadd.f32 %v5989, %v6552
      %v6663 = vadd.f32 %v5990, %v6555
      %v6664 = vadd.f32 %v5991, %v6560
      %v6665 = vadd.f32 %v5992, %v6563
      %v6666 = vadd.f32 %v5993, %v6568
      %v6667 = vadd.f32 %v5994, %v6571
      %v6668 = vadd.f32 %v5995, %v6576
      %v6669 = vadd.f32 %v5996, %v6579
      %v6670 = vadd.f32 %v5997, %v6584
      %v6671 = vadd.f32 %v5998, %v6587
      %v6672 = vadd.f32 %v5999, %v6592
      %v6673 = vadd.f32 %v6000, %v6595
      %v6674 = vadd.f32 %v6001, %v6600
      %v6675 = vadd.f32 %v6002, %v6603
      %v6676 = vadd.f32 %v6003, %v6608
      %v6677 = vadd.f32 %v6004, %v6611
      %v6678 = vld [vmem:[%s391] sm:$0x1]
      %v6680 = vlaneseq
      %v6681 = vshrl.u32 %v6680, 7
      %v6682 = vsub.s32 0, %v6681
      %v6683 = vrot.slane %v6678, %v6682
      %v6685 = vadd.f32 %v6614, %v6683
      %v6686 = vadd.f32 %v6615, %v6683
      %v6687 = vadd.f32 %v6616, %v6683
      %v6688 = vadd.f32 %v6617, %v6683
      %v6689 = vadd.f32 %v6618, %v6683
      %v6690 = vadd.f32 %v6619, %v6683
      %v6691 = vadd.f32 %v6620, %v6683
      %v6692 = vadd.f32 %v6621, %v6683
      %v6693 = vadd.f32 %v6622, %v6683
      %v6694 = vadd.f32 %v6623, %v6683
      %v6695 = vadd.f32 %v6624, %v6683
      %v6696 = vadd.f32 %v6625, %v6683
      %v6697 = vadd.f32 %v6626, %v6683
      %v6698 = vadd.f32 %v6627, %v6683
      %v6699 = vadd.f32 %v6628, %v6683
      %v6700 = vadd.f32 %v6629, %v6683
      %v6701 = vadd.f32 %v6630, %v6683
      %v6702 = vadd.f32 %v6631, %v6683
      %v6703 = vadd.f32 %v6632, %v6683
      %v6704 = vadd.f32 %v6633, %v6683
      %v6705 = vadd.f32 %v6634, %v6683
      %v6706 = vadd.f32 %v6635, %v6683
      %v6707 = vadd.f32 %v6636, %v6683
      %v6708 = vadd.f32 %v6637, %v6683
      %v6709 = vadd.f32 %v6638, %v6683
      %v6710 = vadd.f32 %v6639, %v6683
      %v6711 = vadd.f32 %v6640, %v6683
      %v6712 = vadd.f32 %v6641, %v6683
      %v6713 = vadd.f32 %v6642, %v6683
      %v6714 = vadd.f32 %v6643, %v6683
      %v6715 = vadd.f32 %v6644, %v6683
      %v6716 = vadd.f32 %v6645, %v6683
      %v6717 = vadd.f32 %v6646, %v6683
      %v6718 = vadd.f32 %v6647, %v6683
      %v6719 = vadd.f32 %v6648, %v6683
      %v6720 = vadd.f32 %v6649, %v6683
      %v6721 = vadd.f32 %v6650, %v6683
      %v6722 = vadd.f32 %v6651, %v6683
      %v6723 = vadd.f32 %v6652, %v6683
      %v6724 = vadd.f32 %v6653, %v6683
      %v6725 = vadd.f32 %v6654, %v6683
      %v6726 = vadd.f32 %v6655, %v6683
      %v6727 = vadd.f32 %v6656, %v6683
      %v6728 = vadd.f32 %v6657, %v6683
      %v6729 = vadd.f32 %v6658, %v6683
      %v6730 = vadd.f32 %v6659, %v6683
      %v6731 = vadd.f32 %v6660, %v6683
      %v6732 = vadd.f32 %v6661, %v6683
      %v6733 = vadd.f32 %v6662, %v6683
      %v6734 = vadd.f32 %v6663, %v6683
      %v6735 = vadd.f32 %v6664, %v6683
      %v6736 = vadd.f32 %v6665, %v6683
      %v6737 = vadd.f32 %v6666, %v6683
      %v6738 = vadd.f32 %v6667, %v6683
      %v6739 = vadd.f32 %v6668, %v6683
      %v6740 = vadd.f32 %v6669, %v6683
      %v6741 = vadd.f32 %v6670, %v6683
      %v6742 = vadd.f32 %v6671, %v6683
      %v6743 = vadd.f32 %v6672, %v6683
      %v6744 = vadd.f32 %v6673, %v6683
      %v6745 = vadd.f32 %v6674, %v6683
      %v6746 = vadd.f32 %v6675, %v6683
      %v6747 = vadd.f32 %v6676, %v6683
      %v6748 = vadd.f32 %v6677, %v6683
      %v6749 = vmax.f32 %v6685, 0.0
      %v6750 = vmax.f32 %v6686, 0.0
      %v6751 = vmax.f32 %v6687, 0.0
      %v6752 = vmax.f32 %v6688, 0.0
      %v6753 = vmax.f32 %v6689, 0.0
      %v6754 = vmax.f32 %v6690, 0.0
      %v6755 = vmax.f32 %v6691, 0.0
      %v6756 = vmax.f32 %v6692, 0.0
      %v6757 = vmax.f32 %v6693, 0.0
      %v6758 = vmax.f32 %v6694, 0.0
      %v6759 = vmax.f32 %v6695, 0.0
      %v6760 = vmax.f32 %v6696, 0.0
      %v6761 = vmax.f32 %v6697, 0.0
      %v6762 = vmax.f32 %v6698, 0.0
      %v6763 = vmax.f32 %v6699, 0.0
      %v6764 = vmax.f32 %v6700, 0.0
      %v6765 = vmax.f32 %v6701, 0.0
      %v6766 = vmax.f32 %v6702, 0.0
      %v6767 = vmax.f32 %v6703, 0.0
      %v6768 = vmax.f32 %v6704, 0.0
      %v6769 = vmax.f32 %v6705, 0.0
      %v6770 = vmax.f32 %v6706, 0.0
      %v6771 = vmax.f32 %v6707, 0.0
      %v6772 = vmax.f32 %v6708, 0.0
      %v6773 = vmax.f32 %v6709, 0.0
      %v6774 = vmax.f32 %v6710, 0.0
      %v6775 = vmax.f32 %v6711, 0.0
      %v6776 = vmax.f32 %v6712, 0.0
      %v6777 = vmax.f32 %v6713, 0.0
      %v6778 = vmax.f32 %v6714, 0.0
      %v6779 = vmax.f32 %v6715, 0.0
      %v6780 = vmax.f32 %v6716, 0.0
      %v6781 = vmax.f32 %v6717, 0.0
      %v6782 = vmax.f32 %v6718, 0.0
      %v6783 = vmax.f32 %v6719, 0.0
      %v6784 = vmax.f32 %v6720, 0.0
      %v6785 = vmax.f32 %v6721, 0.0
      %v6786 = vmax.f32 %v6722, 0.0
      %v6787 = vmax.f32 %v6723, 0.0
      %v6788 = vmax.f32 %v6724, 0.0
      %v6789 = vmax.f32 %v6725, 0.0
      %v6790 = vmax.f32 %v6726, 0.0
      %v6791 = vmax.f32 %v6727, 0.0
      %v6792 = vmax.f32 %v6728, 0.0
      %v6793 = vmax.f32 %v6729, 0.0
      %v6794 = vmax.f32 %v6730, 0.0
      %v6795 = vmax.f32 %v6731, 0.0
      %v6796 = vmax.f32 %v6732, 0.0
      %v6797 = vmax.f32 %v6733, 0.0
      %v6798 = vmax.f32 %v6734, 0.0
      %v6799 = vmax.f32 %v6735, 0.0
      %v6800 = vmax.f32 %v6736, 0.0
      %v6801 = vmax.f32 %v6737, 0.0
      %v6802 = vmax.f32 %v6738, 0.0
      %v6803 = vmax.f32 %v6739, 0.0
      %v6804 = vmax.f32 %v6740, 0.0
      %v6805 = vmax.f32 %v6741, 0.0
      %v6806 = vmax.f32 %v6742, 0.0
      %v6807 = vmax.f32 %v6743, 0.0
      %v6808 = vmax.f32 %v6744, 0.0
      %v6809 = vmax.f32 %v6745, 0.0
      %v6810 = vmax.f32 %v6746, 0.0
      %v6811 = vmax.f32 %v6747, 0.0
      %v6812 = vmax.f32 %v6748, 0.0
      %6813 = vst [vmem:[%s399] sm:$0xff] %v6749
      %6814 = vst [vmem:[%s399 + $0x8] sm:$0xff] %v6750
      %6815 = vst [vmem:[%s399 + $0x10] sm:$0xff] %v6751
      %6816 = vst [vmem:[%s399 + $0x18] sm:$0xff] %v6752
      %6817 = vst [vmem:[%s399 + $0x20] sm:$0xff] %v6753
      %6818 = vst [vmem:[%s399 + $0x28] sm:$0xff] %v6754
      %6819 = vst [vmem:[%s399 + $0x30] sm:$0xff] %v6755
      %6820 = vst [vmem:[%s399 + $0x38] sm:$0xff] %v6756
      %6821 = vst [vmem:[%s399 + $0x40] sm:$0xff] %v6757
      %6822 = vst [vmem:[%s399 + $0x48] sm:$0xff] %v6758
      %6823 = vst [vmem:[%s399 + $0x50] sm:$0xff] %v6759
      %6824 = vst [vmem:[%s399 + $0x58] sm:$0xff] %v6760
      %6825 = vst [vmem:[%s399 + $0x60] sm:$0xff] %v6761
      %6826 = vst [vmem:[%s399 + $0x68] sm:$0xff] %v6762
      %6827 = vst [vmem:[%s399 + $0x70] sm:$0xff] %v6763
      %6828 = vst [vmem:[%s399 + $0x78] sm:$0xff] %v6764
      %6829 = vst [vmem:[%s399 + $0x80] sm:$0xff] %v6765
      %6830 = vst [vmem:[%s399 + $0x88] sm:$0xff] %v6766
      %6831 = vst [vmem:[%s399 + $0x90] sm:$0xff] %v6767
      %6832 = vst [vmem:[%s399 + $0x98] sm:$0xff] %v6768
      %6833 = vst [vmem:[%s399 + $0xa0] sm:$0xff] %v6769
      %6834 = vst [vmem:[%s399 + $0xa8] sm:$0xff] %v6770
      %6835 = vst [vmem:[%s399 + $0xb0] sm:$0xff] %v6771
      %6836 = vst [vmem:[%s399 + $0xb8] sm:$0xff] %v6772
      %6837 = vst [vmem:[%s399 + $0xc0] sm:$0xff] %v6773
      %6838 = vst [vmem:[%s399 + $0xc8] sm:$0xff] %v6774
      %6839 = vst [vmem:[%s399 + $0xd0] sm:$0xff] %v6775
      %6840 = vst [vmem:[%s399 + $0xd8] sm:$0xff] %v6776
      %6841 = vst [vmem:[%s399 + $0xe0] sm:$0xff] %v6777
      %6842 = vst [vmem:[%s399 + $0xe8] sm:$0xff] %v6778
      %6843 = vst [vmem:[%s399 + $0xf0] sm:$0xff] %v6779
      %6844 = vst [vmem:[%s399 + $0xf8] sm:$0xff] %v6780
      %6845 = vst [vmem:[%s399 + $0x100] sm:$0xff] %v6781
      %6846 = vst [vmem:[%s399 + $0x108] sm:$0xff] %v6782
      %6847 = vst [vmem:[%s399 + $0x110] sm:$0xff] %v6783
      %6848 = vst [vmem:[%s399 + $0x118] sm:$0xff] %v6784
      %6849 = vst [vmem:[%s399 + $0x120] sm:$0xff] %v6785
      %6850 = vst [vmem:[%s399 + $0x128] sm:$0xff] %v6786
      %6851 = vst [vmem:[%s399 + $0x130] sm:$0xff] %v6787
      %6852 = vst [vmem:[%s399 + $0x138] sm:$0xff] %v6788
      %6853 = vst [vmem:[%s399 + $0x140] sm:$0xff] %v6789
      %6854 = vst [vmem:[%s399 + $0x148] sm:$0xff] %v6790
      %6855 = vst [vmem:[%s399 + $0x150] sm:$0xff] %v6791
      %6856 = vst [vmem:[%s399 + $0x158] sm:$0xff] %v6792
      %6857 = vst [vmem:[%s399 + $0x160] sm:$0xff] %v6793
      %6858 = vst [vmem:[%s399 + $0x168] sm:$0xff] %v6794
      %6859 = vst [vmem:[%s399 + $0x170] sm:$0xff] %v6795
      %6860 = vst [vmem:[%s399 + $0x178] sm:$0xff] %v6796
      %6861 = vst [vmem:[%s399 + $0x180] sm:$0xff] %v6797
      %6862 = vst [vmem:[%s399 + $0x188] sm:$0xff] %v6798
      %6863 = vst [vmem:[%s399 + $0x190] sm:$0xff] %v6799
      %6864 = vst [vmem:[%s399 + $0x198] sm:$0xff] %v6800
      %6865 = vst [vmem:[%s399 + $0x1a0] sm:$0xff] %v6801
      %6866 = vst [vmem:[%s399 + $0x1a8] sm:$0xff] %v6802
      %6867 = vst [vmem:[%s399 + $0x1b0] sm:$0xff] %v6803
      %6868 = vst [vmem:[%s399 + $0x1b8] sm:$0xff] %v6804
      %6869 = vst [vmem:[%s399 + $0x1c0] sm:$0xff] %v6805
      %6870 = vst [vmem:[%s399 + $0x1c8] sm:$0xff] %v6806
      %6871 = vst [vmem:[%s399 + $0x1d0] sm:$0xff] %v6807
      %6872 = vst [vmem:[%s399 + $0x1d8] sm:$0xff] %v6808
      %6873 = vst [vmem:[%s399 + $0x1e0] sm:$0xff] %v6809
      %6874 = vst [vmem:[%s399 + $0x1e8] sm:$0xff] %v6810
      %6875 = vst [vmem:[%s399 + $0x1f0] sm:$0xff] %v6811
      %6876 = vst [vmem:[%s399 + $0x1f8] sm:$0xff] %v6812
      %s6877 = smul.u32 64, %s22
      %p6878 = scmp.lt.s32.totalorder %s6877, 127
      %s6879 = scalar_select %p6878, %s6877, 127
      %p6880 = scmp.lt.s32.totalorder %s21, 0
      %s6881 = scalar_select %p6880, %s21, 0
      %s6882 = sadd.s32 %s6881, %s6879
      %s6883 = smul.addr %s6882, 8
      %s6884 = scalar_lea.vmem %s6, %s6883
      // Predicated region
      $region45: #{residual_block_forward.3} parent=43 // pred_check
        %p6885 = pneg %p209
      $region46: #{residual_block_forward.3} parent=43 // pred_check_branch
        %6887 = sbr.rel (%p6885) target = $region48
      $region47: #{residual_block_forward.3} parent=43 // pred_region
        %s6888 = smul.u32 64, %s22
      $region48: #{residual_block_forward.3} parent=43 // pred_fallthru
        _
    $region44: #{residual_block_forward.3} parent=5 // pred_fallthru
      _
    %p6889 = scmp.le.s32.totalorder 2, %s12
    // Predicated region
    $region49: #{residual_block_forward.3} parent=5 // pred_check
      %p6890 = pneg %p6889
    $region50: #{residual_block_forward.3} parent=5 // pred_check_branch
      %6892 = sbr.rel (%p6890) target = $region52
    $region51: #{residual_block_forward.3} parent=5 // pred_region
      %s6893 = ssub.s32 %s12, 2
      // Predicated region
      $region53: #{residual_block_forward.3} parent=51 // pred_check
        %p6894 = pneg %p215
      $region54: #{residual_block_forward.3} parent=51 // pred_check_branch
        %6896 = sbr.rel (%p6894) target = $region56
      $region55: #{residual_block_forward.3} parent=51 // pred_region
        %s6897 = smul.u32 64, %s24
        %p6898 = scmp.lt.s32.totalorder %s6897, 127
        %s6899 = scalar_select %p6898, %s6897, 127
        %p6900 = scmp.lt.s32.totalorder %s23, 0
        %s6901 = scalar_select %p6900, %s23, 0
        %s6902 = sadd.s32 %s6901, %s6899
        %s6903 = smul.addr %s6902, 8
        %s6904 = scalar_lea.vmem %s6, %s6903
      $region56: #{residual_block_forward.3} parent=51 // pred_fallthru
        _
    $region52: #{residual_block_forward.3} parent=5 // pred_fallthru
      _
  $region6: #{residual_block_forward.3} parent=0 // loop_footer
    %s16 = sadd.s32 1, %s12
  $region7: #{residual_block_forward.3} parent=0 // loop_footer_branch
    %11 = sbr.rel target = $region3
  $region8: #{residual_block_forward.3} parent=0 // loop_exit
    _

</llo_original>
